<compile_context>
chip_gen: v7x
topology: tpu7x:2x2x1
jax: 0.10.0
libtpu: 0.0.40
codegen_flags: <defaults>
</compile_context>

<pallas_src>
from functools import partial

import numpy as np
import jax
import jax.numpy as jnp
from jax.experimental import pallas as pl
from jax.experimental.pallas import tpu as pltpu


# MXU operand dtype (f32 accumulation everywhere).  jnp.float32 -> full f32
# parity with the reference (~2e-3); jnp.bfloat16 -> ~3x MXU throughput.
_MXU_DTYPE = jnp.bfloat16


def _gelu_exact(x):
    # PyTorch F.gelu default = exact (erf-based) GELU.
    return 0.5 * x * (1.0 + jax.lax.erf(x * 0.7071067811865476))


def _pick_batch_tile(B, max_tile=8):
    """Largest batch tile <= max_tile that divides B; prefer grid length >= 2
    so both v7x TensorCores get work (single TC on v5e/v6e: no effect)."""
    divisors = [t for t in range(1, min(B, max_tile) + 1) if B % t == 0]
    multi = [t for t in divisors if B // t >= 2]
    return max(multi) if multi else max(divisors)


# ----------------------------------------------------------------------------
# Fused FNO2D kernel: one grid step == B_TILE batch elements, all in VMEM.
# Activation layout: (B_TILE * width, H*W)  (samples/channels on sublanes,
# flattened spatial on lanes).
# ----------------------------------------------------------------------------
def _fno_kernel(x_ref, w0t_ref, b0_ref, fw_ref, e_ref, g_ref,
                w1t_ref, b1_ref, w2t_ref, b2_ref, o_ref):
    bt, cin, hw = x_ref.shape          # (B_TILE, Cin, H*W)
    width = w0t_ref.shape[0]
    n_layers, _, two_mm = fw_ref.shape
    cout = w2t_ref.shape[0]

    def mxu(a, b):
        # bf16 (or f32) operands, f32 accumulation on the MXU.
        return jnp.dot(a.astype(_MXU_DTYPE), b.astype(_MXU_DTYPE),
                       preferred_element_type=jnp.float32)

    x = x_ref[...]                     # (bt, Cin, H*W) f32
    w0t = w0t_ref[...]                 # (width, Cin)   f32
    b0 = b0_ref[...]                   # (width, 1)     f32

    # --- fc0: pointwise linear, samples stacked along sublanes --------------
    hs = []
    for b in range(bt):                # bt is small & static -> unrolled
        xb = x[b]                      # (Cin, H*W)
        if cin <= 8:
            # Tiny contraction -> VPU broadcast-FMAs instead of an almost
            # entirely padded MXU pass.
            hb = w0t[:, 0:1] * xb[0:1, :]
            for c in range(1, cin):
                hb = hb + w0t[:, c:c + 1] * xb[c:c + 1, :]
        else:
            hb = mxu(w0t, xb)
        hs.append(hb + b0)             # bias broadcasts (width,1)->(width,hw)
    h = jnp.concatenate(hs, axis=0) if bt > 1 else hs[0]   # (bt*width, hw) f32

    # --- Fourier layers (fused; activation never leaves VMEM) ---------------
    e = e_ref[...]                     # (H*W, 2*m1*m2)  bf16: [Re | Im] fwd DFT
    g = g_ref[...]                     # (2*m1*m2, H*W)  bf16: [Re ; -Im] inv DFT
    for l in range(n_layers):          # small static L -> unrolled
        xri = mxu(h, e)                # (bt*width, 2mm): truncated fft2, f32
        # Broadcast the real spectral weights over the batch sub-axis
        # (sublane-split reshape is layout preserving: width % 8 == 0).
        y = (xri.reshape(bt, width, two_mm) * fw_ref[l][None, :, :]
             ).reshape(bt * width, two_mm)
        h = _gelu_exact(mxu(y, g))     # (bt*width, hw): real(ifft2) + GELU, f32

    # --- fc1 (+GELU) and fc2 on the resident tile, per sample ---------------
    w1t = w1t_ref[...]                 # (hid, width) f32 (cast to bf16 in mxu)
    b1 = b1_ref[...]                   # (hid, 1)
    w2t = w2t_ref[...]                 # (Cout, hid)  f32 (kept f32 for accuracy)
    b2 = b2_ref[...]                   # (Cout, 1)
    for b in range(bt):
        hb = h[b * width:(b + 1) * width, :]                 # (width, hw)
        h1 = _gelu_exact(mxu(w1t, hb) + b1)                  # (hid, hw)
        ob = jnp.dot(w2t, h1, preferred_element_type=jnp.float32) + b2
        o_ref[b] = ob.astype(o_ref.dtype)                    # (Cout, hw)


def make_dft_mats(H, W, m1, m2):
    """Packed truncated 2-D DFT matrices (exact, real/imag decomposition).

    TODO(synk): for large H*W, use the separable per-axis DFT factors
    (H x m1) and (W x m2) as two smaller matmuls per direction instead of the
    dense Kronecker matrices below (memory/FLOPs O(HW*(m1+m2)) vs O(HW*m1*m2)).
    """
    h = np.arange(H)
    w = np.arange(W)
    k1 = np.arange(m1)
    k2 = np.arange(m2)
    # Forward: E[(h,w), (k1,k2)] = exp(-2i*pi*(k1*h/H + k2*w/W))
    ph = np.exp(-2j * np.pi * np.outer(h, k1) / H)      # (H, m1)
    pw = np.exp(-2j * np.pi * np.outer(w, k2) / W)      # (W, m2)
    E = (ph[:, None, :, None] * pw[None, :, None, :]).reshape(H * W, m1 * m2)
    # Inverse (zero-padded spectrum, real part only), includes 1/(H*W):
    gh = np.exp(2j * np.pi * np.outer(k1, h) / H) / H   # (m1, H)
    gw = np.exp(2j * np.pi * np.outer(k2, w) / W) / W   # (m2, W)
    G = (gh[:, None, :, None] * gw[None, :, None, :]).reshape(m1 * m2, H * W)
    e_packed = np.concatenate([E.real, E.imag], axis=1)    # (H*W, 2*m1*m2)
    g_packed = np.concatenate([G.real, -G.imag], axis=0)   # (2*m1*m2, H*W)
    return (jnp.asarray(e_packed, jnp.float32),
            jnp.asarray(g_packed, jnp.float32))


# ----------------------------------------------------------------------------
# One-time parameter packing (hoisted out of the per-call path).
# ----------------------------------------------------------------------------
def pack_fno_params(params, m1, m2, H, W):
    (fc0_w, fc0_b), (fc1_w, fc1_b), (fc2_w, fc2_b), fweights = params
    width = fc0_w.shape[1]
    hid = fc1_w.shape[1]
    cout = fc2_w.shape[1]
    mm = m1 * m2

    e_packed, g_packed = make_dft_mats(H, W, m1, m2)

    # Spectral weights as (L, width, m1*m2), duplicated along lanes so they
    # multiply the packed [Re | Im] spectrum directly.
    fw = jnp.stack([jnp.asarray(w, jnp.float32).reshape(width, mm)
                    for w in fweights], axis=0)
    fw2 = jnp.concatenate([fw, fw], axis=-1)                # (L, width, 2*mm)

    return dict(
        w0t=jnp.asarray(fc0_w, jnp.float32).T,              # (width, Cin)
        b0=jnp.asarray(fc0_b, jnp.float32).reshape(width, 1),
        fw=fw2,                                             # (L, width, 2mm) f32
        e=e_packed.astype(_MXU_DTYPE),                      # (H*W, 2mm)
        g=g_packed.astype(_MXU_DTYPE),                      # (2mm, H*W)
        w1t=jnp.asarray(fc1_w, jnp.float32).T,              # (hid, width)
        b1=jnp.asarray(fc1_b, jnp.float32).reshape(hid, 1),
        w2t=jnp.asarray(fc2_w, jnp.float32).T,              # (Cout, hid)
        b2=jnp.asarray(fc2_b, jnp.float32).reshape(cout, 1),
    )


# ----------------------------------------------------------------------------
# Full FNO2D forward: single pallas_call, grid over batch tiles.
# ----------------------------------------------------------------------------
@partial(jax.jit, static_argnames=("single_buffer_consts",))
def fno2d_forward_packed(x, packed, single_buffer_consts=True):
    B, Cin, H, W = x.shape
    HW = H * W
    width = packed["w0t"].shape[0]
    hid = packed["w1t"].shape[0]
    Cout = packed["w2t"].shape[0]
    L, _, two_mm = packed["fw"].shape

    b_tile = _pick_batch_tile(B)
    grid = (B // b_tile,)

    # NCHW -> (B, C, H*W) is a free, contiguous reshape (no transpose).
    x_flat = x.reshape(B, Cin, HW)

    def const_spec(shape):
        # Weight/DFT blocks: same block index on every grid step.  Single-
        # buffer them to avoid the default 2x VMEM allocation + DMA bookkeeping.
        idx = lambda b: (0,) * len(shape)
        if single_buffer_consts:
            return pl.BlockSpec(shape, idx, pipeline_mode=pl.Buffered(1))
        return pl.BlockSpec(shape, idx)

    out = pl.pallas_call(
        _fno_kernel,
        out_shape=jax.ShapeDtypeStruct((B, Cout, HW), jnp.float32),
        grid_spec=pltpu.PrefetchScalarGridSpec(
            num_scalar_prefetch=0,
            grid=grid,
            in_specs=[
                pl.BlockSpec((b_tile, Cin, HW), lambda b: (b, 0, 0)),   # x
                const_spec((width, Cin)),                               # fc0 W^T
                const_spec((width, 1)),                                 # fc0 b
                const_spec((L, width, two_mm)),                         # spectral W
                const_spec((HW, two_mm)),                               # E packed
                const_spec((two_mm, HW)),                               # G packed
                const_spec((hid, width)),                               # fc1 W^T
                const_spec((hid, 1)),                                   # fc1 b
                const_spec((Cout, hid)),                                # fc2 W^T
                const_spec((Cout, 1)),                                  # fc2 b
            ],
            out_specs=pl.BlockSpec((b_tile, Cout, HW), lambda b: (b, 0, 0)),
        ),
        compiler_params=pltpu.CompilerParams(
            dimension_semantics=("parallel",)),
    )(x_flat, packed["w0t"], packed["b0"], packed["fw"], packed["e"],
      packed["g"], packed["w1t"], packed["b1"], packed["w2t"], packed["b2"])

    return out.reshape(B, Cout, H, W)


def fno2d_forward(x, packed):
    """Forward with graceful fallback if this JAX build rejects pl.Buffered(1)
    (fallback is identical math, just default double-buffered constants)."""
    try:
        return fno2d_forward_packed(x, packed, single_buffer_consts=True)
    except Exception:
        return fno2d_forward_packed(x, packed, single_buffer_consts=False)


# ----------------------------------------------------------------------------
# Pure-JAX reference (mirrors the PyTorch module exactly) for validation.
# ----------------------------------------------------------------------------
def fno2d_reference(x, params, m1, m2):
    (fc0_w, fc0_b), (fc1_w, fc1_b), (fc2_w, fc2_b), fweights = params
    xl = jnp.transpose(x, (0, 2, 3, 1))
    h = xl @ fc0_w + fc0_b
    h = jnp.transpose(h, (0, 3, 1, 2))
    for w in fweights:
        ft = jnp.fft.fftn(h, axes=(-2, -1))
        out_ft = jnp.zeros_like(ft)
        out_ft = out_ft.at[:, :, :m1, :m2].set(ft[:, :, :m1, :m2] * w[None])
        h = jnp.fft.ifftn(out_ft, axes=(-2, -1)).real
        h = jax.nn.gelu(h, approximate=False)
    hl = jnp.transpose(h, (0, 2, 3, 1))
    hl = jax.nn.gelu(hl @ fc1_w + fc1_b, approximate=False)
    out = hl @ fc2_w + fc2_b
    return jnp.transpose(out, (0, 3, 1, 2))


def init_params(key, in_channels, out_channels, m1, m2, width, n_layers):
    keys = jax.random.split(key, 3 + n_layers)

    def linear(k, fan_in, fan_out):
        kw, kb = jax.random.split(k)
        bound = 1.0 / np.sqrt(fan_in)
        w = jax.random.uniform(kw, (fan_in, fan_out), jnp.float32, -bound, bound)
        b = jax.random.uniform(kb, (fan_out,), jnp.float32, -bound, bound)
        return w, b

    fc0 = linear(keys[0], in_channels, width)
    fc1 = linear(keys[1], width, 128)
    fc2 = linear(keys[2], 128, out_channels)
    # torch.randn(1, out_channels, modes1, modes2) -> stored as (width, m1, m2),
    # broadcast over batch (weights are REAL; only the [:m1, :m2] spectrum
    # corner is kept, exactly as in the reference module).
    fweights = [jax.random.normal(keys[3 + i], (width, m1, m2), jnp.float32)
                for i in range(n_layers)]
    return fc0, fc1, fc2, fweights


if __name__ == "__main__":
    B, Cin, Cout = 8, 3, 1
    H = W = 16
    m1 = m2 = 8
    width = 32
    n_layers = 2

    key = jax.random.PRNGKey(0)
    kx, kp = jax.random.split(key)
    x = jax.random.normal(kx, (B, Cin, H, W), jnp.float32)
    params = init_params(kp, Cin, Cout, m1, m2, width, n_layers)

    # Packing hoisted out of the per-call path (one-time per parameter set).
    packed = pack_fno_params(params, m1, m2, H, W)

    out = jax.block_until_ready(fno2d_forward(x, packed))
    assert out.shape == (B, Cout, H, W)

    ref = jax.block_until_ready(fno2d_reference(x, params, m1, m2))
    # Tolerance sized for bf16 MXU operands (f32 accumulation).  Setting
    # _MXU_DTYPE = jnp.float32 tightens agreement to ~2e-3.
    np.testing.assert_allclose(np.asarray(out), np.asarray(ref),
                               rtol=2e-2, atol=2e-2)
    print("KERNEL_OK")
</pallas_src>

<mosaic_0001>
module attributes {stable_mosaic.version = 11 : i64} {
  func.func @_fno_kernel(%arg0: i32, %arg1: memref<4x3x256xf32, #tpu.memory_space<vmem>>, %arg2: memref<32x3xf32, #tpu.memory_space<vmem>>, %arg3: memref<32x1xf32, #tpu.memory_space<vmem>>, %arg4: memref<2x32x128xf32, #tpu.memory_space<vmem>>, %arg5: memref<256x128xbf16, #tpu.memory_space<vmem>>, %arg6: memref<128x256xbf16, #tpu.memory_space<vmem>>, %arg7: memref<128x32xf32, #tpu.memory_space<vmem>>, %arg8: memref<128x1xf32, #tpu.memory_space<vmem>>, %arg9: memref<1x128xf32, #tpu.memory_space<vmem>>, %arg10: memref<1x1xf32, #tpu.memory_space<vmem>>, %arg11: memref<4x1x256xf32, #tpu.memory_space<vmem>>) attributes {dimension_semantics = [#tpu.dimension_semantics<parallel>], iteration_bounds = array<i64: 2>, scalar_prefetch = 0 : i64, scratch_operands = 0 : i64, tpu.core_type = #tpu.core_type<tc>, window_params = [{transform_indices = @transform_0, window_bounds = array<i64: 4, 3, 256>}, {pipeline_mode = #tpu.pipeline_mode<synchronous>, transform_indices = @transform_1, window_bounds = array<i64: 32, 3>}, {pipeline_mode = #tpu.pipeline_mode<synchronous>, transform_indices = @transform_2, window_bounds = array<i64: 32, 1>}, {pipeline_mode = #tpu.pipeline_mode<synchronous>, transform_indices = @transform_3, window_bounds = array<i64: 2, 32, 128>}, {pipeline_mode = #tpu.pipeline_mode<synchronous>, transform_indices = @transform_4, window_bounds = array<i64: 256, 128>}, {pipeline_mode = #tpu.pipeline_mode<synchronous>, transform_indices = @transform_5, window_bounds = array<i64: 128, 256>}, {pipeline_mode = #tpu.pipeline_mode<synchronous>, transform_indices = @transform_6, window_bounds = array<i64: 128, 32>}, {pipeline_mode = #tpu.pipeline_mode<synchronous>, transform_indices = @transform_7, window_bounds = array<i64: 128, 1>}, {pipeline_mode = #tpu.pipeline_mode<synchronous>, transform_indices = @transform_8, window_bounds = array<i64: 1, 128>}, {pipeline_mode = #tpu.pipeline_mode<synchronous>, transform_indices = @transform_9, window_bounds = array<i64: 1, 1>}, {transform_indices = @transform_10, window_bounds = array<i64: 4, 1, 256>}]} {
    %c0 = arith.constant 0 : index
    %c0_0 = arith.constant 0 : index
    %c0_1 = arith.constant 0 : index
    %0 = vector.load %arg1[%c0, %c0_0, %c0_1] : memref<4x3x256xf32, #tpu.memory_space<vmem>>, vector<4x3x256xf32>
    %c0_2 = arith.constant 0 : index
    %c0_3 = arith.constant 0 : index
    %1 = vector.load %arg2[%c0_2, %c0_3] : memref<32x3xf32, #tpu.memory_space<vmem>>, vector<32x3xf32>
    %c0_4 = arith.constant 0 : index
    %c0_5 = arith.constant 0 : index
    %2 = vector.load %arg3[%c0_4, %c0_5] : memref<32x1xf32, #tpu.memory_space<vmem>>, vector<32x1xf32>
    %3 = vector.extract_strided_slice %0 {offsets = [0, 0, 0], sizes = [1, 3, 256], strides = [1, 1, 1]} : vector<4x3x256xf32> to vector<1x3x256xf32>
    %4 = vector.shape_cast %3 : vector<1x3x256xf32> to vector<3x256xf32>
    %5 = vector.extract_strided_slice %1 {offsets = [0, 0], sizes = [32, 1], strides = [1, 1]} : vector<32x3xf32> to vector<32x1xf32>
    %6 = vector.extract_strided_slice %4 {offsets = [0, 0], sizes = [1, 256], strides = [1, 1]} : vector<3x256xf32> to vector<1x256xf32>
    %7 = vector.broadcast %5 : vector<32x1xf32> to vector<32x256xf32>
    %8 = vector.broadcast %6 : vector<1x256xf32> to vector<32x256xf32>
    %9 = arith.mulf %7, %8 : vector<32x256xf32>
    %10 = vector.extract_strided_slice %1 {offsets = [0, 1], sizes = [32, 1], strides = [1, 1]} : vector<32x3xf32> to vector<32x1xf32>
    %11 = vector.extract_strided_slice %4 {offsets = [1, 0], sizes = [1, 256], strides = [1, 1]} : vector<3x256xf32> to vector<1x256xf32>
    %12 = vector.broadcast %10 : vector<32x1xf32> to vector<32x256xf32>
    %13 = vector.broadcast %11 : vector<1x256xf32> to vector<32x256xf32>
    %14 = arith.mulf %12, %13 : vector<32x256xf32>
    %15 = arith.addf %9, %14 : vector<32x256xf32>
    %16 = vector.extract_strided_slice %1 {offsets = [0, 2], sizes = [32, 1], strides = [1, 1]} : vector<32x3xf32> to vector<32x1xf32>
    %17 = vector.extract_strided_slice %4 {offsets = [2, 0], sizes = [1, 256], strides = [1, 1]} : vector<3x256xf32> to vector<1x256xf32>
    %18 = vector.broadcast %16 : vector<32x1xf32> to vector<32x256xf32>
    %19 = vector.broadcast %17 : vector<1x256xf32> to vector<32x256xf32>
    %20 = arith.mulf %18, %19 : vector<32x256xf32>
    %21 = arith.addf %15, %20 : vector<32x256xf32>
    %22 = vector.broadcast %2 : vector<32x1xf32> to vector<32x256xf32>
    %23 = arith.addf %21, %22 : vector<32x256xf32>
    %24 = vector.extract_strided_slice %0 {offsets = [1, 0, 0], sizes = [1, 3, 256], strides = [1, 1, 1]} : vector<4x3x256xf32> to vector<1x3x256xf32>
    %25 = vector.shape_cast %24 : vector<1x3x256xf32> to vector<3x256xf32>
    %26 = vector.extract_strided_slice %1 {offsets = [0, 0], sizes = [32, 1], strides = [1, 1]} : vector<32x3xf32> to vector<32x1xf32>
    %27 = vector.extract_strided_slice %25 {offsets = [0, 0], sizes = [1, 256], strides = [1, 1]} : vector<3x256xf32> to vector<1x256xf32>
    %28 = vector.broadcast %26 : vector<32x1xf32> to vector<32x256xf32>
    %29 = vector.broadcast %27 : vector<1x256xf32> to vector<32x256xf32>
    %30 = arith.mulf %28, %29 : vector<32x256xf32>
    %31 = vector.extract_strided_slice %1 {offsets = [0, 1], sizes = [32, 1], strides = [1, 1]} : vector<32x3xf32> to vector<32x1xf32>
    %32 = vector.extract_strided_slice %25 {offsets = [1, 0], sizes = [1, 256], strides = [1, 1]} : vector<3x256xf32> to vector<1x256xf32>
    %33 = vector.broadcast %31 : vector<32x1xf32> to vector<32x256xf32>
    %34 = vector.broadcast %32 : vector<1x256xf32> to vector<32x256xf32>
    %35 = arith.mulf %33, %34 : vector<32x256xf32>
    %36 = arith.addf %30, %35 : vector<32x256xf32>
    %37 = vector.extract_strided_slice %1 {offsets = [0, 2], sizes = [32, 1], strides = [1, 1]} : vector<32x3xf32> to vector<32x1xf32>
    %38 = vector.extract_strided_slice %25 {offsets = [2, 0], sizes = [1, 256], strides = [1, 1]} : vector<3x256xf32> to vector<1x256xf32>
    %39 = vector.broadcast %37 : vector<32x1xf32> to vector<32x256xf32>
    %40 = vector.broadcast %38 : vector<1x256xf32> to vector<32x256xf32>
    %41 = arith.mulf %39, %40 : vector<32x256xf32>
    %42 = arith.addf %36, %41 : vector<32x256xf32>
    %43 = vector.broadcast %2 : vector<32x1xf32> to vector<32x256xf32>
    %44 = arith.addf %42, %43 : vector<32x256xf32>
    %45 = vector.extract_strided_slice %0 {offsets = [2, 0, 0], sizes = [1, 3, 256], strides = [1, 1, 1]} : vector<4x3x256xf32> to vector<1x3x256xf32>
    %46 = vector.shape_cast %45 : vector<1x3x256xf32> to vector<3x256xf32>
    %47 = vector.extract_strided_slice %1 {offsets = [0, 0], sizes = [32, 1], strides = [1, 1]} : vector<32x3xf32> to vector<32x1xf32>
    %48 = vector.extract_strided_slice %46 {offsets = [0, 0], sizes = [1, 256], strides = [1, 1]} : vector<3x256xf32> to vector<1x256xf32>
    %49 = vector.broadcast %47 : vector<32x1xf32> to vector<32x256xf32>
    %50 = vector.broadcast %48 : vector<1x256xf32> to vector<32x256xf32>
    %51 = arith.mulf %49, %50 : vector<32x256xf32>
    %52 = vector.extract_strided_slice %1 {offsets = [0, 1], sizes = [32, 1], strides = [1, 1]} : vector<32x3xf32> to vector<32x1xf32>
    %53 = vector.extract_strided_slice %46 {offsets = [1, 0], sizes = [1, 256], strides = [1, 1]} : vector<3x256xf32> to vector<1x256xf32>
    %54 = vector.broadcast %52 : vector<32x1xf32> to vector<32x256xf32>
    %55 = vector.broadcast %53 : vector<1x256xf32> to vector<32x256xf32>
    %56 = arith.mulf %54, %55 : vector<32x256xf32>
    %57 = arith.addf %51, %56 : vector<32x256xf32>
    %58 = vector.extract_strided_slice %1 {offsets = [0, 2], sizes = [32, 1], strides = [1, 1]} : vector<32x3xf32> to vector<32x1xf32>
    %59 = vector.extract_strided_slice %46 {offsets = [2, 0], sizes = [1, 256], strides = [1, 1]} : vector<3x256xf32> to vector<1x256xf32>
    %60 = vector.broadcast %58 : vector<32x1xf32> to vector<32x256xf32>
    %61 = vector.broadcast %59 : vector<1x256xf32> to vector<32x256xf32>
    %62 = arith.mulf %60, %61 : vector<32x256xf32>
    %63 = arith.addf %57, %62 : vector<32x256xf32>
    %64 = vector.broadcast %2 : vector<32x1xf32> to vector<32x256xf32>
    %65 = arith.addf %63, %64 : vector<32x256xf32>
    %66 = vector.extract_strided_slice %0 {offsets = [3, 0, 0], sizes = [1, 3, 256], strides = [1, 1, 1]} : vector<4x3x256xf32> to vector<1x3x256xf32>
    %67 = vector.shape_cast %66 : vector<1x3x256xf32> to vector<3x256xf32>
    %68 = vector.extract_strided_slice %1 {offsets = [0, 0], sizes = [32, 1], strides = [1, 1]} : vector<32x3xf32> to vector<32x1xf32>
    %69 = vector.extract_strided_slice %67 {offsets = [0, 0], sizes = [1, 256], strides = [1, 1]} : vector<3x256xf32> to vector<1x256xf32>
    %70 = vector.broadcast %68 : vector<32x1xf32> to vector<32x256xf32>
    %71 = vector.broadcast %69 : vector<1x256xf32> to vector<32x256xf32>
    %72 = arith.mulf %70, %71 : vector<32x256xf32>
    %73 = vector.extract_strided_slice %1 {offsets = [0, 1], sizes = [32, 1], strides = [1, 1]} : vector<32x3xf32> to vector<32x1xf32>
    %74 = vector.extract_strided_slice %67 {offsets = [1, 0], sizes = [1, 256], strides = [1, 1]} : vector<3x256xf32> to vector<1x256xf32>
    %75 = vector.broadcast %73 : vector<32x1xf32> to vector<32x256xf32>
    %76 = vector.broadcast %74 : vector<1x256xf32> to vector<32x256xf32>
    %77 = arith.mulf %75, %76 : vector<32x256xf32>
    %78 = arith.addf %72, %77 : vector<32x256xf32>
    %79 = vector.extract_strided_slice %1 {offsets = [0, 2], sizes = [32, 1], strides = [1, 1]} : vector<32x3xf32> to vector<32x1xf32>
    %80 = vector.extract_strided_slice %67 {offsets = [2, 0], sizes = [1, 256], strides = [1, 1]} : vector<3x256xf32> to vector<1x256xf32>
    %81 = vector.broadcast %79 : vector<32x1xf32> to vector<32x256xf32>
    %82 = vector.broadcast %80 : vector<1x256xf32> to vector<32x256xf32>
    %83 = arith.mulf %81, %82 : vector<32x256xf32>
    %84 = arith.addf %78, %83 : vector<32x256xf32>
    %85 = vector.broadcast %2 : vector<32x1xf32> to vector<32x256xf32>
    %86 = arith.addf %84, %85 : vector<32x256xf32>
    %87 = tpu.concatenate %23, %44, %65, %86 in 0 : vector<32x256xf32>, vector<32x256xf32>, vector<32x256xf32>, vector<32x256xf32> -> vector<128x256xf32>
    %c0_6 = arith.constant 0 : index
    %c0_7 = arith.constant 0 : index
    %88 = vector.load %arg5[%c0_6, %c0_7] : memref<256x128xbf16, #tpu.memory_space<vmem>>, vector<256x128xbf16>
    %c0_8 = arith.constant 0 : index
    %c0_9 = arith.constant 0 : index
    %89 = vector.load %arg6[%c0_8, %c0_9] : memref<128x256xbf16, #tpu.memory_space<vmem>>, vector<128x256xbf16>
    %90 = arith.truncf %87 : vector<128x256xf32> to vector<128x256xbf16>
    %cst = arith.constant dense<0.000000e+00> : vector<128x128xf32>
    %91 = tpu.matmul %90, %88, %cst {dimension_numbers = #tpu.dot_dimension_numbers<[1], [0], [0], [1], [0, 0, 1, 1], [], []>} : vector<128x256xbf16>, vector<256x128xbf16>, vector<128x128xf32> -> vector<128x128xf32>
    %92 = vector.shape_cast %91 : vector<128x128xf32> to vector<4x32x128xf32>
    %c0_10 = arith.constant 0 : index
    %c0_11 = arith.constant 0 : index
    %c0_12 = arith.constant 0 : index
    %93 = vector.load %arg4[%c0_10, %c0_11, %c0_12] : memref<2x32x128xf32, #tpu.memory_space<vmem>>, vector<1x32x128xf32>
    %94 = vector.shape_cast %93 : vector<1x32x128xf32> to vector<32x128xf32>
    %95 = vector.shape_cast %94 : vector<32x128xf32> to vector<1x32x128xf32>
    %96 = vector.broadcast %95 : vector<1x32x128xf32> to vector<4x32x128xf32>
    %97 = arith.mulf %92, %96 : vector<4x32x128xf32>
    %98 = vector.shape_cast %97 : vector<4x32x128xf32> to vector<128x128xf32>
    %99 = arith.truncf %98 : vector<128x128xf32> to vector<128x128xbf16>
    %cst_13 = arith.constant dense<0.000000e+00> : vector<128x256xf32>
    %100 = tpu.matmul %99, %89, %cst_13 {dimension_numbers = #tpu.dot_dimension_numbers<[1], [0], [0], [1], [0, 0, 1, 1], [], []>} : vector<128x128xbf16>, vector<128x256xbf16>, vector<128x256xf32> -> vector<128x256xf32>
    %cst_14 = arith.constant 5.000000e-01 : f32
    %101 = vector.broadcast %cst_14 : f32 to vector<128x256xf32>
    %102 = arith.mulf %101, %100 : vector<128x256xf32>
    %cst_15 = arith.constant 0.707106769 : f32
    %103 = vector.broadcast %cst_15 : f32 to vector<128x256xf32>
    %104 = arith.mulf %100, %103 : vector<128x256xf32>
    %105 = math.erf %104 : vector<128x256xf32>
    %cst_16 = arith.constant 1.000000e+00 : f32
    %106 = vector.broadcast %cst_16 : f32 to vector<128x256xf32>
    %107 = arith.addf %106, %105 : vector<128x256xf32>
    %108 = arith.mulf %102, %107 : vector<128x256xf32>
    %109 = arith.truncf %108 : vector<128x256xf32> to vector<128x256xbf16>
    %cst_17 = arith.constant dense<0.000000e+00> : vector<128x128xf32>
    %110 = tpu.matmul %109, %88, %cst_17 {dimension_numbers = #tpu.dot_dimension_numbers<[1], [0], [0], [1], [0, 0, 1, 1], [], []>} : vector<128x256xbf16>, vector<256x128xbf16>, vector<128x128xf32> -> vector<128x128xf32>
    %111 = vector.shape_cast %110 : vector<128x128xf32> to vector<4x32x128xf32>
    %c1 = arith.constant 1 : index
    %c0_18 = arith.constant 0 : index
    %c0_19 = arith.constant 0 : index
    %112 = vector.load %arg4[%c1, %c0_18, %c0_19] : memref<2x32x128xf32, #tpu.memory_space<vmem>>, vector<1x32x128xf32>
    %113 = vector.shape_cast %112 : vector<1x32x128xf32> to vector<32x128xf32>
    %114 = vector.shape_cast %113 : vector<32x128xf32> to vector<1x32x128xf32>
    %115 = vector.broadcast %114 : vector<1x32x128xf32> to vector<4x32x128xf32>
    %116 = arith.mulf %111, %115 : vector<4x32x128xf32>
    %117 = vector.shape_cast %116 : vector<4x32x128xf32> to vector<128x128xf32>
    %118 = arith.truncf %117 : vector<128x128xf32> to vector<128x128xbf16>
    %cst_20 = arith.constant dense<0.000000e+00> : vector<128x256xf32>
    %119 = tpu.matmul %118, %89, %cst_20 {dimension_numbers = #tpu.dot_dimension_numbers<[1], [0], [0], [1], [0, 0, 1, 1], [], []>} : vector<128x128xbf16>, vector<128x256xbf16>, vector<128x256xf32> -> vector<128x256xf32>
    %cst_21 = arith.constant 5.000000e-01 : f32
    %120 = vector.broadcast %cst_21 : f32 to vector<128x256xf32>
    %121 = arith.mulf %120, %119 : vector<128x256xf32>
    %cst_22 = arith.constant 0.707106769 : f32
    %122 = vector.broadcast %cst_22 : f32 to vector<128x256xf32>
    %123 = arith.mulf %119, %122 : vector<128x256xf32>
    %124 = math.erf %123 : vector<128x256xf32>
    %cst_23 = arith.constant 1.000000e+00 : f32
    %125 = vector.broadcast %cst_23 : f32 to vector<128x256xf32>
    %126 = arith.addf %125, %124 : vector<128x256xf32>
    %127 = arith.mulf %121, %126 : vector<128x256xf32>
    %c0_24 = arith.constant 0 : index
    %c0_25 = arith.constant 0 : index
    %128 = vector.load %arg7[%c0_24, %c0_25] : memref<128x32xf32, #tpu.memory_space<vmem>>, vector<128x32xf32>
    %c0_26 = arith.constant 0 : index
    %c0_27 = arith.constant 0 : index
    %129 = vector.load %arg8[%c0_26, %c0_27] : memref<128x1xf32, #tpu.memory_space<vmem>>, vector<128x1xf32>
    %c0_28 = arith.constant 0 : index
    %c0_29 = arith.constant 0 : index
    %130 = vector.load %arg9[%c0_28, %c0_29] : memref<1x128xf32, #tpu.memory_space<vmem>>, vector<1x128xf32>
    %c0_30 = arith.constant 0 : index
    %c0_31 = arith.constant 0 : index
    %131 = vector.load %arg10[%c0_30, %c0_31] : memref<1x1xf32, #tpu.memory_space<vmem>>, vector<1x1xf32>
    %132 = vector.extract_strided_slice %127 {offsets = [0, 0], sizes = [32, 256], strides = [1, 1]} : vector<128x256xf32> to vector<32x256xf32>
    %133 = arith.truncf %128 : vector<128x32xf32> to vector<128x32xbf16>
    %134 = arith.truncf %132 : vector<32x256xf32> to vector<32x256xbf16>
    %cst_32 = arith.constant dense<0.000000e+00> : vector<128x256xf32>
    %135 = tpu.matmul %133, %134, %cst_32 {dimension_numbers = #tpu.dot_dimension_numbers<[1], [0], [0], [1], [0, 0, 1, 1], [], []>} : vector<128x32xbf16>, vector<32x256xbf16>, vector<128x256xf32> -> vector<128x256xf32>
    %136 = vector.broadcast %129 : vector<128x1xf32> to vector<128x256xf32>
    %137 = arith.addf %135, %136 : vector<128x256xf32>
    %cst_33 = arith.constant 5.000000e-01 : f32
    %138 = vector.broadcast %cst_33 : f32 to vector<128x256xf32>
    %139 = arith.mulf %138, %137 : vector<128x256xf32>
    %cst_34 = arith.constant 0.707106769 : f32
    %140 = vector.broadcast %cst_34 : f32 to vector<128x256xf32>
    %141 = arith.mulf %137, %140 : vector<128x256xf32>
    %142 = math.erf %141 : vector<128x256xf32>
    %cst_35 = arith.constant 1.000000e+00 : f32
    %143 = vector.broadcast %cst_35 : f32 to vector<128x256xf32>
    %144 = arith.addf %143, %142 : vector<128x256xf32>
    %145 = arith.mulf %139, %144 : vector<128x256xf32>
    %cst_36 = arith.constant dense<0.000000e+00> : vector<1x256xf32>
    %146 = tpu.matmul %130, %145, %cst_36 {dimension_numbers = #tpu.dot_dimension_numbers<[1], [0], [0], [1], [0, 0, 1, 1], [], []>} : vector<1x128xf32>, vector<128x256xf32>, vector<1x256xf32> -> vector<1x256xf32>
    %147 = vector.broadcast %131 : vector<1x1xf32> to vector<1x256xf32>
    %148 = arith.addf %146, %147 : vector<1x256xf32>
    %c0_37 = arith.constant 0 : index
    %c0_38 = arith.constant 0 : index
    %c0_39 = arith.constant 0 : index
    %149 = vector.load %arg11[%c0_37, %c0_38, %c0_39] : memref<4x1x256xf32, #tpu.memory_space<vmem>>, vector<1x1x256xf32>
    %150 = vector.shape_cast %149 : vector<1x1x256xf32> to vector<1x256xf32>
    %151 = vector.shape_cast %148 : vector<1x256xf32> to vector<1x1x256xf32>
    tpu.vector_store %arg11[%c0_37, %c0_38, %c0_39], %151 {strides = array<i32>} : memref<4x1x256xf32, #tpu.memory_space<vmem>>, vector<1x1x256xf32>,
    %152 = vector.extract_strided_slice %127 {offsets = [32, 0], sizes = [32, 256], strides = [1, 1]} : vector<128x256xf32> to vector<32x256xf32>
    %153 = arith.truncf %128 : vector<128x32xf32> to vector<128x32xbf16>
    %154 = arith.truncf %152 : vector<32x256xf32> to vector<32x256xbf16>
    %cst_40 = arith.constant dense<0.000000e+00> : vector<128x256xf32>
    %155 = tpu.matmul %153, %154, %cst_40 {dimension_numbers = #tpu.dot_dimension_numbers<[1], [0], [0], [1], [0, 0, 1, 1], [], []>} : vector<128x32xbf16>, vector<32x256xbf16>, vector<128x256xf32> -> vector<128x256xf32>
    %156 = vector.broadcast %129 : vector<128x1xf32> to vector<128x256xf32>
    %157 = arith.addf %155, %156 : vector<128x256xf32>
    %cst_41 = arith.constant 5.000000e-01 : f32
    %158 = vector.broadcast %cst_41 : f32 to vector<128x256xf32>
    %159 = arith.mulf %158, %157 : vector<128x256xf32>
    %cst_42 = arith.constant 0.707106769 : f32
    %160 = vector.broadcast %cst_42 : f32 to vector<128x256xf32>
    %161 = arith.mulf %157, %160 : vector<128x256xf32>
    %162 = math.erf %161 : vector<128x256xf32>
    %cst_43 = arith.constant 1.000000e+00 : f32
    %163 = vector.broadcast %cst_43 : f32 to vector<128x256xf32>
    %164 = arith.addf %163, %162 : vector<128x256xf32>
    %165 = arith.mulf %159, %164 : vector<128x256xf32>
    %cst_44 = arith.constant dense<0.000000e+00> : vector<1x256xf32>
    %166 = tpu.matmul %130, %165, %cst_44 {dimension_numbers = #tpu.dot_dimension_numbers<[1], [0], [0], [1], [0, 0, 1, 1], [], []>} : vector<1x128xf32>, vector<128x256xf32>, vector<1x256xf32> -> vector<1x256xf32>
    %167 = vector.broadcast %131 : vector<1x1xf32> to vector<1x256xf32>
    %168 = arith.addf %166, %167 : vector<1x256xf32>
    %c1_45 = arith.constant 1 : index
    %c0_46 = arith.constant 0 : index
    %c0_47 = arith.constant 0 : index
    %169 = vector.load %arg11[%c1_45, %c0_46, %c0_47] : memref<4x1x256xf32, #tpu.memory_space<vmem>>, vector<1x1x256xf32>
    %170 = vector.shape_cast %169 : vector<1x1x256xf32> to vector<1x256xf32>
    %171 = vector.shape_cast %168 : vector<1x256xf32> to vector<1x1x256xf32>
    tpu.vector_store %arg11[%c1_45, %c0_46, %c0_47], %171 {strides = array<i32>} : memref<4x1x256xf32, #tpu.memory_space<vmem>>, vector<1x1x256xf32>,
    %172 = vector.extract_strided_slice %127 {offsets = [64, 0], sizes = [32, 256], strides = [1, 1]} : vector<128x256xf32> to vector<32x256xf32>
    %173 = arith.truncf %128 : vector<128x32xf32> to vector<128x32xbf16>
    %174 = arith.truncf %172 : vector<32x256xf32> to vector<32x256xbf16>
    %cst_48 = arith.constant dense<0.000000e+00> : vector<128x256xf32>
    %175 = tpu.matmul %173, %174, %cst_48 {dimension_numbers = #tpu.dot_dimension_numbers<[1], [0], [0], [1], [0, 0, 1, 1], [], []>} : vector<128x32xbf16>, vector<32x256xbf16>, vector<128x256xf32> -> vector<128x256xf32>
    %176 = vector.broadcast %129 : vector<128x1xf32> to vector<128x256xf32>
    %177 = arith.addf %175, %176 : vector<128x256xf32>
    %cst_49 = arith.constant 5.000000e-01 : f32
    %178 = vector.broadcast %cst_49 : f32 to vector<128x256xf32>
    %179 = arith.mulf %178, %177 : vector<128x256xf32>
    %cst_50 = arith.constant 0.707106769 : f32
    %180 = vector.broadcast %cst_50 : f32 to vector<128x256xf32>
    %181 = arith.mulf %177, %180 : vector<128x256xf32>
    %182 = math.erf %181 : vector<128x256xf32>
    %cst_51 = arith.constant 1.000000e+00 : f32
    %183 = vector.broadcast %cst_51 : f32 to vector<128x256xf32>
    %184 = arith.addf %183, %182 : vector<128x256xf32>
    %185 = arith.mulf %179, %184 : vector<128x256xf32>
    %cst_52 = arith.constant dense<0.000000e+00> : vector<1x256xf32>
    %186 = tpu.matmul %130, %185, %cst_52 {dimension_numbers = #tpu.dot_dimension_numbers<[1], [0], [0], [1], [0, 0, 1, 1], [], []>} : vector<1x128xf32>, vector<128x256xf32>, vector<1x256xf32> -> vector<1x256xf32>
    %187 = vector.broadcast %131 : vector<1x1xf32> to vector<1x256xf32>
    %188 = arith.addf %186, %187 : vector<1x256xf32>
    %c2 = arith.constant 2 : index
    %c0_53 = arith.constant 0 : index
    %c0_54 = arith.constant 0 : index
    %189 = vector.load %arg11[%c2, %c0_53, %c0_54] : memref<4x1x256xf32, #tpu.memory_space<vmem>>, vector<1x1x256xf32>
    %190 = vector.shape_cast %189 : vector<1x1x256xf32> to vector<1x256xf32>
    %191 = vector.shape_cast %188 : vector<1x256xf32> to vector<1x1x256xf32>
    tpu.vector_store %arg11[%c2, %c0_53, %c0_54], %191 {strides = array<i32>} : memref<4x1x256xf32, #tpu.memory_space<vmem>>, vector<1x1x256xf32>,
    %192 = vector.extract_strided_slice %127 {offsets = [96, 0], sizes = [32, 256], strides = [1, 1]} : vector<128x256xf32> to vector<32x256xf32>
    %193 = arith.truncf %128 : vector<128x32xf32> to vector<128x32xbf16>
    %194 = arith.truncf %192 : vector<32x256xf32> to vector<32x256xbf16>
    %cst_55 = arith.constant dense<0.000000e+00> : vector<128x256xf32>
    %195 = tpu.matmul %193, %194, %cst_55 {dimension_numbers = #tpu.dot_dimension_numbers<[1], [0], [0], [1], [0, 0, 1, 1], [], []>} : vector<128x32xbf16>, vector<32x256xbf16>, vector<128x256xf32> -> vector<128x256xf32>
    %196 = vector.broadcast %129 : vector<128x1xf32> to vector<128x256xf32>
    %197 = arith.addf %195, %196 : vector<128x256xf32>
    %cst_56 = arith.constant 5.000000e-01 : f32
    %198 = vector.broadcast %cst_56 : f32 to vector<128x256xf32>
    %199 = arith.mulf %198, %197 : vector<128x256xf32>
    %cst_57 = arith.constant 0.707106769 : f32
    %200 = vector.broadcast %cst_57 : f32 to vector<128x256xf32>
    %201 = arith.mulf %197, %200 : vector<128x256xf32>
    %202 = math.erf %201 : vector<128x256xf32>
    %cst_58 = arith.constant 1.000000e+00 : f32
    %203 = vector.broadcast %cst_58 : f32 to vector<128x256xf32>
    %204 = arith.addf %203, %202 : vector<128x256xf32>
    %205 = arith.mulf %199, %204 : vector<128x256xf32>
    %cst_59 = arith.constant dense<0.000000e+00> : vector<1x256xf32>
    %206 = tpu.matmul %130, %205, %cst_59 {dimension_numbers = #tpu.dot_dimension_numbers<[1], [0], [0], [1], [0, 0, 1, 1], [], []>} : vector<1x128xf32>, vector<128x256xf32>, vector<1x256xf32> -> vector<1x256xf32>
    %207 = vector.broadcast %131 : vector<1x1xf32> to vector<1x256xf32>
    %208 = arith.addf %206, %207 : vector<1x256xf32>
    %c3 = arith.constant 3 : index
    %c0_60 = arith.constant 0 : index
    %c0_61 = arith.constant 0 : index
    %209 = vector.load %arg11[%c3, %c0_60, %c0_61] : memref<4x1x256xf32, #tpu.memory_space<vmem>>, vector<1x1x256xf32>
    %210 = vector.shape_cast %209 : vector<1x1x256xf32> to vector<1x256xf32>
    %211 = vector.shape_cast %208 : vector<1x256xf32> to vector<1x1x256xf32>
    tpu.vector_store %arg11[%c3, %c0_60, %c0_61], %211 {strides = array<i32>} : memref<4x1x256xf32, #tpu.memory_space<vmem>>, vector<1x1x256xf32>,
    return
  }
  func.func @transform_0(%arg0: i32) -> (i32, i32, i32) {
    %c0_i32 = arith.constant 0 : i32
    %c0_i32_0 = arith.constant 0 : i32
    %c0_i32_1 = arith.constant 0 : i32
    return %arg0, %c0_i32, %c0_i32_0 : i32, i32, i32
  }
  func.func @transform_1(%arg0: i32) -> (i32, i32) {
    %c0_i32 = arith.constant 0 : i32
    %c0_i32_0 = arith.constant 0 : i32
    %c0_i32_1 = arith.constant 0 : i32
    return %c0_i32, %c0_i32_0 : i32, i32
  }
  func.func @transform_2(%arg0: i32) -> (i32, i32) {
    %c0_i32 = arith.constant 0 : i32
    %c0_i32_0 = arith.constant 0 : i32
    %c0_i32_1 = arith.constant 0 : i32
    return %c0_i32, %c0_i32_0 : i32, i32
  }
  func.func @transform_3(%arg0: i32) -> (i32, i32, i32) {
    %c0_i32 = arith.constant 0 : i32
    %c0_i32_0 = arith.constant 0 : i32
    %c0_i32_1 = arith.constant 0 : i32
    %c0_i32_2 = arith.constant 0 : i32
    return %c0_i32, %c0_i32_0, %c0_i32_1 : i32, i32, i32
  }
  func.func @transform_4(%arg0: i32) -> (i32, i32) {
    %c0_i32 = arith.constant 0 : i32
    %c0_i32_0 = arith.constant 0 : i32
    %c0_i32_1 = arith.constant 0 : i32
    return %c0_i32, %c0_i32_0 : i32, i32
  }
  func.func @transform_5(%arg0: i32) -> (i32, i32) {
    %c0_i32 = arith.constant 0 : i32
    %c0_i32_0 = arith.constant 0 : i32
    %c0_i32_1 = arith.constant 0 : i32
    return %c0_i32, %c0_i32_0 : i32, i32
  }
  func.func @transform_6(%arg0: i32) -> (i32, i32) {
    %c0_i32 = arith.constant 0 : i32
    %c0_i32_0 = arith.constant 0 : i32
    %c0_i32_1 = arith.constant 0 : i32
    return %c0_i32, %c0_i32_0 : i32, i32
  }
  func.func @transform_7(%arg0: i32) -> (i32, i32) {
    %c0_i32 = arith.constant 0 : i32
    %c0_i32_0 = arith.constant 0 : i32
    %c0_i32_1 = arith.constant 0 : i32
    return %c0_i32, %c0_i32_0 : i32, i32
  }
  func.func @transform_8(%arg0: i32) -> (i32, i32) {
    %c0_i32 = arith.constant 0 : i32
    %c0_i32_0 = arith.constant 0 : i32
    %c0_i32_1 = arith.constant 0 : i32
    return %c0_i32, %c0_i32_0 : i32, i32
  }
  func.func @transform_9(%arg0: i32) -> (i32, i32) {
    %c0_i32 = arith.constant 0 : i32
    %c0_i32_0 = arith.constant 0 : i32
    %c0_i32_1 = arith.constant 0 : i32
    return %c0_i32, %c0_i32_0 : i32, i32
  }
  func.func @transform_10(%arg0: i32) -> (i32, i32, i32) {
    %c0_i32 = arith.constant 0 : i32
    %c0_i32_0 = arith.constant 0 : i32
    %c0_i32_1 = arith.constant 0 : i32
    return %arg0, %c0_i32, %c0_i32_0 : i32, i32, i32
  }
}

module attributes {stable_mosaic.version = 11 : i64} {
  func.func @_fno_kernel(%arg0: i32, %arg1: memref<4x3x256xf32, #tpu.memory_space<vmem>>, %arg2: memref<32x3xf32, #tpu.memory_space<vmem>>, %arg3: memref<32x1xf32, #tpu.memory_space<vmem>>, %arg4: memref<2x32x128xf32, #tpu.memory_space<vmem>>, %arg5: memref<256x128xbf16, #tpu.memory_space<vmem>>, %arg6: memref<128x256xbf16, #tpu.memory_space<vmem>>, %arg7: memref<128x32xf32, #tpu.memory_space<vmem>>, %arg8: memref<128x1xf32, #tpu.memory_space<vmem>>, %arg9: memref<1x128xf32, #tpu.memory_space<vmem>>, %arg10: memref<1x1xf32, #tpu.memory_space<vmem>>, %arg11: memref<4x1x256xf32, #tpu.memory_space<vmem>>) attributes {dimension_semantics = [#tpu.dimension_semantics<parallel>], iteration_bounds = array<i64: 2>, scalar_prefetch = 0 : i64, scratch_operands = 0 : i64, tpu.core_type = #tpu.core_type<tc>, window_params = [{transform_indices = @transform_0, window_bounds = array<i64: 4, 3, 256>}, {pipeline_mode = #tpu.pipeline_mode<synchronous>, transform_indices = @transform_1, window_bounds = array<i64: 32, 3>}, {pipeline_mode = #tpu.pipeline_mode<synchronous>, transform_indices = @transform_2, window_bounds = array<i64: 32, 1>}, {pipeline_mode = #tpu.pipeline_mode<synchronous>, transform_indices = @transform_3, window_bounds = array<i64: 2, 32, 128>}, {pipeline_mode = #tpu.pipeline_mode<synchronous>, transform_indices = @transform_4, window_bounds = array<i64: 256, 128>}, {pipeline_mode = #tpu.pipeline_mode<synchronous>, transform_indices = @transform_5, window_bounds = array<i64: 128, 256>}, {pipeline_mode = #tpu.pipeline_mode<synchronous>, transform_indices = @transform_6, window_bounds = array<i64: 128, 32>}, {pipeline_mode = #tpu.pipeline_mode<synchronous>, transform_indices = @transform_7, window_bounds = array<i64: 128, 1>}, {pipeline_mode = #tpu.pipeline_mode<synchronous>, transform_indices = @transform_8, window_bounds = array<i64: 1, 128>}, {pipeline_mode = #tpu.pipeline_mode<synchronous>, transform_indices = @transform_9, window_bounds = array<i64: 1, 1>}, {transform_indices = @transform_10, window_bounds = array<i64: 4, 1, 256>}]} {
    %c0 = arith.constant 0 : index
    %c0_0 = arith.constant 0 : index
    %c0_1 = arith.constant 0 : index
    %0 = vector.load %arg1[%c0, %c0_0, %c0_1] : memref<4x3x256xf32, #tpu.memory_space<vmem>>, vector<4x3x256xf32>
    %c0_2 = arith.constant 0 : index
    %c0_3 = arith.constant 0 : index
    %1 = vector.load %arg2[%c0_2, %c0_3] : memref<32x3xf32, #tpu.memory_space<vmem>>, vector<32x3xf32>
    %c0_4 = arith.constant 0 : index
    %c0_5 = arith.constant 0 : index
    %2 = vector.load %arg3[%c0_4, %c0_5] : memref<32x1xf32, #tpu.memory_space<vmem>>, vector<32x1xf32>
    %3 = vector.extract_strided_slice %0 {offsets = [0, 0, 0], sizes = [1, 3, 256], strides = [1, 1, 1]} : vector<4x3x256xf32> to vector<1x3x256xf32>
    %4 = vector.shape_cast %3 : vector<1x3x256xf32> to vector<3x256xf32>
    %5 = vector.extract_strided_slice %1 {offsets = [0, 0], sizes = [32, 1], strides = [1, 1]} : vector<32x3xf32> to vector<32x1xf32>
    %6 = vector.extract_strided_slice %4 {offsets = [0, 0], sizes = [1, 256], strides = [1, 1]} : vector<3x256xf32> to vector<1x256xf32>
    %7 = vector.broadcast %5 : vector<32x1xf32> to vector<32x256xf32>
    %8 = vector.broadcast %6 : vector<1x256xf32> to vector<32x256xf32>
    %9 = arith.mulf %7, %8 : vector<32x256xf32>
    %10 = vector.extract_strided_slice %1 {offsets = [0, 1], sizes = [32, 1], strides = [1, 1]} : vector<32x3xf32> to vector<32x1xf32>
    %11 = vector.extract_strided_slice %4 {offsets = [1, 0], sizes = [1, 256], strides = [1, 1]} : vector<3x256xf32> to vector<1x256xf32>
    %12 = vector.broadcast %10 : vector<32x1xf32> to vector<32x256xf32>
    %13 = vector.broadcast %11 : vector<1x256xf32> to vector<32x256xf32>
    %14 = arith.mulf %12, %13 : vector<32x256xf32>
    %15 = arith.addf %9, %14 : vector<32x256xf32>
    %16 = vector.extract_strided_slice %1 {offsets = [0, 2], sizes = [32, 1], strides = [1, 1]} : vector<32x3xf32> to vector<32x1xf32>
    %17 = vector.extract_strided_slice %4 {offsets = [2, 0], sizes = [1, 256], strides = [1, 1]} : vector<3x256xf32> to vector<1x256xf32>
    %18 = vector.broadcast %16 : vector<32x1xf32> to vector<32x256xf32>
    %19 = vector.broadcast %17 : vector<1x256xf32> to vector<32x256xf32>
    %20 = arith.mulf %18, %19 : vector<32x256xf32>
    %21 = arith.addf %15, %20 : vector<32x256xf32>
    %22 = vector.broadcast %2 : vector<32x1xf32> to vector<32x256xf32>
    %23 = arith.addf %21, %22 : vector<32x256xf32>
    %24 = vector.extract_strided_slice %0 {offsets = [1, 0, 0], sizes = [1, 3, 256], strides = [1, 1, 1]} : vector<4x3x256xf32> to vector<1x3x256xf32>
    %25 = vector.shape_cast %24 : vector<1x3x256xf32> to vector<3x256xf32>
    %26 = vector.extract_strided_slice %1 {offsets = [0, 0], sizes = [32, 1], strides = [1, 1]} : vector<32x3xf32> to vector<32x1xf32>
    %27 = vector.extract_strided_slice %25 {offsets = [0, 0], sizes = [1, 256], strides = [1, 1]} : vector<3x256xf32> to vector<1x256xf32>
    %28 = vector.broadcast %26 : vector<32x1xf32> to vector<32x256xf32>
    %29 = vector.broadcast %27 : vector<1x256xf32> to vector<32x256xf32>
    %30 = arith.mulf %28, %29 : vector<32x256xf32>
    %31 = vector.extract_strided_slice %1 {offsets = [0, 1], sizes = [32, 1], strides = [1, 1]} : vector<32x3xf32> to vector<32x1xf32>
    %32 = vector.extract_strided_slice %25 {offsets = [1, 0], sizes = [1, 256], strides = [1, 1]} : vector<3x256xf32> to vector<1x256xf32>
    %33 = vector.broadcast %31 : vector<32x1xf32> to vector<32x256xf32>
    %34 = vector.broadcast %32 : vector<1x256xf32> to vector<32x256xf32>
    %35 = arith.mulf %33, %34 : vector<32x256xf32>
    %36 = arith.addf %30, %35 : vector<32x256xf32>
    %37 = vector.extract_strided_slice %1 {offsets = [0, 2], sizes = [32, 1], strides = [1, 1]} : vector<32x3xf32> to vector<32x1xf32>
    %38 = vector.extract_strided_slice %25 {offsets = [2, 0], sizes = [1, 256], strides = [1, 1]} : vector<3x256xf32> to vector<1x256xf32>
    %39 = vector.broadcast %37 : vector<32x1xf32> to vector<32x256xf32>
    %40 = vector.broadcast %38 : vector<1x256xf32> to vector<32x256xf32>
    %41 = arith.mulf %39, %40 : vector<32x256xf32>
    %42 = arith.addf %36, %41 : vector<32x256xf32>
    %43 = vector.broadcast %2 : vector<32x1xf32> to vector<32x256xf32>
    %44 = arith.addf %42, %43 : vector<32x256xf32>
    %45 = vector.extract_strided_slice %0 {offsets = [2, 0, 0], sizes = [1, 3, 256], strides = [1, 1, 1]} : vector<4x3x256xf32> to vector<1x3x256xf32>
    %46 = vector.shape_cast %45 : vector<1x3x256xf32> to vector<3x256xf32>
    %47 = vector.extract_strided_slice %1 {offsets = [0, 0], sizes = [32, 1], strides = [1, 1]} : vector<32x3xf32> to vector<32x1xf32>
    %48 = vector.extract_strided_slice %46 {offsets = [0, 0], sizes = [1, 256], strides = [1, 1]} : vector<3x256xf32> to vector<1x256xf32>
    %49 = vector.broadcast %47 : vector<32x1xf32> to vector<32x256xf32>
    %50 = vector.broadcast %48 : vector<1x256xf32> to vector<32x256xf32>
    %51 = arith.mulf %49, %50 : vector<32x256xf32>
    %52 = vector.extract_strided_slice %1 {offsets = [0, 1], sizes = [32, 1], strides = [1, 1]} : vector<32x3xf32> to vector<32x1xf32>
    %53 = vector.extract_strided_slice %46 {offsets = [1, 0], sizes = [1, 256], strides = [1, 1]} : vector<3x256xf32> to vector<1x256xf32>
    %54 = vector.broadcast %52 : vector<32x1xf32> to vector<32x256xf32>
    %55 = vector.broadcast %53 : vector<1x256xf32> to vector<32x256xf32>
    %56 = arith.mulf %54, %55 : vector<32x256xf32>
    %57 = arith.addf %51, %56 : vector<32x256xf32>
    %58 = vector.extract_strided_slice %1 {offsets = [0, 2], sizes = [32, 1], strides = [1, 1]} : vector<32x3xf32> to vector<32x1xf32>
    %59 = vector.extract_strided_slice %46 {offsets = [2, 0], sizes = [1, 256], strides = [1, 1]} : vector<3x256xf32> to vector<1x256xf32>
    %60 = vector.broadcast %58 : vector<32x1xf32> to vector<32x256xf32>
    %61 = vector.broadcast %59 : vector<1x256xf32> to vector<32x256xf32>
    %62 = arith.mulf %60, %61 : vector<32x256xf32>
    %63 = arith.addf %57, %62 : vector<32x256xf32>
    %64 = vector.broadcast %2 : vector<32x1xf32> to vector<32x256xf32>
    %65 = arith.addf %63, %64 : vector<32x256xf32>
    %66 = vector.extract_strided_slice %0 {offsets = [3, 0, 0], sizes = [1, 3, 256], strides = [1, 1, 1]} : vector<4x3x256xf32> to vector<1x3x256xf32>
    %67 = vector.shape_cast %66 : vector<1x3x256xf32> to vector<3x256xf32>
    %68 = vector.extract_strided_slice %1 {offsets = [0, 0], sizes = [32, 1], strides = [1, 1]} : vector<32x3xf32> to vector<32x1xf32>
    %69 = vector.extract_strided_slice %67 {offsets = [0, 0], sizes = [1, 256], strides = [1, 1]} : vector<3x256xf32> to vector<1x256xf32>
    %70 = vector.broadcast %68 : vector<32x1xf32> to vector<32x256xf32>
    %71 = vector.broadcast %69 : vector<1x256xf32> to vector<32x256xf32>
    %72 = arith.mulf %70, %71 : vector<32x256xf32>
    %73 = vector.extract_strided_slice %1 {offsets = [0, 1], sizes = [32, 1], strides = [1, 1]} : vector<32x3xf32> to vector<32x1xf32>
    %74 = vector.extract_strided_slice %67 {offsets = [1, 0], sizes = [1, 256], strides = [1, 1]} : vector<3x256xf32> to vector<1x256xf32>
    %75 = vector.broadcast %73 : vector<32x1xf32> to vector<32x256xf32>
    %76 = vector.broadcast %74 : vector<1x256xf32> to vector<32x256xf32>
    %77 = arith.mulf %75, %76 : vector<32x256xf32>
    %78 = arith.addf %72, %77 : vector<32x256xf32>
    %79 = vector.extract_strided_slice %1 {offsets = [0, 2], sizes = [32, 1], strides = [1, 1]} : vector<32x3xf32> to vector<32x1xf32>
    %80 = vector.extract_strided_slice %67 {offsets = [2, 0], sizes = [1, 256], strides = [1, 1]} : vector<3x256xf32> to vector<1x256xf32>
    %81 = vector.broadcast %79 : vector<32x1xf32> to vector<32x256xf32>
    %82 = vector.broadcast %80 : vector<1x256xf32> to vector<32x256xf32>
    %83 = arith.mulf %81, %82 : vector<32x256xf32>
    %84 = arith.addf %78, %83 : vector<32x256xf32>
    %85 = vector.broadcast %2 : vector<32x1xf32> to vector<32x256xf32>
    %86 = arith.addf %84, %85 : vector<32x256xf32>
    %87 = tpu.concatenate %23, %44, %65, %86 in 0 : vector<32x256xf32>, vector<32x256xf32>, vector<32x256xf32>, vector<32x256xf32> -> vector<128x256xf32>
    %c0_6 = arith.constant 0 : index
    %c0_7 = arith.constant 0 : index
    %88 = vector.load %arg5[%c0_6, %c0_7] : memref<256x128xbf16, #tpu.memory_space<vmem>>, vector<256x128xbf16>
    %c0_8 = arith.constant 0 : index
    %c0_9 = arith.constant 0 : index
    %89 = vector.load %arg6[%c0_8, %c0_9] : memref<128x256xbf16, #tpu.memory_space<vmem>>, vector<128x256xbf16>
    %90 = arith.truncf %87 : vector<128x256xf32> to vector<128x256xbf16>
    %cst = arith.constant dense<0.000000e+00> : vector<128x128xf32>
    %91 = tpu.matmul %90, %88, %cst {dimension_numbers = #tpu.dot_dimension_numbers<[1], [0], [0], [1], [0, 0, 1, 1], [], []>} : vector<128x256xbf16>, vector<256x128xbf16>, vector<128x128xf32> -> vector<128x128xf32>
    %92 = vector.shape_cast %91 : vector<128x128xf32> to vector<4x32x128xf32>
    %c0_10 = arith.constant 0 : index
    %c0_11 = arith.constant 0 : index
    %c0_12 = arith.constant 0 : index
    %93 = vector.load %arg4[%c0_10, %c0_11, %c0_12] : memref<2x32x128xf32, #tpu.memory_space<vmem>>, vector<1x32x128xf32>
    %94 = vector.shape_cast %93 : vector<1x32x128xf32> to vector<32x128xf32>
    %95 = vector.shape_cast %94 : vector<32x128xf32> to vector<1x32x128xf32>
    %96 = vector.broadcast %95 : vector<1x32x128xf32> to vector<4x32x128xf32>
    %97 = arith.mulf %92, %96 : vector<4x32x128xf32>
    %98 = vector.shape_cast %97 : vector<4x32x128xf32> to vector<128x128xf32>
    %99 = arith.truncf %98 : vector<128x128xf32> to vector<128x128xbf16>
    %cst_13 = arith.constant dense<0.000000e+00> : vector<128x256xf32>
    %100 = tpu.matmul %99, %89, %cst_13 {dimension_numbers = #tpu.dot_dimension_numbers<[1], [0], [0], [1], [0, 0, 1, 1], [], []>} : vector<128x128xbf16>, vector<128x256xbf16>, vector<128x256xf32> -> vector<128x256xf32>
    %cst_14 = arith.constant 5.000000e-01 : f32
    %101 = vector.broadcast %cst_14 : f32 to vector<128x256xf32>
    %102 = arith.mulf %101, %100 : vector<128x256xf32>
    %cst_15 = arith.constant 0.707106769 : f32
    %103 = vector.broadcast %cst_15 : f32 to vector<128x256xf32>
    %104 = arith.mulf %100, %103 : vector<128x256xf32>
    %105 = math.erf %104 : vector<128x256xf32>
    %cst_16 = arith.constant 1.000000e+00 : f32
    %106 = vector.broadcast %cst_16 : f32 to vector<128x256xf32>
    %107 = arith.addf %106, %105 : vector<128x256xf32>
    %108 = arith.mulf %102, %107 : vector<128x256xf32>
    %109 = arith.truncf %108 : vector<128x256xf32> to vector<128x256xbf16>
    %cst_17 = arith.constant dense<0.000000e+00> : vector<128x128xf32>
    %110 = tpu.matmul %109, %88, %cst_17 {dimension_numbers = #tpu.dot_dimension_numbers<[1], [0], [0], [1], [0, 0, 1, 1], [], []>} : vector<128x256xbf16>, vector<256x128xbf16>, vector<128x128xf32> -> vector<128x128xf32>
    %111 = vector.shape_cast %110 : vector<128x128xf32> to vector<4x32x128xf32>
    %c1 = arith.constant 1 : index
    %c0_18 = arith.constant 0 : index
    %c0_19 = arith.constant 0 : index
    %112 = vector.load %arg4[%c1, %c0_18, %c0_19] : memref<2x32x128xf32, #tpu.memory_space<vmem>>, vector<1x32x128xf32>
    %113 = vector.shape_cast %112 : vector<1x32x128xf32> to vector<32x128xf32>
    %114 = vector.shape_cast %113 : vector<32x128xf32> to vector<1x32x128xf32>
    %115 = vector.broadcast %114 : vector<1x32x128xf32> to vector<4x32x128xf32>
    %116 = arith.mulf %111, %115 : vector<4x32x128xf32>
    %117 = vector.shape_cast %116 : vector<4x32x128xf32> to vector<128x128xf32>
    %118 = arith.truncf %117 : vector<128x128xf32> to vector<128x128xbf16>
    %cst_20 = arith.constant dense<0.000000e+00> : vector<128x256xf32>
    %119 = tpu.matmul %118, %89, %cst_20 {dimension_numbers = #tpu.dot_dimension_numbers<[1], [0], [0], [1], [0, 0, 1, 1], [], []>} : vector<128x128xbf16>, vector<128x256xbf16>, vector<128x256xf32> -> vector<128x256xf32>
    %cst_21 = arith.constant 5.000000e-01 : f32
    %120 = vector.broadcast %cst_21 : f32 to vector<128x256xf32>
    %121 = arith.mulf %120, %119 : vector<128x256xf32>
    %cst_22 = arith.constant 0.707106769 : f32
    %122 = vector.broadcast %cst_22 : f32 to vector<128x256xf32>
    %123 = arith.mulf %119, %122 : vector<128x256xf32>
    %124 = math.erf %123 : vector<128x256xf32>
    %cst_23 = arith.constant 1.000000e+00 : f32
    %125 = vector.broadcast %cst_23 : f32 to vector<128x256xf32>
    %126 = arith.addf %125, %124 : vector<128x256xf32>
    %127 = arith.mulf %121, %126 : vector<128x256xf32>
    %c0_24 = arith.constant 0 : index
    %c0_25 = arith.constant 0 : index
    %128 = vector.load %arg7[%c0_24, %c0_25] : memref<128x32xf32, #tpu.memory_space<vmem>>, vector<128x32xf32>
    %c0_26 = arith.constant 0 : index
    %c0_27 = arith.constant 0 : index
    %129 = vector.load %arg8[%c0_26, %c0_27] : memref<128x1xf32, #tpu.memory_space<vmem>>, vector<128x1xf32>
    %c0_28 = arith.constant 0 : index
    %c0_29 = arith.constant 0 : index
    %130 = vector.load %arg9[%c0_28, %c0_29] : memref<1x128xf32, #tpu.memory_space<vmem>>, vector<1x128xf32>
    %c0_30 = arith.constant 0 : index
    %c0_31 = arith.constant 0 : index
    %131 = vector.load %arg10[%c0_30, %c0_31] : memref<1x1xf32, #tpu.memory_space<vmem>>, vector<1x1xf32>
    %132 = vector.extract_strided_slice %127 {offsets = [0, 0], sizes = [32, 256], strides = [1, 1]} : vector<128x256xf32> to vector<32x256xf32>
    %133 = arith.truncf %128 : vector<128x32xf32> to vector<128x32xbf16>
    %134 = arith.truncf %132 : vector<32x256xf32> to vector<32x256xbf16>
    %cst_32 = arith.constant dense<0.000000e+00> : vector<128x256xf32>
    %135 = tpu.matmul %133, %134, %cst_32 {dimension_numbers = #tpu.dot_dimension_numbers<[1], [0], [0], [1], [0, 0, 1, 1], [], []>} : vector<128x32xbf16>, vector<32x256xbf16>, vector<128x256xf32> -> vector<128x256xf32>
    %136 = vector.broadcast %129 : vector<128x1xf32> to vector<128x256xf32>
    %137 = arith.addf %135, %136 : vector<128x256xf32>
    %cst_33 = arith.constant 5.000000e-01 : f32
    %138 = vector.broadcast %cst_33 : f32 to vector<128x256xf32>
    %139 = arith.mulf %138, %137 : vector<128x256xf32>
    %cst_34 = arith.constant 0.707106769 : f32
    %140 = vector.broadcast %cst_34 : f32 to vector<128x256xf32>
    %141 = arith.mulf %137, %140 : vector<128x256xf32>
    %142 = math.erf %141 : vector<128x256xf32>
    %cst_35 = arith.constant 1.000000e+00 : f32
    %143 = vector.broadcast %cst_35 : f32 to vector<128x256xf32>
    %144 = arith.addf %143, %142 : vector<128x256xf32>
    %145 = arith.mulf %139, %144 : vector<128x256xf32>
    %cst_36 = arith.constant dense<0.000000e+00> : vector<1x256xf32>
    %146 = tpu.matmul %130, %145, %cst_36 {dimension_numbers = #tpu.dot_dimension_numbers<[1], [0], [0], [1], [0, 0, 1, 1], [], []>} : vector<1x128xf32>, vector<128x256xf32>, vector<1x256xf32> -> vector<1x256xf32>
    %147 = vector.broadcast %131 : vector<1x1xf32> to vector<1x256xf32>
    %148 = arith.addf %146, %147 : vector<1x256xf32>
    %c0_37 = arith.constant 0 : index
    %c0_38 = arith.constant 0 : index
    %c0_39 = arith.constant 0 : index
    %149 = vector.load %arg11[%c0_37, %c0_38, %c0_39] : memref<4x1x256xf32, #tpu.memory_space<vmem>>, vector<1x1x256xf32>
    %150 = vector.shape_cast %149 : vector<1x1x256xf32> to vector<1x256xf32>
    %151 = vector.shape_cast %148 : vector<1x256xf32> to vector<1x1x256xf32>
    tpu.vector_store %arg11[%c0_37, %c0_38, %c0_39], %151 {strides = array<i32>} : memref<4x1x256xf32, #tpu.memory_space<vmem>>, vector<1x1x256xf32>,
    %152 = vector.extract_strided_slice %127 {offsets = [32, 0], sizes = [32, 256], strides = [1, 1]} : vector<128x256xf32> to vector<32x256xf32>
    %153 = arith.truncf %128 : vector<128x32xf32> to vector<128x32xbf16>
    %154 = arith.truncf %152 : vector<32x256xf32> to vector<32x256xbf16>
    %cst_40 = arith.constant dense<0.000000e+00> : vector<128x256xf32>
    %155 = tpu.matmul %153, %154, %cst_40 {dimension_numbers = #tpu.dot_dimension_numbers<[1], [0], [0], [1], [0, 0, 1, 1], [], []>} : vector<128x32xbf16>, vector<32x256xbf16>, vector<128x256xf32> -> vector<128x256xf32>
    %156 = vector.broadcast %129 : vector<128x1xf32> to vector<128x256xf32>
    %157 = arith.addf %155, %156 : vector<128x256xf32>
    %cst_41 = arith.constant 5.000000e-01 : f32
    %158 = vector.broadcast %cst_41 : f32 to vector<128x256xf32>
    %159 = arith.mulf %158, %157 : vector<128x256xf32>
    %cst_42 = arith.constant 0.707106769 : f32
    %160 = vector.broadcast %cst_42 : f32 to vector<128x256xf32>
    %161 = arith.mulf %157, %160 : vector<128x256xf32>
    %162 = math.erf %161 : vector<128x256xf32>
    %cst_43 = arith.constant 1.000000e+00 : f32
    %163 = vector.broadcast %cst_43 : f32 to vector<128x256xf32>
    %164 = arith.addf %163, %162 : vector<128x256xf32>
    %165 = arith.mulf %159, %164 : vector<128x256xf32>
    %cst_44 = arith.constant dense<0.000000e+00> : vector<1x256xf32>
    %166 = tpu.matmul %130, %165, %cst_44 {dimension_numbers = #tpu.dot_dimension_numbers<[1], [0], [0], [1], [0, 0, 1, 1], [], []>} : vector<1x128xf32>, vector<128x256xf32>, vector<1x256xf32> -> vector<1x256xf32>
    %167 = vector.broadcast %131 : vector<1x1xf32> to vector<1x256xf32>
    %168 = arith.addf %166, %167 : vector<1x256xf32>
    %c1_45 = arith.constant 1 : index
    %c0_46 = arith.constant 0 : index
    %c0_47 = arith.constant 0 : index
    %169 = vector.load %arg11[%c1_45, %c0_46, %c0_47] : memref<4x1x256xf32, #tpu.memory_space<vmem>>, vector<1x1x256xf32>
    %170 = vector.shape_cast %169 : vector<1x1x256xf32> to vector<1x256xf32>
    %171 = vector.shape_cast %168 : vector<1x256xf32> to vector<1x1x256xf32>
    tpu.vector_store %arg11[%c1_45, %c0_46, %c0_47], %171 {strides = array<i32>} : memref<4x1x256xf32, #tpu.memory_space<vmem>>, vector<1x1x256xf32>,
    %172 = vector.extract_strided_slice %127 {offsets = [64, 0], sizes = [32, 256], strides = [1, 1]} : vector<128x256xf32> to vector<32x256xf32>
    %173 = arith.truncf %128 : vector<128x32xf32> to vector<128x32xbf16>
    %174 = arith.truncf %172 : vector<32x256xf32> to vector<32x256xbf16>
    %cst_48 = arith.constant dense<0.000000e+00> : vector<128x256xf32>
    %175 = tpu.matmul %173, %174, %cst_48 {dimension_numbers = #tpu.dot_dimension_numbers<[1], [0], [0], [1], [0, 0, 1, 1], [], []>} : vector<128x32xbf16>, vector<32x256xbf16>, vector<128x256xf32> -> vector<128x256xf32>
    %176 = vector.broadcast %129 : vector<128x1xf32> to vector<128x256xf32>
    %177 = arith.addf %175, %176 : vector<128x256xf32>
    %cst_49 = arith.constant 5.000000e-01 : f32
    %178 = vector.broadcast %cst_49 : f32 to vector<128x256xf32>
    %179 = arith.mulf %178, %177 : vector<128x256xf32>
    %cst_50 = arith.constant 0.707106769 : f32
    %180 = vector.broadcast %cst_50 : f32 to vector<128x256xf32>
    %181 = arith.mulf %177, %180 : vector<128x256xf32>
    %182 = math.erf %181 : vector<128x256xf32>
    %cst_51 = arith.constant 1.000000e+00 : f32
    %183 = vector.broadcast %cst_51 : f32 to vector<128x256xf32>
    %184 = arith.addf %183, %182 : vector<128x256xf32>
    %185 = arith.mulf %179, %184 : vector<128x256xf32>
    %cst_52 = arith.constant dense<0.000000e+00> : vector<1x256xf32>
    %186 = tpu.matmul %130, %185, %cst_52 {dimension_numbers = #tpu.dot_dimension_numbers<[1], [0], [0], [1], [0, 0, 1, 1], [], []>} : vector<1x128xf32>, vector<128x256xf32>, vector<1x256xf32> -> vector<1x256xf32>
    %187 = vector.broadcast %131 : vector<1x1xf32> to vector<1x256xf32>
    %188 = arith.addf %186, %187 : vector<1x256xf32>
    %c2 = arith.constant 2 : index
    %c0_53 = arith.constant 0 : index
    %c0_54 = arith.constant 0 : index
    %189 = vector.load %arg11[%c2, %c0_53, %c0_54] : memref<4x1x256xf32, #tpu.memory_space<vmem>>, vector<1x1x256xf32>
    %190 = vector.shape_cast %189 : vector<1x1x256xf32> to vector<1x256xf32>
    %191 = vector.shape_cast %188 : vector<1x256xf32> to vector<1x1x256xf32>
    tpu.vector_store %arg11[%c2, %c0_53, %c0_54], %191 {strides = array<i32>} : memref<4x1x256xf32, #tpu.memory_space<vmem>>, vector<1x1x256xf32>,
    %192 = vector.extract_strided_slice %127 {offsets = [96, 0], sizes = [32, 256], strides = [1, 1]} : vector<128x256xf32> to vector<32x256xf32>
    %193 = arith.truncf %128 : vector<128x32xf32> to vector<128x32xbf16>
    %194 = arith.truncf %192 : vector<32x256xf32> to vector<32x256xbf16>
    %cst_55 = arith.constant dense<0.000000e+00> : vector<128x256xf32>
    %195 = tpu.matmul %193, %194, %cst_55 {dimension_numbers = #tpu.dot_dimension_numbers<[1], [0], [0], [1], [0, 0, 1, 1], [], []>} : vector<128x32xbf16>, vector<32x256xbf16>, vector<128x256xf32> -> vector<128x256xf32>
    %196 = vector.broadcast %129 : vector<128x1xf32> to vector<128x256xf32>
    %197 = arith.addf %195, %196 : vector<128x256xf32>
    %cst_56 = arith.constant 5.000000e-01 : f32
    %198 = vector.broadcast %cst_56 : f32 to vector<128x256xf32>
    %199 = arith.mulf %198, %197 : vector<128x256xf32>
    %cst_57 = arith.constant 0.707106769 : f32
    %200 = vector.broadcast %cst_57 : f32 to vector<128x256xf32>
    %201 = arith.mulf %197, %200 : vector<128x256xf32>
    %202 = math.erf %201 : vector<128x256xf32>
    %cst_58 = arith.constant 1.000000e+00 : f32
    %203 = vector.broadcast %cst_58 : f32 to vector<128x256xf32>
    %204 = arith.addf %203, %202 : vector<128x256xf32>
    %205 = arith.mulf %199, %204 : vector<128x256xf32>
    %cst_59 = arith.constant dense<0.000000e+00> : vector<1x256xf32>
    %206 = tpu.matmul %130, %205, %cst_59 {dimension_numbers = #tpu.dot_dimension_numbers<[1], [0], [0], [1], [0, 0, 1, 1], [], []>} : vector<1x128xf32>, vector<128x256xf32>, vector<1x256xf32> -> vector<1x256xf32>
    %207 = vector.broadcast %131 : vector<1x1xf32> to vector<1x256xf32>
    %208 = arith.addf %206, %207 : vector<1x256xf32>
    %c3 = arith.constant 3 : index
    %c0_60 = arith.constant 0 : index
    %c0_61 = arith.constant 0 : index
    %209 = vector.load %arg11[%c3, %c0_60, %c0_61] : memref<4x1x256xf32, #tpu.memory_space<vmem>>, vector<1x1x256xf32>
    %210 = vector.shape_cast %209 : vector<1x1x256xf32> to vector<1x256xf32>
    %211 = vector.shape_cast %208 : vector<1x256xf32> to vector<1x1x256xf32>
    tpu.vector_store %arg11[%c3, %c0_60, %c0_61], %211 {strides = array<i32>} : memref<4x1x256xf32, #tpu.memory_space<vmem>>, vector<1x1x256xf32>,
    return
  }
  func.func @transform_0(%arg0: i32) -> (i32, i32, i32) {
    %c0_i32 = arith.constant 0 : i32
    %c0_i32_0 = arith.constant 0 : i32
    %c0_i32_1 = arith.constant 0 : i32
    return %arg0, %c0_i32, %c0_i32_0 : i32, i32, i32
  }
  func.func @transform_1(%arg0: i32) -> (i32, i32) {
    %c0_i32 = arith.constant 0 : i32
    %c0_i32_0 = arith.constant 0 : i32
    %c0_i32_1 = arith.constant 0 : i32
    return %c0_i32, %c0_i32_0 : i32, i32
  }
  func.func @transform_2(%arg0: i32) -> (i32, i32) {
    %c0_i32 = arith.constant 0 : i32
    %c0_i32_0 = arith.constant 0 : i32
    %c0_i32_1 = arith.constant 0 : i32
    return %c0_i32, %c0_i32_0 : i32, i32
  }
  func.func @transform_3(%arg0: i32) -> (i32, i32, i32) {
    %c0_i32 = arith.constant 0 : i32
    %c0_i32_0 = arith.constant 0 : i32
    %c0_i32_1 = arith.constant 0 : i32
    %c0_i32_2 = arith.constant 0 : i32
    return %c0_i32, %c0_i32_0, %c0_i32_1 : i32, i32, i32
  }
  func.func @transform_4(%arg0: i32) -> (i32, i32) {
    %c0_i32 = arith.constant 0 : i32
    %c0_i32_0 = arith.constant 0 : i32
    %c0_i32_1 = arith.constant 0 : i32
    return %c0_i32, %c0_i32_0 : i32, i32
  }
  func.func @transform_5(%arg0: i32) -> (i32, i32) {
    %c0_i32 = arith.constant 0 : i32
    %c0_i32_0 = arith.constant 0 : i32
    %c0_i32_1 = arith.constant 0 : i32
    return %c0_i32, %c0_i32_0 : i32, i32
  }
  func.func @transform_6(%arg0: i32) -> (i32, i32) {
    %c0_i32 = arith.constant 0 : i32
    %c0_i32_0 = arith.constant 0 : i32
    %c0_i32_1 = arith.constant 0 : i32
    return %c0_i32, %c0_i32_0 : i32, i32
  }
  func.func @transform_7(%arg0: i32) -> (i32, i32) {
    %c0_i32 = arith.constant 0 : i32
    %c0_i32_0 = arith.constant 0 : i32
    %c0_i32_1 = arith.constant 0 : i32
    return %c0_i32, %c0_i32_0 : i32, i32
  }
  func.func @transform_8(%arg0: i32) -> (i32, i32) {
    %c0_i32 = arith.constant 0 : i32
    %c0_i32_0 = arith.constant 0 : i32
    %c0_i32_1 = arith.constant 0 : i32
    return %c0_i32, %c0_i32_0 : i32, i32
  }
  func.func @transform_9(%arg0: i32) -> (i32, i32) {
    %c0_i32 = arith.constant 0 : i32
    %c0_i32_0 = arith.constant 0 : i32
    %c0_i32_1 = arith.constant 0 : i32
    return %c0_i32, %c0_i32_0 : i32, i32
  }
  func.func @transform_10(%arg0: i32) -> (i32, i32, i32) {
    %c0_i32 = arith.constant 0 : i32
    %c0_i32_0 = arith.constant 0 : i32
    %c0_i32_1 = arith.constant 0 : i32
    return %arg0, %c0_i32, %c0_i32_0 : i32, i32, i32
  }
}

</mosaic_0001>

<llo_original>
// kernel: fno2d_forward_packed.1
$region0: #{fno2d_forward_packed.1}
  #allocation0 [shape = 'u32[]', space=smem, size = 0x4, offset = 0x4, fixed_abs, tag = 'smem constant byte address 0x4 - core index']
  #allocation1 [shape = 'u32[144,128]{1,0:T(1,128)}', space=vmem, size = 0x12000, scoped, tag = 'internal scratch']
  #allocation2 [shape = 'f32[1,1]{1,0:T(1,128)S(1)}', space=vmem, size = 0x200, scoped, tag = 'scoped memory for fno2d_forward_packed.1']
  %s0 = inlined_call_operand.vmem [shape: f32[8,3,256], index: 0, kind: input, shape index: {}]
  %s1 = inlined_call_operand.vmem [shape: f32[32,3], index: 1, kind: input, shape index: {}]
  %s2 = inlined_call_operand.vmem [shape: f32[32,1], index: 2, kind: input, shape index: {}]
  %s3 = inlined_call_operand.vmem [shape: f32[2,32,128], index: 3, kind: input, shape index: {}]
  %s4 = inlined_call_operand.vmem [shape: bf16[256,128], index: 4, kind: input, shape index: {}]
  %s5 = inlined_call_operand.vmem [shape: bf16[128,256], index: 5, kind: input, shape index: {}]
  %s6 = inlined_call_operand.vmem [shape: f32[128,32], index: 6, kind: input, shape index: {}]
  %s7 = inlined_call_operand.vmem [shape: f32[128,1], index: 7, kind: input, shape index: {}]
  %s8 = inlined_call_operand.vmem [shape: f32[1,128], index: 8, kind: input, shape index: {}]
  %s9 = inlined_call_operand.<no memory space> [shape: f32[1,1], index: 9, kind: input, shape index: {}]
  %s10 = inlined_call_operand.vmem [shape: f32[8,1,256], index: 10, kind: output, shape index: {}]
  %s11 = sld [smem:[#allocation0]]
  $region73: #{fno2d_forward_packed.1} parent=0
    _
  %s13 = ssub.s32 1, %s11
  %s14 = scalar_select 0, %s13, %s11
  %v15 = vstv %s9
  %16 = vst [vmem:[#allocation2] sm:$0x1] %v15
  loop: start=0, step=1, limit=4
  $region2: #{fno2d_forward_packed.1} parent=0 // loop_pre_header
    _
  $region3: #{fno2d_forward_packed.1} parent=0 // loop_header
    %s18 = sphi 0, %s22
    %p19 = scmp.ge.s32.totalorder %s18, 4
    %s28 = sphi 0, %s30
    %s31 = sphi 0, %s28
    %s32 = sphi 0, %s31
    %s48 = sphi 0, %s32
    %s52 = sphi 0, %s52
    %s54 = sphi 0, %s52
    %s55 = sphi 0, %s54
    %s69 = sphi 0, %s55
    %s73 = sphi 0, %s73
    %s75 = sphi 0, %s73
    %s76 = sphi 0, %s75
    %s90 = sphi 0, %s76
    %s94 = sphi 0, %s94
    %s96 = sphi 0, %s94
    %s97 = sphi 0, %s96
    %s111 = sphi 0, %s97
    %s115 = sphi 0, %s115
    %s117 = sphi 0, %s115
    %s118 = sphi 0, %s117
    %s132 = sphi 0, %s118
    %s136 = sphi 0, %s136
    %s138 = sphi 0, %s136
    %s139 = sphi 0, %s138
    %s153 = sphi 0, %s139
    %s157 = sphi 0, %s157
    %s159 = sphi 0, %s157
    %s160 = sphi 0, %s159
    %s174 = sphi 0, %s160
    %s178 = sphi 0, %s178
    %s180 = sphi 0, %s178
    %s181 = sphi 0, %s180
    %s195 = sphi 0, %s181
    %s199 = sphi 0, %s199
    %s201 = sphi 0, %s199
    %s202 = sphi 0, %s201
    %s216 = sphi 0, %s202
    %s220 = sphi 0, %s220
    %s222 = sphi 0, %s220
    %s223 = sphi 0, %s222
    %s237 = sphi 0, %s223
    %s243 = sphi 0, %s245
    %s246 = sphi 0, %s243
    %s247 = sphi 0, %s246
    %s263 = sphi 0, %s247
  $region4: #{fno2d_forward_packed.1} parent=0 // loop_header_branch
    %21 = sbr.rel (%p19) target = $region8
  $region5: #{fno2d_forward_packed.1} parent=0 // loop_body
    %s23 = ssub.s32 %s18, 1
    %s24 = ssub.s32 %s18, 2
    %s25 = sadd.s32 %s18, 1
    %s26 = ssub.s32 %s18, %s25
    %p27 = scmp.eq.s32.totalorder %s26, 0
    %s29 = sadd.s32 %s28, 1
    %s30 = scalar_select %p27, %s28, %s29
    %p33 = pneg %p27
    %p34 = scmp.eq.s32.totalorder %s18, 1
    %p35 = por %p33, %p34
    %p36 = scmp.ne.s32.totalorder %s28, %s31
    %p37 = scmp.eq.s32.totalorder %s18, 0
    %p38 = por %p36, %p37
    %p39 = scmp.ne.s32.totalorder %s28, %s31
    %p40 = scmp.eq.s32.totalorder %s23, 1
    %p41 = por %p39, %p40
    %p42 = scmp.ne.s32.totalorder %s31, %s32
    %p43 = scmp.eq.s32.totalorder %s23, 0
    %p44 = por %p42, %p43
    %p45 = scmp.ne.s32.totalorder %s31, %s32
    %p46 = scmp.eq.s32.totalorder %s24, 1
    %p47 = por %p45, %p46
    %p49 = scmp.ne.s32.totalorder %s32, %s48
    %p50 = scmp.eq.s32.totalorder %s24, 0
    %p51 = por %p49, %p50
    %s53 = sadd.s32 %s52, 1
    %p56 = scmp.eq.s32.totalorder %s18, 1
    %p57 = scmp.ne.s32.totalorder %s52, %s54
    %p58 = scmp.eq.s32.totalorder %s18, 0
    %p59 = por %p57, %p58
    %p60 = scmp.ne.s32.totalorder %s52, %s54
    %p61 = scmp.eq.s32.totalorder %s23, 1
    %p62 = por %p60, %p61
    %p63 = scmp.ne.s32.totalorder %s54, %s55
    %p64 = scmp.eq.s32.totalorder %s23, 0
    %p65 = por %p63, %p64
    %p66 = scmp.ne.s32.totalorder %s54, %s55
    %p67 = scmp.eq.s32.totalorder %s24, 1
    %p68 = por %p66, %p67
    %p70 = scmp.ne.s32.totalorder %s55, %s69
    %p71 = scmp.eq.s32.totalorder %s24, 0
    %p72 = por %p70, %p71
    %s74 = sadd.s32 %s73, 1
    %p77 = scmp.eq.s32.totalorder %s18, 1
    %p78 = scmp.ne.s32.totalorder %s73, %s75
    %p79 = scmp.eq.s32.totalorder %s18, 0
    %p80 = por %p78, %p79
    %p81 = scmp.ne.s32.totalorder %s73, %s75
    %p82 = scmp.eq.s32.totalorder %s23, 1
    %p83 = por %p81, %p82
    %p84 = scmp.ne.s32.totalorder %s75, %s76
    %p85 = scmp.eq.s32.totalorder %s23, 0
    %p86 = por %p84, %p85
    %p87 = scmp.ne.s32.totalorder %s75, %s76
    %p88 = scmp.eq.s32.totalorder %s24, 1
    %p89 = por %p87, %p88
    %p91 = scmp.ne.s32.totalorder %s76, %s90
    %p92 = scmp.eq.s32.totalorder %s24, 0
    %p93 = por %p91, %p92
    %s95 = sadd.s32 %s94, 1
    %p98 = scmp.eq.s32.totalorder %s18, 1
    %p99 = scmp.ne.s32.totalorder %s94, %s96
    %p100 = scmp.eq.s32.totalorder %s18, 0
    %p101 = por %p99, %p100
    %p102 = scmp.ne.s32.totalorder %s94, %s96
    %p103 = scmp.eq.s32.totalorder %s23, 1
    %p104 = por %p102, %p103
    %p105 = scmp.ne.s32.totalorder %s96, %s97
    %p106 = scmp.eq.s32.totalorder %s23, 0
    %p107 = por %p105, %p106
    %p108 = scmp.ne.s32.totalorder %s96, %s97
    %p109 = scmp.eq.s32.totalorder %s24, 1
    %p110 = por %p108, %p109
    %p112 = scmp.ne.s32.totalorder %s97, %s111
    %p113 = scmp.eq.s32.totalorder %s24, 0
    %p114 = por %p112, %p113
    %s116 = sadd.s32 %s115, 1
    %p119 = scmp.eq.s32.totalorder %s18, 1
    %p120 = scmp.ne.s32.totalorder %s115, %s117
    %p121 = scmp.eq.s32.totalorder %s18, 0
    %p122 = por %p120, %p121
    %p123 = scmp.ne.s32.totalorder %s115, %s117
    %p124 = scmp.eq.s32.totalorder %s23, 1
    %p125 = por %p123, %p124
    %p126 = scmp.ne.s32.totalorder %s117, %s118
    %p127 = scmp.eq.s32.totalorder %s23, 0
    %p128 = por %p126, %p127
    %p129 = scmp.ne.s32.totalorder %s117, %s118
    %p130 = scmp.eq.s32.totalorder %s24, 1
    %p131 = por %p129, %p130
    %p133 = scmp.ne.s32.totalorder %s118, %s132
    %p134 = scmp.eq.s32.totalorder %s24, 0
    %p135 = por %p133, %p134
    %s137 = sadd.s32 %s136, 1
    %p140 = scmp.eq.s32.totalorder %s18, 1
    %p141 = scmp.ne.s32.totalorder %s136, %s138
    %p142 = scmp.eq.s32.totalorder %s18, 0
    %p143 = por %p141, %p142
    %p144 = scmp.ne.s32.totalorder %s136, %s138
    %p145 = scmp.eq.s32.totalorder %s23, 1
    %p146 = por %p144, %p145
    %p147 = scmp.ne.s32.totalorder %s138, %s139
    %p148 = scmp.eq.s32.totalorder %s23, 0
    %p149 = por %p147, %p148
    %p150 = scmp.ne.s32.totalorder %s138, %s139
    %p151 = scmp.eq.s32.totalorder %s24, 1
    %p152 = por %p150, %p151
    %p154 = scmp.ne.s32.totalorder %s139, %s153
    %p155 = scmp.eq.s32.totalorder %s24, 0
    %p156 = por %p154, %p155
    %s158 = sadd.s32 %s157, 1
    %p161 = scmp.eq.s32.totalorder %s18, 1
    %p162 = scmp.ne.s32.totalorder %s157, %s159
    %p163 = scmp.eq.s32.totalorder %s18, 0
    %p164 = por %p162, %p163
    %p165 = scmp.ne.s32.totalorder %s157, %s159
    %p166 = scmp.eq.s32.totalorder %s23, 1
    %p167 = por %p165, %p166
    %p168 = scmp.ne.s32.totalorder %s159, %s160
    %p169 = scmp.eq.s32.totalorder %s23, 0
    %p170 = por %p168, %p169
    %p171 = scmp.ne.s32.totalorder %s159, %s160
    %p172 = scmp.eq.s32.totalorder %s24, 1
    %p173 = por %p171, %p172
    %p175 = scmp.ne.s32.totalorder %s160, %s174
    %p176 = scmp.eq.s32.totalorder %s24, 0
    %p177 = por %p175, %p176
    %s179 = sadd.s32 %s178, 1
    %p182 = scmp.eq.s32.totalorder %s18, 1
    %p183 = scmp.ne.s32.totalorder %s178, %s180
    %p184 = scmp.eq.s32.totalorder %s18, 0
    %p185 = por %p183, %p184
    %p186 = scmp.ne.s32.totalorder %s178, %s180
    %p187 = scmp.eq.s32.totalorder %s23, 1
    %p188 = por %p186, %p187
    %p189 = scmp.ne.s32.totalorder %s180, %s181
    %p190 = scmp.eq.s32.totalorder %s23, 0
    %p191 = por %p189, %p190
    %p192 = scmp.ne.s32.totalorder %s180, %s181
    %p193 = scmp.eq.s32.totalorder %s24, 1
    %p194 = por %p192, %p193
    %p196 = scmp.ne.s32.totalorder %s181, %s195
    %p197 = scmp.eq.s32.totalorder %s24, 0
    %p198 = por %p196, %p197
    %s200 = sadd.s32 %s199, 1
    %p203 = scmp.eq.s32.totalorder %s18, 1
    %p204 = scmp.ne.s32.totalorder %s199, %s201
    %p205 = scmp.eq.s32.totalorder %s18, 0
    %p206 = por %p204, %p205
    %p207 = scmp.ne.s32.totalorder %s199, %s201
    %p208 = scmp.eq.s32.totalorder %s23, 1
    %p209 = por %p207, %p208
    %p210 = scmp.ne.s32.totalorder %s201, %s202
    %p211 = scmp.eq.s32.totalorder %s23, 0
    %p212 = por %p210, %p211
    %p213 = scmp.ne.s32.totalorder %s201, %s202
    %p214 = scmp.eq.s32.totalorder %s24, 1
    %p215 = por %p213, %p214
    %p217 = scmp.ne.s32.totalorder %s202, %s216
    %p218 = scmp.eq.s32.totalorder %s24, 0
    %p219 = por %p217, %p218
    %s221 = sadd.s32 %s220, 1
    %p224 = scmp.eq.s32.totalorder %s18, 1
    %p225 = scmp.ne.s32.totalorder %s220, %s222
    %p226 = scmp.eq.s32.totalorder %s18, 0
    %p227 = por %p225, %p226
    %p228 = scmp.ne.s32.totalorder %s220, %s222
    %p229 = scmp.eq.s32.totalorder %s23, 1
    %p230 = por %p228, %p229
    %p231 = scmp.ne.s32.totalorder %s222, %s223
    %p232 = scmp.eq.s32.totalorder %s23, 0
    %p233 = por %p231, %p232
    %p234 = scmp.ne.s32.totalorder %s222, %s223
    %p235 = scmp.eq.s32.totalorder %s24, 1
    %p236 = por %p234, %p235
    %p238 = scmp.ne.s32.totalorder %s223, %s237
    %p239 = scmp.eq.s32.totalorder %s24, 0
    %p240 = por %p238, %p239
    %s241 = ssub.s32 %s18, %s25
    %p242 = scmp.eq.s32.totalorder %s241, 0
    %s244 = sadd.s32 %s243, 1
    %s245 = scalar_select %p242, %s243, %s244
    %p248 = pneg %p242
    %p249 = scmp.eq.s32.totalorder %s18, 1
    %p250 = por %p248, %p249
    %p251 = scmp.ne.s32.totalorder %s243, %s246
    %p252 = scmp.eq.s32.totalorder %s18, 0
    %p253 = por %p251, %p252
    %p254 = scmp.ne.s32.totalorder %s243, %s246
    %p255 = scmp.eq.s32.totalorder %s23, 1
    %p256 = por %p254, %p255
    %p257 = scmp.ne.s32.totalorder %s246, %s247
    %p258 = scmp.eq.s32.totalorder %s23, 0
    %p259 = por %p257, %p258
    %p260 = scmp.ne.s32.totalorder %s246, %s247
    %p261 = scmp.eq.s32.totalorder %s24, 1
    %p262 = por %p260, %p261
    %p264 = scmp.ne.s32.totalorder %s247, %s263
    %p265 = scmp.eq.s32.totalorder %s24, 0
    %p266 = por %p264, %p265
    %p267 = scmp.le.s32.totalorder 1, %s18
    %p268 = scmp.lt.s32.totalorder %s18, 3
    %p269 = pnand %p267, %p268
    %p270 = pneg %p269
    // Predicated region
    $region9: #{fno2d_forward_packed.1} parent=5 // pred_check
      _
    $region10: #{fno2d_forward_packed.1} parent=5 // pred_check_branch
      %272 = sbr.rel (%p269) target = $region12
    $region11: #{fno2d_forward_packed.1} parent=5 // pred_region
      %s273 = ssub.s32 %s18, 1
      // Predicated region
      $region13: #{fno2d_forward_packed.1} parent=11 // pred_check
        %p274 = pneg %p65
      $region14: #{fno2d_forward_packed.1} parent=11 // pred_check_branch
        %276 = sbr.rel (%p274) target = $region16
      $region15: #{fno2d_forward_packed.1} parent=11 // pred_region
        _
      $region16: #{fno2d_forward_packed.1} parent=11 // pred_fallthru
        _
      // Predicated region
      $region17: #{fno2d_forward_packed.1} parent=11 // pred_check
        %p277 = pneg %p86
      $region18: #{fno2d_forward_packed.1} parent=11 // pred_check_branch
        %279 = sbr.rel (%p277) target = $region20
      $region19: #{fno2d_forward_packed.1} parent=11 // pred_region
        _
      $region20: #{fno2d_forward_packed.1} parent=11 // pred_fallthru
        _
      // Predicated region
      $region21: #{fno2d_forward_packed.1} parent=11 // pred_check
        %p280 = pneg %p107
      $region22: #{fno2d_forward_packed.1} parent=11 // pred_check_branch
        %282 = sbr.rel (%p280) target = $region24
      $region23: #{fno2d_forward_packed.1} parent=11 // pred_region
        _
      $region24: #{fno2d_forward_packed.1} parent=11 // pred_fallthru
        _
      // Predicated region
      $region25: #{fno2d_forward_packed.1} parent=11 // pred_check
        %p283 = pneg %p128
      $region26: #{fno2d_forward_packed.1} parent=11 // pred_check_branch
        %285 = sbr.rel (%p283) target = $region28
      $region27: #{fno2d_forward_packed.1} parent=11 // pred_region
        _
      $region28: #{fno2d_forward_packed.1} parent=11 // pred_fallthru
        _
      // Predicated region
      $region29: #{fno2d_forward_packed.1} parent=11 // pred_check
        %p286 = pneg %p149
      $region30: #{fno2d_forward_packed.1} parent=11 // pred_check_branch
        %288 = sbr.rel (%p286) target = $region32
      $region31: #{fno2d_forward_packed.1} parent=11 // pred_region
        _
      $region32: #{fno2d_forward_packed.1} parent=11 // pred_fallthru
        _
      // Predicated region
      $region33: #{fno2d_forward_packed.1} parent=11 // pred_check
        %p289 = pneg %p170
      $region34: #{fno2d_forward_packed.1} parent=11 // pred_check_branch
        %291 = sbr.rel (%p289) target = $region36
      $region35: #{fno2d_forward_packed.1} parent=11 // pred_region
        _
      $region36: #{fno2d_forward_packed.1} parent=11 // pred_fallthru
        _
      // Predicated region
      $region37: #{fno2d_forward_packed.1} parent=11 // pred_check
        %p292 = pneg %p191
      $region38: #{fno2d_forward_packed.1} parent=11 // pred_check_branch
        %294 = sbr.rel (%p292) target = $region40
      $region39: #{fno2d_forward_packed.1} parent=11 // pred_region
        _
      $region40: #{fno2d_forward_packed.1} parent=11 // pred_fallthru
        _
      // Predicated region
      $region41: #{fno2d_forward_packed.1} parent=11 // pred_check
        %p295 = pneg %p212
      $region42: #{fno2d_forward_packed.1} parent=11 // pred_check_branch
        %297 = sbr.rel (%p295) target = $region44
      $region43: #{fno2d_forward_packed.1} parent=11 // pred_region
        _
      $region44: #{fno2d_forward_packed.1} parent=11 // pred_fallthru
        _
      // Predicated region
      $region45: #{fno2d_forward_packed.1} parent=11 // pred_check
        %p298 = pneg %p233
      $region46: #{fno2d_forward_packed.1} parent=11 // pred_check_branch
        %300 = sbr.rel (%p298) target = $region48
      $region47: #{fno2d_forward_packed.1} parent=11 // pred_region
        _
      $region48: #{fno2d_forward_packed.1} parent=11 // pred_fallthru
        _
    $region12: #{fno2d_forward_packed.1} parent=5 // pred_fallthru
      _
    %p301 = scmp.lt.s32.totalorder %s18, 2
    // Predicated region
    $region49: #{fno2d_forward_packed.1} parent=5 // pred_check
      %p302 = pneg %p301
    $region50: #{fno2d_forward_packed.1} parent=5 // pred_check_branch
      %304 = sbr.rel (%p302) target = $region52
    $region51: #{fno2d_forward_packed.1} parent=5 // pred_region
      // Predicated region
      $region53: #{fno2d_forward_packed.1} parent=51 // pred_check
        %p305 = pneg %p38
      $region54: #{fno2d_forward_packed.1} parent=51 // pred_check_branch
        %307 = sbr.rel (%p305) target = $region56
      $region55: #{fno2d_forward_packed.1} parent=51 // pred_region
        %s308 = smul.u32 4, %s18
        %p309 = scmp.lt.s32.totalorder %s308, 7
        %s310 = scalar_select %p309, %s308, 7
        %s311 = smul.addr %s310, 2
        %s312 = smul.addr %s311, 4
        %s313 = scalar_lea.vmem %s0, %s312
        %s314 = smul.u32 4, %s18
      $region56: #{fno2d_forward_packed.1} parent=51 // pred_fallthru
        _
    $region52: #{fno2d_forward_packed.1} parent=5 // pred_fallthru
      _
    %p315 = scmp.le.s32.totalorder 1, %s18
    %p316 = scmp.lt.s32.totalorder %s18, 3
    %p317 = pnand %p315, %p316
    %p318 = pneg %p317
    // Predicated region
    $region57: #{fno2d_forward_packed.1} parent=5 // pred_check
      _
    $region58: #{fno2d_forward_packed.1} parent=5 // pred_check_branch
      %320 = sbr.rel (%p317) target = $region60
    $region59: #{fno2d_forward_packed.1} parent=5 // pred_region
      %s321 = ssub.s32 %s18, 1
      %s322 = smul.u32 4, %s23
      %p323 = scmp.lt.s32.totalorder %s322, 7
      %s324 = scalar_select %p323, %s322, 7
      %s325 = smul.addr %s324, 2
      %s326 = smul.addr %s325, 4
      %s327 = scalar_lea.vmem %s0, %s326
      %p328 = pneg %p44
      %p329 = pneg %p41
      %p330 = pneg %p65
      %p331 = pneg %p62
      %p332 = pneg %p86
      %p333 = pneg %p83
      %p334 = pneg %p107
      %p335 = pneg %p104
      %p336 = pneg %p128
      %p337 = pneg %p125
      %p338 = pneg %p149
      %p339 = pneg %p146
      %p340 = pneg %p170
      %p341 = pneg %p167
      %p342 = pneg %p191
      %p343 = pneg %p188
      %p344 = pneg %p212
      %p345 = pneg %p209
      %p346 = pneg %p233
      %p347 = pneg %p230
      %p348 = pneg %p259
      %p349 = pneg %p256
      %s350 = smul.u32 4, %s23
      %p351 = scmp.lt.s32.totalorder %s350, 7
      %s352 = scalar_select %p351, %s350, 7
      %s353 = smul.addr %s352, 2
      %s354 = scalar_lea.vmem %s10, %s353
      %s355 = smul.u32 4, %s23
      %p356 = scmp.lt.s32.totalorder %s355, 7
      %s357 = scalar_select %p356, %s355, 7
      %s358 = smul.addr %s357, 2
      %s359 = smul.addr %s358, 4
      %s360 = scalar_lea.vmem %s0, %s359
      %s361 = smul.u32 4, %s23
      %s362 = smul.u32 4, %s23
      %p363 = scmp.lt.s32.totalorder %s362, 7
      %s364 = scalar_select %p363, %s362, 7
      %s365 = smul.addr %s364, 2
      %s366 = scalar_lea.vmem %s10, %s365
      %s367 = smul.u32 4, %s23
      %v369 = vld [vmem:[%s360] sm:$0x77]
      %v370 = vld [vmem:[%s360 + $0x8] sm:$0x77]
      %v371 = vld [vmem:[%s360 + $0x10] sm:$0x77]
      %v372 = vld [vmem:[%s360 + $0x18] sm:$0x77]
      %v373 = vld [vmem:[%s1] sm:$0xff]
      %v374 = vld [vmem:[%s1 + $0x8] sm:$0xff]
      %v375 = vld [vmem:[%s1 + $0x10] sm:$0xff]
      %v376 = vld [vmem:[%s1 + $0x18] sm:$0xff]
      %v377 = vld [vmem:[%s2] sm:$0xff]
      %v378 = vld [vmem:[%s2 + $0x8] sm:$0xff]
      %v379 = vld [vmem:[%s2 + $0x10] sm:$0xff]
      %v380 = vld [vmem:[%s2 + $0x18] sm:$0xff]
      %382 = vset.pattern.permute.xlu0 0
      %383 = vperm.xlu0 %382, %v373
      %v384 = vpop.permute.xlu0 %383
      %387 = vset.pattern.permute.xlu0 0
      %388 = vperm.xlu0 %387, %v374
      %v389 = vpop.permute.xlu0 %388
      %392 = vset.pattern.permute.xlu0 0
      %393 = vperm.xlu0 %392, %v375
      %v394 = vpop.permute.xlu0 %393
      %397 = vset.pattern.permute.xlu0 0
      %398 = vperm.xlu0 %397, %v376
      %v399 = vpop.permute.xlu0 %398
      %v402 = vlaneseq
      %v403 = vshrl.u32 %v402, 7
      %v404 = vsub.s32 0, %v403
      %v405 = vrot.slane %v369, %v404
      %v406 = vlaneseq
      %v407 = vshrl.u32 %v406, 7
      %v408 = vsub.s32 4, %v407
      %v409 = vrot.slane %v369, %v408
      %v412 = vlaneseq
      %v413 = vshrl.u32 %v412, 7
      %v414 = vsub.s32 0, %v413
      %v415 = vrot.slane %v405, %v414
      %v416 = vlaneseq
      %v417 = vshrl.u32 %v416, 7
      %v418 = vsub.s32 0, %v417
      %v419 = vrot.slane %v409, %v418
      %v420 = vmul.f32 %v384, %v415
      %v421 = vmul.f32 %v384, %v419
      %v422 = vmul.f32 %v389, %v415
      %v423 = vmul.f32 %v389, %v419
      %v424 = vmul.f32 %v394, %v415
      %v425 = vmul.f32 %v394, %v419
      %v426 = vmul.f32 %v399, %v415
      %v427 = vmul.f32 %v399, %v419
      %428 = vset.pattern.permute.xlu0 1
      %429 = vperm.xlu0 %428, %v373
      %v430 = vpop.permute.xlu0 %429
      %432 = vset.pattern.permute.xlu0 1
      %433 = vperm.xlu0 %432, %v374
      %v434 = vpop.permute.xlu0 %433
      %436 = vset.pattern.permute.xlu0 1
      %437 = vperm.xlu0 %436, %v375
      %v438 = vpop.permute.xlu0 %437
      %440 = vset.pattern.permute.xlu0 1
      %441 = vperm.xlu0 %440, %v376
      %v442 = vpop.permute.xlu0 %441
      %v444 = vlaneseq
      %v445 = vshrl.u32 %v444, 7
      %v446 = vsub.s32 1, %v445
      %v447 = vrot.slane %v369, %v446
      %v448 = vlaneseq
      %v449 = vshrl.u32 %v448, 7
      %v450 = vsub.s32 5, %v449
      %v451 = vrot.slane %v369, %v450
      %v454 = vlaneseq
      %v455 = vshrl.u32 %v454, 7
      %v456 = vsub.s32 1, %v455
      %v457 = vrot.slane %v447, %v456
      %v458 = vlaneseq
      %v459 = vshrl.u32 %v458, 7
      %v460 = vsub.s32 1, %v459
      %v461 = vrot.slane %v451, %v460
      %v462 = vmul.f32 %v430, %v457
      %v463 = vmul.f32 %v430, %v461
      %v464 = vmul.f32 %v434, %v457
      %v465 = vmul.f32 %v434, %v461
      %v466 = vmul.f32 %v438, %v457
      %v467 = vmul.f32 %v438, %v461
      %v468 = vmul.f32 %v442, %v457
      %v469 = vmul.f32 %v442, %v461
      %v470 = vadd.f32 %v420, %v462
      %v471 = vadd.f32 %v421, %v463
      %v472 = vadd.f32 %v422, %v464
      %v473 = vadd.f32 %v423, %v465
      %v474 = vadd.f32 %v424, %v466
      %v475 = vadd.f32 %v425, %v467
      %v476 = vadd.f32 %v426, %v468
      %v477 = vadd.f32 %v427, %v469
      %478 = vset.pattern.permute.xlu0 2
      %479 = vperm.xlu0 %478, %v373
      %v480 = vpop.permute.xlu0 %479
      %482 = vset.pattern.permute.xlu0 2
      %483 = vperm.xlu0 %482, %v374
      %v484 = vpop.permute.xlu0 %483
      %486 = vset.pattern.permute.xlu0 2
      %487 = vperm.xlu0 %486, %v375
      %v488 = vpop.permute.xlu0 %487
      %490 = vset.pattern.permute.xlu0 2
      %491 = vperm.xlu0 %490, %v376
      %v492 = vpop.permute.xlu0 %491
      %v494 = vlaneseq
      %v495 = vshrl.u32 %v494, 7
      %v496 = vsub.s32 2, %v495
      %v497 = vrot.slane %v369, %v496
      %v498 = vlaneseq
      %v499 = vshrl.u32 %v498, 7
      %v500 = vsub.s32 6, %v499
      %v501 = vrot.slane %v369, %v500
      %v504 = vlaneseq
      %v505 = vshrl.u32 %v504, 7
      %v506 = vsub.s32 2, %v505
      %v507 = vrot.slane %v497, %v506
      %v508 = vlaneseq
      %v509 = vshrl.u32 %v508, 7
      %v510 = vsub.s32 2, %v509
      %v511 = vrot.slane %v501, %v510
      %v512 = vmul.f32 %v480, %v507
      %v513 = vmul.f32 %v480, %v511
      %v514 = vmul.f32 %v484, %v507
      %v515 = vmul.f32 %v484, %v511
      %v516 = vmul.f32 %v488, %v507
      %v517 = vmul.f32 %v488, %v511
      %v518 = vmul.f32 %v492, %v507
      %v519 = vmul.f32 %v492, %v511
      %v520 = vadd.f32 %v470, %v512
      %v521 = vadd.f32 %v471, %v513
      %v522 = vadd.f32 %v472, %v514
      %v523 = vadd.f32 %v473, %v515
      %v524 = vadd.f32 %v474, %v516
      %v525 = vadd.f32 %v475, %v517
      %v526 = vadd.f32 %v476, %v518
      %v527 = vadd.f32 %v477, %v519
      %529 = vset.pattern.permute.xlu0 0
      %530 = vperm.xlu0 %529, %v377
      %v531 = vpop.permute.xlu0 %530
      %534 = vset.pattern.permute.xlu0 0
      %535 = vperm.xlu0 %534, %v378
      %v536 = vpop.permute.xlu0 %535
      %539 = vset.pattern.permute.xlu0 0
      %540 = vperm.xlu0 %539, %v379
      %v541 = vpop.permute.xlu0 %540
      %544 = vset.pattern.permute.xlu0 0
      %545 = vperm.xlu0 %544, %v380
      %v546 = vpop.permute.xlu0 %545
      %v548 = vadd.f32 %v520, %v531
      %v549 = vadd.f32 %v521, %v531
      %v550 = vadd.f32 %v522, %v536
      %v551 = vadd.f32 %v523, %v536
      %v552 = vadd.f32 %v524, %v541
      %v553 = vadd.f32 %v525, %v541
      %v554 = vadd.f32 %v526, %v546
      %v555 = vadd.f32 %v527, %v546
      %v557 = vlaneseq
      %v558 = vshrl.u32 %v557, 7
      %v559 = vsub.s32 0, %v558
      %v560 = vrot.slane %v370, %v559
      %v561 = vlaneseq
      %v562 = vshrl.u32 %v561, 7
      %v563 = vsub.s32 4, %v562
      %v564 = vrot.slane %v370, %v563
      %v567 = vlaneseq
      %v568 = vshrl.u32 %v567, 7
      %v569 = vsub.s32 0, %v568
      %v570 = vrot.slane %v560, %v569
      %v571 = vlaneseq
      %v572 = vshrl.u32 %v571, 7
      %v573 = vsub.s32 0, %v572
      %v574 = vrot.slane %v564, %v573
      %v575 = vmul.f32 %v384, %v570
      %v576 = vmul.f32 %v384, %v574
      %v577 = vmul.f32 %v389, %v570
      %v578 = vmul.f32 %v389, %v574
      %v579 = vmul.f32 %v394, %v570
      %v580 = vmul.f32 %v394, %v574
      %v581 = vmul.f32 %v399, %v570
      %v582 = vmul.f32 %v399, %v574
      %v583 = vlaneseq
      %v584 = vshrl.u32 %v583, 7
      %v585 = vsub.s32 1, %v584
      %v586 = vrot.slane %v370, %v585
      %v587 = vlaneseq
      %v588 = vshrl.u32 %v587, 7
      %v589 = vsub.s32 5, %v588
      %v590 = vrot.slane %v370, %v589
      %v593 = vlaneseq
      %v594 = vshrl.u32 %v593, 7
      %v595 = vsub.s32 1, %v594
      %v596 = vrot.slane %v586, %v595
      %v597 = vlaneseq
      %v598 = vshrl.u32 %v597, 7
      %v599 = vsub.s32 1, %v598
      %v600 = vrot.slane %v590, %v599
      %v601 = vmul.f32 %v430, %v596
      %v602 = vmul.f32 %v430, %v600
      %v603 = vmul.f32 %v434, %v596
      %v604 = vmul.f32 %v434, %v600
      %v605 = vmul.f32 %v438, %v596
      %v606 = vmul.f32 %v438, %v600
      %v607 = vmul.f32 %v442, %v596
      %v608 = vmul.f32 %v442, %v600
      %v609 = vadd.f32 %v575, %v601
      %v610 = vadd.f32 %v576, %v602
      %v611 = vadd.f32 %v577, %v603
      %v612 = vadd.f32 %v578, %v604
      %v613 = vadd.f32 %v579, %v605
      %v614 = vadd.f32 %v580, %v606
      %v615 = vadd.f32 %v581, %v607
      %v616 = vadd.f32 %v582, %v608
      %v617 = vlaneseq
      %v618 = vshrl.u32 %v617, 7
      %v619 = vsub.s32 2, %v618
      %v620 = vrot.slane %v370, %v619
      %v621 = vlaneseq
      %v622 = vshrl.u32 %v621, 7
      %v623 = vsub.s32 6, %v622
      %v624 = vrot.slane %v370, %v623
      %v627 = vlaneseq
      %v628 = vshrl.u32 %v627, 7
      %v629 = vsub.s32 2, %v628
      %v630 = vrot.slane %v620, %v629
      %v631 = vlaneseq
      %v632 = vshrl.u32 %v631, 7
      %v633 = vsub.s32 2, %v632
      %v634 = vrot.slane %v624, %v633
      %v635 = vmul.f32 %v480, %v630
      %v636 = vmul.f32 %v480, %v634
      %v637 = vmul.f32 %v484, %v630
      %v638 = vmul.f32 %v484, %v634
      %v639 = vmul.f32 %v488, %v630
      %v640 = vmul.f32 %v488, %v634
      %v641 = vmul.f32 %v492, %v630
      %v642 = vmul.f32 %v492, %v634
      %v643 = vadd.f32 %v609, %v635
      %v644 = vadd.f32 %v610, %v636
      %v645 = vadd.f32 %v611, %v637
      %v646 = vadd.f32 %v612, %v638
      %v647 = vadd.f32 %v613, %v639
      %v648 = vadd.f32 %v614, %v640
      %v649 = vadd.f32 %v615, %v641
      %v650 = vadd.f32 %v616, %v642
      %v651 = vadd.f32 %v643, %v531
      %v652 = vadd.f32 %v644, %v531
      %v653 = vadd.f32 %v645, %v536
      %v654 = vadd.f32 %v646, %v536
      %v655 = vadd.f32 %v647, %v541
      %v656 = vadd.f32 %v648, %v541
      %v657 = vadd.f32 %v649, %v546
      %v658 = vadd.f32 %v650, %v546
      %v660 = vlaneseq
      %v661 = vshrl.u32 %v660, 7
      %v662 = vsub.s32 0, %v661
      %v663 = vrot.slane %v371, %v662
      %v664 = vlaneseq
      %v665 = vshrl.u32 %v664, 7
      %v666 = vsub.s32 4, %v665
      %v667 = vrot.slane %v371, %v666
      %v670 = vlaneseq
      %v671 = vshrl.u32 %v670, 7
      %v672 = vsub.s32 0, %v671
      %v673 = vrot.slane %v663, %v672
      %v674 = vlaneseq
      %v675 = vshrl.u32 %v674, 7
      %v676 = vsub.s32 0, %v675
      %v677 = vrot.slane %v667, %v676
      %v678 = vmul.f32 %v384, %v673
      %v679 = vmul.f32 %v384, %v677
      %v680 = vmul.f32 %v389, %v673
      %v681 = vmul.f32 %v389, %v677
      %v682 = vmul.f32 %v394, %v673
      %v683 = vmul.f32 %v394, %v677
      %v684 = vmul.f32 %v399, %v673
      %v685 = vmul.f32 %v399, %v677
      %v686 = vlaneseq
      %v687 = vshrl.u32 %v686, 7
      %v688 = vsub.s32 1, %v687
      %v689 = vrot.slane %v371, %v688
      %v690 = vlaneseq
      %v691 = vshrl.u32 %v690, 7
      %v692 = vsub.s32 5, %v691
      %v693 = vrot.slane %v371, %v692
      %v696 = vlaneseq
      %v697 = vshrl.u32 %v696, 7
      %v698 = vsub.s32 1, %v697
      %v699 = vrot.slane %v689, %v698
      %v700 = vlaneseq
      %v701 = vshrl.u32 %v700, 7
      %v702 = vsub.s32 1, %v701
      %v703 = vrot.slane %v693, %v702
      %v704 = vmul.f32 %v430, %v699
      %v705 = vmul.f32 %v430, %v703
      %v706 = vmul.f32 %v434, %v699
      %v707 = vmul.f32 %v434, %v703
      %v708 = vmul.f32 %v438, %v699
      %v709 = vmul.f32 %v438, %v703
      %v710 = vmul.f32 %v442, %v699
      %v711 = vmul.f32 %v442, %v703
      %v712 = vadd.f32 %v678, %v704
      %v713 = vadd.f32 %v679, %v705
      %v714 = vadd.f32 %v680, %v706
      %v715 = vadd.f32 %v681, %v707
      %v716 = vadd.f32 %v682, %v708
      %v717 = vadd.f32 %v683, %v709
      %v718 = vadd.f32 %v684, %v710
      %v719 = vadd.f32 %v685, %v711
      %v720 = vlaneseq
      %v721 = vshrl.u32 %v720, 7
      %v722 = vsub.s32 2, %v721
      %v723 = vrot.slane %v371, %v722
      %v724 = vlaneseq
      %v725 = vshrl.u32 %v724, 7
      %v726 = vsub.s32 6, %v725
      %v727 = vrot.slane %v371, %v726
      %v730 = vlaneseq
      %v731 = vshrl.u32 %v730, 7
      %v732 = vsub.s32 2, %v731
      %v733 = vrot.slane %v723, %v732
      %v734 = vlaneseq
      %v735 = vshrl.u32 %v734, 7
      %v736 = vsub.s32 2, %v735
      %v737 = vrot.slane %v727, %v736
      %v738 = vmul.f32 %v480, %v733
      %v739 = vmul.f32 %v480, %v737
      %v740 = vmul.f32 %v484, %v733
      %v741 = vmul.f32 %v484, %v737
      %v742 = vmul.f32 %v488, %v733
      %v743 = vmul.f32 %v488, %v737
      %v744 = vmul.f32 %v492, %v733
      %v745 = vmul.f32 %v492, %v737
      %v746 = vadd.f32 %v712, %v738
      %v747 = vadd.f32 %v713, %v739
      %v748 = vadd.f32 %v714, %v740
      %v749 = vadd.f32 %v715, %v741
      %v750 = vadd.f32 %v716, %v742
      %v751 = vadd.f32 %v717, %v743
      %v752 = vadd.f32 %v718, %v744
      %v753 = vadd.f32 %v719, %v745
      %v754 = vadd.f32 %v746, %v531
      %v755 = vadd.f32 %v747, %v531
      %v756 = vadd.f32 %v748, %v536
      %v757 = vadd.f32 %v749, %v536
      %v758 = vadd.f32 %v750, %v541
      %v759 = vadd.f32 %v751, %v541
      %v760 = vadd.f32 %v752, %v546
      %v761 = vadd.f32 %v753, %v546
      %v763 = vlaneseq
      %v764 = vshrl.u32 %v763, 7
      %v765 = vsub.s32 0, %v764
      %v766 = vrot.slane %v372, %v765
      %v767 = vlaneseq
      %v768 = vshrl.u32 %v767, 7
      %v769 = vsub.s32 4, %v768
      %v770 = vrot.slane %v372, %v769
      %v773 = vlaneseq
      %v774 = vshrl.u32 %v773, 7
      %v775 = vsub.s32 0, %v774
      %v776 = vrot.slane %v766, %v775
      %v777 = vlaneseq
      %v778 = vshrl.u32 %v777, 7
      %v779 = vsub.s32 0, %v778
      %v780 = vrot.slane %v770, %v779
      %v781 = vmul.f32 %v384, %v776
      %v782 = vmul.f32 %v384, %v780
      %v783 = vmul.f32 %v389, %v776
      %v784 = vmul.f32 %v389, %v780
      %v785 = vmul.f32 %v394, %v776
      %v786 = vmul.f32 %v394, %v780
      %v787 = vmul.f32 %v399, %v776
      %v788 = vmul.f32 %v399, %v780
      %v789 = vlaneseq
      %v790 = vshrl.u32 %v789, 7
      %v791 = vsub.s32 1, %v790
      %v792 = vrot.slane %v372, %v791
      %v793 = vlaneseq
      %v794 = vshrl.u32 %v793, 7
      %v795 = vsub.s32 5, %v794
      %v796 = vrot.slane %v372, %v795
      %v799 = vlaneseq
      %v800 = vshrl.u32 %v799, 7
      %v801 = vsub.s32 1, %v800
      %v802 = vrot.slane %v792, %v801
      %v803 = vlaneseq
      %v804 = vshrl.u32 %v803, 7
      %v805 = vsub.s32 1, %v804
      %v806 = vrot.slane %v796, %v805
      %v807 = vmul.f32 %v430, %v802
      %v808 = vmul.f32 %v430, %v806
      %v809 = vmul.f32 %v434, %v802
      %v810 = vmul.f32 %v434, %v806
      %v811 = vmul.f32 %v438, %v802
      %v812 = vmul.f32 %v438, %v806
      %v813 = vmul.f32 %v442, %v802
      %v814 = vmul.f32 %v442, %v806
      %v815 = vadd.f32 %v781, %v807
      %v816 = vadd.f32 %v782, %v808
      %v817 = vadd.f32 %v783, %v809
      %v818 = vadd.f32 %v784, %v810
      %v819 = vadd.f32 %v785, %v811
      %v820 = vadd.f32 %v786, %v812
      %v821 = vadd.f32 %v787, %v813
      %v822 = vadd.f32 %v788, %v814
      %v823 = vlaneseq
      %v824 = vshrl.u32 %v823, 7
      %v825 = vsub.s32 2, %v824
      %v826 = vrot.slane %v372, %v825
      %v827 = vlaneseq
      %v828 = vshrl.u32 %v827, 7
      %v829 = vsub.s32 6, %v828
      %v830 = vrot.slane %v372, %v829
      %v833 = vlaneseq
      %v834 = vshrl.u32 %v833, 7
      %v835 = vsub.s32 2, %v834
      %v836 = vrot.slane %v826, %v835
      %v837 = vlaneseq
      %v838 = vshrl.u32 %v837, 7
      %v839 = vsub.s32 2, %v838
      %v840 = vrot.slane %v830, %v839
      %v841 = vmul.f32 %v480, %v836
      %v842 = vmul.f32 %v480, %v840
      %v843 = vmul.f32 %v484, %v836
      %v844 = vmul.f32 %v484, %v840
      %v845 = vmul.f32 %v488, %v836
      %v846 = vmul.f32 %v488, %v840
      %v847 = vmul.f32 %v492, %v836
      %v848 = vmul.f32 %v492, %v840
      %v849 = vadd.f32 %v815, %v841
      %v850 = vadd.f32 %v816, %v842
      %v851 = vadd.f32 %v817, %v843
      %v852 = vadd.f32 %v818, %v844
      %v853 = vadd.f32 %v819, %v845
      %v854 = vadd.f32 %v820, %v846
      %v855 = vadd.f32 %v821, %v847
      %v856 = vadd.f32 %v822, %v848
      %v857 = vadd.f32 %v849, %v531
      %v858 = vadd.f32 %v850, %v531
      %v859 = vadd.f32 %v851, %v536
      %v860 = vadd.f32 %v852, %v536
      %v861 = vadd.f32 %v853, %v541
      %v862 = vadd.f32 %v854, %v541
      %v863 = vadd.f32 %v855, %v546
      %v864 = vadd.f32 %v856, %v546
      %v865 = vld [vmem:[%s4] sm:$0xf]
      %v866 = vld [vmem:[%s4 + $0x4] sm:$0xf]
      %v867 = vld [vmem:[%s4 + $0x8] sm:$0xf]
      %v868 = vld [vmem:[%s4 + $0xc] sm:$0xf]
      %v869 = vld [vmem:[%s4 + $0x10] sm:$0xf]
      %v870 = vld [vmem:[%s4 + $0x14] sm:$0xf]
      %v871 = vld [vmem:[%s4 + $0x18] sm:$0xf]
      %v872 = vld [vmem:[%s4 + $0x1c] sm:$0xf]
      %v873 = vld [vmem:[%s4 + $0x20] sm:$0xf]
      %v874 = vld [vmem:[%s4 + $0x24] sm:$0xf]
      %v875 = vld [vmem:[%s4 + $0x28] sm:$0xf]
      %v876 = vld [vmem:[%s4 + $0x2c] sm:$0xf]
      %v877 = vld [vmem:[%s4 + $0x30] sm:$0xf]
      %v878 = vld [vmem:[%s4 + $0x34] sm:$0xf]
      %v879 = vld [vmem:[%s4 + $0x38] sm:$0xf]
      %v880 = vld [vmem:[%s4 + $0x3c] sm:$0xf]
      %v881 = vld [vmem:[%s4 + $0x40] sm:$0xf]
      %v882 = vld [vmem:[%s4 + $0x44] sm:$0xf]
      %v883 = vld [vmem:[%s4 + $0x48] sm:$0xf]
      %v884 = vld [vmem:[%s4 + $0x4c] sm:$0xf]
      %v885 = vld [vmem:[%s4 + $0x50] sm:$0xf]
      %v886 = vld [vmem:[%s4 + $0x54] sm:$0xf]
      %v887 = vld [vmem:[%s4 + $0x58] sm:$0xf]
      %v888 = vld [vmem:[%s4 + $0x5c] sm:$0xf]
      %v889 = vld [vmem:[%s4 + $0x60] sm:$0xf]
      %v890 = vld [vmem:[%s4 + $0x64] sm:$0xf]
      %v891 = vld [vmem:[%s4 + $0x68] sm:$0xf]
      %v892 = vld [vmem:[%s4 + $0x6c] sm:$0xf]
      %v893 = vld [vmem:[%s4 + $0x70] sm:$0xf]
      %v894 = vld [vmem:[%s4 + $0x74] sm:$0xf]
      %v895 = vld [vmem:[%s4 + $0x78] sm:$0xf]
      %v896 = vld [vmem:[%s4 + $0x7c] sm:$0xf]
      %v897 = vld [vmem:[%s5] sm:$0xff]
      %v898 = vld [vmem:[%s5 + $0x8] sm:$0xff]
      %v899 = vld [vmem:[%s5 + $0x10] sm:$0xff]
      %v900 = vld [vmem:[%s5 + $0x18] sm:$0xff]
      %v901 = vld [vmem:[%s5 + $0x20] sm:$0xff]
      %v902 = vld [vmem:[%s5 + $0x28] sm:$0xff]
      %v903 = vld [vmem:[%s5 + $0x30] sm:$0xff]
      %v904 = vld [vmem:[%s5 + $0x38] sm:$0xff]
      %v905 = vld [vmem:[%s5 + $0x40] sm:$0xff]
      %v906 = vld [vmem:[%s5 + $0x48] sm:$0xff]
      %v907 = vld [vmem:[%s5 + $0x50] sm:$0xff]
      %v908 = vld [vmem:[%s5 + $0x58] sm:$0xff]
      %v909 = vld [vmem:[%s5 + $0x60] sm:$0xff]
      %v910 = vld [vmem:[%s5 + $0x68] sm:$0xff]
      %v911 = vld [vmem:[%s5 + $0x70] sm:$0xff]
      %v912 = vld [vmem:[%s5 + $0x78] sm:$0xff]
      %v913 = vpack.c.bf16 %v550, %v548
      %v914 = vpack.c.bf16 %v551, %v549
      %v915 = vpack.c.bf16 %v554, %v552
      %v916 = vpack.c.bf16 %v555, %v553
      %v917 = vpack.c.bf16 %v653, %v651
      %v918 = vpack.c.bf16 %v654, %v652
      %v919 = vpack.c.bf16 %v657, %v655
      %v920 = vpack.c.bf16 %v658, %v656
      %v921 = vpack.c.bf16 %v756, %v754
      %v922 = vpack.c.bf16 %v757, %v755
      %v923 = vpack.c.bf16 %v760, %v758
      %v924 = vpack.c.bf16 %v761, %v759
      %v925 = vpack.c.bf16 %v859, %v857
      %v926 = vpack.c.bf16 %v860, %v858
      %v927 = vpack.c.bf16 %v863, %v861
      %v928 = vpack.c.bf16 %v864, %v862
      %v961 = vunpack.c.l.b16 %v865
      %v962 = vunpack.c.l.b16 %v866
      %v963 = vunpack.c.l.b16 %v867
      %v964 = vunpack.c.l.b16 %v868
      %v965 = vunpack.c.l.b16 %v869
      %v966 = vunpack.c.l.b16 %v870
      %v967 = vunpack.c.l.b16 %v871
      %v968 = vunpack.c.l.b16 %v872
      %v969 = vunpack.c.l.b16 %v873
      %v970 = vunpack.c.l.b16 %v874
      %v971 = vunpack.c.l.b16 %v875
      %v972 = vunpack.c.l.b16 %v876
      %v973 = vunpack.c.l.b16 %v877
      %v974 = vunpack.c.l.b16 %v878
      %v975 = vunpack.c.l.b16 %v879
      %v976 = vunpack.c.l.b16 %v880
      %v977 = vunpack.c.l.b16 %v881
      %v978 = vunpack.c.l.b16 %v882
      %v979 = vunpack.c.l.b16 %v883
      %v980 = vunpack.c.l.b16 %v884
      %v981 = vunpack.c.l.b16 %v885
      %v982 = vunpack.c.l.b16 %v886
      %v983 = vunpack.c.l.b16 %v887
      %v984 = vunpack.c.l.b16 %v888
      %v985 = vunpack.c.l.b16 %v889
      %v986 = vunpack.c.l.b16 %v890
      %v987 = vunpack.c.l.b16 %v891
      %v988 = vunpack.c.l.b16 %v892
      %v989 = vunpack.c.l.b16 %v893
      %v990 = vunpack.c.l.b16 %v894
      %v991 = vunpack.c.l.b16 %v895
      %v992 = vunpack.c.l.b16 %v896
      %v993 = vpack.c.b16 %v962, %v961
      %v994 = vpack.c.b16 %v964, %v963
      %v995 = vpack.c.b16 %v966, %v965
      %v996 = vpack.c.b16 %v968, %v967
      %v997 = vpack.c.b16 %v970, %v969
      %v998 = vpack.c.b16 %v972, %v971
      %v999 = vpack.c.b16 %v974, %v973
      %v1000 = vpack.c.b16 %v976, %v975
      %v1001 = vpack.c.b16 %v978, %v977
      %v1002 = vpack.c.b16 %v980, %v979
      %v1003 = vpack.c.b16 %v982, %v981
      %v1004 = vpack.c.b16 %v984, %v983
      %v1005 = vpack.c.b16 %v986, %v985
      %v1006 = vpack.c.b16 %v988, %v987
      %v1007 = vpack.c.b16 %v990, %v989
      %v1008 = vpack.c.b16 %v992, %v991
      %1025 = vmatprep.subr.bf16.mxu0 0
      %1026 = vmatpush1.bf16.msra.mxu0 %v993
      %1027 = vmatprep.subr.bf16.mxu0 0
      %1028 = vmatpush1.bf16.msra.mxu0 %v994
      %1029 = vmatprep.subr.bf16.mxu0 0
      %1030 = vmatpush1.bf16.msra.mxu0 %v995
      %1031 = vmatprep.subr.bf16.mxu0 0
      %1032 = vmatpush1.bf16.msra.mxu0 %v996
      %1033 = vmatprep.subr.bf16.mxu0 0
      %1034 = vmatpush1.bf16.msra.mxu0 %v997
      %1035 = vmatprep.subr.bf16.mxu0 0
      %1036 = vmatpush1.bf16.msra.mxu0 %v998
      %1037 = vmatprep.subr.bf16.mxu0 0
      %1038 = vmatpush1.bf16.msra.mxu0 %v999
      %1039 = vmatprep.subr.bf16.mxu0 0
      %1040 = vmatpush1.bf16.msra.mxu0 %v1000
      %1041 = vmatprep.subr.bf16.mxu0 0
      %1042 = vmatpush1.bf16.msra.mxu0 %v1001
      %1043 = vmatprep.subr.bf16.mxu0 0
      %1044 = vmatpush1.bf16.msra.mxu0 %v1002
      %1045 = vmatprep.subr.bf16.mxu0 0
      %1046 = vmatpush1.bf16.msra.mxu0 %v1003
      %1047 = vmatprep.subr.bf16.mxu0 0
      %1048 = vmatpush1.bf16.msra.mxu0 %v1004
      %1049 = vmatprep.subr.bf16.mxu0 0
      %1050 = vmatpush1.bf16.msra.mxu0 %v1005
      %1051 = vmatprep.subr.bf16.mxu0 0
      %1052 = vmatpush1.bf16.msra.mxu0 %v1006
      %1053 = vmatprep.subr.bf16.mxu0 0
      %1054 = vmatpush1.bf16.msra.mxu0 %v1007
      %1055 = vmatprep.subr.bf16.mxu0 0
      %1056 = vmatpush1.bf16.msra.mxu0 %v1008
      %1057 = vmatprep.mubr.bf16.mxu0 %v914
      %1058 = vmatmul.mubr.bf16.gmra.mrb[0].mxu0 %v913
      %v1059 = vpop.f32.mrb[0].mxu0
      %v1060 = vadd.f32 0.0, %v1059
      %v1061 = vpop.f32.mrb[0].mxu0
      %v1062 = vpop.f32.mrb[0].mxu0
      %v1063 = vadd.f32 0.0, %v1062
      %v1064 = vpop.f32.mrb[0].mxu0
      %1065 = vmatprep.mubr.bf16.mxu0 %v916
      %1066 = vmatmul.mubr.bf16.gmra.mrb[0].mxu0 %v915
      %v1067 = vpop.f32.mrb[0].mxu0
      %v1068 = vadd.f32 0.0, %v1067
      %v1069 = vpop.f32.mrb[0].mxu0
      %v1070 = vpop.f32.mrb[0].mxu0
      %v1071 = vadd.f32 0.0, %v1070
      %v1072 = vpop.f32.mrb[0].mxu0
      %1073 = vmatprep.mubr.bf16.mxu0 %v918
      %1074 = vmatmul.mubr.bf16.gmra.mrb[0].mxu0 %v917
      %v1075 = vpop.f32.mrb[0].mxu0
      %v1076 = vadd.f32 0.0, %v1075
      %v1077 = vpop.f32.mrb[0].mxu0
      %v1078 = vpop.f32.mrb[0].mxu0
      %v1079 = vadd.f32 0.0, %v1078
      %v1080 = vpop.f32.mrb[0].mxu0
      %1081 = vmatprep.mubr.bf16.mxu0 %v920
      %1082 = vmatmul.mubr.bf16.gmra.mrb[0].mxu0 %v919
      %v1083 = vpop.f32.mrb[0].mxu0
      %v1084 = vadd.f32 0.0, %v1083
      %v1085 = vpop.f32.mrb[0].mxu0
      %v1086 = vpop.f32.mrb[0].mxu0
      %v1087 = vadd.f32 0.0, %v1086
      %v1088 = vpop.f32.mrb[0].mxu0
      %1089 = vmatprep.mubr.bf16.mxu0 %v922
      %1090 = vmatmul.mubr.bf16.gmra.mrb[0].mxu0 %v921
      %v1091 = vpop.f32.mrb[0].mxu0
      %v1092 = vadd.f32 0.0, %v1091
      %v1093 = vpop.f32.mrb[0].mxu0
      %v1094 = vpop.f32.mrb[0].mxu0
      %v1095 = vadd.f32 0.0, %v1094
      %v1096 = vpop.f32.mrb[0].mxu0
      %1097 = vmatprep.mubr.bf16.mxu0 %v924
      %1098 = vmatmul.mubr.bf16.gmra.mrb[0].mxu0 %v923
      %v1099 = vpop.f32.mrb[0].mxu0
      %v1100 = vadd.f32 0.0, %v1099
      %v1101 = vpop.f32.mrb[0].mxu0
      %v1102 = vpop.f32.mrb[0].mxu0
      %v1103 = vadd.f32 0.0, %v1102
      %v1104 = vpop.f32.mrb[0].mxu0
      %1105 = vmatprep.mubr.bf16.mxu0 %v926
      %1106 = vmatmul.mubr.bf16.gmra.mrb[0].mxu0 %v925
      %v1107 = vpop.f32.mrb[0].mxu0
      %v1108 = vadd.f32 0.0, %v1107
      %v1109 = vpop.f32.mrb[0].mxu0
      %v1110 = vpop.f32.mrb[0].mxu0
      %v1111 = vadd.f32 0.0, %v1110
      %v1112 = vpop.f32.mrb[0].mxu0
      %1113 = vmatprep.mubr.bf16.mxu0 %v928
      %1114 = vmatmul.mubr.bf16.gmra.mrb[0].mxu0 %v927
      %v1115 = vpop.f32.mrb[0].mxu0
      %v1116 = vadd.f32 0.0, %v1115
      %v1117 = vpop.f32.mrb[0].mxu0
      %v1118 = vpop.f32.mrb[0].mxu0
      %v1119 = vadd.f32 0.0, %v1118
      %v1120 = vpop.f32.mrb[0].mxu0
      %1121 = vdwg.mxu0
      %v1122 = vld [vmem:[%s3] sm:$0xff]
      %v1123 = vld [vmem:[%s3 + $0x8] sm:$0xff]
      %v1124 = vld [vmem:[%s3 + $0x10] sm:$0xff]
      %v1125 = vld [vmem:[%s3 + $0x18] sm:$0xff]
      %v1126 = vmul.f32 %v1060, %v1122
      %v1127 = vmul.f32 %v1063, %v1123
      %v1128 = vmul.f32 %v1068, %v1124
      %v1129 = vmul.f32 %v1071, %v1125
      %v1130 = vmul.f32 %v1076, %v1122
      %v1131 = vmul.f32 %v1079, %v1123
      %v1132 = vmul.f32 %v1084, %v1124
      %v1133 = vmul.f32 %v1087, %v1125
      %v1134 = vmul.f32 %v1092, %v1122
      %v1135 = vmul.f32 %v1095, %v1123
      %v1136 = vmul.f32 %v1100, %v1124
      %v1137 = vmul.f32 %v1103, %v1125
      %v1138 = vmul.f32 %v1108, %v1122
      %v1139 = vmul.f32 %v1111, %v1123
      %v1140 = vmul.f32 %v1116, %v1124
      %v1141 = vmul.f32 %v1119, %v1125
      %v1142 = vpack.c.bf16 %v1127, %v1126
      %v1143 = vpack.c.bf16 %v1129, %v1128
      %v1144 = vpack.c.bf16 %v1131, %v1130
      %v1145 = vpack.c.bf16 %v1133, %v1132
      %v1146 = vpack.c.bf16 %v1135, %v1134
      %v1147 = vpack.c.bf16 %v1137, %v1136
      %v1148 = vpack.c.bf16 %v1139, %v1138
      %v1149 = vpack.c.bf16 %v1141, %v1140
      %v1166 = vunpack.c.l.b16 %v897
      %v1167 = vunpack.c.h.b16 %v897
      %v1168 = vunpack.c.l.b16 %v898
      %v1169 = vunpack.c.h.b16 %v898
      %v1170 = vunpack.c.l.b16 %v899
      %v1171 = vunpack.c.h.b16 %v899
      %v1172 = vunpack.c.l.b16 %v900
      %v1173 = vunpack.c.h.b16 %v900
      %v1174 = vunpack.c.l.b16 %v901
      %v1175 = vunpack.c.h.b16 %v901
      %v1176 = vunpack.c.l.b16 %v902
      %v1177 = vunpack.c.h.b16 %v902
      %v1178 = vunpack.c.l.b16 %v903
      %v1179 = vunpack.c.h.b16 %v903
      %v1180 = vunpack.c.l.b16 %v904
      %v1181 = vunpack.c.h.b16 %v904
      %v1182 = vunpack.c.l.b16 %v905
      %v1183 = vunpack.c.h.b16 %v905
      %v1184 = vunpack.c.l.b16 %v906
      %v1185 = vunpack.c.h.b16 %v906
      %v1186 = vunpack.c.l.b16 %v907
      %v1187 = vunpack.c.h.b16 %v907
      %v1188 = vunpack.c.l.b16 %v908
      %v1189 = vunpack.c.h.b16 %v908
      %v1190 = vunpack.c.l.b16 %v909
      %v1191 = vunpack.c.h.b16 %v909
      %v1192 = vunpack.c.l.b16 %v910
      %v1193 = vunpack.c.h.b16 %v910
      %v1194 = vunpack.c.l.b16 %v911
      %v1195 = vunpack.c.h.b16 %v911
      %v1196 = vunpack.c.l.b16 %v912
      %v1197 = vunpack.c.h.b16 %v912
      %v1198 = vpack.c.b16 %v1168, %v1166
      %v1199 = vpack.c.b16 %v1169, %v1167
      %v1200 = vpack.c.b16 %v1172, %v1170
      %v1201 = vpack.c.b16 %v1173, %v1171
      %v1202 = vpack.c.b16 %v1176, %v1174
      %v1203 = vpack.c.b16 %v1177, %v1175
      %v1204 = vpack.c.b16 %v1180, %v1178
      %v1205 = vpack.c.b16 %v1181, %v1179
      %v1206 = vpack.c.b16 %v1184, %v1182
      %v1207 = vpack.c.b16 %v1185, %v1183
      %v1208 = vpack.c.b16 %v1188, %v1186
      %v1209 = vpack.c.b16 %v1189, %v1187
      %v1210 = vpack.c.b16 %v1192, %v1190
      %v1211 = vpack.c.b16 %v1193, %v1191
      %v1212 = vpack.c.b16 %v1196, %v1194
      %v1213 = vpack.c.b16 %v1197, %v1195
      %1230 = vmatprep.subr.bf16.mxu0 %v1199
      %1231 = vmatpush1.bf16.msra.mxu0 %v1198
      %1232 = vmatprep.subr.bf16.mxu0 %v1201
      %1233 = vmatpush1.bf16.msra.mxu0 %v1200
      %1234 = vmatprep.subr.bf16.mxu0 %v1203
      %1235 = vmatpush1.bf16.msra.mxu0 %v1202
      %1236 = vmatprep.subr.bf16.mxu0 %v1205
      %1237 = vmatpush1.bf16.msra.mxu0 %v1204
      %1238 = vmatprep.subr.bf16.mxu0 %v1207
      %1239 = vmatpush1.bf16.msra.mxu0 %v1206
      %1240 = vmatprep.subr.bf16.mxu0 %v1209
      %1241 = vmatpush1.bf16.msra.mxu0 %v1208
      %1242 = vmatprep.subr.bf16.mxu0 %v1211
      %1243 = vmatpush1.bf16.msra.mxu0 %v1210
      %1244 = vmatprep.subr.bf16.mxu0 %v1213
      %1245 = vmatpush1.bf16.msra.mxu0 %v1212
      %1246 = vmatprep.subr.bf16.mxu0 0
      %1247 = vmatpush1.bf16.msra.mxu0 0
      %1248 = vmatprep.subr.bf16.mxu0 0
      %1249 = vmatpush1.bf16.msra.mxu0 0
      %1250 = vmatprep.subr.bf16.mxu0 0
      %1251 = vmatpush1.bf16.msra.mxu0 0
      %1252 = vmatprep.subr.bf16.mxu0 0
      %1253 = vmatpush1.bf16.msra.mxu0 0
      %1254 = vmatprep.subr.bf16.mxu0 0
      %1255 = vmatpush1.bf16.msra.mxu0 0
      %1256 = vmatprep.subr.bf16.mxu0 0
      %1257 = vmatpush1.bf16.msra.mxu0 0
      %1258 = vmatprep.subr.bf16.mxu0 0
      %1259 = vmatpush1.bf16.msra.mxu0 0
      %1260 = vmatprep.subr.bf16.mxu0 0
      %1261 = vmatpush1.bf16.msra.mxu0 0
      %1262 = vmatprep.mubr.bf16.mxu0 0
      %1263 = vmatmul.mubr.bf16.gmra.mrb[0].mxu0 %v1142
      %v1264 = vpop.f32.mrb[0].mxu0
      %v1265 = vadd.f32 0.0, %v1264
      %v1266 = vpop.f32.mrb[0].mxu0
      %v1267 = vadd.f32 0.0, %v1266
      %v1268 = vpop.f32.mrb[0].mxu0
      %v1269 = vadd.f32 0.0, %v1268
      %v1270 = vpop.f32.mrb[0].mxu0
      %v1271 = vadd.f32 0.0, %v1270
      %1272 = vmatprep.mubr.bf16.mxu0 0
      %1273 = vmatmul.mubr.bf16.gmra.mrb[0].mxu0 %v1143
      %v1274 = vpop.f32.mrb[0].mxu0
      %v1275 = vadd.f32 0.0, %v1274
      %v1276 = vpop.f32.mrb[0].mxu0
      %v1277 = vadd.f32 0.0, %v1276
      %v1278 = vpop.f32.mrb[0].mxu0
      %v1279 = vadd.f32 0.0, %v1278
      %v1280 = vpop.f32.mrb[0].mxu0
      %v1281 = vadd.f32 0.0, %v1280
      %1282 = vmatprep.mubr.bf16.mxu0 0
      %1283 = vmatmul.mubr.bf16.gmra.mrb[0].mxu0 %v1144
      %v1284 = vpop.f32.mrb[0].mxu0
      %v1285 = vadd.f32 0.0, %v1284
      %v1286 = vpop.f32.mrb[0].mxu0
      %v1287 = vadd.f32 0.0, %v1286
      %v1288 = vpop.f32.mrb[0].mxu0
      %v1289 = vadd.f32 0.0, %v1288
      %v1290 = vpop.f32.mrb[0].mxu0
      %v1291 = vadd.f32 0.0, %v1290
      %1292 = vmatprep.mubr.bf16.mxu0 0
      %1293 = vmatmul.mubr.bf16.gmra.mrb[0].mxu0 %v1145
      %v1294 = vpop.f32.mrb[0].mxu0
      %v1295 = vadd.f32 0.0, %v1294
      %v1296 = vpop.f32.mrb[0].mxu0
      %v1297 = vadd.f32 0.0, %v1296
      %v1298 = vpop.f32.mrb[0].mxu0
      %v1299 = vadd.f32 0.0, %v1298
      %v1300 = vpop.f32.mrb[0].mxu0
      %v1301 = vadd.f32 0.0, %v1300
      %1302 = vmatprep.mubr.bf16.mxu0 0
      %1303 = vmatmul.mubr.bf16.gmra.mrb[0].mxu0 %v1146
      %v1304 = vpop.f32.mrb[0].mxu0
      %v1305 = vadd.f32 0.0, %v1304
      %v1306 = vpop.f32.mrb[0].mxu0
      %v1307 = vadd.f32 0.0, %v1306
      %v1308 = vpop.f32.mrb[0].mxu0
      %v1309 = vadd.f32 0.0, %v1308
      %v1310 = vpop.f32.mrb[0].mxu0
      %v1311 = vadd.f32 0.0, %v1310
      %1312 = vmatprep.mubr.bf16.mxu0 0
      %1313 = vmatmul.mubr.bf16.gmra.mrb[0].mxu0 %v1147
      %v1314 = vpop.f32.mrb[0].mxu0
      %v1315 = vadd.f32 0.0, %v1314
      %v1316 = vpop.f32.mrb[0].mxu0
      %v1317 = vadd.f32 0.0, %v1316
      %v1318 = vpop.f32.mrb[0].mxu0
      %v1319 = vadd.f32 0.0, %v1318
      %v1320 = vpop.f32.mrb[0].mxu0
      %v1321 = vadd.f32 0.0, %v1320
      %1322 = vmatprep.mubr.bf16.mxu0 0
      %1323 = vmatmul.mubr.bf16.gmra.mrb[0].mxu0 %v1148
      %v1324 = vpop.f32.mrb[0].mxu0
      %v1325 = vadd.f32 0.0, %v1324
      %v1326 = vpop.f32.mrb[0].mxu0
      %v1327 = vadd.f32 0.0, %v1326
      %v1328 = vpop.f32.mrb[0].mxu0
      %v1329 = vadd.f32 0.0, %v1328
      %v1330 = vpop.f32.mrb[0].mxu0
      %v1331 = vadd.f32 0.0, %v1330
      %1332 = vmatprep.mubr.bf16.mxu0 0
      %1333 = vmatmul.mubr.bf16.gmra.mrb[0].mxu0 %v1149
      %v1334 = vpop.f32.mrb[0].mxu0
      %v1335 = vadd.f32 0.0, %v1334
      %v1336 = vpop.f32.mrb[0].mxu0
      %v1337 = vadd.f32 0.0, %v1336
      %v1338 = vpop.f32.mrb[0].mxu0
      %v1339 = vadd.f32 0.0, %v1338
      %v1340 = vpop.f32.mrb[0].mxu0
      %v1341 = vadd.f32 0.0, %v1340
      %1342 = vdwg.mxu0
      %v1343 = vmul.f32 %v1265, 0.5
      %v1344 = vmul.f32 %v1267, 0.5
      %v1345 = vmul.f32 %v1269, 0.5
      %v1346 = vmul.f32 %v1271, 0.5
      %v1347 = vmul.f32 %v1275, 0.5
      %v1348 = vmul.f32 %v1277, 0.5
      %v1349 = vmul.f32 %v1279, 0.5
      %v1350 = vmul.f32 %v1281, 0.5
      %v1351 = vmul.f32 %v1285, 0.5
      %v1352 = vmul.f32 %v1287, 0.5
      %v1353 = vmul.f32 %v1289, 0.5
      %v1354 = vmul.f32 %v1291, 0.5
      %v1355 = vmul.f32 %v1295, 0.5
      %v1356 = vmul.f32 %v1297, 0.5
      %v1357 = vmul.f32 %v1299, 0.5
      %v1358 = vmul.f32 %v1301, 0.5
      %v1359 = vmul.f32 %v1305, 0.5
      %v1360 = vmul.f32 %v1307, 0.5
      %v1361 = vmul.f32 %v1309, 0.5
      %v1362 = vmul.f32 %v1311, 0.5
      %v1363 = vmul.f32 %v1315, 0.5
      %v1364 = vmul.f32 %v1317, 0.5
      %v1365 = vmul.f32 %v1319, 0.5
      %v1366 = vmul.f32 %v1321, 0.5
      %v1367 = vmul.f32 %v1325, 0.5
      %v1368 = vmul.f32 %v1327, 0.5
      %v1369 = vmul.f32 %v1329, 0.5
      %v1370 = vmul.f32 %v1331, 0.5
      %v1371 = vmul.f32 %v1335, 0.5
      %v1372 = vmul.f32 %v1337, 0.5
      %v1373 = vmul.f32 %v1339, 0.5
      %v1374 = vmul.f32 %v1341, 0.5
      %v1375 = vmul.f32 %v1265, 0.70710677
      %v1376 = vmul.f32 %v1267, 0.70710677
      %v1377 = vmul.f32 %v1269, 0.70710677
      %v1378 = vmul.f32 %v1271, 0.70710677
      %v1379 = vmul.f32 %v1275, 0.70710677
      %v1380 = vmul.f32 %v1277, 0.70710677
      %v1381 = vmul.f32 %v1279, 0.70710677
      %v1382 = vmul.f32 %v1281, 0.70710677
      %v1383 = vmul.f32 %v1285, 0.70710677
      %v1384 = vmul.f32 %v1287, 0.70710677
      %v1385 = vmul.f32 %v1289, 0.70710677
      %v1386 = vmul.f32 %v1291, 0.70710677
      %v1387 = vmul.f32 %v1295, 0.70710677
      %v1388 = vmul.f32 %v1297, 0.70710677
      %v1389 = vmul.f32 %v1299, 0.70710677
      %v1390 = vmul.f32 %v1301, 0.70710677
      %v1391 = vmul.f32 %v1305, 0.70710677
      %v1392 = vmul.f32 %v1307, 0.70710677
      %v1393 = vmul.f32 %v1309, 0.70710677
      %v1394 = vmul.f32 %v1311, 0.70710677
      %v1395 = vmul.f32 %v1315, 0.70710677
      %v1396 = vmul.f32 %v1317, 0.70710677
      %v1397 = vmul.f32 %v1319, 0.70710677
      %v1398 = vmul.f32 %v1321, 0.70710677
      %v1399 = vmul.f32 %v1325, 0.70710677
      %v1400 = vmul.f32 %v1327, 0.70710677
      %v1401 = vmul.f32 %v1329, 0.70710677
      %v1402 = vmul.f32 %v1331, 0.70710677
      %v1403 = vmul.f32 %v1335, 0.70710677
      %v1404 = vmul.f32 %v1337, 0.70710677
      %v1405 = vmul.f32 %v1339, 0.70710677
      %v1406 = vmul.f32 %v1341, 0.70710677
      %v1407 = verf.f32.pop %v1375
      %v1408 = verf.f32.pop %v1376
      %v1409 = verf.f32.pop %v1377
      %v1410 = verf.f32.pop %v1378
      %v1411 = verf.f32.pop %v1379
      %v1412 = verf.f32.pop %v1380
      %v1413 = verf.f32.pop %v1381
      %v1414 = verf.f32.pop %v1382
      %v1415 = verf.f32.pop %v1383
      %v1416 = verf.f32.pop %v1384
      %v1417 = verf.f32.pop %v1385
      %v1418 = verf.f32.pop %v1386
      %v1419 = verf.f32.pop %v1387
      %v1420 = verf.f32.pop %v1388
      %v1421 = verf.f32.pop %v1389
      %v1422 = verf.f32.pop %v1390
      %v1423 = verf.f32.pop %v1391
      %v1424 = verf.f32.pop %v1392
      %v1425 = verf.f32.pop %v1393
      %v1426 = verf.f32.pop %v1394
      %v1427 = verf.f32.pop %v1395
      %v1428 = verf.f32.pop %v1396
      %v1429 = verf.f32.pop %v1397
      %v1430 = verf.f32.pop %v1398
      %v1431 = verf.f32.pop %v1399
      %v1432 = verf.f32.pop %v1400
      %v1433 = verf.f32.pop %v1401
      %v1434 = verf.f32.pop %v1402
      %v1435 = verf.f32.pop %v1403
      %v1436 = verf.f32.pop %v1404
      %v1437 = verf.f32.pop %v1405
      %v1438 = verf.f32.pop %v1406
      %v1439 = vadd.f32 %v1407, 1.0
      %v1440 = vadd.f32 %v1408, 1.0
      %v1441 = vadd.f32 %v1409, 1.0
      %v1442 = vadd.f32 %v1410, 1.0
      %v1443 = vadd.f32 %v1411, 1.0
      %v1444 = vadd.f32 %v1412, 1.0
      %v1445 = vadd.f32 %v1413, 1.0
      %v1446 = vadd.f32 %v1414, 1.0
      %v1447 = vadd.f32 %v1415, 1.0
      %v1448 = vadd.f32 %v1416, 1.0
      %v1449 = vadd.f32 %v1417, 1.0
      %v1450 = vadd.f32 %v1418, 1.0
      %v1451 = vadd.f32 %v1419, 1.0
      %v1452 = vadd.f32 %v1420, 1.0
      %v1453 = vadd.f32 %v1421, 1.0
      %v1454 = vadd.f32 %v1422, 1.0
      %v1455 = vadd.f32 %v1423, 1.0
      %v1456 = vadd.f32 %v1424, 1.0
      %v1457 = vadd.f32 %v1425, 1.0
      %v1458 = vadd.f32 %v1426, 1.0
      %v1459 = vadd.f32 %v1427, 1.0
      %v1460 = vadd.f32 %v1428, 1.0
      %v1461 = vadd.f32 %v1429, 1.0
      %v1462 = vadd.f32 %v1430, 1.0
      %v1463 = vadd.f32 %v1431, 1.0
      %v1464 = vadd.f32 %v1432, 1.0
      %v1465 = vadd.f32 %v1433, 1.0
      %v1466 = vadd.f32 %v1434, 1.0
      %v1467 = vadd.f32 %v1435, 1.0
      %v1468 = vadd.f32 %v1436, 1.0
      %v1469 = vadd.f32 %v1437, 1.0
      %v1470 = vadd.f32 %v1438, 1.0
      %v1471 = vmul.f32 %v1343, %v1439
      %v1472 = vmul.f32 %v1344, %v1440
      %v1473 = vmul.f32 %v1345, %v1441
      %v1474 = vmul.f32 %v1346, %v1442
      %v1475 = vmul.f32 %v1347, %v1443
      %v1476 = vmul.f32 %v1348, %v1444
      %v1477 = vmul.f32 %v1349, %v1445
      %v1478 = vmul.f32 %v1350, %v1446
      %v1479 = vmul.f32 %v1351, %v1447
      %v1480 = vmul.f32 %v1352, %v1448
      %v1481 = vmul.f32 %v1353, %v1449
      %v1482 = vmul.f32 %v1354, %v1450
      %v1483 = vmul.f32 %v1355, %v1451
      %v1484 = vmul.f32 %v1356, %v1452
      %v1485 = vmul.f32 %v1357, %v1453
      %v1486 = vmul.f32 %v1358, %v1454
      %v1487 = vmul.f32 %v1359, %v1455
      %v1488 = vmul.f32 %v1360, %v1456
      %v1489 = vmul.f32 %v1361, %v1457
      %v1490 = vmul.f32 %v1362, %v1458
      %v1491 = vmul.f32 %v1363, %v1459
      %v1492 = vmul.f32 %v1364, %v1460
      %v1493 = vmul.f32 %v1365, %v1461
      %v1494 = vmul.f32 %v1366, %v1462
      %v1495 = vmul.f32 %v1367, %v1463
      %v1496 = vmul.f32 %v1368, %v1464
      %v1497 = vmul.f32 %v1369, %v1465
      %v1498 = vmul.f32 %v1370, %v1466
      %v1499 = vmul.f32 %v1371, %v1467
      %v1500 = vmul.f32 %v1372, %v1468
      %v1501 = vmul.f32 %v1373, %v1469
      %v1502 = vmul.f32 %v1374, %v1470
      %v1503 = vpack.c.bf16 %v1473, %v1471
      %v1504 = vpack.c.bf16 %v1474, %v1472
      %v1505 = vpack.c.bf16 %v1477, %v1475
      %v1506 = vpack.c.bf16 %v1478, %v1476
      %v1507 = vpack.c.bf16 %v1481, %v1479
      %v1508 = vpack.c.bf16 %v1482, %v1480
      %v1509 = vpack.c.bf16 %v1485, %v1483
      %v1510 = vpack.c.bf16 %v1486, %v1484
      %v1511 = vpack.c.bf16 %v1489, %v1487
      %v1512 = vpack.c.bf16 %v1490, %v1488
      %v1513 = vpack.c.bf16 %v1493, %v1491
      %v1514 = vpack.c.bf16 %v1494, %v1492
      %v1515 = vpack.c.bf16 %v1497, %v1495
      %v1516 = vpack.c.bf16 %v1498, %v1496
      %v1517 = vpack.c.bf16 %v1501, %v1499
      %v1518 = vpack.c.bf16 %v1502, %v1500
      %1519 = vmatprep.subr.bf16.mxu0 0
      %1520 = vmatpush1.bf16.msra.mxu0 %v993
      %1521 = vmatprep.subr.bf16.mxu0 0
      %1522 = vmatpush1.bf16.msra.mxu0 %v994
      %1523 = vmatprep.subr.bf16.mxu0 0
      %1524 = vmatpush1.bf16.msra.mxu0 %v995
      %1525 = vmatprep.subr.bf16.mxu0 0
      %1526 = vmatpush1.bf16.msra.mxu0 %v996
      %1527 = vmatprep.subr.bf16.mxu0 0
      %1528 = vmatpush1.bf16.msra.mxu0 %v997
      %1529 = vmatprep.subr.bf16.mxu0 0
      %1530 = vmatpush1.bf16.msra.mxu0 %v998
      %1531 = vmatprep.subr.bf16.mxu0 0
      %1532 = vmatpush1.bf16.msra.mxu0 %v999
      %1533 = vmatprep.subr.bf16.mxu0 0
      %1534 = vmatpush1.bf16.msra.mxu0 %v1000
      %1535 = vmatprep.subr.bf16.mxu0 0
      %1536 = vmatpush1.bf16.msra.mxu0 %v1001
      %1537 = vmatprep.subr.bf16.mxu0 0
      %1538 = vmatpush1.bf16.msra.mxu0 %v1002
      %1539 = vmatprep.subr.bf16.mxu0 0
      %1540 = vmatpush1.bf16.msra.mxu0 %v1003
      %1541 = vmatprep.subr.bf16.mxu0 0
      %1542 = vmatpush1.bf16.msra.mxu0 %v1004
      %1543 = vmatprep.subr.bf16.mxu0 0
      %1544 = vmatpush1.bf16.msra.mxu0 %v1005
      %1545 = vmatprep.subr.bf16.mxu0 0
      %1546 = vmatpush1.bf16.msra.mxu0 %v1006
      %1547 = vmatprep.subr.bf16.mxu0 0
      %1548 = vmatpush1.bf16.msra.mxu0 %v1007
      %1549 = vmatprep.subr.bf16.mxu0 0
      %1550 = vmatpush1.bf16.msra.mxu0 %v1008
      %1551 = vmatprep.mubr.bf16.mxu0 %v1504
      %1552 = vmatmul.mubr.bf16.gmra.mrb[0].mxu0 %v1503
      %v1553 = vpop.f32.mrb[0].mxu0
      %v1554 = vadd.f32 0.0, %v1553
      %v1555 = vpop.f32.mrb[0].mxu0
      %v1556 = vpop.f32.mrb[0].mxu0
      %v1557 = vadd.f32 0.0, %v1556
      %v1558 = vpop.f32.mrb[0].mxu0
      %1559 = vmatprep.mubr.bf16.mxu0 %v1506
      %1560 = vmatmul.mubr.bf16.gmra.mrb[0].mxu0 %v1505
      %v1561 = vpop.f32.mrb[0].mxu0
      %v1562 = vadd.f32 0.0, %v1561
      %v1563 = vpop.f32.mrb[0].mxu0
      %v1564 = vpop.f32.mrb[0].mxu0
      %v1565 = vadd.f32 0.0, %v1564
      %v1566 = vpop.f32.mrb[0].mxu0
      %1567 = vmatprep.mubr.bf16.mxu0 %v1508
      %1568 = vmatmul.mubr.bf16.gmra.mrb[0].mxu0 %v1507
      %v1569 = vpop.f32.mrb[0].mxu0
      %v1570 = vadd.f32 0.0, %v1569
      %v1571 = vpop.f32.mrb[0].mxu0
      %v1572 = vpop.f32.mrb[0].mxu0
      %v1573 = vadd.f32 0.0, %v1572
      %v1574 = vpop.f32.mrb[0].mxu0
      %1575 = vmatprep.mubr.bf16.mxu0 %v1510
      %1576 = vmatmul.mubr.bf16.gmra.mrb[0].mxu0 %v1509
      %v1577 = vpop.f32.mrb[0].mxu0
      %v1578 = vadd.f32 0.0, %v1577
      %v1579 = vpop.f32.mrb[0].mxu0
      %v1580 = vpop.f32.mrb[0].mxu0
      %v1581 = vadd.f32 0.0, %v1580
      %v1582 = vpop.f32.mrb[0].mxu0
      %1583 = vmatprep.mubr.bf16.mxu0 %v1512
      %1584 = vmatmul.mubr.bf16.gmra.mrb[0].mxu0 %v1511
      %v1585 = vpop.f32.mrb[0].mxu0
      %v1586 = vadd.f32 0.0, %v1585
      %v1587 = vpop.f32.mrb[0].mxu0
      %v1588 = vpop.f32.mrb[0].mxu0
      %v1589 = vadd.f32 0.0, %v1588
      %v1590 = vpop.f32.mrb[0].mxu0
      %1591 = vmatprep.mubr.bf16.mxu0 %v1514
      %1592 = vmatmul.mubr.bf16.gmra.mrb[0].mxu0 %v1513
      %v1593 = vpop.f32.mrb[0].mxu0
      %v1594 = vadd.f32 0.0, %v1593
      %v1595 = vpop.f32.mrb[0].mxu0
      %v1596 = vpop.f32.mrb[0].mxu0
      %v1597 = vadd.f32 0.0, %v1596
      %v1598 = vpop.f32.mrb[0].mxu0
      %1599 = vmatprep.mubr.bf16.mxu0 %v1516
      %1600 = vmatmul.mubr.bf16.gmra.mrb[0].mxu0 %v1515
      %v1601 = vpop.f32.mrb[0].mxu0
      %v1602 = vadd.f32 0.0, %v1601
      %v1603 = vpop.f32.mrb[0].mxu0
      %v1604 = vpop.f32.mrb[0].mxu0
      %v1605 = vadd.f32 0.0, %v1604
      %v1606 = vpop.f32.mrb[0].mxu0
      %1607 = vmatprep.mubr.bf16.mxu0 %v1518
      %1608 = vmatmul.mubr.bf16.gmra.mrb[0].mxu0 %v1517
      %v1609 = vpop.f32.mrb[0].mxu0
      %v1610 = vadd.f32 0.0, %v1609
      %v1611 = vpop.f32.mrb[0].mxu0
      %v1612 = vpop.f32.mrb[0].mxu0
      %v1613 = vadd.f32 0.0, %v1612
      %v1614 = vpop.f32.mrb[0].mxu0
      %1615 = vdwg.mxu0
      %s1616 = scalar_lea.vmem %s3, 32
      %v1617 = vld [vmem:[%s1616] sm:$0xff]
      %v1618 = vld [vmem:[%s1616 + $0x8] sm:$0xff]
      %v1619 = vld [vmem:[%s1616 + $0x10] sm:$0xff]
      %v1620 = vld [vmem:[%s1616 + $0x18] sm:$0xff]
      %v1621 = vmul.f32 %v1554, %v1617
      %v1622 = vmul.f32 %v1557, %v1618
      %v1623 = vmul.f32 %v1562, %v1619
      %v1624 = vmul.f32 %v1565, %v1620
      %v1625 = vmul.f32 %v1570, %v1617
      %v1626 = vmul.f32 %v1573, %v1618
      %v1627 = vmul.f32 %v1578, %v1619
      %v1628 = vmul.f32 %v1581, %v1620
      %v1629 = vmul.f32 %v1586, %v1617
      %v1630 = vmul.f32 %v1589, %v1618
      %v1631 = vmul.f32 %v1594, %v1619
      %v1632 = vmul.f32 %v1597, %v1620
      %v1633 = vmul.f32 %v1602, %v1617
      %v1634 = vmul.f32 %v1605, %v1618
      %v1635 = vmul.f32 %v1610, %v1619
      %v1636 = vmul.f32 %v1613, %v1620
      %v1637 = vpack.c.bf16 %v1622, %v1621
      %v1638 = vpack.c.bf16 %v1624, %v1623
      %v1639 = vpack.c.bf16 %v1626, %v1625
      %v1640 = vpack.c.bf16 %v1628, %v1627
      %v1641 = vpack.c.bf16 %v1630, %v1629
      %v1642 = vpack.c.bf16 %v1632, %v1631
      %v1643 = vpack.c.bf16 %v1634, %v1633
      %v1644 = vpack.c.bf16 %v1636, %v1635
      %1645 = vmatprep.subr.bf16.mxu0 %v1199
      %1646 = vmatpush1.bf16.msra.mxu0 %v1198
      %1647 = vmatprep.subr.bf16.mxu0 %v1201
      %1648 = vmatpush1.bf16.msra.mxu0 %v1200
      %1649 = vmatprep.subr.bf16.mxu0 %v1203
      %1650 = vmatpush1.bf16.msra.mxu0 %v1202
      %1651 = vmatprep.subr.bf16.mxu0 %v1205
      %1652 = vmatpush1.bf16.msra.mxu0 %v1204
      %1653 = vmatprep.subr.bf16.mxu0 %v1207
      %1654 = vmatpush1.bf16.msra.mxu0 %v1206
      %1655 = vmatprep.subr.bf16.mxu0 %v1209
      %1656 = vmatpush1.bf16.msra.mxu0 %v1208
      %1657 = vmatprep.subr.bf16.mxu0 %v1211
      %1658 = vmatpush1.bf16.msra.mxu0 %v1210
      %1659 = vmatprep.subr.bf16.mxu0 %v1213
      %1660 = vmatpush1.bf16.msra.mxu0 %v1212
      %1661 = vmatprep.subr.bf16.mxu0 0
      %1662 = vmatpush1.bf16.msra.mxu0 0
      %1663 = vmatprep.subr.bf16.mxu0 0
      %1664 = vmatpush1.bf16.msra.mxu0 0
      %1665 = vmatprep.subr.bf16.mxu0 0
      %1666 = vmatpush1.bf16.msra.mxu0 0
      %1667 = vmatprep.subr.bf16.mxu0 0
      %1668 = vmatpush1.bf16.msra.mxu0 0
      %1669 = vmatprep.subr.bf16.mxu0 0
      %1670 = vmatpush1.bf16.msra.mxu0 0
      %1671 = vmatprep.subr.bf16.mxu0 0
      %1672 = vmatpush1.bf16.msra.mxu0 0
      %1673 = vmatprep.subr.bf16.mxu0 0
      %1674 = vmatpush1.bf16.msra.mxu0 0
      %1675 = vmatprep.subr.bf16.mxu0 0
      %1676 = vmatpush1.bf16.msra.mxu0 0
      %1677 = vmatprep.mubr.bf16.mxu0 0
      %1678 = vmatmul.mubr.bf16.gmra.mrb[0].mxu0 %v1637
      %v1679 = vpop.f32.mrb[0].mxu0
      %v1680 = vadd.f32 0.0, %v1679
      %v1681 = vpop.f32.mrb[0].mxu0
      %v1682 = vadd.f32 0.0, %v1681
      %v1683 = vpop.f32.mrb[0].mxu0
      %v1684 = vadd.f32 0.0, %v1683
      %v1685 = vpop.f32.mrb[0].mxu0
      %v1686 = vadd.f32 0.0, %v1685
      %1687 = vmatprep.mubr.bf16.mxu0 0
      %1688 = vmatmul.mubr.bf16.gmra.mrb[0].mxu0 %v1638
      %v1689 = vpop.f32.mrb[0].mxu0
      %v1690 = vadd.f32 0.0, %v1689
      %v1691 = vpop.f32.mrb[0].mxu0
      %v1692 = vadd.f32 0.0, %v1691
      %v1693 = vpop.f32.mrb[0].mxu0
      %v1694 = vadd.f32 0.0, %v1693
      %v1695 = vpop.f32.mrb[0].mxu0
      %v1696 = vadd.f32 0.0, %v1695
      %1697 = vmatprep.mubr.bf16.mxu0 0
      %1698 = vmatmul.mubr.bf16.gmra.mrb[0].mxu0 %v1639
      %v1699 = vpop.f32.mrb[0].mxu0
      %v1700 = vadd.f32 0.0, %v1699
      %v1701 = vpop.f32.mrb[0].mxu0
      %v1702 = vadd.f32 0.0, %v1701
      %v1703 = vpop.f32.mrb[0].mxu0
      %v1704 = vadd.f32 0.0, %v1703
      %v1705 = vpop.f32.mrb[0].mxu0
      %v1706 = vadd.f32 0.0, %v1705
      %1707 = vmatprep.mubr.bf16.mxu0 0
      %1708 = vmatmul.mubr.bf16.gmra.mrb[0].mxu0 %v1640
      %v1709 = vpop.f32.mrb[0].mxu0
      %v1710 = vadd.f32 0.0, %v1709
      %v1711 = vpop.f32.mrb[0].mxu0
      %v1712 = vadd.f32 0.0, %v1711
      %v1713 = vpop.f32.mrb[0].mxu0
      %v1714 = vadd.f32 0.0, %v1713
      %v1715 = vpop.f32.mrb[0].mxu0
      %v1716 = vadd.f32 0.0, %v1715
      %1717 = vmatprep.mubr.bf16.mxu0 0
      %1718 = vmatmul.mubr.bf16.gmra.mrb[0].mxu0 %v1641
      %v1719 = vpop.f32.mrb[0].mxu0
      %v1720 = vadd.f32 0.0, %v1719
      %v1721 = vpop.f32.mrb[0].mxu0
      %v1722 = vadd.f32 0.0, %v1721
      %v1723 = vpop.f32.mrb[0].mxu0
      %v1724 = vadd.f32 0.0, %v1723
      %v1725 = vpop.f32.mrb[0].mxu0
      %v1726 = vadd.f32 0.0, %v1725
      %1727 = vmatprep.mubr.bf16.mxu0 0
      %1728 = vmatmul.mubr.bf16.gmra.mrb[0].mxu0 %v1642
      %v1729 = vpop.f32.mrb[0].mxu0
      %v1730 = vadd.f32 0.0, %v1729
      %v1731 = vpop.f32.mrb[0].mxu0
      %v1732 = vadd.f32 0.0, %v1731
      %v1733 = vpop.f32.mrb[0].mxu0
      %v1734 = vadd.f32 0.0, %v1733
      %v1735 = vpop.f32.mrb[0].mxu0
      %v1736 = vadd.f32 0.0, %v1735
      %1737 = vmatprep.mubr.bf16.mxu0 0
      %1738 = vmatmul.mubr.bf16.gmra.mrb[0].mxu0 %v1643
      %v1739 = vpop.f32.mrb[0].mxu0
      %v1740 = vadd.f32 0.0, %v1739
      %v1741 = vpop.f32.mrb[0].mxu0
      %v1742 = vadd.f32 0.0, %v1741
      %v1743 = vpop.f32.mrb[0].mxu0
      %v1744 = vadd.f32 0.0, %v1743
      %v1745 = vpop.f32.mrb[0].mxu0
      %v1746 = vadd.f32 0.0, %v1745
      %1747 = vmatprep.mubr.bf16.mxu0 0
      %1748 = vmatmul.mubr.bf16.gmra.mrb[0].mxu0 %v1644
      %v1749 = vpop.f32.mrb[0].mxu0
      %v1750 = vadd.f32 0.0, %v1749
      %v1751 = vpop.f32.mrb[0].mxu0
      %v1752 = vadd.f32 0.0, %v1751
      %v1753 = vpop.f32.mrb[0].mxu0
      %v1754 = vadd.f32 0.0, %v1753
      %v1755 = vpop.f32.mrb[0].mxu0
      %v1756 = vadd.f32 0.0, %v1755
      %1757 = vdwg.mxu0
      %v1758 = vmul.f32 %v1680, 0.5
      %v1759 = vmul.f32 %v1682, 0.5
      %v1760 = vmul.f32 %v1684, 0.5
      %v1761 = vmul.f32 %v1686, 0.5
      %v1762 = vmul.f32 %v1690, 0.5
      %v1763 = vmul.f32 %v1692, 0.5
      %v1764 = vmul.f32 %v1694, 0.5
      %v1765 = vmul.f32 %v1696, 0.5
      %v1766 = vmul.f32 %v1700, 0.5
      %v1767 = vmul.f32 %v1702, 0.5
      %v1768 = vmul.f32 %v1704, 0.5
      %v1769 = vmul.f32 %v1706, 0.5
      %v1770 = vmul.f32 %v1710, 0.5
      %v1771 = vmul.f32 %v1712, 0.5
      %v1772 = vmul.f32 %v1714, 0.5
      %v1773 = vmul.f32 %v1716, 0.5
      %v1774 = vmul.f32 %v1720, 0.5
      %v1775 = vmul.f32 %v1722, 0.5
      %v1776 = vmul.f32 %v1724, 0.5
      %v1777 = vmul.f32 %v1726, 0.5
      %v1778 = vmul.f32 %v1730, 0.5
      %v1779 = vmul.f32 %v1732, 0.5
      %v1780 = vmul.f32 %v1734, 0.5
      %v1781 = vmul.f32 %v1736, 0.5
      %v1782 = vmul.f32 %v1740, 0.5
      %v1783 = vmul.f32 %v1742, 0.5
      %v1784 = vmul.f32 %v1744, 0.5
      %v1785 = vmul.f32 %v1746, 0.5
      %v1786 = vmul.f32 %v1750, 0.5
      %v1787 = vmul.f32 %v1752, 0.5
      %v1788 = vmul.f32 %v1754, 0.5
      %v1789 = vmul.f32 %v1756, 0.5
      %v1790 = vmul.f32 %v1680, 0.70710677
      %v1791 = vmul.f32 %v1682, 0.70710677
      %v1792 = vmul.f32 %v1684, 0.70710677
      %v1793 = vmul.f32 %v1686, 0.70710677
      %v1794 = vmul.f32 %v1690, 0.70710677
      %v1795 = vmul.f32 %v1692, 0.70710677
      %v1796 = vmul.f32 %v1694, 0.70710677
      %v1797 = vmul.f32 %v1696, 0.70710677
      %v1798 = vmul.f32 %v1700, 0.70710677
      %v1799 = vmul.f32 %v1702, 0.70710677
      %v1800 = vmul.f32 %v1704, 0.70710677
      %v1801 = vmul.f32 %v1706, 0.70710677
      %v1802 = vmul.f32 %v1710, 0.70710677
      %v1803 = vmul.f32 %v1712, 0.70710677
      %v1804 = vmul.f32 %v1714, 0.70710677
      %v1805 = vmul.f32 %v1716, 0.70710677
      %v1806 = vmul.f32 %v1720, 0.70710677
      %v1807 = vmul.f32 %v1722, 0.70710677
      %v1808 = vmul.f32 %v1724, 0.70710677
      %v1809 = vmul.f32 %v1726, 0.70710677
      %v1810 = vmul.f32 %v1730, 0.70710677
      %v1811 = vmul.f32 %v1732, 0.70710677
      %v1812 = vmul.f32 %v1734, 0.70710677
      %v1813 = vmul.f32 %v1736, 0.70710677
      %v1814 = vmul.f32 %v1740, 0.70710677
      %v1815 = vmul.f32 %v1742, 0.70710677
      %v1816 = vmul.f32 %v1744, 0.70710677
      %v1817 = vmul.f32 %v1746, 0.70710677
      %v1818 = vmul.f32 %v1750, 0.70710677
      %v1819 = vmul.f32 %v1752, 0.70710677
      %v1820 = vmul.f32 %v1754, 0.70710677
      %v1821 = vmul.f32 %v1756, 0.70710677
      %v1822 = verf.f32.pop %v1790
      %v1823 = verf.f32.pop %v1791
      %v1824 = verf.f32.pop %v1792
      %v1825 = verf.f32.pop %v1793
      %v1826 = verf.f32.pop %v1794
      %v1827 = verf.f32.pop %v1795
      %v1828 = verf.f32.pop %v1796
      %v1829 = verf.f32.pop %v1797
      %v1830 = verf.f32.pop %v1798
      %v1831 = verf.f32.pop %v1799
      %v1832 = verf.f32.pop %v1800
      %v1833 = verf.f32.pop %v1801
      %v1834 = verf.f32.pop %v1802
      %v1835 = verf.f32.pop %v1803
      %v1836 = verf.f32.pop %v1804
      %v1837 = verf.f32.pop %v1805
      %v1838 = verf.f32.pop %v1806
      %v1839 = verf.f32.pop %v1807
      %v1840 = verf.f32.pop %v1808
      %v1841 = verf.f32.pop %v1809
      %v1842 = verf.f32.pop %v1810
      %v1843 = verf.f32.pop %v1811
      %v1844 = verf.f32.pop %v1812
      %v1845 = verf.f32.pop %v1813
      %v1846 = verf.f32.pop %v1814
      %v1847 = verf.f32.pop %v1815
      %v1848 = verf.f32.pop %v1816
      %v1849 = verf.f32.pop %v1817
      %v1850 = verf.f32.pop %v1818
      %v1851 = verf.f32.pop %v1819
      %v1852 = verf.f32.pop %v1820
      %v1853 = verf.f32.pop %v1821
      %v1854 = vadd.f32 %v1822, 1.0
      %v1855 = vadd.f32 %v1823, 1.0
      %v1856 = vadd.f32 %v1824, 1.0
      %v1857 = vadd.f32 %v1825, 1.0
      %v1858 = vadd.f32 %v1826, 1.0
      %v1859 = vadd.f32 %v1827, 1.0
      %v1860 = vadd.f32 %v1828, 1.0
      %v1861 = vadd.f32 %v1829, 1.0
      %v1862 = vadd.f32 %v1830, 1.0
      %v1863 = vadd.f32 %v1831, 1.0
      %v1864 = vadd.f32 %v1832, 1.0
      %v1865 = vadd.f32 %v1833, 1.0
      %v1866 = vadd.f32 %v1834, 1.0
      %v1867 = vadd.f32 %v1835, 1.0
      %v1868 = vadd.f32 %v1836, 1.0
      %v1869 = vadd.f32 %v1837, 1.0
      %v1870 = vadd.f32 %v1838, 1.0
      %v1871 = vadd.f32 %v1839, 1.0
      %v1872 = vadd.f32 %v1840, 1.0
      %v1873 = vadd.f32 %v1841, 1.0
      %v1874 = vadd.f32 %v1842, 1.0
      %v1875 = vadd.f32 %v1843, 1.0
      %v1876 = vadd.f32 %v1844, 1.0
      %v1877 = vadd.f32 %v1845, 1.0
      %v1878 = vadd.f32 %v1846, 1.0
      %v1879 = vadd.f32 %v1847, 1.0
      %v1880 = vadd.f32 %v1848, 1.0
      %v1881 = vadd.f32 %v1849, 1.0
      %v1882 = vadd.f32 %v1850, 1.0
      %v1883 = vadd.f32 %v1851, 1.0
      %v1884 = vadd.f32 %v1852, 1.0
      %v1885 = vadd.f32 %v1853, 1.0
      %v1886 = vmul.f32 %v1758, %v1854
      %v1887 = vmul.f32 %v1759, %v1855
      %v1888 = vmul.f32 %v1760, %v1856
      %v1889 = vmul.f32 %v1761, %v1857
      %v1890 = vmul.f32 %v1762, %v1858
      %v1891 = vmul.f32 %v1763, %v1859
      %v1892 = vmul.f32 %v1764, %v1860
      %v1893 = vmul.f32 %v1765, %v1861
      %v1894 = vmul.f32 %v1766, %v1862
      %v1895 = vmul.f32 %v1767, %v1863
      %v1896 = vmul.f32 %v1768, %v1864
      %v1897 = vmul.f32 %v1769, %v1865
      %v1898 = vmul.f32 %v1770, %v1866
      %v1899 = vmul.f32 %v1771, %v1867
      %v1900 = vmul.f32 %v1772, %v1868
      %v1901 = vmul.f32 %v1773, %v1869
      %v1902 = vmul.f32 %v1774, %v1870
      %v1903 = vmul.f32 %v1775, %v1871
      %v1904 = vmul.f32 %v1776, %v1872
      %v1905 = vmul.f32 %v1777, %v1873
      %v1906 = vmul.f32 %v1778, %v1874
      %v1907 = vmul.f32 %v1779, %v1875
      %v1908 = vmul.f32 %v1780, %v1876
      %v1909 = vmul.f32 %v1781, %v1877
      %v1910 = vmul.f32 %v1782, %v1878
      %v1911 = vmul.f32 %v1783, %v1879
      %v1912 = vmul.f32 %v1784, %v1880
      %v1913 = vmul.f32 %v1785, %v1881
      %v1914 = vmul.f32 %v1786, %v1882
      %v1915 = vmul.f32 %v1787, %v1883
      %v1916 = vmul.f32 %v1788, %v1884
      %v1917 = vmul.f32 %v1789, %v1885
      %v1918 = vld [vmem:[%s6] sm:$0xff]
      %v1919 = vld [vmem:[%s6 + $0x8] sm:$0xff]
      %v1920 = vld [vmem:[%s6 + $0x10] sm:$0xff]
      %v1921 = vld [vmem:[%s6 + $0x18] sm:$0xff]
      %v1922 = vld [vmem:[%s6 + $0x20] sm:$0xff]
      %v1923 = vld [vmem:[%s6 + $0x28] sm:$0xff]
      %v1924 = vld [vmem:[%s6 + $0x30] sm:$0xff]
      %v1925 = vld [vmem:[%s6 + $0x38] sm:$0xff]
      %v1926 = vld [vmem:[%s6 + $0x40] sm:$0xff]
      %v1927 = vld [vmem:[%s6 + $0x48] sm:$0xff]
      %v1928 = vld [vmem:[%s6 + $0x50] sm:$0xff]
      %v1929 = vld [vmem:[%s6 + $0x58] sm:$0xff]
      %v1930 = vld [vmem:[%s6 + $0x60] sm:$0xff]
      %v1931 = vld [vmem:[%s6 + $0x68] sm:$0xff]
      %v1932 = vld [vmem:[%s6 + $0x70] sm:$0xff]
      %v1933 = vld [vmem:[%s6 + $0x78] sm:$0xff]
      %v1934 = vld [vmem:[%s7] sm:$0xff]
      %v1935 = vld [vmem:[%s7 + $0x8] sm:$0xff]
      %v1936 = vld [vmem:[%s7 + $0x10] sm:$0xff]
      %v1937 = vld [vmem:[%s7 + $0x18] sm:$0xff]
      %v1938 = vld [vmem:[%s7 + $0x20] sm:$0xff]
      %v1939 = vld [vmem:[%s7 + $0x28] sm:$0xff]
      %v1940 = vld [vmem:[%s7 + $0x30] sm:$0xff]
      %v1941 = vld [vmem:[%s7 + $0x38] sm:$0xff]
      %v1942 = vld [vmem:[%s7 + $0x40] sm:$0xff]
      %v1943 = vld [vmem:[%s7 + $0x48] sm:$0xff]
      %v1944 = vld [vmem:[%s7 + $0x50] sm:$0xff]
      %v1945 = vld [vmem:[%s7 + $0x58] sm:$0xff]
      %v1946 = vld [vmem:[%s7 + $0x60] sm:$0xff]
      %v1947 = vld [vmem:[%s7 + $0x68] sm:$0xff]
      %v1948 = vld [vmem:[%s7 + $0x70] sm:$0xff]
      %v1949 = vld [vmem:[%s7 + $0x78] sm:$0xff]
      %v1950 = vld [vmem:[%s8] sm:$0x1]
      %v1951 = vld [vmem:[#allocation2] sm:$0x1]
      %v1952 = vpack.c.bf16 %v1919, %v1918
      %v1953 = vpack.c.bf16 %v1921, %v1920
      %v1954 = vpack.c.bf16 %v1923, %v1922
      %v1955 = vpack.c.bf16 %v1925, %v1924
      %v1956 = vpack.c.bf16 %v1927, %v1926
      %v1957 = vpack.c.bf16 %v1929, %v1928
      %v1958 = vpack.c.bf16 %v1931, %v1930
      %v1959 = vpack.c.bf16 %v1933, %v1932
      %v1960 = vpack.c.bf16 %v1888, %v1886
      %v1961 = vpack.c.bf16 %v1889, %v1887
      %v1962 = vpack.c.bf16 %v1892, %v1890
      %v1963 = vpack.c.bf16 %v1893, %v1891
      %1965 = vset.pattern.permute.xlu0 0
      %1966 = vperm.xlu0 %1965, %v1934
      %v1967 = vpop.permute.xlu0 %1966
      %1970 = vset.pattern.permute.xlu0 0
      %1971 = vperm.xlu0 %1970, %v1935
      %v1972 = vpop.permute.xlu0 %1971
      %1975 = vset.pattern.permute.xlu0 0
      %1976 = vperm.xlu0 %1975, %v1936
      %v1977 = vpop.permute.xlu0 %1976
      %1980 = vset.pattern.permute.xlu0 0
      %1981 = vperm.xlu0 %1980, %v1937
      %v1982 = vpop.permute.xlu0 %1981
      %1985 = vset.pattern.permute.xlu0 0
      %1986 = vperm.xlu0 %1985, %v1938
      %v1987 = vpop.permute.xlu0 %1986
      %1990 = vset.pattern.permute.xlu0 0
      %1991 = vperm.xlu0 %1990, %v1939
      %v1992 = vpop.permute.xlu0 %1991
      %1995 = vset.pattern.permute.xlu0 0
      %1996 = vperm.xlu0 %1995, %v1940
      %v1997 = vpop.permute.xlu0 %1996
      %2000 = vset.pattern.permute.xlu0 0
      %2001 = vperm.xlu0 %2000, %v1941
      %v2002 = vpop.permute.xlu0 %2001
      %2005 = vset.pattern.permute.xlu0 0
      %2006 = vperm.xlu0 %2005, %v1942
      %v2007 = vpop.permute.xlu0 %2006
      %2010 = vset.pattern.permute.xlu0 0
      %2011 = vperm.xlu0 %2010, %v1943
      %v2012 = vpop.permute.xlu0 %2011
      %2015 = vset.pattern.permute.xlu0 0
      %2016 = vperm.xlu0 %2015, %v1944
      %v2017 = vpop.permute.xlu0 %2016
      %2020 = vset.pattern.permute.xlu0 0
      %2021 = vperm.xlu0 %2020, %v1945
      %v2022 = vpop.permute.xlu0 %2021
      %2025 = vset.pattern.permute.xlu0 0
      %2026 = vperm.xlu0 %2025, %v1946
      %v2027 = vpop.permute.xlu0 %2026
      %2030 = vset.pattern.permute.xlu0 0
      %2031 = vperm.xlu0 %2030, %v1947
      %v2032 = vpop.permute.xlu0 %2031
      %2035 = vset.pattern.permute.xlu0 0
      %2036 = vperm.xlu0 %2035, %v1948
      %v2037 = vpop.permute.xlu0 %2036
      %2040 = vset.pattern.permute.xlu0 0
      %2041 = vperm.xlu0 %2040, %v1949
      %v2042 = vpop.permute.xlu0 %2041
      %vm2044 = vcmask 261120
      %v2046 = vsel %vm2044, %v1952, 0
      %v2049 = vsel %vm2044, %v1953, 0
      %v2052 = vsel %vm2044, %v1954, 0
      %v2055 = vsel %vm2044, %v1955, 0
      %v2058 = vsel %vm2044, %v1956, 0
      %v2061 = vsel %vm2044, %v1957, 0
      %v2064 = vsel %vm2044, %v1958, 0
      %v2067 = vsel %vm2044, %v1959, 0
      %2069 = vmatprep.subr.bf16.mxu0 %v1961
      %2070 = vmatpush1.bf16.msra.mxu0 %v1960
      %2071 = vmatprep.subr.bf16.mxu0 %v1963
      %2072 = vmatpush1.bf16.msra.mxu0 %v1962
      %2073 = vmatprep.subr.bf16.mxu0 0
      %2074 = vmatpush1.bf16.msra.mxu0 0
      %2075 = vmatprep.subr.bf16.mxu0 0
      %2076 = vmatpush1.bf16.msra.mxu0 0
      %2077 = vmatprep.subr.bf16.mxu0 0
      %2078 = vmatpush1.bf16.msra.mxu0 0
      %2079 = vmatprep.subr.bf16.mxu0 0
      %2080 = vmatpush1.bf16.msra.mxu0 0
      %2081 = vmatprep.subr.bf16.mxu0 0
      %2082 = vmatpush1.bf16.msra.mxu0 0
      %2083 = vmatprep.subr.bf16.mxu0 0
      %2084 = vmatpush1.bf16.msra.mxu0 0
      %2085 = vmatprep.subr.bf16.mxu0 0
      %2086 = vmatpush1.bf16.msra.mxu0 0
      %2087 = vmatprep.subr.bf16.mxu0 0
      %2088 = vmatpush1.bf16.msra.mxu0 0
      %2089 = vmatprep.subr.bf16.mxu0 0
      %2090 = vmatpush1.bf16.msra.mxu0 0
      %2091 = vmatprep.subr.bf16.mxu0 0
      %2092 = vmatpush1.bf16.msra.mxu0 0
      %2093 = vmatprep.subr.bf16.mxu0 0
      %2094 = vmatpush1.bf16.msra.mxu0 0
      %2095 = vmatprep.subr.bf16.mxu0 0
      %2096 = vmatpush1.bf16.msra.mxu0 0
      %2097 = vmatprep.subr.bf16.mxu0 0
      %2098 = vmatpush1.bf16.msra.mxu0 0
      %2099 = vmatprep.subr.bf16.mxu0 0
      %2100 = vmatpush1.bf16.msra.mxu0 0
      %2101 = vmatprep.mubr.bf16.mxu0 0
      %2102 = vmatmul.mubr.bf16.gmra.mrb[0].mxu0 %v2046
      %v2103 = vpop.f32.mrb[0].mxu0
      %v2104 = vadd.f32 %v1967, %v2103
      %v2105 = vpop.f32.mrb[0].mxu0
      %v2106 = vadd.f32 %v1967, %v2105
      %v2107 = vpop.f32.mrb[0].mxu0
      %v2108 = vadd.f32 %v1972, %v2107
      %v2109 = vpop.f32.mrb[0].mxu0
      %v2110 = vadd.f32 %v1972, %v2109
      %2111 = vmatprep.mubr.bf16.mxu0 0
      %2112 = vmatmul.mubr.bf16.gmra.mrb[0].mxu0 %v2049
      %v2113 = vpop.f32.mrb[0].mxu0
      %v2114 = vadd.f32 %v1977, %v2113
      %v2115 = vpop.f32.mrb[0].mxu0
      %v2116 = vadd.f32 %v1977, %v2115
      %v2117 = vpop.f32.mrb[0].mxu0
      %v2118 = vadd.f32 %v1982, %v2117
      %v2119 = vpop.f32.mrb[0].mxu0
      %v2120 = vadd.f32 %v1982, %v2119
      %2121 = vmatprep.mubr.bf16.mxu0 0
      %2122 = vmatmul.mubr.bf16.gmra.mrb[0].mxu0 %v2052
      %v2123 = vpop.f32.mrb[0].mxu0
      %v2124 = vadd.f32 %v1987, %v2123
      %v2125 = vpop.f32.mrb[0].mxu0
      %v2126 = vadd.f32 %v1987, %v2125
      %v2127 = vpop.f32.mrb[0].mxu0
      %v2128 = vadd.f32 %v1992, %v2127
      %v2129 = vpop.f32.mrb[0].mxu0
      %v2130 = vadd.f32 %v1992, %v2129
      %2131 = vmatprep.mubr.bf16.mxu0 0
      %2132 = vmatmul.mubr.bf16.gmra.mrb[0].mxu0 %v2055
      %v2133 = vpop.f32.mrb[0].mxu0
      %v2134 = vadd.f32 %v1997, %v2133
      %v2135 = vpop.f32.mrb[0].mxu0
      %v2136 = vadd.f32 %v1997, %v2135
      %v2137 = vpop.f32.mrb[0].mxu0
      %v2138 = vadd.f32 %v2002, %v2137
      %v2139 = vpop.f32.mrb[0].mxu0
      %v2140 = vadd.f32 %v2002, %v2139
      %2141 = vmatprep.mubr.bf16.mxu0 0
      %2142 = vmatmul.mubr.bf16.gmra.mrb[0].mxu0 %v2058
      %v2143 = vpop.f32.mrb[0].mxu0
      %v2144 = vadd.f32 %v2007, %v2143
      %v2145 = vpop.f32.mrb[0].mxu0
      %v2146 = vadd.f32 %v2007, %v2145
      %v2147 = vpop.f32.mrb[0].mxu0
      %v2148 = vadd.f32 %v2012, %v2147
      %v2149 = vpop.f32.mrb[0].mxu0
      %v2150 = vadd.f32 %v2012, %v2149
      %2151 = vmatprep.mubr.bf16.mxu0 0
      %2152 = vmatmul.mubr.bf16.gmra.mrb[0].mxu0 %v2061
      %v2153 = vpop.f32.mrb[0].mxu0
      %v2154 = vadd.f32 %v2017, %v2153
      %v2155 = vpop.f32.mrb[0].mxu0
      %v2156 = vadd.f32 %v2017, %v2155
      %v2157 = vpop.f32.mrb[0].mxu0
      %v2158 = vadd.f32 %v2022, %v2157
      %v2159 = vpop.f32.mrb[0].mxu0
      %v2160 = vadd.f32 %v2022, %v2159
      %2161 = vmatprep.mubr.bf16.mxu0 0
      %2162 = vmatmul.mubr.bf16.gmra.mrb[0].mxu0 %v2064
      %v2163 = vpop.f32.mrb[0].mxu0
      %v2164 = vadd.f32 %v2027, %v2163
      %v2165 = vpop.f32.mrb[0].mxu0
      %v2166 = vadd.f32 %v2027, %v2165
      %v2167 = vpop.f32.mrb[0].mxu0
      %v2168 = vadd.f32 %v2032, %v2167
      %v2169 = vpop.f32.mrb[0].mxu0
      %v2170 = vadd.f32 %v2032, %v2169
      %2171 = vmatprep.mubr.bf16.mxu0 0
      %2172 = vmatmul.mubr.bf16.gmra.mrb[0].mxu0 %v2067
      %v2173 = vpop.f32.mrb[0].mxu0
      %v2174 = vadd.f32 %v2037, %v2173
      %v2175 = vpop.f32.mrb[0].mxu0
      %v2176 = vadd.f32 %v2037, %v2175
      %v2177 = vpop.f32.mrb[0].mxu0
      %v2178 = vadd.f32 %v2042, %v2177
      %v2179 = vpop.f32.mrb[0].mxu0
      %v2180 = vadd.f32 %v2042, %v2179
      %2181 = vdwg.mxu0
      %v2182 = vmul.f32 %v2104, 0.5
      %v2183 = vmul.f32 %v2106, 0.5
      %v2184 = vmul.f32 %v2108, 0.5
      %v2185 = vmul.f32 %v2110, 0.5
      %v2186 = vmul.f32 %v2114, 0.5
      %v2187 = vmul.f32 %v2116, 0.5
      %v2188 = vmul.f32 %v2118, 0.5
      %v2189 = vmul.f32 %v2120, 0.5
      %v2190 = vmul.f32 %v2124, 0.5
      %v2191 = vmul.f32 %v2126, 0.5
      %v2192 = vmul.f32 %v2128, 0.5
      %v2193 = vmul.f32 %v2130, 0.5
      %v2194 = vmul.f32 %v2134, 0.5
      %v2195 = vmul.f32 %v2136, 0.5
      %v2196 = vmul.f32 %v2138, 0.5
      %v2197 = vmul.f32 %v2140, 0.5
      %v2198 = vmul.f32 %v2144, 0.5
      %v2199 = vmul.f32 %v2146, 0.5
      %v2200 = vmul.f32 %v2148, 0.5
      %v2201 = vmul.f32 %v2150, 0.5
      %v2202 = vmul.f32 %v2154, 0.5
      %v2203 = vmul.f32 %v2156, 0.5
      %v2204 = vmul.f32 %v2158, 0.5
      %v2205 = vmul.f32 %v2160, 0.5
      %v2206 = vmul.f32 %v2164, 0.5
      %v2207 = vmul.f32 %v2166, 0.5
      %v2208 = vmul.f32 %v2168, 0.5
      %v2209 = vmul.f32 %v2170, 0.5
      %v2210 = vmul.f32 %v2174, 0.5
      %v2211 = vmul.f32 %v2176, 0.5
      %v2212 = vmul.f32 %v2178, 0.5
      %v2213 = vmul.f32 %v2180, 0.5
      %v2214 = vmul.f32 %v2104, 0.70710677
      %v2215 = vmul.f32 %v2106, 0.70710677
      %v2216 = vmul.f32 %v2108, 0.70710677
      %v2217 = vmul.f32 %v2110, 0.70710677
      %v2218 = vmul.f32 %v2114, 0.70710677
      %v2219 = vmul.f32 %v2116, 0.70710677
      %v2220 = vmul.f32 %v2118, 0.70710677
      %v2221 = vmul.f32 %v2120, 0.70710677
      %v2222 = vmul.f32 %v2124, 0.70710677
      %v2223 = vmul.f32 %v2126, 0.70710677
      %v2224 = vmul.f32 %v2128, 0.70710677
      %v2225 = vmul.f32 %v2130, 0.70710677
      %v2226 = vmul.f32 %v2134, 0.70710677
      %v2227 = vmul.f32 %v2136, 0.70710677
      %v2228 = vmul.f32 %v2138, 0.70710677
      %v2229 = vmul.f32 %v2140, 0.70710677
      %v2230 = vmul.f32 %v2144, 0.70710677
      %v2231 = vmul.f32 %v2146, 0.70710677
      %v2232 = vmul.f32 %v2148, 0.70710677
      %v2233 = vmul.f32 %v2150, 0.70710677
      %v2234 = vmul.f32 %v2154, 0.70710677
      %v2235 = vmul.f32 %v2156, 0.70710677
      %v2236 = vmul.f32 %v2158, 0.70710677
      %v2237 = vmul.f32 %v2160, 0.70710677
      %v2238 = vmul.f32 %v2164, 0.70710677
      %v2239 = vmul.f32 %v2166, 0.70710677
      %v2240 = vmul.f32 %v2168, 0.70710677
      %v2241 = vmul.f32 %v2170, 0.70710677
      %v2242 = vmul.f32 %v2174, 0.70710677
      %v2243 = vmul.f32 %v2176, 0.70710677
      %v2244 = vmul.f32 %v2178, 0.70710677
      %v2245 = vmul.f32 %v2180, 0.70710677
      %v2246 = verf.f32.pop %v2214
      %v2247 = verf.f32.pop %v2215
      %v2248 = verf.f32.pop %v2216
      %v2249 = verf.f32.pop %v2217
      %v2250 = verf.f32.pop %v2218
      %v2251 = verf.f32.pop %v2219
      %v2252 = verf.f32.pop %v2220
      %v2253 = verf.f32.pop %v2221
      %v2254 = verf.f32.pop %v2222
      %v2255 = verf.f32.pop %v2223
      %v2256 = verf.f32.pop %v2224
      %v2257 = verf.f32.pop %v2225
      %v2258 = verf.f32.pop %v2226
      %v2259 = verf.f32.pop %v2227
      %v2260 = verf.f32.pop %v2228
      %v2261 = verf.f32.pop %v2229
      %v2262 = verf.f32.pop %v2230
      %v2263 = verf.f32.pop %v2231
      %v2264 = verf.f32.pop %v2232
      %v2265 = verf.f32.pop %v2233
      %v2266 = verf.f32.pop %v2234
      %v2267 = verf.f32.pop %v2235
      %v2268 = verf.f32.pop %v2236
      %v2269 = verf.f32.pop %v2237
      %v2270 = verf.f32.pop %v2238
      %v2271 = verf.f32.pop %v2239
      %v2272 = verf.f32.pop %v2240
      %v2273 = verf.f32.pop %v2241
      %v2274 = verf.f32.pop %v2242
      %v2275 = verf.f32.pop %v2243
      %v2276 = verf.f32.pop %v2244
      %v2277 = verf.f32.pop %v2245
      %v2278 = vadd.f32 %v2246, 1.0
      %v2279 = vadd.f32 %v2247, 1.0
      %v2280 = vadd.f32 %v2248, 1.0
      %v2281 = vadd.f32 %v2249, 1.0
      %v2282 = vadd.f32 %v2250, 1.0
      %v2283 = vadd.f32 %v2251, 1.0
      %v2284 = vadd.f32 %v2252, 1.0
      %v2285 = vadd.f32 %v2253, 1.0
      %v2286 = vadd.f32 %v2254, 1.0
      %v2287 = vadd.f32 %v2255, 1.0
      %v2288 = vadd.f32 %v2256, 1.0
      %v2289 = vadd.f32 %v2257, 1.0
      %v2290 = vadd.f32 %v2258, 1.0
      %v2291 = vadd.f32 %v2259, 1.0
      %v2292 = vadd.f32 %v2260, 1.0
      %v2293 = vadd.f32 %v2261, 1.0
      %v2294 = vadd.f32 %v2262, 1.0
      %v2295 = vadd.f32 %v2263, 1.0
      %v2296 = vadd.f32 %v2264, 1.0
      %v2297 = vadd.f32 %v2265, 1.0
      %v2298 = vadd.f32 %v2266, 1.0
      %v2299 = vadd.f32 %v2267, 1.0
      %v2300 = vadd.f32 %v2268, 1.0
      %v2301 = vadd.f32 %v2269, 1.0
      %v2302 = vadd.f32 %v2270, 1.0
      %v2303 = vadd.f32 %v2271, 1.0
      %v2304 = vadd.f32 %v2272, 1.0
      %v2305 = vadd.f32 %v2273, 1.0
      %v2306 = vadd.f32 %v2274, 1.0
      %v2307 = vadd.f32 %v2275, 1.0
      %v2308 = vadd.f32 %v2276, 1.0
      %v2309 = vadd.f32 %v2277, 1.0
      %v2310 = vmul.f32 %v2182, %v2278
      %v2311 = vmul.f32 %v2183, %v2279
      %v2312 = vmul.f32 %v2184, %v2280
      %v2313 = vmul.f32 %v2185, %v2281
      %v2314 = vmul.f32 %v2186, %v2282
      %v2315 = vmul.f32 %v2187, %v2283
      %v2316 = vmul.f32 %v2188, %v2284
      %v2317 = vmul.f32 %v2189, %v2285
      %v2318 = vmul.f32 %v2190, %v2286
      %v2319 = vmul.f32 %v2191, %v2287
      %v2320 = vmul.f32 %v2192, %v2288
      %v2321 = vmul.f32 %v2193, %v2289
      %v2322 = vmul.f32 %v2194, %v2290
      %v2323 = vmul.f32 %v2195, %v2291
      %v2324 = vmul.f32 %v2196, %v2292
      %v2325 = vmul.f32 %v2197, %v2293
      %v2326 = vmul.f32 %v2198, %v2294
      %v2327 = vmul.f32 %v2199, %v2295
      %v2328 = vmul.f32 %v2200, %v2296
      %v2329 = vmul.f32 %v2201, %v2297
      %v2330 = vmul.f32 %v2202, %v2298
      %v2331 = vmul.f32 %v2203, %v2299
      %v2332 = vmul.f32 %v2204, %v2300
      %v2333 = vmul.f32 %v2205, %v2301
      %v2334 = vmul.f32 %v2206, %v2302
      %v2335 = vmul.f32 %v2207, %v2303
      %v2336 = vmul.f32 %v2208, %v2304
      %v2337 = vmul.f32 %v2209, %v2305
      %v2338 = vmul.f32 %v2210, %v2306
      %v2339 = vmul.f32 %v2211, %v2307
      %v2340 = vmul.f32 %v2212, %v2308
      %v2341 = vmul.f32 %v2213, %v2309
      %2343 = vset.pattern.permute.xlu0 0
      %2344 = vperm.xlu0 %2343, %v1951
      %v2345 = vpop.permute.xlu0 %2344
      %v2347 = vlaneseq
      %v2348 = vshrl.u32 %v2347, 7
      %v2349 = vsub.s32 0, %v2348
      %v2350 = vrot.slane %v2345, %v2349
      %2351 = vmatprep.subr.mxu0 %v2311
      %2352 = vmatpush1.msra.mxu0 %v2310
      %2353 = vmatprep.subr.mxu0 %v2313
      %2354 = vmatpush1.msra.mxu0 %v2312
      %2355 = vmatprep.subr.mxu0 %v2315
      %2356 = vmatpush1.msra.mxu0 %v2314
      %2357 = vmatprep.subr.mxu0 %v2317
      %2358 = vmatpush1.msra.mxu0 %v2316
      %2359 = vmatprep.subr.mxu0 %v2319
      %2360 = vmatpush1.msra.mxu0 %v2318
      %2361 = vmatprep.subr.mxu0 %v2321
      %2362 = vmatpush1.msra.mxu0 %v2320
      %2363 = vmatprep.subr.mxu0 %v2323
      %2364 = vmatpush1.msra.mxu0 %v2322
      %2365 = vmatprep.subr.mxu0 %v2325
      %2366 = vmatpush1.msra.mxu0 %v2324
      %2367 = vmatprep.subr.mxu0 %v2327
      %2368 = vmatpush1.msra.mxu0 %v2326
      %2369 = vmatprep.subr.mxu0 %v2329
      %2370 = vmatpush1.msra.mxu0 %v2328
      %2371 = vmatprep.subr.mxu0 %v2331
      %2372 = vmatpush1.msra.mxu0 %v2330
      %2373 = vmatprep.subr.mxu0 %v2333
      %2374 = vmatpush1.msra.mxu0 %v2332
      %2375 = vmatprep.subr.mxu0 %v2335
      %2376 = vmatpush1.msra.mxu0 %v2334
      %2377 = vmatprep.subr.mxu0 %v2337
      %2378 = vmatpush1.msra.mxu0 %v2336
      %2379 = vmatprep.subr.mxu0 %v2339
      %2380 = vmatpush1.msra.mxu0 %v2338
      %2381 = vmatprep.subr.mxu0 %v2341
      %2382 = vmatpush1.msra.mxu0 %v2340
      %2383 = vmatprep.subr.mxu0 0.0
      %2384 = vmatpush1.msra.mxu0 0.0
      %2385 = vmatprep.subr.mxu0 0.0
      %2386 = vmatpush1.msra.mxu0 0.0
      %2387 = vmatprep.subr.mxu0 0.0
      %2388 = vmatpush1.msra.mxu0 0.0
      %2389 = vmatprep.subr.mxu0 0.0
      %2390 = vmatpush1.msra.mxu0 0.0
      %2391 = vmatprep.subr.mxu0 0.0
      %2392 = vmatpush1.msra.mxu0 0.0
      %2393 = vmatprep.subr.mxu0 0.0
      %2394 = vmatpush1.msra.mxu0 0.0
      %2395 = vmatprep.subr.mxu0 0.0
      %2396 = vmatpush1.msra.mxu0 0.0
      %2397 = vmatprep.subr.mxu0 0.0
      %2398 = vmatpush1.msra.mxu0 0.0
      %2399 = vmatprep.subr.mxu0 0.0
      %2400 = vmatpush1.msra.mxu0 0.0
      %2401 = vmatprep.subr.mxu0 0.0
      %2402 = vmatpush1.msra.mxu0 0.0
      %2403 = vmatprep.subr.mxu0 0.0
      %2404 = vmatpush1.msra.mxu0 0.0
      %2405 = vmatprep.subr.mxu0 0.0
      %2406 = vmatpush1.msra.mxu0 0.0
      %2407 = vmatprep.subr.mxu0 0.0
      %2408 = vmatpush1.msra.mxu0 0.0
      %2409 = vmatprep.subr.mxu0 0.0
      %2410 = vmatpush1.msra.mxu0 0.0
      %2411 = vmatprep.subr.mxu0 0.0
      %2412 = vmatpush1.msra.mxu0 0.0
      %2413 = vmatprep.subr.mxu0 0.0
      %2414 = vmatpush1.msra.mxu0 0.0
      %2415 = vmatprep.mubr.f32.mxu0 0.0
      %2416 = vmatmul.mubr.f32.gmra.mrb[0].mxu0 %v1950
      %v2417 = vpop.f32.mrb[0].mxu0
      %v2418 = vadd.f32 %v2350, %v2417
      %v2419 = vpop.f32.mrb[0].mxu0
      %v2420 = vadd.f32 %v2350, %v2419
      %2421 = vdwg.mxu0
      %v2424 = vcombine.low %v2418, %v2420
      %v2426 = vunpack.c.l.s4 1966171168
      %v2427 = vunpack.c.0.s8 %v2426
      %v2428 = vlaneseq
      %v2429 = vshrl.u32 %v2428, 7
      %v2430 = vsub.s32 %v2427, %v2429
      %v2431 = vrot.slane %v2424, %v2430
      %v2433 = vunpack.c.l.s4 1966171168
      %v2434 = vunpack.c.0.s8 %v2433
      %v2435 = vlaneseq
      %v2436 = vshrl.u32 %v2435, 7
      %v2437 = vsub.s32 %v2434, %v2436
      %v2438 = vrot.slane %v2431, %v2437
      %v2440 = vlaneseq
      %vm2441 = vcmp.ge.s32.totalorder %v2440, 0
      %vm2442 = vcmp.lt.s32.totalorder %v2440, 256
      %vm2443 = vmand %vm2441, %vm2442
      %2444 = vst.msk [vmem:[%s366] sm:$0x3] %vm2443, %v2438
      %v2445 = vpack.c.bf16 %v1896, %v1894
      %v2446 = vpack.c.bf16 %v1897, %v1895
      %v2447 = vpack.c.bf16 %v1900, %v1898
      %v2448 = vpack.c.bf16 %v1901, %v1899
      %2449 = vmatprep.subr.bf16.mxu0 %v2446
      %2450 = vmatpush1.bf16.msra.mxu0 %v2445
      %2451 = vmatprep.subr.bf16.mxu0 %v2448
      %2452 = vmatpush1.bf16.msra.mxu0 %v2447
      %2453 = vmatprep.subr.bf16.mxu0 0
      %2454 = vmatpush1.bf16.msra.mxu0 0
      %2455 = vmatprep.subr.bf16.mxu0 0
      %2456 = vmatpush1.bf16.msra.mxu0 0
      %2457 = vmatprep.subr.bf16.mxu0 0
      %2458 = vmatpush1.bf16.msra.mxu0 0
      %2459 = vmatprep.subr.bf16.mxu0 0
      %2460 = vmatpush1.bf16.msra.mxu0 0
      %2461 = vmatprep.subr.bf16.mxu0 0
      %2462 = vmatpush1.bf16.msra.mxu0 0
      %2463 = vmatprep.subr.bf16.mxu0 0
      %2464 = vmatpush1.bf16.msra.mxu0 0
      %2465 = vmatprep.subr.bf16.mxu0 0
      %2466 = vmatpush1.bf16.msra.mxu0 0
      %2467 = vmatprep.subr.bf16.mxu0 0
      %2468 = vmatpush1.bf16.msra.mxu0 0
      %2469 = vmatprep.subr.bf16.mxu0 0
      %2470 = vmatpush1.bf16.msra.mxu0 0
      %2471 = vmatprep.subr.bf16.mxu0 0
      %2472 = vmatpush1.bf16.msra.mxu0 0
      %2473 = vmatprep.subr.bf16.mxu0 0
      %2474 = vmatpush1.bf16.msra.mxu0 0
      %2475 = vmatprep.subr.bf16.mxu0 0
      %2476 = vmatpush1.bf16.msra.mxu0 0
      %2477 = vmatprep.subr.bf16.mxu0 0
      %2478 = vmatpush1.bf16.msra.mxu0 0
      %2479 = vmatprep.subr.bf16.mxu0 0
      %2480 = vmatpush1.bf16.msra.mxu0 0
      %2481 = vmatprep.mubr.bf16.mxu0 0
      %2482 = vmatmul.mubr.bf16.gmra.mrb[0].mxu0 %v2046
      %v2483 = vpop.f32.mrb[0].mxu0
      %v2484 = vadd.f32 %v1967, %v2483
      %v2485 = vpop.f32.mrb[0].mxu0
      %v2486 = vadd.f32 %v1967, %v2485
      %v2487 = vpop.f32.mrb[0].mxu0
      %v2488 = vadd.f32 %v1972, %v2487
      %v2489 = vpop.f32.mrb[0].mxu0
      %v2490 = vadd.f32 %v1972, %v2489
      %2491 = vmatprep.mubr.bf16.mxu0 0
      %2492 = vmatmul.mubr.bf16.gmra.mrb[0].mxu0 %v2049
      %v2493 = vpop.f32.mrb[0].mxu0
      %v2494 = vadd.f32 %v1977, %v2493
      %v2495 = vpop.f32.mrb[0].mxu0
      %v2496 = vadd.f32 %v1977, %v2495
      %v2497 = vpop.f32.mrb[0].mxu0
      %v2498 = vadd.f32 %v1982, %v2497
      %v2499 = vpop.f32.mrb[0].mxu0
      %v2500 = vadd.f32 %v1982, %v2499
      %2501 = vmatprep.mubr.bf16.mxu0 0
      %2502 = vmatmul.mubr.bf16.gmra.mrb[0].mxu0 %v2052
      %v2503 = vpop.f32.mrb[0].mxu0
      %v2504 = vadd.f32 %v1987, %v2503
      %v2505 = vpop.f32.mrb[0].mxu0
      %v2506 = vadd.f32 %v1987, %v2505
      %v2507 = vpop.f32.mrb[0].mxu0
      %v2508 = vadd.f32 %v1992, %v2507
      %v2509 = vpop.f32.mrb[0].mxu0
      %v2510 = vadd.f32 %v1992, %v2509
      %2511 = vmatprep.mubr.bf16.mxu0 0
      %2512 = vmatmul.mubr.bf16.gmra.mrb[0].mxu0 %v2055
      %v2513 = vpop.f32.mrb[0].mxu0
      %v2514 = vadd.f32 %v1997, %v2513
      %v2515 = vpop.f32.mrb[0].mxu0
      %v2516 = vadd.f32 %v1997, %v2515
      %v2517 = vpop.f32.mrb[0].mxu0
      %v2518 = vadd.f32 %v2002, %v2517
      %v2519 = vpop.f32.mrb[0].mxu0
      %v2520 = vadd.f32 %v2002, %v2519
      %2521 = vmatprep.mubr.bf16.mxu0 0
      %2522 = vmatmul.mubr.bf16.gmra.mrb[0].mxu0 %v2058
      %v2523 = vpop.f32.mrb[0].mxu0
      %v2524 = vadd.f32 %v2007, %v2523
      %v2525 = vpop.f32.mrb[0].mxu0
      %v2526 = vadd.f32 %v2007, %v2525
      %v2527 = vpop.f32.mrb[0].mxu0
      %v2528 = vadd.f32 %v2012, %v2527
      %v2529 = vpop.f32.mrb[0].mxu0
      %v2530 = vadd.f32 %v2012, %v2529
      %2531 = vmatprep.mubr.bf16.mxu0 0
      %2532 = vmatmul.mubr.bf16.gmra.mrb[0].mxu0 %v2061
      %v2533 = vpop.f32.mrb[0].mxu0
      %v2534 = vadd.f32 %v2017, %v2533
      %v2535 = vpop.f32.mrb[0].mxu0
      %v2536 = vadd.f32 %v2017, %v2535
      %v2537 = vpop.f32.mrb[0].mxu0
      %v2538 = vadd.f32 %v2022, %v2537
      %v2539 = vpop.f32.mrb[0].mxu0
      %v2540 = vadd.f32 %v2022, %v2539
      %2541 = vmatprep.mubr.bf16.mxu0 0
      %2542 = vmatmul.mubr.bf16.gmra.mrb[0].mxu0 %v2064
      %v2543 = vpop.f32.mrb[0].mxu0
      %v2544 = vadd.f32 %v2027, %v2543
      %v2545 = vpop.f32.mrb[0].mxu0
      %v2546 = vadd.f32 %v2027, %v2545
      %v2547 = vpop.f32.mrb[0].mxu0
      %v2548 = vadd.f32 %v2032, %v2547
      %v2549 = vpop.f32.mrb[0].mxu0
      %v2550 = vadd.f32 %v2032, %v2549
      %2551 = vmatprep.mubr.bf16.mxu0 0
      %2552 = vmatmul.mubr.bf16.gmra.mrb[0].mxu0 %v2067
      %v2553 = vpop.f32.mrb[0].mxu0
      %v2554 = vadd.f32 %v2037, %v2553
      %v2555 = vpop.f32.mrb[0].mxu0
      %v2556 = vadd.f32 %v2037, %v2555
      %v2557 = vpop.f32.mrb[0].mxu0
      %v2558 = vadd.f32 %v2042, %v2557
      %v2559 = vpop.f32.mrb[0].mxu0
      %v2560 = vadd.f32 %v2042, %v2559
      %2561 = vdwg.mxu0
      %v2562 = vmul.f32 %v2484, 0.5
      %v2563 = vmul.f32 %v2486, 0.5
      %v2564 = vmul.f32 %v2488, 0.5
      %v2565 = vmul.f32 %v2490, 0.5
      %v2566 = vmul.f32 %v2494, 0.5
      %v2567 = vmul.f32 %v2496, 0.5
      %v2568 = vmul.f32 %v2498, 0.5
      %v2569 = vmul.f32 %v2500, 0.5
      %v2570 = vmul.f32 %v2504, 0.5
      %v2571 = vmul.f32 %v2506, 0.5
      %v2572 = vmul.f32 %v2508, 0.5
      %v2573 = vmul.f32 %v2510, 0.5
      %v2574 = vmul.f32 %v2514, 0.5
      %v2575 = vmul.f32 %v2516, 0.5
      %v2576 = vmul.f32 %v2518, 0.5
      %v2577 = vmul.f32 %v2520, 0.5
      %v2578 = vmul.f32 %v2524, 0.5
      %v2579 = vmul.f32 %v2526, 0.5
      %v2580 = vmul.f32 %v2528, 0.5
      %v2581 = vmul.f32 %v2530, 0.5
      %v2582 = vmul.f32 %v2534, 0.5
      %v2583 = vmul.f32 %v2536, 0.5
      %v2584 = vmul.f32 %v2538, 0.5
      %v2585 = vmul.f32 %v2540, 0.5
      %v2586 = vmul.f32 %v2544, 0.5
      %v2587 = vmul.f32 %v2546, 0.5
      %v2588 = vmul.f32 %v2548, 0.5
      %v2589 = vmul.f32 %v2550, 0.5
      %v2590 = vmul.f32 %v2554, 0.5
      %v2591 = vmul.f32 %v2556, 0.5
      %v2592 = vmul.f32 %v2558, 0.5
      %v2593 = vmul.f32 %v2560, 0.5
      %v2594 = vmul.f32 %v2484, 0.70710677
      %v2595 = vmul.f32 %v2486, 0.70710677
      %v2596 = vmul.f32 %v2488, 0.70710677
      %v2597 = vmul.f32 %v2490, 0.70710677
      %v2598 = vmul.f32 %v2494, 0.70710677
      %v2599 = vmul.f32 %v2496, 0.70710677
      %v2600 = vmul.f32 %v2498, 0.70710677
      %v2601 = vmul.f32 %v2500, 0.70710677
      %v2602 = vmul.f32 %v2504, 0.70710677
      %v2603 = vmul.f32 %v2506, 0.70710677
      %v2604 = vmul.f32 %v2508, 0.70710677
      %v2605 = vmul.f32 %v2510, 0.70710677
      %v2606 = vmul.f32 %v2514, 0.70710677
      %v2607 = vmul.f32 %v2516, 0.70710677
      %v2608 = vmul.f32 %v2518, 0.70710677
      %v2609 = vmul.f32 %v2520, 0.70710677
      %v2610 = vmul.f32 %v2524, 0.70710677
      %v2611 = vmul.f32 %v2526, 0.70710677
      %v2612 = vmul.f32 %v2528, 0.70710677
      %v2613 = vmul.f32 %v2530, 0.70710677
      %v2614 = vmul.f32 %v2534, 0.70710677
      %v2615 = vmul.f32 %v2536, 0.70710677
      %v2616 = vmul.f32 %v2538, 0.70710677
      %v2617 = vmul.f32 %v2540, 0.70710677
      %v2618 = vmul.f32 %v2544, 0.70710677
      %v2619 = vmul.f32 %v2546, 0.70710677
      %v2620 = vmul.f32 %v2548, 0.70710677
      %v2621 = vmul.f32 %v2550, 0.70710677
      %v2622 = vmul.f32 %v2554, 0.70710677
      %v2623 = vmul.f32 %v2556, 0.70710677
      %v2624 = vmul.f32 %v2558, 0.70710677
      %v2625 = vmul.f32 %v2560, 0.70710677
      %v2626 = verf.f32.pop %v2594
      %v2627 = verf.f32.pop %v2595
      %v2628 = verf.f32.pop %v2596
      %v2629 = verf.f32.pop %v2597
      %v2630 = verf.f32.pop %v2598
      %v2631 = verf.f32.pop %v2599
      %v2632 = verf.f32.pop %v2600
      %v2633 = verf.f32.pop %v2601
      %v2634 = verf.f32.pop %v2602
      %v2635 = verf.f32.pop %v2603
      %v2636 = verf.f32.pop %v2604
      %v2637 = verf.f32.pop %v2605
      %v2638 = verf.f32.pop %v2606
      %v2639 = verf.f32.pop %v2607
      %v2640 = verf.f32.pop %v2608
      %v2641 = verf.f32.pop %v2609
      %v2642 = verf.f32.pop %v2610
      %v2643 = verf.f32.pop %v2611
      %v2644 = verf.f32.pop %v2612
      %v2645 = verf.f32.pop %v2613
      %v2646 = verf.f32.pop %v2614
      %v2647 = verf.f32.pop %v2615
      %v2648 = verf.f32.pop %v2616
      %v2649 = verf.f32.pop %v2617
      %v2650 = verf.f32.pop %v2618
      %v2651 = verf.f32.pop %v2619
      %v2652 = verf.f32.pop %v2620
      %v2653 = verf.f32.pop %v2621
      %v2654 = verf.f32.pop %v2622
      %v2655 = verf.f32.pop %v2623
      %v2656 = verf.f32.pop %v2624
      %v2657 = verf.f32.pop %v2625
      %v2658 = vadd.f32 %v2626, 1.0
      %v2659 = vadd.f32 %v2627, 1.0
      %v2660 = vadd.f32 %v2628, 1.0
      %v2661 = vadd.f32 %v2629, 1.0
      %v2662 = vadd.f32 %v2630, 1.0
      %v2663 = vadd.f32 %v2631, 1.0
      %v2664 = vadd.f32 %v2632, 1.0
      %v2665 = vadd.f32 %v2633, 1.0
      %v2666 = vadd.f32 %v2634, 1.0
      %v2667 = vadd.f32 %v2635, 1.0
      %v2668 = vadd.f32 %v2636, 1.0
      %v2669 = vadd.f32 %v2637, 1.0
      %v2670 = vadd.f32 %v2638, 1.0
      %v2671 = vadd.f32 %v2639, 1.0
      %v2672 = vadd.f32 %v2640, 1.0
      %v2673 = vadd.f32 %v2641, 1.0
      %v2674 = vadd.f32 %v2642, 1.0
      %v2675 = vadd.f32 %v2643, 1.0
      %v2676 = vadd.f32 %v2644, 1.0
      %v2677 = vadd.f32 %v2645, 1.0
      %v2678 = vadd.f32 %v2646, 1.0
      %v2679 = vadd.f32 %v2647, 1.0
      %v2680 = vadd.f32 %v2648, 1.0
      %v2681 = vadd.f32 %v2649, 1.0
      %v2682 = vadd.f32 %v2650, 1.0
      %v2683 = vadd.f32 %v2651, 1.0
      %v2684 = vadd.f32 %v2652, 1.0
      %v2685 = vadd.f32 %v2653, 1.0
      %v2686 = vadd.f32 %v2654, 1.0
      %v2687 = vadd.f32 %v2655, 1.0
      %v2688 = vadd.f32 %v2656, 1.0
      %v2689 = vadd.f32 %v2657, 1.0
      %v2690 = vmul.f32 %v2562, %v2658
      %v2691 = vmul.f32 %v2563, %v2659
      %v2692 = vmul.f32 %v2564, %v2660
      %v2693 = vmul.f32 %v2565, %v2661
      %v2694 = vmul.f32 %v2566, %v2662
      %v2695 = vmul.f32 %v2567, %v2663
      %v2696 = vmul.f32 %v2568, %v2664
      %v2697 = vmul.f32 %v2569, %v2665
      %v2698 = vmul.f32 %v2570, %v2666
      %v2699 = vmul.f32 %v2571, %v2667
      %v2700 = vmul.f32 %v2572, %v2668
      %v2701 = vmul.f32 %v2573, %v2669
      %v2702 = vmul.f32 %v2574, %v2670
      %v2703 = vmul.f32 %v2575, %v2671
      %v2704 = vmul.f32 %v2576, %v2672
      %v2705 = vmul.f32 %v2577, %v2673
      %v2706 = vmul.f32 %v2578, %v2674
      %v2707 = vmul.f32 %v2579, %v2675
      %v2708 = vmul.f32 %v2580, %v2676
      %v2709 = vmul.f32 %v2581, %v2677
      %v2710 = vmul.f32 %v2582, %v2678
      %v2711 = vmul.f32 %v2583, %v2679
      %v2712 = vmul.f32 %v2584, %v2680
      %v2713 = vmul.f32 %v2585, %v2681
      %v2714 = vmul.f32 %v2586, %v2682
      %v2715 = vmul.f32 %v2587, %v2683
      %v2716 = vmul.f32 %v2588, %v2684
      %v2717 = vmul.f32 %v2589, %v2685
      %v2718 = vmul.f32 %v2590, %v2686
      %v2719 = vmul.f32 %v2591, %v2687
      %v2720 = vmul.f32 %v2592, %v2688
      %v2721 = vmul.f32 %v2593, %v2689
      %2722 = vmatprep.subr.mxu0 %v2691
      %2723 = vmatpush1.msra.mxu0 %v2690
      %2724 = vmatprep.subr.mxu0 %v2693
      %2725 = vmatpush1.msra.mxu0 %v2692
      %2726 = vmatprep.subr.mxu0 %v2695
      %2727 = vmatpush1.msra.mxu0 %v2694
      %2728 = vmatprep.subr.mxu0 %v2697
      %2729 = vmatpush1.msra.mxu0 %v2696
      %2730 = vmatprep.subr.mxu0 %v2699
      %2731 = vmatpush1.msra.mxu0 %v2698
      %2732 = vmatprep.subr.mxu0 %v2701
      %2733 = vmatpush1.msra.mxu0 %v2700
      %2734 = vmatprep.subr.mxu0 %v2703
      %2735 = vmatpush1.msra.mxu0 %v2702
      %2736 = vmatprep.subr.mxu0 %v2705
      %2737 = vmatpush1.msra.mxu0 %v2704
      %2738 = vmatprep.subr.mxu0 %v2707
      %2739 = vmatpush1.msra.mxu0 %v2706
      %2740 = vmatprep.subr.mxu0 %v2709
      %2741 = vmatpush1.msra.mxu0 %v2708
      %2742 = vmatprep.subr.mxu0 %v2711
      %2743 = vmatpush1.msra.mxu0 %v2710
      %2744 = vmatprep.subr.mxu0 %v2713
      %2745 = vmatpush1.msra.mxu0 %v2712
      %2746 = vmatprep.subr.mxu0 %v2715
      %2747 = vmatpush1.msra.mxu0 %v2714
      %2748 = vmatprep.subr.mxu0 %v2717
      %2749 = vmatpush1.msra.mxu0 %v2716
      %2750 = vmatprep.subr.mxu0 %v2719
      %2751 = vmatpush1.msra.mxu0 %v2718
      %2752 = vmatprep.subr.mxu0 %v2721
      %2753 = vmatpush1.msra.mxu0 %v2720
      %2754 = vmatprep.subr.mxu0 0.0
      %2755 = vmatpush1.msra.mxu0 0.0
      %2756 = vmatprep.subr.mxu0 0.0
      %2757 = vmatpush1.msra.mxu0 0.0
      %2758 = vmatprep.subr.mxu0 0.0
      %2759 = vmatpush1.msra.mxu0 0.0
      %2760 = vmatprep.subr.mxu0 0.0
      %2761 = vmatpush1.msra.mxu0 0.0
      %2762 = vmatprep.subr.mxu0 0.0
      %2763 = vmatpush1.msra.mxu0 0.0
      %2764 = vmatprep.subr.mxu0 0.0
      %2765 = vmatpush1.msra.mxu0 0.0
      %2766 = vmatprep.subr.mxu0 0.0
      %2767 = vmatpush1.msra.mxu0 0.0
      %2768 = vmatprep.subr.mxu0 0.0
      %2769 = vmatpush1.msra.mxu0 0.0
      %2770 = vmatprep.subr.mxu0 0.0
      %2771 = vmatpush1.msra.mxu0 0.0
      %2772 = vmatprep.subr.mxu0 0.0
      %2773 = vmatpush1.msra.mxu0 0.0
      %2774 = vmatprep.subr.mxu0 0.0
      %2775 = vmatpush1.msra.mxu0 0.0
      %2776 = vmatprep.subr.mxu0 0.0
      %2777 = vmatpush1.msra.mxu0 0.0
      %2778 = vmatprep.subr.mxu0 0.0
      %2779 = vmatpush1.msra.mxu0 0.0
      %2780 = vmatprep.subr.mxu0 0.0
      %2781 = vmatpush1.msra.mxu0 0.0
      %2782 = vmatprep.subr.mxu0 0.0
      %2783 = vmatpush1.msra.mxu0 0.0
      %2784 = vmatprep.subr.mxu0 0.0
      %2785 = vmatpush1.msra.mxu0 0.0
      %2786 = vmatprep.mubr.f32.mxu0 0.0
      %2787 = vmatmul.mubr.f32.gmra.mrb[0].mxu0 %v1950
      %v2788 = vpop.f32.mrb[0].mxu0
      %v2789 = vadd.f32 %v2350, %v2788
      %v2790 = vpop.f32.mrb[0].mxu0
      %v2791 = vadd.f32 %v2350, %v2790
      %2792 = vdwg.mxu0
      %v2795 = vcombine.low %v2789, %v2791
      %v2797 = vunpack.c.l.s4 1966171168
      %v2798 = vunpack.c.0.s8 %v2797
      %v2799 = vlaneseq
      %v2800 = vshrl.u32 %v2799, 7
      %v2801 = vsub.s32 %v2798, %v2800
      %v2802 = vrot.slane %v2795, %v2801
      %v2804 = vunpack.c.l.s4 1966171168
      %v2805 = vunpack.c.0.s8 %v2804
      %v2806 = vlaneseq
      %v2807 = vshrl.u32 %v2806, 7
      %v2808 = vsub.s32 %v2805, %v2807
      %v2809 = vrot.slane %v2802, %v2808
      %s2811 = scalar_lea.vmem %s366, 2
      %2812 = vst.msk [vmem:[%s2811] sm:$0x3] %vm2443, %v2809
      %v2813 = vpack.c.bf16 %v1904, %v1902
      %v2814 = vpack.c.bf16 %v1905, %v1903
      %v2815 = vpack.c.bf16 %v1908, %v1906
      %v2816 = vpack.c.bf16 %v1909, %v1907
      %2817 = vmatprep.subr.bf16.mxu0 %v2814
      %2818 = vmatpush1.bf16.msra.mxu0 %v2813
      %2819 = vmatprep.subr.bf16.mxu0 %v2816
      %2820 = vmatpush1.bf16.msra.mxu0 %v2815
      %2821 = vmatprep.subr.bf16.mxu0 0
      %2822 = vmatpush1.bf16.msra.mxu0 0
      %2823 = vmatprep.subr.bf16.mxu0 0
      %2824 = vmatpush1.bf16.msra.mxu0 0
      %2825 = vmatprep.subr.bf16.mxu0 0
      %2826 = vmatpush1.bf16.msra.mxu0 0
      %2827 = vmatprep.subr.bf16.mxu0 0
      %2828 = vmatpush1.bf16.msra.mxu0 0
      %2829 = vmatprep.subr.bf16.mxu0 0
      %2830 = vmatpush1.bf16.msra.mxu0 0
      %2831 = vmatprep.subr.bf16.mxu0 0
      %2832 = vmatpush1.bf16.msra.mxu0 0
      %2833 = vmatprep.subr.bf16.mxu0 0
      %2834 = vmatpush1.bf16.msra.mxu0 0
      %2835 = vmatprep.subr.bf16.mxu0 0
      %2836 = vmatpush1.bf16.msra.mxu0 0
      %2837 = vmatprep.subr.bf16.mxu0 0
      %2838 = vmatpush1.bf16.msra.mxu0 0
      %2839 = vmatprep.subr.bf16.mxu0 0
      %2840 = vmatpush1.bf16.msra.mxu0 0
      %2841 = vmatprep.subr.bf16.mxu0 0
      %2842 = vmatpush1.bf16.msra.mxu0 0
      %2843 = vmatprep.subr.bf16.mxu0 0
      %2844 = vmatpush1.bf16.msra.mxu0 0
      %2845 = vmatprep.subr.bf16.mxu0 0
      %2846 = vmatpush1.bf16.msra.mxu0 0
      %2847 = vmatprep.subr.bf16.mxu0 0
      %2848 = vmatpush1.bf16.msra.mxu0 0
      %2849 = vmatprep.mubr.bf16.mxu0 0
      %2850 = vmatmul.mubr.bf16.gmra.mrb[0].mxu0 %v2046
      %v2851 = vpop.f32.mrb[0].mxu0
      %v2852 = vadd.f32 %v1967, %v2851
      %v2853 = vpop.f32.mrb[0].mxu0
      %v2854 = vadd.f32 %v1967, %v2853
      %v2855 = vpop.f32.mrb[0].mxu0
      %v2856 = vadd.f32 %v1972, %v2855
      %v2857 = vpop.f32.mrb[0].mxu0
      %v2858 = vadd.f32 %v1972, %v2857
      %2859 = vmatprep.mubr.bf16.mxu0 0
      %2860 = vmatmul.mubr.bf16.gmra.mrb[0].mxu0 %v2049
      %v2861 = vpop.f32.mrb[0].mxu0
      %v2862 = vadd.f32 %v1977, %v2861
      %v2863 = vpop.f32.mrb[0].mxu0
      %v2864 = vadd.f32 %v1977, %v2863
      %v2865 = vpop.f32.mrb[0].mxu0
      %v2866 = vadd.f32 %v1982, %v2865
      %v2867 = vpop.f32.mrb[0].mxu0
      %v2868 = vadd.f32 %v1982, %v2867
      %2869 = vmatprep.mubr.bf16.mxu0 0
      %2870 = vmatmul.mubr.bf16.gmra.mrb[0].mxu0 %v2052
      %v2871 = vpop.f32.mrb[0].mxu0
      %v2872 = vadd.f32 %v1987, %v2871
      %v2873 = vpop.f32.mrb[0].mxu0
      %v2874 = vadd.f32 %v1987, %v2873
      %v2875 = vpop.f32.mrb[0].mxu0
      %v2876 = vadd.f32 %v1992, %v2875
      %v2877 = vpop.f32.mrb[0].mxu0
      %v2878 = vadd.f32 %v1992, %v2877
      %2879 = vmatprep.mubr.bf16.mxu0 0
      %2880 = vmatmul.mubr.bf16.gmra.mrb[0].mxu0 %v2055
      %v2881 = vpop.f32.mrb[0].mxu0
      %v2882 = vadd.f32 %v1997, %v2881
      %v2883 = vpop.f32.mrb[0].mxu0
      %v2884 = vadd.f32 %v1997, %v2883
      %v2885 = vpop.f32.mrb[0].mxu0
      %v2886 = vadd.f32 %v2002, %v2885
      %v2887 = vpop.f32.mrb[0].mxu0
      %v2888 = vadd.f32 %v2002, %v2887
      %2889 = vmatprep.mubr.bf16.mxu0 0
      %2890 = vmatmul.mubr.bf16.gmra.mrb[0].mxu0 %v2058
      %v2891 = vpop.f32.mrb[0].mxu0
      %v2892 = vadd.f32 %v2007, %v2891
      %v2893 = vpop.f32.mrb[0].mxu0
      %v2894 = vadd.f32 %v2007, %v2893
      %v2895 = vpop.f32.mrb[0].mxu0
      %v2896 = vadd.f32 %v2012, %v2895
      %v2897 = vpop.f32.mrb[0].mxu0
      %v2898 = vadd.f32 %v2012, %v2897
      %2899 = vmatprep.mubr.bf16.mxu0 0
      %2900 = vmatmul.mubr.bf16.gmra.mrb[0].mxu0 %v2061
      %v2901 = vpop.f32.mrb[0].mxu0
      %v2902 = vadd.f32 %v2017, %v2901
      %v2903 = vpop.f32.mrb[0].mxu0
      %v2904 = vadd.f32 %v2017, %v2903
      %v2905 = vpop.f32.mrb[0].mxu0
      %v2906 = vadd.f32 %v2022, %v2905
      %v2907 = vpop.f32.mrb[0].mxu0
      %v2908 = vadd.f32 %v2022, %v2907
      %2909 = vmatprep.mubr.bf16.mxu0 0
      %2910 = vmatmul.mubr.bf16.gmra.mrb[0].mxu0 %v2064
      %v2911 = vpop.f32.mrb[0].mxu0
      %v2912 = vadd.f32 %v2027, %v2911
      %v2913 = vpop.f32.mrb[0].mxu0
      %v2914 = vadd.f32 %v2027, %v2913
      %v2915 = vpop.f32.mrb[0].mxu0
      %v2916 = vadd.f32 %v2032, %v2915
      %v2917 = vpop.f32.mrb[0].mxu0
      %v2918 = vadd.f32 %v2032, %v2917
      %2919 = vmatprep.mubr.bf16.mxu0 0
      %2920 = vmatmul.mubr.bf16.gmra.mrb[0].mxu0 %v2067
      %v2921 = vpop.f32.mrb[0].mxu0
      %v2922 = vadd.f32 %v2037, %v2921
      %v2923 = vpop.f32.mrb[0].mxu0
      %v2924 = vadd.f32 %v2037, %v2923
      %v2925 = vpop.f32.mrb[0].mxu0
      %v2926 = vadd.f32 %v2042, %v2925
      %v2927 = vpop.f32.mrb[0].mxu0
      %v2928 = vadd.f32 %v2042, %v2927
      %2929 = vdwg.mxu0
      %v2930 = vmul.f32 %v2852, 0.5
      %v2931 = vmul.f32 %v2854, 0.5
      %v2932 = vmul.f32 %v2856, 0.5
      %v2933 = vmul.f32 %v2858, 0.5
      %v2934 = vmul.f32 %v2862, 0.5
      %v2935 = vmul.f32 %v2864, 0.5
      %v2936 = vmul.f32 %v2866, 0.5
      %v2937 = vmul.f32 %v2868, 0.5
      %v2938 = vmul.f32 %v2872, 0.5
      %v2939 = vmul.f32 %v2874, 0.5
      %v2940 = vmul.f32 %v2876, 0.5
      %v2941 = vmul.f32 %v2878, 0.5
      %v2942 = vmul.f32 %v2882, 0.5
      %v2943 = vmul.f32 %v2884, 0.5
      %v2944 = vmul.f32 %v2886, 0.5
      %v2945 = vmul.f32 %v2888, 0.5
      %v2946 = vmul.f32 %v2892, 0.5
      %v2947 = vmul.f32 %v2894, 0.5
      %v2948 = vmul.f32 %v2896, 0.5
      %v2949 = vmul.f32 %v2898, 0.5
      %v2950 = vmul.f32 %v2902, 0.5
      %v2951 = vmul.f32 %v2904, 0.5
      %v2952 = vmul.f32 %v2906, 0.5
      %v2953 = vmul.f32 %v2908, 0.5
      %v2954 = vmul.f32 %v2912, 0.5
      %v2955 = vmul.f32 %v2914, 0.5
      %v2956 = vmul.f32 %v2916, 0.5
      %v2957 = vmul.f32 %v2918, 0.5
      %v2958 = vmul.f32 %v2922, 0.5
      %v2959 = vmul.f32 %v2924, 0.5
      %v2960 = vmul.f32 %v2926, 0.5
      %v2961 = vmul.f32 %v2928, 0.5
      %v2962 = vmul.f32 %v2852, 0.70710677
      %v2963 = vmul.f32 %v2854, 0.70710677
      %v2964 = vmul.f32 %v2856, 0.70710677
      %v2965 = vmul.f32 %v2858, 0.70710677
      %v2966 = vmul.f32 %v2862, 0.70710677
      %v2967 = vmul.f32 %v2864, 0.70710677
      %v2968 = vmul.f32 %v2866, 0.70710677
      %v2969 = vmul.f32 %v2868, 0.70710677
      %v2970 = vmul.f32 %v2872, 0.70710677
      %v2971 = vmul.f32 %v2874, 0.70710677
      %v2972 = vmul.f32 %v2876, 0.70710677
      %v2973 = vmul.f32 %v2878, 0.70710677
      %v2974 = vmul.f32 %v2882, 0.70710677
      %v2975 = vmul.f32 %v2884, 0.70710677
      %v2976 = vmul.f32 %v2886, 0.70710677
      %v2977 = vmul.f32 %v2888, 0.70710677
      %v2978 = vmul.f32 %v2892, 0.70710677
      %v2979 = vmul.f32 %v2894, 0.70710677
      %v2980 = vmul.f32 %v2896, 0.70710677
      %v2981 = vmul.f32 %v2898, 0.70710677
      %v2982 = vmul.f32 %v2902, 0.70710677
      %v2983 = vmul.f32 %v2904, 0.70710677
      %v2984 = vmul.f32 %v2906, 0.70710677
      %v2985 = vmul.f32 %v2908, 0.70710677
      %v2986 = vmul.f32 %v2912, 0.70710677
      %v2987 = vmul.f32 %v2914, 0.70710677
      %v2988 = vmul.f32 %v2916, 0.70710677
      %v2989 = vmul.f32 %v2918, 0.70710677
      %v2990 = vmul.f32 %v2922, 0.70710677
      %v2991 = vmul.f32 %v2924, 0.70710677
      %v2992 = vmul.f32 %v2926, 0.70710677
      %v2993 = vmul.f32 %v2928, 0.70710677
      %v2994 = verf.f32.pop %v2962
      %v2995 = verf.f32.pop %v2963
      %v2996 = verf.f32.pop %v2964
      %v2997 = verf.f32.pop %v2965
      %v2998 = verf.f32.pop %v2966
      %v2999 = verf.f32.pop %v2967
      %v3000 = verf.f32.pop %v2968
      %v3001 = verf.f32.pop %v2969
      %v3002 = verf.f32.pop %v2970
      %v3003 = verf.f32.pop %v2971
      %v3004 = verf.f32.pop %v2972
      %v3005 = verf.f32.pop %v2973
      %v3006 = verf.f32.pop %v2974
      %v3007 = verf.f32.pop %v2975
      %v3008 = verf.f32.pop %v2976
      %v3009 = verf.f32.pop %v2977
      %v3010 = verf.f32.pop %v2978
      %v3011 = verf.f32.pop %v2979
      %v3012 = verf.f32.pop %v2980
      %v3013 = verf.f32.pop %v2981
      %v3014 = verf.f32.pop %v2982
      %v3015 = verf.f32.pop %v2983
      %v3016 = verf.f32.pop %v2984
      %v3017 = verf.f32.pop %v2985
      %v3018 = verf.f32.pop %v2986
      %v3019 = verf.f32.pop %v2987
      %v3020 = verf.f32.pop %v2988
      %v3021 = verf.f32.pop %v2989
      %v3022 = verf.f32.pop %v2990
      %v3023 = verf.f32.pop %v2991
      %v3024 = verf.f32.pop %v2992
      %v3025 = verf.f32.pop %v2993
      %v3026 = vadd.f32 %v2994, 1.0
      %v3027 = vadd.f32 %v2995, 1.0
      %v3028 = vadd.f32 %v2996, 1.0
      %v3029 = vadd.f32 %v2997, 1.0
      %v3030 = vadd.f32 %v2998, 1.0
      %v3031 = vadd.f32 %v2999, 1.0
      %v3032 = vadd.f32 %v3000, 1.0
      %v3033 = vadd.f32 %v3001, 1.0
      %v3034 = vadd.f32 %v3002, 1.0
      %v3035 = vadd.f32 %v3003, 1.0
      %v3036 = vadd.f32 %v3004, 1.0
      %v3037 = vadd.f32 %v3005, 1.0
      %v3038 = vadd.f32 %v3006, 1.0
      %v3039 = vadd.f32 %v3007, 1.0
      %v3040 = vadd.f32 %v3008, 1.0
      %v3041 = vadd.f32 %v3009, 1.0
      %v3042 = vadd.f32 %v3010, 1.0
      %v3043 = vadd.f32 %v3011, 1.0
      %v3044 = vadd.f32 %v3012, 1.0
      %v3045 = vadd.f32 %v3013, 1.0
      %v3046 = vadd.f32 %v3014, 1.0
      %v3047 = vadd.f32 %v3015, 1.0
      %v3048 = vadd.f32 %v3016, 1.0
      %v3049 = vadd.f32 %v3017, 1.0
      %v3050 = vadd.f32 %v3018, 1.0
      %v3051 = vadd.f32 %v3019, 1.0
      %v3052 = vadd.f32 %v3020, 1.0
      %v3053 = vadd.f32 %v3021, 1.0
      %v3054 = vadd.f32 %v3022, 1.0
      %v3055 = vadd.f32 %v3023, 1.0
      %v3056 = vadd.f32 %v3024, 1.0
      %v3057 = vadd.f32 %v3025, 1.0
      %v3058 = vmul.f32 %v2930, %v3026
      %v3059 = vmul.f32 %v2931, %v3027
      %v3060 = vmul.f32 %v2932, %v3028
      %v3061 = vmul.f32 %v2933, %v3029
      %v3062 = vmul.f32 %v2934, %v3030
      %v3063 = vmul.f32 %v2935, %v3031
      %v3064 = vmul.f32 %v2936, %v3032
      %v3065 = vmul.f32 %v2937, %v3033
      %v3066 = vmul.f32 %v2938, %v3034
      %v3067 = vmul.f32 %v2939, %v3035
      %v3068 = vmul.f32 %v2940, %v3036
      %v3069 = vmul.f32 %v2941, %v3037
      %v3070 = vmul.f32 %v2942, %v3038
      %v3071 = vmul.f32 %v2943, %v3039
      %v3072 = vmul.f32 %v2944, %v3040
      %v3073 = vmul.f32 %v2945, %v3041
      %v3074 = vmul.f32 %v2946, %v3042
      %v3075 = vmul.f32 %v2947, %v3043
      %v3076 = vmul.f32 %v2948, %v3044
      %v3077 = vmul.f32 %v2949, %v3045
      %v3078 = vmul.f32 %v2950, %v3046
      %v3079 = vmul.f32 %v2951, %v3047
      %v3080 = vmul.f32 %v2952, %v3048
      %v3081 = vmul.f32 %v2953, %v3049
      %v3082 = vmul.f32 %v2954, %v3050
      %v3083 = vmul.f32 %v2955, %v3051
      %v3084 = vmul.f32 %v2956, %v3052
      %v3085 = vmul.f32 %v2957, %v3053
      %v3086 = vmul.f32 %v2958, %v3054
      %v3087 = vmul.f32 %v2959, %v3055
      %v3088 = vmul.f32 %v2960, %v3056
      %v3089 = vmul.f32 %v2961, %v3057
      %3090 = vmatprep.subr.mxu0 %v3059
      %3091 = vmatpush1.msra.mxu0 %v3058
      %3092 = vmatprep.subr.mxu0 %v3061
      %3093 = vmatpush1.msra.mxu0 %v3060
      %3094 = vmatprep.subr.mxu0 %v3063
      %3095 = vmatpush1.msra.mxu0 %v3062
      %3096 = vmatprep.subr.mxu0 %v3065
      %3097 = vmatpush1.msra.mxu0 %v3064
      %3098 = vmatprep.subr.mxu0 %v3067
      %3099 = vmatpush1.msra.mxu0 %v3066
      %3100 = vmatprep.subr.mxu0 %v3069
      %3101 = vmatpush1.msra.mxu0 %v3068
      %3102 = vmatprep.subr.mxu0 %v3071
      %3103 = vmatpush1.msra.mxu0 %v3070
      %3104 = vmatprep.subr.mxu0 %v3073
      %3105 = vmatpush1.msra.mxu0 %v3072
      %3106 = vmatprep.subr.mxu0 %v3075
      %3107 = vmatpush1.msra.mxu0 %v3074
      %3108 = vmatprep.subr.mxu0 %v3077
      %3109 = vmatpush1.msra.mxu0 %v3076
      %3110 = vmatprep.subr.mxu0 %v3079
      %3111 = vmatpush1.msra.mxu0 %v3078
      %3112 = vmatprep.subr.mxu0 %v3081
      %3113 = vmatpush1.msra.mxu0 %v3080
      %3114 = vmatprep.subr.mxu0 %v3083
      %3115 = vmatpush1.msra.mxu0 %v3082
      %3116 = vmatprep.subr.mxu0 %v3085
      %3117 = vmatpush1.msra.mxu0 %v3084
      %3118 = vmatprep.subr.mxu0 %v3087
      %3119 = vmatpush1.msra.mxu0 %v3086
      %3120 = vmatprep.subr.mxu0 %v3089
      %3121 = vmatpush1.msra.mxu0 %v3088
      %3122 = vmatprep.subr.mxu0 0.0
      %3123 = vmatpush1.msra.mxu0 0.0
      %3124 = vmatprep.subr.mxu0 0.0
      %3125 = vmatpush1.msra.mxu0 0.0
      %3126 = vmatprep.subr.mxu0 0.0
      %3127 = vmatpush1.msra.mxu0 0.0
      %3128 = vmatprep.subr.mxu0 0.0
      %3129 = vmatpush1.msra.mxu0 0.0
      %3130 = vmatprep.subr.mxu0 0.0
      %3131 = vmatpush1.msra.mxu0 0.0
      %3132 = vmatprep.subr.mxu0 0.0
      %3133 = vmatpush1.msra.mxu0 0.0
      %3134 = vmatprep.subr.mxu0 0.0
      %3135 = vmatpush1.msra.mxu0 0.0
      %3136 = vmatprep.subr.mxu0 0.0
      %3137 = vmatpush1.msra.mxu0 0.0
      %3138 = vmatprep.subr.mxu0 0.0
      %3139 = vmatpush1.msra.mxu0 0.0
      %3140 = vmatprep.subr.mxu0 0.0
      %3141 = vmatpush1.msra.mxu0 0.0
      %3142 = vmatprep.subr.mxu0 0.0
      %3143 = vmatpush1.msra.mxu0 0.0
      %3144 = vmatprep.subr.mxu0 0.0
      %3145 = vmatpush1.msra.mxu0 0.0
      %3146 = vmatprep.subr.mxu0 0.0
      %3147 = vmatpush1.msra.mxu0 0.0
      %3148 = vmatprep.subr.mxu0 0.0
      %3149 = vmatpush1.msra.mxu0 0.0
      %3150 = vmatprep.subr.mxu0 0.0
      %3151 = vmatpush1.msra.mxu0 0.0
      %3152 = vmatprep.subr.mxu0 0.0
      %3153 = vmatpush1.msra.mxu0 0.0
      %3154 = vmatprep.mubr.f32.mxu0 0.0
      %3155 = vmatmul.mubr.f32.gmra.mrb[0].mxu0 %v1950
      %v3156 = vpop.f32.mrb[0].mxu0
      %v3157 = vadd.f32 %v2350, %v3156
      %v3158 = vpop.f32.mrb[0].mxu0
      %v3159 = vadd.f32 %v2350, %v3158
      %3160 = vdwg.mxu0
      %v3163 = vcombine.low %v3157, %v3159
      %v3165 = vunpack.c.l.s4 1966171168
      %v3166 = vunpack.c.0.s8 %v3165
      %v3167 = vlaneseq
      %v3168 = vshrl.u32 %v3167, 7
      %v3169 = vsub.s32 %v3166, %v3168
      %v3170 = vrot.slane %v3163, %v3169
      %v3172 = vunpack.c.l.s4 1966171168
      %v3173 = vunpack.c.0.s8 %v3172
      %v3174 = vlaneseq
      %v3175 = vshrl.u32 %v3174, 7
      %v3176 = vsub.s32 %v3173, %v3175
      %v3177 = vrot.slane %v3170, %v3176
      %s3179 = scalar_lea.vmem %s366, 4
      %3180 = vst.msk [vmem:[%s3179] sm:$0x3] %vm2443, %v3177
      %v3181 = vpack.c.bf16 %v1912, %v1910
      %v3182 = vpack.c.bf16 %v1913, %v1911
      %v3183 = vpack.c.bf16 %v1916, %v1914
      %v3184 = vpack.c.bf16 %v1917, %v1915
      %3185 = vmatprep.subr.bf16.mxu0 %v3182
      %3186 = vmatpush1.bf16.msra.mxu0 %v3181
      %3187 = vmatprep.subr.bf16.mxu0 %v3184
      %3188 = vmatpush1.bf16.msra.mxu0 %v3183
      %3189 = vmatprep.subr.bf16.mxu0 0
      %3190 = vmatpush1.bf16.msra.mxu0 0
      %3191 = vmatprep.subr.bf16.mxu0 0
      %3192 = vmatpush1.bf16.msra.mxu0 0
      %3193 = vmatprep.subr.bf16.mxu0 0
      %3194 = vmatpush1.bf16.msra.mxu0 0
      %3195 = vmatprep.subr.bf16.mxu0 0
      %3196 = vmatpush1.bf16.msra.mxu0 0
      %3197 = vmatprep.subr.bf16.mxu0 0
      %3198 = vmatpush1.bf16.msra.mxu0 0
      %3199 = vmatprep.subr.bf16.mxu0 0
      %3200 = vmatpush1.bf16.msra.mxu0 0
      %3201 = vmatprep.subr.bf16.mxu0 0
      %3202 = vmatpush1.bf16.msra.mxu0 0
      %3203 = vmatprep.subr.bf16.mxu0 0
      %3204 = vmatpush1.bf16.msra.mxu0 0
      %3205 = vmatprep.subr.bf16.mxu0 0
      %3206 = vmatpush1.bf16.msra.mxu0 0
      %3207 = vmatprep.subr.bf16.mxu0 0
      %3208 = vmatpush1.bf16.msra.mxu0 0
      %3209 = vmatprep.subr.bf16.mxu0 0
      %3210 = vmatpush1.bf16.msra.mxu0 0
      %3211 = vmatprep.subr.bf16.mxu0 0
      %3212 = vmatpush1.bf16.msra.mxu0 0
      %3213 = vmatprep.subr.bf16.mxu0 0
      %3214 = vmatpush1.bf16.msra.mxu0 0
      %3215 = vmatprep.subr.bf16.mxu0 0
      %3216 = vmatpush1.bf16.msra.mxu0 0
      %3217 = vmatprep.mubr.bf16.mxu0 0
      %3218 = vmatmul.mubr.bf16.gmra.mrb[0].mxu0 %v2046
      %v3219 = vpop.f32.mrb[0].mxu0
      %v3220 = vadd.f32 %v1967, %v3219
      %v3221 = vpop.f32.mrb[0].mxu0
      %v3222 = vadd.f32 %v1967, %v3221
      %v3223 = vpop.f32.mrb[0].mxu0
      %v3224 = vadd.f32 %v1972, %v3223
      %v3225 = vpop.f32.mrb[0].mxu0
      %v3226 = vadd.f32 %v1972, %v3225
      %3227 = vmatprep.mubr.bf16.mxu0 0
      %3228 = vmatmul.mubr.bf16.gmra.mrb[0].mxu0 %v2049
      %v3229 = vpop.f32.mrb[0].mxu0
      %v3230 = vadd.f32 %v1977, %v3229
      %v3231 = vpop.f32.mrb[0].mxu0
      %v3232 = vadd.f32 %v1977, %v3231
      %v3233 = vpop.f32.mrb[0].mxu0
      %v3234 = vadd.f32 %v1982, %v3233
      %v3235 = vpop.f32.mrb[0].mxu0
      %v3236 = vadd.f32 %v1982, %v3235
      %3237 = vmatprep.mubr.bf16.mxu0 0
      %3238 = vmatmul.mubr.bf16.gmra.mrb[0].mxu0 %v2052
      %v3239 = vpop.f32.mrb[0].mxu0
      %v3240 = vadd.f32 %v1987, %v3239
      %v3241 = vpop.f32.mrb[0].mxu0
      %v3242 = vadd.f32 %v1987, %v3241
      %v3243 = vpop.f32.mrb[0].mxu0
      %v3244 = vadd.f32 %v1992, %v3243
      %v3245 = vpop.f32.mrb[0].mxu0
      %v3246 = vadd.f32 %v1992, %v3245
      %3247 = vmatprep.mubr.bf16.mxu0 0
      %3248 = vmatmul.mubr.bf16.gmra.mrb[0].mxu0 %v2055
      %v3249 = vpop.f32.mrb[0].mxu0
      %v3250 = vadd.f32 %v1997, %v3249
      %v3251 = vpop.f32.mrb[0].mxu0
      %v3252 = vadd.f32 %v1997, %v3251
      %v3253 = vpop.f32.mrb[0].mxu0
      %v3254 = vadd.f32 %v2002, %v3253
      %v3255 = vpop.f32.mrb[0].mxu0
      %v3256 = vadd.f32 %v2002, %v3255
      %3257 = vmatprep.mubr.bf16.mxu0 0
      %3258 = vmatmul.mubr.bf16.gmra.mrb[0].mxu0 %v2058
      %v3259 = vpop.f32.mrb[0].mxu0
      %v3260 = vadd.f32 %v2007, %v3259
      %v3261 = vpop.f32.mrb[0].mxu0
      %v3262 = vadd.f32 %v2007, %v3261
      %v3263 = vpop.f32.mrb[0].mxu0
      %v3264 = vadd.f32 %v2012, %v3263
      %v3265 = vpop.f32.mrb[0].mxu0
      %v3266 = vadd.f32 %v2012, %v3265
      %3267 = vmatprep.mubr.bf16.mxu0 0
      %3268 = vmatmul.mubr.bf16.gmra.mrb[0].mxu0 %v2061
      %v3269 = vpop.f32.mrb[0].mxu0
      %v3270 = vadd.f32 %v2017, %v3269
      %v3271 = vpop.f32.mrb[0].mxu0
      %v3272 = vadd.f32 %v2017, %v3271
      %v3273 = vpop.f32.mrb[0].mxu0
      %v3274 = vadd.f32 %v2022, %v3273
      %v3275 = vpop.f32.mrb[0].mxu0
      %v3276 = vadd.f32 %v2022, %v3275
      %3277 = vmatprep.mubr.bf16.mxu0 0
      %3278 = vmatmul.mubr.bf16.gmra.mrb[0].mxu0 %v2064
      %v3279 = vpop.f32.mrb[0].mxu0
      %v3280 = vadd.f32 %v2027, %v3279
      %v3281 = vpop.f32.mrb[0].mxu0
      %v3282 = vadd.f32 %v2027, %v3281
      %v3283 = vpop.f32.mrb[0].mxu0
      %v3284 = vadd.f32 %v2032, %v3283
      %v3285 = vpop.f32.mrb[0].mxu0
      %v3286 = vadd.f32 %v2032, %v3285
      %3287 = vmatprep.mubr.bf16.mxu0 0
      %3288 = vmatmul.mubr.bf16.gmra.mrb[0].mxu0 %v2067
      %v3289 = vpop.f32.mrb[0].mxu0
      %v3290 = vadd.f32 %v2037, %v3289
      %v3291 = vpop.f32.mrb[0].mxu0
      %v3292 = vadd.f32 %v2037, %v3291
      %v3293 = vpop.f32.mrb[0].mxu0
      %v3294 = vadd.f32 %v2042, %v3293
      %v3295 = vpop.f32.mrb[0].mxu0
      %v3296 = vadd.f32 %v2042, %v3295
      %3297 = vdwg.mxu0
      %v3298 = vmul.f32 %v3220, 0.5
      %v3299 = vmul.f32 %v3222, 0.5
      %v3300 = vmul.f32 %v3224, 0.5
      %v3301 = vmul.f32 %v3226, 0.5
      %v3302 = vmul.f32 %v3230, 0.5
      %v3303 = vmul.f32 %v3232, 0.5
      %v3304 = vmul.f32 %v3234, 0.5
      %v3305 = vmul.f32 %v3236, 0.5
      %v3306 = vmul.f32 %v3240, 0.5
      %v3307 = vmul.f32 %v3242, 0.5
      %v3308 = vmul.f32 %v3244, 0.5
      %v3309 = vmul.f32 %v3246, 0.5
      %v3310 = vmul.f32 %v3250, 0.5
      %v3311 = vmul.f32 %v3252, 0.5
      %v3312 = vmul.f32 %v3254, 0.5
      %v3313 = vmul.f32 %v3256, 0.5
      %v3314 = vmul.f32 %v3260, 0.5
      %v3315 = vmul.f32 %v3262, 0.5
      %v3316 = vmul.f32 %v3264, 0.5
      %v3317 = vmul.f32 %v3266, 0.5
      %v3318 = vmul.f32 %v3270, 0.5
      %v3319 = vmul.f32 %v3272, 0.5
      %v3320 = vmul.f32 %v3274, 0.5
      %v3321 = vmul.f32 %v3276, 0.5
      %v3322 = vmul.f32 %v3280, 0.5
      %v3323 = vmul.f32 %v3282, 0.5
      %v3324 = vmul.f32 %v3284, 0.5
      %v3325 = vmul.f32 %v3286, 0.5
      %v3326 = vmul.f32 %v3290, 0.5
      %v3327 = vmul.f32 %v3292, 0.5
      %v3328 = vmul.f32 %v3294, 0.5
      %v3329 = vmul.f32 %v3296, 0.5
      %v3330 = vmul.f32 %v3220, 0.70710677
      %v3331 = vmul.f32 %v3222, 0.70710677
      %v3332 = vmul.f32 %v3224, 0.70710677
      %v3333 = vmul.f32 %v3226, 0.70710677
      %v3334 = vmul.f32 %v3230, 0.70710677
      %v3335 = vmul.f32 %v3232, 0.70710677
      %v3336 = vmul.f32 %v3234, 0.70710677
      %v3337 = vmul.f32 %v3236, 0.70710677
      %v3338 = vmul.f32 %v3240, 0.70710677
      %v3339 = vmul.f32 %v3242, 0.70710677
      %v3340 = vmul.f32 %v3244, 0.70710677
      %v3341 = vmul.f32 %v3246, 0.70710677
      %v3342 = vmul.f32 %v3250, 0.70710677
      %v3343 = vmul.f32 %v3252, 0.70710677
      %v3344 = vmul.f32 %v3254, 0.70710677
      %v3345 = vmul.f32 %v3256, 0.70710677
      %v3346 = vmul.f32 %v3260, 0.70710677
      %v3347 = vmul.f32 %v3262, 0.70710677
      %v3348 = vmul.f32 %v3264, 0.70710677
      %v3349 = vmul.f32 %v3266, 0.70710677
      %v3350 = vmul.f32 %v3270, 0.70710677
      %v3351 = vmul.f32 %v3272, 0.70710677
      %v3352 = vmul.f32 %v3274, 0.70710677
      %v3353 = vmul.f32 %v3276, 0.70710677
      %v3354 = vmul.f32 %v3280, 0.70710677
      %v3355 = vmul.f32 %v3282, 0.70710677
      %v3356 = vmul.f32 %v3284, 0.70710677
      %v3357 = vmul.f32 %v3286, 0.70710677
      %v3358 = vmul.f32 %v3290, 0.70710677
      %v3359 = vmul.f32 %v3292, 0.70710677
      %v3360 = vmul.f32 %v3294, 0.70710677
      %v3361 = vmul.f32 %v3296, 0.70710677
      %v3362 = verf.f32.pop %v3330
      %v3363 = verf.f32.pop %v3331
      %v3364 = verf.f32.pop %v3332
      %v3365 = verf.f32.pop %v3333
      %v3366 = verf.f32.pop %v3334
      %v3367 = verf.f32.pop %v3335
      %v3368 = verf.f32.pop %v3336
      %v3369 = verf.f32.pop %v3337
      %v3370 = verf.f32.pop %v3338
      %v3371 = verf.f32.pop %v3339
      %v3372 = verf.f32.pop %v3340
      %v3373 = verf.f32.pop %v3341
      %v3374 = verf.f32.pop %v3342
      %v3375 = verf.f32.pop %v3343
      %v3376 = verf.f32.pop %v3344
      %v3377 = verf.f32.pop %v3345
      %v3378 = verf.f32.pop %v3346
      %v3379 = verf.f32.pop %v3347
      %v3380 = verf.f32.pop %v3348
      %v3381 = verf.f32.pop %v3349
      %v3382 = verf.f32.pop %v3350
      %v3383 = verf.f32.pop %v3351
      %v3384 = verf.f32.pop %v3352
      %v3385 = verf.f32.pop %v3353
      %v3386 = verf.f32.pop %v3354
      %v3387 = verf.f32.pop %v3355
      %v3388 = verf.f32.pop %v3356
      %v3389 = verf.f32.pop %v3357
      %v3390 = verf.f32.pop %v3358
      %v3391 = verf.f32.pop %v3359
      %v3392 = verf.f32.pop %v3360
      %v3393 = verf.f32.pop %v3361
      %v3394 = vadd.f32 %v3362, 1.0
      %v3395 = vadd.f32 %v3363, 1.0
      %v3396 = vadd.f32 %v3364, 1.0
      %v3397 = vadd.f32 %v3365, 1.0
      %v3398 = vadd.f32 %v3366, 1.0
      %v3399 = vadd.f32 %v3367, 1.0
      %v3400 = vadd.f32 %v3368, 1.0
      %v3401 = vadd.f32 %v3369, 1.0
      %v3402 = vadd.f32 %v3370, 1.0
      %v3403 = vadd.f32 %v3371, 1.0
      %v3404 = vadd.f32 %v3372, 1.0
      %v3405 = vadd.f32 %v3373, 1.0
      %v3406 = vadd.f32 %v3374, 1.0
      %v3407 = vadd.f32 %v3375, 1.0
      %v3408 = vadd.f32 %v3376, 1.0
      %v3409 = vadd.f32 %v3377, 1.0
      %v3410 = vadd.f32 %v3378, 1.0
      %v3411 = vadd.f32 %v3379, 1.0
      %v3412 = vadd.f32 %v3380, 1.0
      %v3413 = vadd.f32 %v3381, 1.0
      %v3414 = vadd.f32 %v3382, 1.0
      %v3415 = vadd.f32 %v3383, 1.0
      %v3416 = vadd.f32 %v3384, 1.0
      %v3417 = vadd.f32 %v3385, 1.0
      %v3418 = vadd.f32 %v3386, 1.0
      %v3419 = vadd.f32 %v3387, 1.0
      %v3420 = vadd.f32 %v3388, 1.0
      %v3421 = vadd.f32 %v3389, 1.0
      %v3422 = vadd.f32 %v3390, 1.0
      %v3423 = vadd.f32 %v3391, 1.0
      %v3424 = vadd.f32 %v3392, 1.0
      %v3425 = vadd.f32 %v3393, 1.0
      %v3426 = vmul.f32 %v3298, %v3394
      %v3427 = vmul.f32 %v3299, %v3395
      %v3428 = vmul.f32 %v3300, %v3396
      %v3429 = vmul.f32 %v3301, %v3397
      %v3430 = vmul.f32 %v3302, %v3398
      %v3431 = vmul.f32 %v3303, %v3399
      %v3432 = vmul.f32 %v3304, %v3400
      %v3433 = vmul.f32 %v3305, %v3401
      %v3434 = vmul.f32 %v3306, %v3402
      %v3435 = vmul.f32 %v3307, %v3403
      %v3436 = vmul.f32 %v3308, %v3404
      %v3437 = vmul.f32 %v3309, %v3405
      %v3438 = vmul.f32 %v3310, %v3406
      %v3439 = vmul.f32 %v3311, %v3407
      %v3440 = vmul.f32 %v3312, %v3408
      %v3441 = vmul.f32 %v3313, %v3409
      %v3442 = vmul.f32 %v3314, %v3410
      %v3443 = vmul.f32 %v3315, %v3411
      %v3444 = vmul.f32 %v3316, %v3412
      %v3445 = vmul.f32 %v3317, %v3413
      %v3446 = vmul.f32 %v3318, %v3414
      %v3447 = vmul.f32 %v3319, %v3415
      %v3448 = vmul.f32 %v3320, %v3416
      %v3449 = vmul.f32 %v3321, %v3417
      %v3450 = vmul.f32 %v3322, %v3418
      %v3451 = vmul.f32 %v3323, %v3419
      %v3452 = vmul.f32 %v3324, %v3420
      %v3453 = vmul.f32 %v3325, %v3421
      %v3454 = vmul.f32 %v3326, %v3422
      %v3455 = vmul.f32 %v3327, %v3423
      %v3456 = vmul.f32 %v3328, %v3424
      %v3457 = vmul.f32 %v3329, %v3425
      %3458 = vmatprep.subr.mxu0 %v3427
      %3459 = vmatpush1.msra.mxu0 %v3426
      %3460 = vmatprep.subr.mxu0 %v3429
      %3461 = vmatpush1.msra.mxu0 %v3428
      %3462 = vmatprep.subr.mxu0 %v3431
      %3463 = vmatpush1.msra.mxu0 %v3430
      %3464 = vmatprep.subr.mxu0 %v3433
      %3465 = vmatpush1.msra.mxu0 %v3432
      %3466 = vmatprep.subr.mxu0 %v3435
      %3467 = vmatpush1.msra.mxu0 %v3434
      %3468 = vmatprep.subr.mxu0 %v3437
      %3469 = vmatpush1.msra.mxu0 %v3436
      %3470 = vmatprep.subr.mxu0 %v3439
      %3471 = vmatpush1.msra.mxu0 %v3438
      %3472 = vmatprep.subr.mxu0 %v3441
      %3473 = vmatpush1.msra.mxu0 %v3440
      %3474 = vmatprep.subr.mxu0 %v3443
      %3475 = vmatpush1.msra.mxu0 %v3442
      %3476 = vmatprep.subr.mxu0 %v3445
      %3477 = vmatpush1.msra.mxu0 %v3444
      %3478 = vmatprep.subr.mxu0 %v3447
      %3479 = vmatpush1.msra.mxu0 %v3446
      %3480 = vmatprep.subr.mxu0 %v3449
      %3481 = vmatpush1.msra.mxu0 %v3448
      %3482 = vmatprep.subr.mxu0 %v3451
      %3483 = vmatpush1.msra.mxu0 %v3450
      %3484 = vmatprep.subr.mxu0 %v3453
      %3485 = vmatpush1.msra.mxu0 %v3452
      %3486 = vmatprep.subr.mxu0 %v3455
      %3487 = vmatpush1.msra.mxu0 %v3454
      %3488 = vmatprep.subr.mxu0 %v3457
      %3489 = vmatpush1.msra.mxu0 %v3456
      %3490 = vmatprep.subr.mxu0 0.0
      %3491 = vmatpush1.msra.mxu0 0.0
      %3492 = vmatprep.subr.mxu0 0.0
      %3493 = vmatpush1.msra.mxu0 0.0
      %3494 = vmatprep.subr.mxu0 0.0
      %3495 = vmatpush1.msra.mxu0 0.0
      %3496 = vmatprep.subr.mxu0 0.0
      %3497 = vmatpush1.msra.mxu0 0.0
      %3498 = vmatprep.subr.mxu0 0.0
      %3499 = vmatpush1.msra.mxu0 0.0
      %3500 = vmatprep.subr.mxu0 0.0
      %3501 = vmatpush1.msra.mxu0 0.0
      %3502 = vmatprep.subr.mxu0 0.0
      %3503 = vmatpush1.msra.mxu0 0.0
      %3504 = vmatprep.subr.mxu0 0.0
      %3505 = vmatpush1.msra.mxu0 0.0
      %3506 = vmatprep.subr.mxu0 0.0
      %3507 = vmatpush1.msra.mxu0 0.0
      %3508 = vmatprep.subr.mxu0 0.0
      %3509 = vmatpush1.msra.mxu0 0.0
      %3510 = vmatprep.subr.mxu0 0.0
      %3511 = vmatpush1.msra.mxu0 0.0
      %3512 = vmatprep.subr.mxu0 0.0
      %3513 = vmatpush1.msra.mxu0 0.0
      %3514 = vmatprep.subr.mxu0 0.0
      %3515 = vmatpush1.msra.mxu0 0.0
      %3516 = vmatprep.subr.mxu0 0.0
      %3517 = vmatpush1.msra.mxu0 0.0
      %3518 = vmatprep.subr.mxu0 0.0
      %3519 = vmatpush1.msra.mxu0 0.0
      %3520 = vmatprep.subr.mxu0 0.0
      %3521 = vmatpush1.msra.mxu0 0.0
      %3522 = vmatprep.mubr.f32.mxu0 0.0
      %3523 = vmatmul.mubr.f32.gmra.mrb[0].mxu0 %v1950
      %v3524 = vpop.f32.mrb[0].mxu0
      %v3525 = vadd.f32 %v2350, %v3524
      %v3526 = vpop.f32.mrb[0].mxu0
      %v3527 = vadd.f32 %v2350, %v3526
      %3528 = vdwg.mxu0
      %v3531 = vcombine.low %v3525, %v3527
      %v3533 = vunpack.c.l.s4 1966171168
      %v3534 = vunpack.c.0.s8 %v3533
      %v3535 = vlaneseq
      %v3536 = vshrl.u32 %v3535, 7
      %v3537 = vsub.s32 %v3534, %v3536
      %v3538 = vrot.slane %v3531, %v3537
      %v3540 = vunpack.c.l.s4 1966171168
      %v3541 = vunpack.c.0.s8 %v3540
      %v3542 = vlaneseq
      %v3543 = vshrl.u32 %v3542, 7
      %v3544 = vsub.s32 %v3541, %v3543
      %v3545 = vrot.slane %v3538, %v3544
      %s3547 = scalar_lea.vmem %s366, 6
      %3548 = vst.msk [vmem:[%s3547] sm:$0x3] %vm2443, %v3545
      %s3549 = smul.u32 4, %s23
      %p3550 = scmp.lt.s32.totalorder %s3549, 7
      %s3551 = scalar_select %p3550, %s3549, 7
      %s3552 = smul.addr %s3551, 2
      %s3553 = scalar_lea.vmem %s10, %s3552
      // Predicated region
      $region61: #{fno2d_forward_packed.1} parent=59 // pred_check
        %p3554 = pneg %p256
      $region62: #{fno2d_forward_packed.1} parent=59 // pred_check_branch
        %3556 = sbr.rel (%p3554) target = $region64
      $region63: #{fno2d_forward_packed.1} parent=59 // pred_region
        %s3557 = smul.u32 4, %s23
      $region64: #{fno2d_forward_packed.1} parent=59 // pred_fallthru
        _
    $region60: #{fno2d_forward_packed.1} parent=5 // pred_fallthru
      _
    %p3558 = scmp.le.s32.totalorder 2, %s18
    // Predicated region
    $region65: #{fno2d_forward_packed.1} parent=5 // pred_check
      %p3559 = pneg %p3558
    $region66: #{fno2d_forward_packed.1} parent=5 // pred_check_branch
      %3561 = sbr.rel (%p3559) target = $region68
    $region67: #{fno2d_forward_packed.1} parent=5 // pred_region
      %s3562 = ssub.s32 %s18, 2
      // Predicated region
      $region69: #{fno2d_forward_packed.1} parent=67 // pred_check
        %p3563 = pneg %p262
      $region70: #{fno2d_forward_packed.1} parent=67 // pred_check_branch
        %3565 = sbr.rel (%p3563) target = $region72
      $region71: #{fno2d_forward_packed.1} parent=67 // pred_region
        %s3566 = smul.u32 4, %s24
        %p3567 = scmp.lt.s32.totalorder %s3566, 7
        %s3568 = scalar_select %p3567, %s3566, 7
        %s3569 = smul.addr %s3568, 2
        %s3570 = scalar_lea.vmem %s10, %s3569
      $region72: #{fno2d_forward_packed.1} parent=67 // pred_fallthru
        _
    $region68: #{fno2d_forward_packed.1} parent=5 // pred_fallthru
      _
  $region6: #{fno2d_forward_packed.1} parent=0 // loop_footer
    %s22 = sadd.s32 1, %s18
  $region7: #{fno2d_forward_packed.1} parent=0 // loop_footer_branch
    %17 = sbr.rel target = $region3
  $region8: #{fno2d_forward_packed.1} parent=0 // loop_exit
    _

// kernel: fno2d_forward_packed.1
$region0: #{fno2d_forward_packed.1}
  #allocation0 [shape = 'u32[]', space=smem, size = 0x4, offset = 0x4, fixed_abs, tag = 'smem constant byte address 0x4 - core index']
  #allocation1 [shape = 'u32[144,128]{1,0:T(1,128)}', space=vmem, size = 0x12000, scoped, tag = 'internal scratch']
  #allocation2 [shape = 'f32[1,1]{1,0:T(1,128)S(1)}', space=vmem, size = 0x200, scoped, tag = 'scoped memory for fno2d_forward_packed.1']
  %s0 = inlined_call_operand.vmem [shape: f32[8,3,256], index: 0, kind: input, shape index: {}]
  %s1 = inlined_call_operand.vmem [shape: f32[32,3], index: 1, kind: input, shape index: {}]
  %s2 = inlined_call_operand.vmem [shape: f32[32,1], index: 2, kind: input, shape index: {}]
  %s3 = inlined_call_operand.vmem [shape: f32[2,32,128], index: 3, kind: input, shape index: {}]
  %s4 = inlined_call_operand.vmem [shape: bf16[256,128], index: 4, kind: input, shape index: {}]
  %s5 = inlined_call_operand.vmem [shape: bf16[128,256], index: 5, kind: input, shape index: {}]
  %s6 = inlined_call_operand.vmem [shape: f32[128,32], index: 6, kind: input, shape index: {}]
  %s7 = inlined_call_operand.vmem [shape: f32[128,1], index: 7, kind: input, shape index: {}]
  %s8 = inlined_call_operand.vmem [shape: f32[1,128], index: 8, kind: input, shape index: {}]
  %s9 = inlined_call_operand.<no memory space> [shape: f32[1,1], index: 9, kind: input, shape index: {}]
  %s10 = inlined_call_operand.vmem [shape: f32[8,1,256], index: 10, kind: output, shape index: {}]
  %s11 = sld [smem:[#allocation0]]
  $region73: #{fno2d_forward_packed.1} parent=0
    _
  %s13 = ssub.s32 1, %s11
  %s14 = scalar_select 0, %s13, %s11
  %v15 = vstv %s9
  %16 = vst [vmem:[#allocation2] sm:$0x1] %v15
  loop: start=0, step=1, limit=4
  $region2: #{fno2d_forward_packed.1} parent=0 // loop_pre_header
    _
  $region3: #{fno2d_forward_packed.1} parent=0 // loop_header
    %s18 = sphi 0, %s22
    %p19 = scmp.ge.s32.totalorder %s18, 4
    %s28 = sphi 0, %s30
    %s31 = sphi 0, %s28
    %s32 = sphi 0, %s31
    %s48 = sphi 0, %s32
    %s52 = sphi 0, %s52
    %s54 = sphi 0, %s52
    %s55 = sphi 0, %s54
    %s69 = sphi 0, %s55
    %s73 = sphi 0, %s73
    %s75 = sphi 0, %s73
    %s76 = sphi 0, %s75
    %s90 = sphi 0, %s76
    %s94 = sphi 0, %s94
    %s96 = sphi 0, %s94
    %s97 = sphi 0, %s96
    %s111 = sphi 0, %s97
    %s115 = sphi 0, %s115
    %s117 = sphi 0, %s115
    %s118 = sphi 0, %s117
    %s132 = sphi 0, %s118
    %s136 = sphi 0, %s136
    %s138 = sphi 0, %s136
    %s139 = sphi 0, %s138
    %s153 = sphi 0, %s139
    %s157 = sphi 0, %s157
    %s159 = sphi 0, %s157
    %s160 = sphi 0, %s159
    %s174 = sphi 0, %s160
    %s178 = sphi 0, %s178
    %s180 = sphi 0, %s178
    %s181 = sphi 0, %s180
    %s195 = sphi 0, %s181
    %s199 = sphi 0, %s199
    %s201 = sphi 0, %s199
    %s202 = sphi 0, %s201
    %s216 = sphi 0, %s202
    %s220 = sphi 0, %s220
    %s222 = sphi 0, %s220
    %s223 = sphi 0, %s222
    %s237 = sphi 0, %s223
    %s243 = sphi 0, %s245
    %s246 = sphi 0, %s243
    %s247 = sphi 0, %s246
    %s263 = sphi 0, %s247
  $region4: #{fno2d_forward_packed.1} parent=0 // loop_header_branch
    %21 = sbr.rel (%p19) target = $region8
  $region5: #{fno2d_forward_packed.1} parent=0 // loop_body
    %s23 = ssub.s32 %s18, 1
    %s24 = ssub.s32 %s18, 2
    %s25 = sadd.s32 %s18, 1
    %s26 = ssub.s32 %s18, %s25
    %p27 = scmp.eq.s32.totalorder %s26, 0
    %s29 = sadd.s32 %s28, 1
    %s30 = scalar_select %p27, %s28, %s29
    %p33 = pneg %p27
    %p34 = scmp.eq.s32.totalorder %s18, 1
    %p35 = por %p33, %p34
    %p36 = scmp.ne.s32.totalorder %s28, %s31
    %p37 = scmp.eq.s32.totalorder %s18, 0
    %p38 = por %p36, %p37
    %p39 = scmp.ne.s32.totalorder %s28, %s31
    %p40 = scmp.eq.s32.totalorder %s23, 1
    %p41 = por %p39, %p40
    %p42 = scmp.ne.s32.totalorder %s31, %s32
    %p43 = scmp.eq.s32.totalorder %s23, 0
    %p44 = por %p42, %p43
    %p45 = scmp.ne.s32.totalorder %s31, %s32
    %p46 = scmp.eq.s32.totalorder %s24, 1
    %p47 = por %p45, %p46
    %p49 = scmp.ne.s32.totalorder %s32, %s48
    %p50 = scmp.eq.s32.totalorder %s24, 0
    %p51 = por %p49, %p50
    %s53 = sadd.s32 %s52, 1
    %p56 = scmp.eq.s32.totalorder %s18, 1
    %p57 = scmp.ne.s32.totalorder %s52, %s54
    %p58 = scmp.eq.s32.totalorder %s18, 0
    %p59 = por %p57, %p58
    %p60 = scmp.ne.s32.totalorder %s52, %s54
    %p61 = scmp.eq.s32.totalorder %s23, 1
    %p62 = por %p60, %p61
    %p63 = scmp.ne.s32.totalorder %s54, %s55
    %p64 = scmp.eq.s32.totalorder %s23, 0
    %p65 = por %p63, %p64
    %p66 = scmp.ne.s32.totalorder %s54, %s55
    %p67 = scmp.eq.s32.totalorder %s24, 1
    %p68 = por %p66, %p67
    %p70 = scmp.ne.s32.totalorder %s55, %s69
    %p71 = scmp.eq.s32.totalorder %s24, 0
    %p72 = por %p70, %p71
    %s74 = sadd.s32 %s73, 1
    %p77 = scmp.eq.s32.totalorder %s18, 1
    %p78 = scmp.ne.s32.totalorder %s73, %s75
    %p79 = scmp.eq.s32.totalorder %s18, 0
    %p80 = por %p78, %p79
    %p81 = scmp.ne.s32.totalorder %s73, %s75
    %p82 = scmp.eq.s32.totalorder %s23, 1
    %p83 = por %p81, %p82
    %p84 = scmp.ne.s32.totalorder %s75, %s76
    %p85 = scmp.eq.s32.totalorder %s23, 0
    %p86 = por %p84, %p85
    %p87 = scmp.ne.s32.totalorder %s75, %s76
    %p88 = scmp.eq.s32.totalorder %s24, 1
    %p89 = por %p87, %p88
    %p91 = scmp.ne.s32.totalorder %s76, %s90
    %p92 = scmp.eq.s32.totalorder %s24, 0
    %p93 = por %p91, %p92
    %s95 = sadd.s32 %s94, 1
    %p98 = scmp.eq.s32.totalorder %s18, 1
    %p99 = scmp.ne.s32.totalorder %s94, %s96
    %p100 = scmp.eq.s32.totalorder %s18, 0
    %p101 = por %p99, %p100
    %p102 = scmp.ne.s32.totalorder %s94, %s96
    %p103 = scmp.eq.s32.totalorder %s23, 1
    %p104 = por %p102, %p103
    %p105 = scmp.ne.s32.totalorder %s96, %s97
    %p106 = scmp.eq.s32.totalorder %s23, 0
    %p107 = por %p105, %p106
    %p108 = scmp.ne.s32.totalorder %s96, %s97
    %p109 = scmp.eq.s32.totalorder %s24, 1
    %p110 = por %p108, %p109
    %p112 = scmp.ne.s32.totalorder %s97, %s111
    %p113 = scmp.eq.s32.totalorder %s24, 0
    %p114 = por %p112, %p113
    %s116 = sadd.s32 %s115, 1
    %p119 = scmp.eq.s32.totalorder %s18, 1
    %p120 = scmp.ne.s32.totalorder %s115, %s117
    %p121 = scmp.eq.s32.totalorder %s18, 0
    %p122 = por %p120, %p121
    %p123 = scmp.ne.s32.totalorder %s115, %s117
    %p124 = scmp.eq.s32.totalorder %s23, 1
    %p125 = por %p123, %p124
    %p126 = scmp.ne.s32.totalorder %s117, %s118
    %p127 = scmp.eq.s32.totalorder %s23, 0
    %p128 = por %p126, %p127
    %p129 = scmp.ne.s32.totalorder %s117, %s118
    %p130 = scmp.eq.s32.totalorder %s24, 1
    %p131 = por %p129, %p130
    %p133 = scmp.ne.s32.totalorder %s118, %s132
    %p134 = scmp.eq.s32.totalorder %s24, 0
    %p135 = por %p133, %p134
    %s137 = sadd.s32 %s136, 1
    %p140 = scmp.eq.s32.totalorder %s18, 1
    %p141 = scmp.ne.s32.totalorder %s136, %s138
    %p142 = scmp.eq.s32.totalorder %s18, 0
    %p143 = por %p141, %p142
    %p144 = scmp.ne.s32.totalorder %s136, %s138
    %p145 = scmp.eq.s32.totalorder %s23, 1
    %p146 = por %p144, %p145
    %p147 = scmp.ne.s32.totalorder %s138, %s139
    %p148 = scmp.eq.s32.totalorder %s23, 0
    %p149 = por %p147, %p148
    %p150 = scmp.ne.s32.totalorder %s138, %s139
    %p151 = scmp.eq.s32.totalorder %s24, 1
    %p152 = por %p150, %p151
    %p154 = scmp.ne.s32.totalorder %s139, %s153
    %p155 = scmp.eq.s32.totalorder %s24, 0
    %p156 = por %p154, %p155
    %s158 = sadd.s32 %s157, 1
    %p161 = scmp.eq.s32.totalorder %s18, 1
    %p162 = scmp.ne.s32.totalorder %s157, %s159
    %p163 = scmp.eq.s32.totalorder %s18, 0
    %p164 = por %p162, %p163
    %p165 = scmp.ne.s32.totalorder %s157, %s159
    %p166 = scmp.eq.s32.totalorder %s23, 1
    %p167 = por %p165, %p166
    %p168 = scmp.ne.s32.totalorder %s159, %s160
    %p169 = scmp.eq.s32.totalorder %s23, 0
    %p170 = por %p168, %p169
    %p171 = scmp.ne.s32.totalorder %s159, %s160
    %p172 = scmp.eq.s32.totalorder %s24, 1
    %p173 = por %p171, %p172
    %p175 = scmp.ne.s32.totalorder %s160, %s174
    %p176 = scmp.eq.s32.totalorder %s24, 0
    %p177 = por %p175, %p176
    %s179 = sadd.s32 %s178, 1
    %p182 = scmp.eq.s32.totalorder %s18, 1
    %p183 = scmp.ne.s32.totalorder %s178, %s180
    %p184 = scmp.eq.s32.totalorder %s18, 0
    %p185 = por %p183, %p184
    %p186 = scmp.ne.s32.totalorder %s178, %s180
    %p187 = scmp.eq.s32.totalorder %s23, 1
    %p188 = por %p186, %p187
    %p189 = scmp.ne.s32.totalorder %s180, %s181
    %p190 = scmp.eq.s32.totalorder %s23, 0
    %p191 = por %p189, %p190
    %p192 = scmp.ne.s32.totalorder %s180, %s181
    %p193 = scmp.eq.s32.totalorder %s24, 1
    %p194 = por %p192, %p193
    %p196 = scmp.ne.s32.totalorder %s181, %s195
    %p197 = scmp.eq.s32.totalorder %s24, 0
    %p198 = por %p196, %p197
    %s200 = sadd.s32 %s199, 1
    %p203 = scmp.eq.s32.totalorder %s18, 1
    %p204 = scmp.ne.s32.totalorder %s199, %s201
    %p205 = scmp.eq.s32.totalorder %s18, 0
    %p206 = por %p204, %p205
    %p207 = scmp.ne.s32.totalorder %s199, %s201
    %p208 = scmp.eq.s32.totalorder %s23, 1
    %p209 = por %p207, %p208
    %p210 = scmp.ne.s32.totalorder %s201, %s202
    %p211 = scmp.eq.s32.totalorder %s23, 0
    %p212 = por %p210, %p211
    %p213 = scmp.ne.s32.totalorder %s201, %s202
    %p214 = scmp.eq.s32.totalorder %s24, 1
    %p215 = por %p213, %p214
    %p217 = scmp.ne.s32.totalorder %s202, %s216
    %p218 = scmp.eq.s32.totalorder %s24, 0
    %p219 = por %p217, %p218
    %s221 = sadd.s32 %s220, 1
    %p224 = scmp.eq.s32.totalorder %s18, 1
    %p225 = scmp.ne.s32.totalorder %s220, %s222
    %p226 = scmp.eq.s32.totalorder %s18, 0
    %p227 = por %p225, %p226
    %p228 = scmp.ne.s32.totalorder %s220, %s222
    %p229 = scmp.eq.s32.totalorder %s23, 1
    %p230 = por %p228, %p229
    %p231 = scmp.ne.s32.totalorder %s222, %s223
    %p232 = scmp.eq.s32.totalorder %s23, 0
    %p233 = por %p231, %p232
    %p234 = scmp.ne.s32.totalorder %s222, %s223
    %p235 = scmp.eq.s32.totalorder %s24, 1
    %p236 = por %p234, %p235
    %p238 = scmp.ne.s32.totalorder %s223, %s237
    %p239 = scmp.eq.s32.totalorder %s24, 0
    %p240 = por %p238, %p239
    %s241 = ssub.s32 %s18, %s25
    %p242 = scmp.eq.s32.totalorder %s241, 0
    %s244 = sadd.s32 %s243, 1
    %s245 = scalar_select %p242, %s243, %s244
    %p248 = pneg %p242
    %p249 = scmp.eq.s32.totalorder %s18, 1
    %p250 = por %p248, %p249
    %p251 = scmp.ne.s32.totalorder %s243, %s246
    %p252 = scmp.eq.s32.totalorder %s18, 0
    %p253 = por %p251, %p252
    %p254 = scmp.ne.s32.totalorder %s243, %s246
    %p255 = scmp.eq.s32.totalorder %s23, 1
    %p256 = por %p254, %p255
    %p257 = scmp.ne.s32.totalorder %s246, %s247
    %p258 = scmp.eq.s32.totalorder %s23, 0
    %p259 = por %p257, %p258
    %p260 = scmp.ne.s32.totalorder %s246, %s247
    %p261 = scmp.eq.s32.totalorder %s24, 1
    %p262 = por %p260, %p261
    %p264 = scmp.ne.s32.totalorder %s247, %s263
    %p265 = scmp.eq.s32.totalorder %s24, 0
    %p266 = por %p264, %p265
    %p267 = scmp.le.s32.totalorder 1, %s18
    %p268 = scmp.lt.s32.totalorder %s18, 3
    %p269 = pnand %p267, %p268
    %p270 = pneg %p269
    // Predicated region
    $region9: #{fno2d_forward_packed.1} parent=5 // pred_check
      _
    $region10: #{fno2d_forward_packed.1} parent=5 // pred_check_branch
      %272 = sbr.rel (%p269) target = $region12
    $region11: #{fno2d_forward_packed.1} parent=5 // pred_region
      %s273 = ssub.s32 %s18, 1
      // Predicated region
      $region13: #{fno2d_forward_packed.1} parent=11 // pred_check
        %p274 = pneg %p65
      $region14: #{fno2d_forward_packed.1} parent=11 // pred_check_branch
        %276 = sbr.rel (%p274) target = $region16
      $region15: #{fno2d_forward_packed.1} parent=11 // pred_region
        _
      $region16: #{fno2d_forward_packed.1} parent=11 // pred_fallthru
        _
      // Predicated region
      $region17: #{fno2d_forward_packed.1} parent=11 // pred_check
        %p277 = pneg %p86
      $region18: #{fno2d_forward_packed.1} parent=11 // pred_check_branch
        %279 = sbr.rel (%p277) target = $region20
      $region19: #{fno2d_forward_packed.1} parent=11 // pred_region
        _
      $region20: #{fno2d_forward_packed.1} parent=11 // pred_fallthru
        _
      // Predicated region
      $region21: #{fno2d_forward_packed.1} parent=11 // pred_check
        %p280 = pneg %p107
      $region22: #{fno2d_forward_packed.1} parent=11 // pred_check_branch
        %282 = sbr.rel (%p280) target = $region24
      $region23: #{fno2d_forward_packed.1} parent=11 // pred_region
        _
      $region24: #{fno2d_forward_packed.1} parent=11 // pred_fallthru
        _
      // Predicated region
      $region25: #{fno2d_forward_packed.1} parent=11 // pred_check
        %p283 = pneg %p128
      $region26: #{fno2d_forward_packed.1} parent=11 // pred_check_branch
        %285 = sbr.rel (%p283) target = $region28
      $region27: #{fno2d_forward_packed.1} parent=11 // pred_region
        _
      $region28: #{fno2d_forward_packed.1} parent=11 // pred_fallthru
        _
      // Predicated region
      $region29: #{fno2d_forward_packed.1} parent=11 // pred_check
        %p286 = pneg %p149
      $region30: #{fno2d_forward_packed.1} parent=11 // pred_check_branch
        %288 = sbr.rel (%p286) target = $region32
      $region31: #{fno2d_forward_packed.1} parent=11 // pred_region
        _
      $region32: #{fno2d_forward_packed.1} parent=11 // pred_fallthru
        _
      // Predicated region
      $region33: #{fno2d_forward_packed.1} parent=11 // pred_check
        %p289 = pneg %p170
      $region34: #{fno2d_forward_packed.1} parent=11 // pred_check_branch
        %291 = sbr.rel (%p289) target = $region36
      $region35: #{fno2d_forward_packed.1} parent=11 // pred_region
        _
      $region36: #{fno2d_forward_packed.1} parent=11 // pred_fallthru
        _
      // Predicated region
      $region37: #{fno2d_forward_packed.1} parent=11 // pred_check
        %p292 = pneg %p191
      $region38: #{fno2d_forward_packed.1} parent=11 // pred_check_branch
        %294 = sbr.rel (%p292) target = $region40
      $region39: #{fno2d_forward_packed.1} parent=11 // pred_region
        _
      $region40: #{fno2d_forward_packed.1} parent=11 // pred_fallthru
        _
      // Predicated region
      $region41: #{fno2d_forward_packed.1} parent=11 // pred_check
        %p295 = pneg %p212
      $region42: #{fno2d_forward_packed.1} parent=11 // pred_check_branch
        %297 = sbr.rel (%p295) target = $region44
      $region43: #{fno2d_forward_packed.1} parent=11 // pred_region
        _
      $region44: #{fno2d_forward_packed.1} parent=11 // pred_fallthru
        _
      // Predicated region
      $region45: #{fno2d_forward_packed.1} parent=11 // pred_check
        %p298 = pneg %p233
      $region46: #{fno2d_forward_packed.1} parent=11 // pred_check_branch
        %300 = sbr.rel (%p298) target = $region48
      $region47: #{fno2d_forward_packed.1} parent=11 // pred_region
        _
      $region48: #{fno2d_forward_packed.1} parent=11 // pred_fallthru
        _
    $region12: #{fno2d_forward_packed.1} parent=5 // pred_fallthru
      _
    %p301 = scmp.lt.s32.totalorder %s18, 2
    // Predicated region
    $region49: #{fno2d_forward_packed.1} parent=5 // pred_check
      %p302 = pneg %p301
    $region50: #{fno2d_forward_packed.1} parent=5 // pred_check_branch
      %304 = sbr.rel (%p302) target = $region52
    $region51: #{fno2d_forward_packed.1} parent=5 // pred_region
      // Predicated region
      $region53: #{fno2d_forward_packed.1} parent=51 // pred_check
        %p305 = pneg %p38
      $region54: #{fno2d_forward_packed.1} parent=51 // pred_check_branch
        %307 = sbr.rel (%p305) target = $region56
      $region55: #{fno2d_forward_packed.1} parent=51 // pred_region
        %s308 = smul.u32 4, %s18
        %p309 = scmp.lt.s32.totalorder %s308, 7
        %s310 = scalar_select %p309, %s308, 7
        %s311 = smul.addr %s310, 2
        %s312 = smul.addr %s311, 4
        %s313 = scalar_lea.vmem %s0, %s312
        %s314 = smul.u32 4, %s18
      $region56: #{fno2d_forward_packed.1} parent=51 // pred_fallthru
        _
    $region52: #{fno2d_forward_packed.1} parent=5 // pred_fallthru
      _
    %p315 = scmp.le.s32.totalorder 1, %s18
    %p316 = scmp.lt.s32.totalorder %s18, 3
    %p317 = pnand %p315, %p316
    %p318 = pneg %p317
    // Predicated region
    $region57: #{fno2d_forward_packed.1} parent=5 // pred_check
      _
    $region58: #{fno2d_forward_packed.1} parent=5 // pred_check_branch
      %320 = sbr.rel (%p317) target = $region60
    $region59: #{fno2d_forward_packed.1} parent=5 // pred_region
      %s321 = ssub.s32 %s18, 1
      %s322 = smul.u32 4, %s23
      %p323 = scmp.lt.s32.totalorder %s322, 7
      %s324 = scalar_select %p323, %s322, 7
      %s325 = smul.addr %s324, 2
      %s326 = smul.addr %s325, 4
      %s327 = scalar_lea.vmem %s0, %s326
      %p328 = pneg %p44
      %p329 = pneg %p41
      %p330 = pneg %p65
      %p331 = pneg %p62
      %p332 = pneg %p86
      %p333 = pneg %p83
      %p334 = pneg %p107
      %p335 = pneg %p104
      %p336 = pneg %p128
      %p337 = pneg %p125
      %p338 = pneg %p149
      %p339 = pneg %p146
      %p340 = pneg %p170
      %p341 = pneg %p167
      %p342 = pneg %p191
      %p343 = pneg %p188
      %p344 = pneg %p212
      %p345 = pneg %p209
      %p346 = pneg %p233
      %p347 = pneg %p230
      %p348 = pneg %p259
      %p349 = pneg %p256
      %s350 = smul.u32 4, %s23
      %p351 = scmp.lt.s32.totalorder %s350, 7
      %s352 = scalar_select %p351, %s350, 7
      %s353 = smul.addr %s352, 2
      %s354 = scalar_lea.vmem %s10, %s353
      %s355 = smul.u32 4, %s23
      %p356 = scmp.lt.s32.totalorder %s355, 7
      %s357 = scalar_select %p356, %s355, 7
      %s358 = smul.addr %s357, 2
      %s359 = smul.addr %s358, 4
      %s360 = scalar_lea.vmem %s0, %s359
      %s361 = smul.u32 4, %s23
      %s362 = smul.u32 4, %s23
      %p363 = scmp.lt.s32.totalorder %s362, 7
      %s364 = scalar_select %p363, %s362, 7
      %s365 = smul.addr %s364, 2
      %s366 = scalar_lea.vmem %s10, %s365
      %s367 = smul.u32 4, %s23
      %v369 = vld [vmem:[%s360] sm:$0x77]
      %v370 = vld [vmem:[%s360 + $0x8] sm:$0x77]
      %v371 = vld [vmem:[%s360 + $0x10] sm:$0x77]
      %v372 = vld [vmem:[%s360 + $0x18] sm:$0x77]
      %v373 = vld [vmem:[%s1] sm:$0xff]
      %v374 = vld [vmem:[%s1 + $0x8] sm:$0xff]
      %v375 = vld [vmem:[%s1 + $0x10] sm:$0xff]
      %v376 = vld [vmem:[%s1 + $0x18] sm:$0xff]
      %v377 = vld [vmem:[%s2] sm:$0xff]
      %v378 = vld [vmem:[%s2 + $0x8] sm:$0xff]
      %v379 = vld [vmem:[%s2 + $0x10] sm:$0xff]
      %v380 = vld [vmem:[%s2 + $0x18] sm:$0xff]
      %382 = vset.pattern.permute.xlu0 0
      %383 = vperm.xlu0 %382, %v373
      %v384 = vpop.permute.xlu0 %383
      %387 = vset.pattern.permute.xlu0 0
      %388 = vperm.xlu0 %387, %v374
      %v389 = vpop.permute.xlu0 %388
      %392 = vset.pattern.permute.xlu0 0
      %393 = vperm.xlu0 %392, %v375
      %v394 = vpop.permute.xlu0 %393
      %397 = vset.pattern.permute.xlu0 0
      %398 = vperm.xlu0 %397, %v376
      %v399 = vpop.permute.xlu0 %398
      %v402 = vlaneseq
      %v403 = vshrl.u32 %v402, 7
      %v404 = vsub.s32 0, %v403
      %v405 = vrot.slane %v369, %v404
      %v406 = vlaneseq
      %v407 = vshrl.u32 %v406, 7
      %v408 = vsub.s32 4, %v407
      %v409 = vrot.slane %v369, %v408
      %v412 = vlaneseq
      %v413 = vshrl.u32 %v412, 7
      %v414 = vsub.s32 0, %v413
      %v415 = vrot.slane %v405, %v414
      %v416 = vlaneseq
      %v417 = vshrl.u32 %v416, 7
      %v418 = vsub.s32 0, %v417
      %v419 = vrot.slane %v409, %v418
      %v420 = vmul.f32 %v384, %v415
      %v421 = vmul.f32 %v384, %v419
      %v422 = vmul.f32 %v389, %v415
      %v423 = vmul.f32 %v389, %v419
      %v424 = vmul.f32 %v394, %v415
      %v425 = vmul.f32 %v394, %v419
      %v426 = vmul.f32 %v399, %v415
      %v427 = vmul.f32 %v399, %v419
      %428 = vset.pattern.permute.xlu0 1
      %429 = vperm.xlu0 %428, %v373
      %v430 = vpop.permute.xlu0 %429
      %432 = vset.pattern.permute.xlu0 1
      %433 = vperm.xlu0 %432, %v374
      %v434 = vpop.permute.xlu0 %433
      %436 = vset.pattern.permute.xlu0 1
      %437 = vperm.xlu0 %436, %v375
      %v438 = vpop.permute.xlu0 %437
      %440 = vset.pattern.permute.xlu0 1
      %441 = vperm.xlu0 %440, %v376
      %v442 = vpop.permute.xlu0 %441
      %v444 = vlaneseq
      %v445 = vshrl.u32 %v444, 7
      %v446 = vsub.s32 1, %v445
      %v447 = vrot.slane %v369, %v446
      %v448 = vlaneseq
      %v449 = vshrl.u32 %v448, 7
      %v450 = vsub.s32 5, %v449
      %v451 = vrot.slane %v369, %v450
      %v454 = vlaneseq
      %v455 = vshrl.u32 %v454, 7
      %v456 = vsub.s32 1, %v455
      %v457 = vrot.slane %v447, %v456
      %v458 = vlaneseq
      %v459 = vshrl.u32 %v458, 7
      %v460 = vsub.s32 1, %v459
      %v461 = vrot.slane %v451, %v460
      %v462 = vmul.f32 %v430, %v457
      %v463 = vmul.f32 %v430, %v461
      %v464 = vmul.f32 %v434, %v457
      %v465 = vmul.f32 %v434, %v461
      %v466 = vmul.f32 %v438, %v457
      %v467 = vmul.f32 %v438, %v461
      %v468 = vmul.f32 %v442, %v457
      %v469 = vmul.f32 %v442, %v461
      %v470 = vadd.f32 %v420, %v462
      %v471 = vadd.f32 %v421, %v463
      %v472 = vadd.f32 %v422, %v464
      %v473 = vadd.f32 %v423, %v465
      %v474 = vadd.f32 %v424, %v466
      %v475 = vadd.f32 %v425, %v467
      %v476 = vadd.f32 %v426, %v468
      %v477 = vadd.f32 %v427, %v469
      %478 = vset.pattern.permute.xlu0 2
      %479 = vperm.xlu0 %478, %v373
      %v480 = vpop.permute.xlu0 %479
      %482 = vset.pattern.permute.xlu0 2
      %483 = vperm.xlu0 %482, %v374
      %v484 = vpop.permute.xlu0 %483
      %486 = vset.pattern.permute.xlu0 2
      %487 = vperm.xlu0 %486, %v375
      %v488 = vpop.permute.xlu0 %487
      %490 = vset.pattern.permute.xlu0 2
      %491 = vperm.xlu0 %490, %v376
      %v492 = vpop.permute.xlu0 %491
      %v494 = vlaneseq
      %v495 = vshrl.u32 %v494, 7
      %v496 = vsub.s32 2, %v495
      %v497 = vrot.slane %v369, %v496
      %v498 = vlaneseq
      %v499 = vshrl.u32 %v498, 7
      %v500 = vsub.s32 6, %v499
      %v501 = vrot.slane %v369, %v500
      %v504 = vlaneseq
      %v505 = vshrl.u32 %v504, 7
      %v506 = vsub.s32 2, %v505
      %v507 = vrot.slane %v497, %v506
      %v508 = vlaneseq
      %v509 = vshrl.u32 %v508, 7
      %v510 = vsub.s32 2, %v509
      %v511 = vrot.slane %v501, %v510
      %v512 = vmul.f32 %v480, %v507
      %v513 = vmul.f32 %v480, %v511
      %v514 = vmul.f32 %v484, %v507
      %v515 = vmul.f32 %v484, %v511
      %v516 = vmul.f32 %v488, %v507
      %v517 = vmul.f32 %v488, %v511
      %v518 = vmul.f32 %v492, %v507
      %v519 = vmul.f32 %v492, %v511
      %v520 = vadd.f32 %v470, %v512
      %v521 = vadd.f32 %v471, %v513
      %v522 = vadd.f32 %v472, %v514
      %v523 = vadd.f32 %v473, %v515
      %v524 = vadd.f32 %v474, %v516
      %v525 = vadd.f32 %v475, %v517
      %v526 = vadd.f32 %v476, %v518
      %v527 = vadd.f32 %v477, %v519
      %529 = vset.pattern.permute.xlu0 0
      %530 = vperm.xlu0 %529, %v377
      %v531 = vpop.permute.xlu0 %530
      %534 = vset.pattern.permute.xlu0 0
      %535 = vperm.xlu0 %534, %v378
      %v536 = vpop.permute.xlu0 %535
      %539 = vset.pattern.permute.xlu0 0
      %540 = vperm.xlu0 %539, %v379
      %v541 = vpop.permute.xlu0 %540
      %544 = vset.pattern.permute.xlu0 0
      %545 = vperm.xlu0 %544, %v380
      %v546 = vpop.permute.xlu0 %545
      %v548 = vadd.f32 %v520, %v531
      %v549 = vadd.f32 %v521, %v531
      %v550 = vadd.f32 %v522, %v536
      %v551 = vadd.f32 %v523, %v536
      %v552 = vadd.f32 %v524, %v541
      %v553 = vadd.f32 %v525, %v541
      %v554 = vadd.f32 %v526, %v546
      %v555 = vadd.f32 %v527, %v546
      %v557 = vlaneseq
      %v558 = vshrl.u32 %v557, 7
      %v559 = vsub.s32 0, %v558
      %v560 = vrot.slane %v370, %v559
      %v561 = vlaneseq
      %v562 = vshrl.u32 %v561, 7
      %v563 = vsub.s32 4, %v562
      %v564 = vrot.slane %v370, %v563
      %v567 = vlaneseq
      %v568 = vshrl.u32 %v567, 7
      %v569 = vsub.s32 0, %v568
      %v570 = vrot.slane %v560, %v569
      %v571 = vlaneseq
      %v572 = vshrl.u32 %v571, 7
      %v573 = vsub.s32 0, %v572
      %v574 = vrot.slane %v564, %v573
      %v575 = vmul.f32 %v384, %v570
      %v576 = vmul.f32 %v384, %v574
      %v577 = vmul.f32 %v389, %v570
      %v578 = vmul.f32 %v389, %v574
      %v579 = vmul.f32 %v394, %v570
      %v580 = vmul.f32 %v394, %v574
      %v581 = vmul.f32 %v399, %v570
      %v582 = vmul.f32 %v399, %v574
      %v583 = vlaneseq
      %v584 = vshrl.u32 %v583, 7
      %v585 = vsub.s32 1, %v584
      %v586 = vrot.slane %v370, %v585
      %v587 = vlaneseq
      %v588 = vshrl.u32 %v587, 7
      %v589 = vsub.s32 5, %v588
      %v590 = vrot.slane %v370, %v589
      %v593 = vlaneseq
      %v594 = vshrl.u32 %v593, 7
      %v595 = vsub.s32 1, %v594
      %v596 = vrot.slane %v586, %v595
      %v597 = vlaneseq
      %v598 = vshrl.u32 %v597, 7
      %v599 = vsub.s32 1, %v598
      %v600 = vrot.slane %v590, %v599
      %v601 = vmul.f32 %v430, %v596
      %v602 = vmul.f32 %v430, %v600
      %v603 = vmul.f32 %v434, %v596
      %v604 = vmul.f32 %v434, %v600
      %v605 = vmul.f32 %v438, %v596
      %v606 = vmul.f32 %v438, %v600
      %v607 = vmul.f32 %v442, %v596
      %v608 = vmul.f32 %v442, %v600
      %v609 = vadd.f32 %v575, %v601
      %v610 = vadd.f32 %v576, %v602
      %v611 = vadd.f32 %v577, %v603
      %v612 = vadd.f32 %v578, %v604
      %v613 = vadd.f32 %v579, %v605
      %v614 = vadd.f32 %v580, %v606
      %v615 = vadd.f32 %v581, %v607
      %v616 = vadd.f32 %v582, %v608
      %v617 = vlaneseq
      %v618 = vshrl.u32 %v617, 7
      %v619 = vsub.s32 2, %v618
      %v620 = vrot.slane %v370, %v619
      %v621 = vlaneseq
      %v622 = vshrl.u32 %v621, 7
      %v623 = vsub.s32 6, %v622
      %v624 = vrot.slane %v370, %v623
      %v627 = vlaneseq
      %v628 = vshrl.u32 %v627, 7
      %v629 = vsub.s32 2, %v628
      %v630 = vrot.slane %v620, %v629
      %v631 = vlaneseq
      %v632 = vshrl.u32 %v631, 7
      %v633 = vsub.s32 2, %v632
      %v634 = vrot.slane %v624, %v633
      %v635 = vmul.f32 %v480, %v630
      %v636 = vmul.f32 %v480, %v634
      %v637 = vmul.f32 %v484, %v630
      %v638 = vmul.f32 %v484, %v634
      %v639 = vmul.f32 %v488, %v630
      %v640 = vmul.f32 %v488, %v634
      %v641 = vmul.f32 %v492, %v630
      %v642 = vmul.f32 %v492, %v634
      %v643 = vadd.f32 %v609, %v635
      %v644 = vadd.f32 %v610, %v636
      %v645 = vadd.f32 %v611, %v637
      %v646 = vadd.f32 %v612, %v638
      %v647 = vadd.f32 %v613, %v639
      %v648 = vadd.f32 %v614, %v640
      %v649 = vadd.f32 %v615, %v641
      %v650 = vadd.f32 %v616, %v642
      %v651 = vadd.f32 %v643, %v531
      %v652 = vadd.f32 %v644, %v531
      %v653 = vadd.f32 %v645, %v536
      %v654 = vadd.f32 %v646, %v536
      %v655 = vadd.f32 %v647, %v541
      %v656 = vadd.f32 %v648, %v541
      %v657 = vadd.f32 %v649, %v546
      %v658 = vadd.f32 %v650, %v546
      %v660 = vlaneseq
      %v661 = vshrl.u32 %v660, 7
      %v662 = vsub.s32 0, %v661
      %v663 = vrot.slane %v371, %v662
      %v664 = vlaneseq
      %v665 = vshrl.u32 %v664, 7
      %v666 = vsub.s32 4, %v665
      %v667 = vrot.slane %v371, %v666
      %v670 = vlaneseq
      %v671 = vshrl.u32 %v670, 7
      %v672 = vsub.s32 0, %v671
      %v673 = vrot.slane %v663, %v672
      %v674 = vlaneseq
      %v675 = vshrl.u32 %v674, 7
      %v676 = vsub.s32 0, %v675
      %v677 = vrot.slane %v667, %v676
      %v678 = vmul.f32 %v384, %v673
      %v679 = vmul.f32 %v384, %v677
      %v680 = vmul.f32 %v389, %v673
      %v681 = vmul.f32 %v389, %v677
      %v682 = vmul.f32 %v394, %v673
      %v683 = vmul.f32 %v394, %v677
      %v684 = vmul.f32 %v399, %v673
      %v685 = vmul.f32 %v399, %v677
      %v686 = vlaneseq
      %v687 = vshrl.u32 %v686, 7
      %v688 = vsub.s32 1, %v687
      %v689 = vrot.slane %v371, %v688
      %v690 = vlaneseq
      %v691 = vshrl.u32 %v690, 7
      %v692 = vsub.s32 5, %v691
      %v693 = vrot.slane %v371, %v692
      %v696 = vlaneseq
      %v697 = vshrl.u32 %v696, 7
      %v698 = vsub.s32 1, %v697
      %v699 = vrot.slane %v689, %v698
      %v700 = vlaneseq
      %v701 = vshrl.u32 %v700, 7
      %v702 = vsub.s32 1, %v701
      %v703 = vrot.slane %v693, %v702
      %v704 = vmul.f32 %v430, %v699
      %v705 = vmul.f32 %v430, %v703
      %v706 = vmul.f32 %v434, %v699
      %v707 = vmul.f32 %v434, %v703
      %v708 = vmul.f32 %v438, %v699
      %v709 = vmul.f32 %v438, %v703
      %v710 = vmul.f32 %v442, %v699
      %v711 = vmul.f32 %v442, %v703
      %v712 = vadd.f32 %v678, %v704
      %v713 = vadd.f32 %v679, %v705
      %v714 = vadd.f32 %v680, %v706
      %v715 = vadd.f32 %v681, %v707
      %v716 = vadd.f32 %v682, %v708
      %v717 = vadd.f32 %v683, %v709
      %v718 = vadd.f32 %v684, %v710
      %v719 = vadd.f32 %v685, %v711
      %v720 = vlaneseq
      %v721 = vshrl.u32 %v720, 7
      %v722 = vsub.s32 2, %v721
      %v723 = vrot.slane %v371, %v722
      %v724 = vlaneseq
      %v725 = vshrl.u32 %v724, 7
      %v726 = vsub.s32 6, %v725
      %v727 = vrot.slane %v371, %v726
      %v730 = vlaneseq
      %v731 = vshrl.u32 %v730, 7
      %v732 = vsub.s32 2, %v731
      %v733 = vrot.slane %v723, %v732
      %v734 = vlaneseq
      %v735 = vshrl.u32 %v734, 7
      %v736 = vsub.s32 2, %v735
      %v737 = vrot.slane %v727, %v736
      %v738 = vmul.f32 %v480, %v733
      %v739 = vmul.f32 %v480, %v737
      %v740 = vmul.f32 %v484, %v733
      %v741 = vmul.f32 %v484, %v737
      %v742 = vmul.f32 %v488, %v733
      %v743 = vmul.f32 %v488, %v737
      %v744 = vmul.f32 %v492, %v733
      %v745 = vmul.f32 %v492, %v737
      %v746 = vadd.f32 %v712, %v738
      %v747 = vadd.f32 %v713, %v739
      %v748 = vadd.f32 %v714, %v740
      %v749 = vadd.f32 %v715, %v741
      %v750 = vadd.f32 %v716, %v742
      %v751 = vadd.f32 %v717, %v743
      %v752 = vadd.f32 %v718, %v744
      %v753 = vadd.f32 %v719, %v745
      %v754 = vadd.f32 %v746, %v531
      %v755 = vadd.f32 %v747, %v531
      %v756 = vadd.f32 %v748, %v536
      %v757 = vadd.f32 %v749, %v536
      %v758 = vadd.f32 %v750, %v541
      %v759 = vadd.f32 %v751, %v541
      %v760 = vadd.f32 %v752, %v546
      %v761 = vadd.f32 %v753, %v546
      %v763 = vlaneseq
      %v764 = vshrl.u32 %v763, 7
      %v765 = vsub.s32 0, %v764
      %v766 = vrot.slane %v372, %v765
      %v767 = vlaneseq
      %v768 = vshrl.u32 %v767, 7
      %v769 = vsub.s32 4, %v768
      %v770 = vrot.slane %v372, %v769
      %v773 = vlaneseq
      %v774 = vshrl.u32 %v773, 7
      %v775 = vsub.s32 0, %v774
      %v776 = vrot.slane %v766, %v775
      %v777 = vlaneseq
      %v778 = vshrl.u32 %v777, 7
      %v779 = vsub.s32 0, %v778
      %v780 = vrot.slane %v770, %v779
      %v781 = vmul.f32 %v384, %v776
      %v782 = vmul.f32 %v384, %v780
      %v783 = vmul.f32 %v389, %v776
      %v784 = vmul.f32 %v389, %v780
      %v785 = vmul.f32 %v394, %v776
      %v786 = vmul.f32 %v394, %v780
      %v787 = vmul.f32 %v399, %v776
      %v788 = vmul.f32 %v399, %v780
      %v789 = vlaneseq
      %v790 = vshrl.u32 %v789, 7
      %v791 = vsub.s32 1, %v790
      %v792 = vrot.slane %v372, %v791
      %v793 = vlaneseq
      %v794 = vshrl.u32 %v793, 7
      %v795 = vsub.s32 5, %v794
      %v796 = vrot.slane %v372, %v795
      %v799 = vlaneseq
      %v800 = vshrl.u32 %v799, 7
      %v801 = vsub.s32 1, %v800
      %v802 = vrot.slane %v792, %v801
      %v803 = vlaneseq
      %v804 = vshrl.u32 %v803, 7
      %v805 = vsub.s32 1, %v804
      %v806 = vrot.slane %v796, %v805
      %v807 = vmul.f32 %v430, %v802
      %v808 = vmul.f32 %v430, %v806
      %v809 = vmul.f32 %v434, %v802
      %v810 = vmul.f32 %v434, %v806
      %v811 = vmul.f32 %v438, %v802
      %v812 = vmul.f32 %v438, %v806
      %v813 = vmul.f32 %v442, %v802
      %v814 = vmul.f32 %v442, %v806
      %v815 = vadd.f32 %v781, %v807
      %v816 = vadd.f32 %v782, %v808
      %v817 = vadd.f32 %v783, %v809
      %v818 = vadd.f32 %v784, %v810
      %v819 = vadd.f32 %v785, %v811
      %v820 = vadd.f32 %v786, %v812
      %v821 = vadd.f32 %v787, %v813
      %v822 = vadd.f32 %v788, %v814
      %v823 = vlaneseq
      %v824 = vshrl.u32 %v823, 7
      %v825 = vsub.s32 2, %v824
      %v826 = vrot.slane %v372, %v825
      %v827 = vlaneseq
      %v828 = vshrl.u32 %v827, 7
      %v829 = vsub.s32 6, %v828
      %v830 = vrot.slane %v372, %v829
      %v833 = vlaneseq
      %v834 = vshrl.u32 %v833, 7
      %v835 = vsub.s32 2, %v834
      %v836 = vrot.slane %v826, %v835
      %v837 = vlaneseq
      %v838 = vshrl.u32 %v837, 7
      %v839 = vsub.s32 2, %v838
      %v840 = vrot.slane %v830, %v839
      %v841 = vmul.f32 %v480, %v836
      %v842 = vmul.f32 %v480, %v840
      %v843 = vmul.f32 %v484, %v836
      %v844 = vmul.f32 %v484, %v840
      %v845 = vmul.f32 %v488, %v836
      %v846 = vmul.f32 %v488, %v840
      %v847 = vmul.f32 %v492, %v836
      %v848 = vmul.f32 %v492, %v840
      %v849 = vadd.f32 %v815, %v841
      %v850 = vadd.f32 %v816, %v842
      %v851 = vadd.f32 %v817, %v843
      %v852 = vadd.f32 %v818, %v844
      %v853 = vadd.f32 %v819, %v845
      %v854 = vadd.f32 %v820, %v846
      %v855 = vadd.f32 %v821, %v847
      %v856 = vadd.f32 %v822, %v848
      %v857 = vadd.f32 %v849, %v531
      %v858 = vadd.f32 %v850, %v531
      %v859 = vadd.f32 %v851, %v536
      %v860 = vadd.f32 %v852, %v536
      %v861 = vadd.f32 %v853, %v541
      %v862 = vadd.f32 %v854, %v541
      %v863 = vadd.f32 %v855, %v546
      %v864 = vadd.f32 %v856, %v546
      %v865 = vld [vmem:[%s4] sm:$0xf]
      %v866 = vld [vmem:[%s4 + $0x4] sm:$0xf]
      %v867 = vld [vmem:[%s4 + $0x8] sm:$0xf]
      %v868 = vld [vmem:[%s4 + $0xc] sm:$0xf]
      %v869 = vld [vmem:[%s4 + $0x10] sm:$0xf]
      %v870 = vld [vmem:[%s4 + $0x14] sm:$0xf]
      %v871 = vld [vmem:[%s4 + $0x18] sm:$0xf]
      %v872 = vld [vmem:[%s4 + $0x1c] sm:$0xf]
      %v873 = vld [vmem:[%s4 + $0x20] sm:$0xf]
      %v874 = vld [vmem:[%s4 + $0x24] sm:$0xf]
      %v875 = vld [vmem:[%s4 + $0x28] sm:$0xf]
      %v876 = vld [vmem:[%s4 + $0x2c] sm:$0xf]
      %v877 = vld [vmem:[%s4 + $0x30] sm:$0xf]
      %v878 = vld [vmem:[%s4 + $0x34] sm:$0xf]
      %v879 = vld [vmem:[%s4 + $0x38] sm:$0xf]
      %v880 = vld [vmem:[%s4 + $0x3c] sm:$0xf]
      %v881 = vld [vmem:[%s4 + $0x40] sm:$0xf]
      %v882 = vld [vmem:[%s4 + $0x44] sm:$0xf]
      %v883 = vld [vmem:[%s4 + $0x48] sm:$0xf]
      %v884 = vld [vmem:[%s4 + $0x4c] sm:$0xf]
      %v885 = vld [vmem:[%s4 + $0x50] sm:$0xf]
      %v886 = vld [vmem:[%s4 + $0x54] sm:$0xf]
      %v887 = vld [vmem:[%s4 + $0x58] sm:$0xf]
      %v888 = vld [vmem:[%s4 + $0x5c] sm:$0xf]
      %v889 = vld [vmem:[%s4 + $0x60] sm:$0xf]
      %v890 = vld [vmem:[%s4 + $0x64] sm:$0xf]
      %v891 = vld [vmem:[%s4 + $0x68] sm:$0xf]
      %v892 = vld [vmem:[%s4 + $0x6c] sm:$0xf]
      %v893 = vld [vmem:[%s4 + $0x70] sm:$0xf]
      %v894 = vld [vmem:[%s4 + $0x74] sm:$0xf]
      %v895 = vld [vmem:[%s4 + $0x78] sm:$0xf]
      %v896 = vld [vmem:[%s4 + $0x7c] sm:$0xf]
      %v897 = vld [vmem:[%s5] sm:$0xff]
      %v898 = vld [vmem:[%s5 + $0x8] sm:$0xff]
      %v899 = vld [vmem:[%s5 + $0x10] sm:$0xff]
      %v900 = vld [vmem:[%s5 + $0x18] sm:$0xff]
      %v901 = vld [vmem:[%s5 + $0x20] sm:$0xff]
      %v902 = vld [vmem:[%s5 + $0x28] sm:$0xff]
      %v903 = vld [vmem:[%s5 + $0x30] sm:$0xff]
      %v904 = vld [vmem:[%s5 + $0x38] sm:$0xff]
      %v905 = vld [vmem:[%s5 + $0x40] sm:$0xff]
      %v906 = vld [vmem:[%s5 + $0x48] sm:$0xff]
      %v907 = vld [vmem:[%s5 + $0x50] sm:$0xff]
      %v908 = vld [vmem:[%s5 + $0x58] sm:$0xff]
      %v909 = vld [vmem:[%s5 + $0x60] sm:$0xff]
      %v910 = vld [vmem:[%s5 + $0x68] sm:$0xff]
      %v911 = vld [vmem:[%s5 + $0x70] sm:$0xff]
      %v912 = vld [vmem:[%s5 + $0x78] sm:$0xff]
      %v913 = vpack.c.bf16 %v550, %v548
      %v914 = vpack.c.bf16 %v551, %v549
      %v915 = vpack.c.bf16 %v554, %v552
      %v916 = vpack.c.bf16 %v555, %v553
      %v917 = vpack.c.bf16 %v653, %v651
      %v918 = vpack.c.bf16 %v654, %v652
      %v919 = vpack.c.bf16 %v657, %v655
      %v920 = vpack.c.bf16 %v658, %v656
      %v921 = vpack.c.bf16 %v756, %v754
      %v922 = vpack.c.bf16 %v757, %v755
      %v923 = vpack.c.bf16 %v760, %v758
      %v924 = vpack.c.bf16 %v761, %v759
      %v925 = vpack.c.bf16 %v859, %v857
      %v926 = vpack.c.bf16 %v860, %v858
      %v927 = vpack.c.bf16 %v863, %v861
      %v928 = vpack.c.bf16 %v864, %v862
      %v961 = vunpack.c.l.b16 %v865
      %v962 = vunpack.c.l.b16 %v866
      %v963 = vunpack.c.l.b16 %v867
      %v964 = vunpack.c.l.b16 %v868
      %v965 = vunpack.c.l.b16 %v869
      %v966 = vunpack.c.l.b16 %v870
      %v967 = vunpack.c.l.b16 %v871
      %v968 = vunpack.c.l.b16 %v872
      %v969 = vunpack.c.l.b16 %v873
      %v970 = vunpack.c.l.b16 %v874
      %v971 = vunpack.c.l.b16 %v875
      %v972 = vunpack.c.l.b16 %v876
      %v973 = vunpack.c.l.b16 %v877
      %v974 = vunpack.c.l.b16 %v878
      %v975 = vunpack.c.l.b16 %v879
      %v976 = vunpack.c.l.b16 %v880
      %v977 = vunpack.c.l.b16 %v881
      %v978 = vunpack.c.l.b16 %v882
      %v979 = vunpack.c.l.b16 %v883
      %v980 = vunpack.c.l.b16 %v884
      %v981 = vunpack.c.l.b16 %v885
      %v982 = vunpack.c.l.b16 %v886
      %v983 = vunpack.c.l.b16 %v887
      %v984 = vunpack.c.l.b16 %v888
      %v985 = vunpack.c.l.b16 %v889
      %v986 = vunpack.c.l.b16 %v890
      %v987 = vunpack.c.l.b16 %v891
      %v988 = vunpack.c.l.b16 %v892
      %v989 = vunpack.c.l.b16 %v893
      %v990 = vunpack.c.l.b16 %v894
      %v991 = vunpack.c.l.b16 %v895
      %v992 = vunpack.c.l.b16 %v896
      %v993 = vpack.c.b16 %v962, %v961
      %v994 = vpack.c.b16 %v964, %v963
      %v995 = vpack.c.b16 %v966, %v965
      %v996 = vpack.c.b16 %v968, %v967
      %v997 = vpack.c.b16 %v970, %v969
      %v998 = vpack.c.b16 %v972, %v971
      %v999 = vpack.c.b16 %v974, %v973
      %v1000 = vpack.c.b16 %v976, %v975
      %v1001 = vpack.c.b16 %v978, %v977
      %v1002 = vpack.c.b16 %v980, %v979
      %v1003 = vpack.c.b16 %v982, %v981
      %v1004 = vpack.c.b16 %v984, %v983
      %v1005 = vpack.c.b16 %v986, %v985
      %v1006 = vpack.c.b16 %v988, %v987
      %v1007 = vpack.c.b16 %v990, %v989
      %v1008 = vpack.c.b16 %v992, %v991
      %1025 = vmatprep.subr.bf16.mxu0 0
      %1026 = vmatpush1.bf16.msra.mxu0 %v993
      %1027 = vmatprep.subr.bf16.mxu0 0
      %1028 = vmatpush1.bf16.msra.mxu0 %v994
      %1029 = vmatprep.subr.bf16.mxu0 0
      %1030 = vmatpush1.bf16.msra.mxu0 %v995
      %1031 = vmatprep.subr.bf16.mxu0 0
      %1032 = vmatpush1.bf16.msra.mxu0 %v996
      %1033 = vmatprep.subr.bf16.mxu0 0
      %1034 = vmatpush1.bf16.msra.mxu0 %v997
      %1035 = vmatprep.subr.bf16.mxu0 0
      %1036 = vmatpush1.bf16.msra.mxu0 %v998
      %1037 = vmatprep.subr.bf16.mxu0 0
      %1038 = vmatpush1.bf16.msra.mxu0 %v999
      %1039 = vmatprep.subr.bf16.mxu0 0
      %1040 = vmatpush1.bf16.msra.mxu0 %v1000
      %1041 = vmatprep.subr.bf16.mxu0 0
      %1042 = vmatpush1.bf16.msra.mxu0 %v1001
      %1043 = vmatprep.subr.bf16.mxu0 0
      %1044 = vmatpush1.bf16.msra.mxu0 %v1002
      %1045 = vmatprep.subr.bf16.mxu0 0
      %1046 = vmatpush1.bf16.msra.mxu0 %v1003
      %1047 = vmatprep.subr.bf16.mxu0 0
      %1048 = vmatpush1.bf16.msra.mxu0 %v1004
      %1049 = vmatprep.subr.bf16.mxu0 0
      %1050 = vmatpush1.bf16.msra.mxu0 %v1005
      %1051 = vmatprep.subr.bf16.mxu0 0
      %1052 = vmatpush1.bf16.msra.mxu0 %v1006
      %1053 = vmatprep.subr.bf16.mxu0 0
      %1054 = vmatpush1.bf16.msra.mxu0 %v1007
      %1055 = vmatprep.subr.bf16.mxu0 0
      %1056 = vmatpush1.bf16.msra.mxu0 %v1008
      %1057 = vmatprep.mubr.bf16.mxu0 %v914
      %1058 = vmatmul.mubr.bf16.gmra.mrb[0].mxu0 %v913
      %v1059 = vpop.f32.mrb[0].mxu0
      %v1060 = vadd.f32 0.0, %v1059
      %v1061 = vpop.f32.mrb[0].mxu0
      %v1062 = vpop.f32.mrb[0].mxu0
      %v1063 = vadd.f32 0.0, %v1062
      %v1064 = vpop.f32.mrb[0].mxu0
      %1065 = vmatprep.mubr.bf16.mxu0 %v916
      %1066 = vmatmul.mubr.bf16.gmra.mrb[0].mxu0 %v915
      %v1067 = vpop.f32.mrb[0].mxu0
      %v1068 = vadd.f32 0.0, %v1067
      %v1069 = vpop.f32.mrb[0].mxu0
      %v1070 = vpop.f32.mrb[0].mxu0
      %v1071 = vadd.f32 0.0, %v1070
      %v1072 = vpop.f32.mrb[0].mxu0
      %1073 = vmatprep.mubr.bf16.mxu0 %v918
      %1074 = vmatmul.mubr.bf16.gmra.mrb[0].mxu0 %v917
      %v1075 = vpop.f32.mrb[0].mxu0
      %v1076 = vadd.f32 0.0, %v1075
      %v1077 = vpop.f32.mrb[0].mxu0
      %v1078 = vpop.f32.mrb[0].mxu0
      %v1079 = vadd.f32 0.0, %v1078
      %v1080 = vpop.f32.mrb[0].mxu0
      %1081 = vmatprep.mubr.bf16.mxu0 %v920
      %1082 = vmatmul.mubr.bf16.gmra.mrb[0].mxu0 %v919
      %v1083 = vpop.f32.mrb[0].mxu0
      %v1084 = vadd.f32 0.0, %v1083
      %v1085 = vpop.f32.mrb[0].mxu0
      %v1086 = vpop.f32.mrb[0].mxu0
      %v1087 = vadd.f32 0.0, %v1086
      %v1088 = vpop.f32.mrb[0].mxu0
      %1089 = vmatprep.mubr.bf16.mxu0 %v922
      %1090 = vmatmul.mubr.bf16.gmra.mrb[0].mxu0 %v921
      %v1091 = vpop.f32.mrb[0].mxu0
      %v1092 = vadd.f32 0.0, %v1091
      %v1093 = vpop.f32.mrb[0].mxu0
      %v1094 = vpop.f32.mrb[0].mxu0
      %v1095 = vadd.f32 0.0, %v1094
      %v1096 = vpop.f32.mrb[0].mxu0
      %1097 = vmatprep.mubr.bf16.mxu0 %v924
      %1098 = vmatmul.mubr.bf16.gmra.mrb[0].mxu0 %v923
      %v1099 = vpop.f32.mrb[0].mxu0
      %v1100 = vadd.f32 0.0, %v1099
      %v1101 = vpop.f32.mrb[0].mxu0
      %v1102 = vpop.f32.mrb[0].mxu0
      %v1103 = vadd.f32 0.0, %v1102
      %v1104 = vpop.f32.mrb[0].mxu0
      %1105 = vmatprep.mubr.bf16.mxu0 %v926
      %1106 = vmatmul.mubr.bf16.gmra.mrb[0].mxu0 %v925
      %v1107 = vpop.f32.mrb[0].mxu0
      %v1108 = vadd.f32 0.0, %v1107
      %v1109 = vpop.f32.mrb[0].mxu0
      %v1110 = vpop.f32.mrb[0].mxu0
      %v1111 = vadd.f32 0.0, %v1110
      %v1112 = vpop.f32.mrb[0].mxu0
      %1113 = vmatprep.mubr.bf16.mxu0 %v928
      %1114 = vmatmul.mubr.bf16.gmra.mrb[0].mxu0 %v927
      %v1115 = vpop.f32.mrb[0].mxu0
      %v1116 = vadd.f32 0.0, %v1115
      %v1117 = vpop.f32.mrb[0].mxu0
      %v1118 = vpop.f32.mrb[0].mxu0
      %v1119 = vadd.f32 0.0, %v1118
      %v1120 = vpop.f32.mrb[0].mxu0
      %1121 = vdwg.mxu0
      %v1122 = vld [vmem:[%s3] sm:$0xff]
      %v1123 = vld [vmem:[%s3 + $0x8] sm:$0xff]
      %v1124 = vld [vmem:[%s3 + $0x10] sm:$0xff]
      %v1125 = vld [vmem:[%s3 + $0x18] sm:$0xff]
      %v1126 = vmul.f32 %v1060, %v1122
      %v1127 = vmul.f32 %v1063, %v1123
      %v1128 = vmul.f32 %v1068, %v1124
      %v1129 = vmul.f32 %v1071, %v1125
      %v1130 = vmul.f32 %v1076, %v1122
      %v1131 = vmul.f32 %v1079, %v1123
      %v1132 = vmul.f32 %v1084, %v1124
      %v1133 = vmul.f32 %v1087, %v1125
      %v1134 = vmul.f32 %v1092, %v1122
      %v1135 = vmul.f32 %v1095, %v1123
      %v1136 = vmul.f32 %v1100, %v1124
      %v1137 = vmul.f32 %v1103, %v1125
      %v1138 = vmul.f32 %v1108, %v1122
      %v1139 = vmul.f32 %v1111, %v1123
      %v1140 = vmul.f32 %v1116, %v1124
      %v1141 = vmul.f32 %v1119, %v1125
      %v1142 = vpack.c.bf16 %v1127, %v1126
      %v1143 = vpack.c.bf16 %v1129, %v1128
      %v1144 = vpack.c.bf16 %v1131, %v1130
      %v1145 = vpack.c.bf16 %v1133, %v1132
      %v1146 = vpack.c.bf16 %v1135, %v1134
      %v1147 = vpack.c.bf16 %v1137, %v1136
      %v1148 = vpack.c.bf16 %v1139, %v1138
      %v1149 = vpack.c.bf16 %v1141, %v1140
      %v1166 = vunpack.c.l.b16 %v897
      %v1167 = vunpack.c.h.b16 %v897
      %v1168 = vunpack.c.l.b16 %v898
      %v1169 = vunpack.c.h.b16 %v898
      %v1170 = vunpack.c.l.b16 %v899
      %v1171 = vunpack.c.h.b16 %v899
      %v1172 = vunpack.c.l.b16 %v900
      %v1173 = vunpack.c.h.b16 %v900
      %v1174 = vunpack.c.l.b16 %v901
      %v1175 = vunpack.c.h.b16 %v901
      %v1176 = vunpack.c.l.b16 %v902
      %v1177 = vunpack.c.h.b16 %v902
      %v1178 = vunpack.c.l.b16 %v903
      %v1179 = vunpack.c.h.b16 %v903
      %v1180 = vunpack.c.l.b16 %v904
      %v1181 = vunpack.c.h.b16 %v904
      %v1182 = vunpack.c.l.b16 %v905
      %v1183 = vunpack.c.h.b16 %v905
      %v1184 = vunpack.c.l.b16 %v906
      %v1185 = vunpack.c.h.b16 %v906
      %v1186 = vunpack.c.l.b16 %v907
      %v1187 = vunpack.c.h.b16 %v907
      %v1188 = vunpack.c.l.b16 %v908
      %v1189 = vunpack.c.h.b16 %v908
      %v1190 = vunpack.c.l.b16 %v909
      %v1191 = vunpack.c.h.b16 %v909
      %v1192 = vunpack.c.l.b16 %v910
      %v1193 = vunpack.c.h.b16 %v910
      %v1194 = vunpack.c.l.b16 %v911
      %v1195 = vunpack.c.h.b16 %v911
      %v1196 = vunpack.c.l.b16 %v912
      %v1197 = vunpack.c.h.b16 %v912
      %v1198 = vpack.c.b16 %v1168, %v1166
      %v1199 = vpack.c.b16 %v1169, %v1167
      %v1200 = vpack.c.b16 %v1172, %v1170
      %v1201 = vpack.c.b16 %v1173, %v1171
      %v1202 = vpack.c.b16 %v1176, %v1174
      %v1203 = vpack.c.b16 %v1177, %v1175
      %v1204 = vpack.c.b16 %v1180, %v1178
      %v1205 = vpack.c.b16 %v1181, %v1179
      %v1206 = vpack.c.b16 %v1184, %v1182
      %v1207 = vpack.c.b16 %v1185, %v1183
      %v1208 = vpack.c.b16 %v1188, %v1186
      %v1209 = vpack.c.b16 %v1189, %v1187
      %v1210 = vpack.c.b16 %v1192, %v1190
      %v1211 = vpack.c.b16 %v1193, %v1191
      %v1212 = vpack.c.b16 %v1196, %v1194
      %v1213 = vpack.c.b16 %v1197, %v1195
      %1230 = vmatprep.subr.bf16.mxu0 %v1199
      %1231 = vmatpush1.bf16.msra.mxu0 %v1198
      %1232 = vmatprep.subr.bf16.mxu0 %v1201
      %1233 = vmatpush1.bf16.msra.mxu0 %v1200
      %1234 = vmatprep.subr.bf16.mxu0 %v1203
      %1235 = vmatpush1.bf16.msra.mxu0 %v1202
      %1236 = vmatprep.subr.bf16.mxu0 %v1205
      %1237 = vmatpush1.bf16.msra.mxu0 %v1204
      %1238 = vmatprep.subr.bf16.mxu0 %v1207
      %1239 = vmatpush1.bf16.msra.mxu0 %v1206
      %1240 = vmatprep.subr.bf16.mxu0 %v1209
      %1241 = vmatpush1.bf16.msra.mxu0 %v1208
      %1242 = vmatprep.subr.bf16.mxu0 %v1211
      %1243 = vmatpush1.bf16.msra.mxu0 %v1210
      %1244 = vmatprep.subr.bf16.mxu0 %v1213
      %1245 = vmatpush1.bf16.msra.mxu0 %v1212
      %1246 = vmatprep.subr.bf16.mxu0 0
      %1247 = vmatpush1.bf16.msra.mxu0 0
      %1248 = vmatprep.subr.bf16.mxu0 0
      %1249 = vmatpush1.bf16.msra.mxu0 0
      %1250 = vmatprep.subr.bf16.mxu0 0
      %1251 = vmatpush1.bf16.msra.mxu0 0
      %1252 = vmatprep.subr.bf16.mxu0 0
      %1253 = vmatpush1.bf16.msra.mxu0 0
      %1254 = vmatprep.subr.bf16.mxu0 0
      %1255 = vmatpush1.bf16.msra.mxu0 0
      %1256 = vmatprep.subr.bf16.mxu0 0
      %1257 = vmatpush1.bf16.msra.mxu0 0
      %1258 = vmatprep.subr.bf16.mxu0 0
      %1259 = vmatpush1.bf16.msra.mxu0 0
      %1260 = vmatprep.subr.bf16.mxu0 0
      %1261 = vmatpush1.bf16.msra.mxu0 0
      %1262 = vmatprep.mubr.bf16.mxu0 0
      %1263 = vmatmul.mubr.bf16.gmra.mrb[0].mxu0 %v1142
      %v1264 = vpop.f32.mrb[0].mxu0
      %v1265 = vadd.f32 0.0, %v1264
      %v1266 = vpop.f32.mrb[0].mxu0
      %v1267 = vadd.f32 0.0, %v1266
      %v1268 = vpop.f32.mrb[0].mxu0
      %v1269 = vadd.f32 0.0, %v1268
      %v1270 = vpop.f32.mrb[0].mxu0
      %v1271 = vadd.f32 0.0, %v1270
      %1272 = vmatprep.mubr.bf16.mxu0 0
      %1273 = vmatmul.mubr.bf16.gmra.mrb[0].mxu0 %v1143
      %v1274 = vpop.f32.mrb[0].mxu0
      %v1275 = vadd.f32 0.0, %v1274
      %v1276 = vpop.f32.mrb[0].mxu0
      %v1277 = vadd.f32 0.0, %v1276
      %v1278 = vpop.f32.mrb[0].mxu0
      %v1279 = vadd.f32 0.0, %v1278
      %v1280 = vpop.f32.mrb[0].mxu0
      %v1281 = vadd.f32 0.0, %v1280
      %1282 = vmatprep.mubr.bf16.mxu0 0
      %1283 = vmatmul.mubr.bf16.gmra.mrb[0].mxu0 %v1144
      %v1284 = vpop.f32.mrb[0].mxu0
      %v1285 = vadd.f32 0.0, %v1284
      %v1286 = vpop.f32.mrb[0].mxu0
      %v1287 = vadd.f32 0.0, %v1286
      %v1288 = vpop.f32.mrb[0].mxu0
      %v1289 = vadd.f32 0.0, %v1288
      %v1290 = vpop.f32.mrb[0].mxu0
      %v1291 = vadd.f32 0.0, %v1290
      %1292 = vmatprep.mubr.bf16.mxu0 0
      %1293 = vmatmul.mubr.bf16.gmra.mrb[0].mxu0 %v1145
      %v1294 = vpop.f32.mrb[0].mxu0
      %v1295 = vadd.f32 0.0, %v1294
      %v1296 = vpop.f32.mrb[0].mxu0
      %v1297 = vadd.f32 0.0, %v1296
      %v1298 = vpop.f32.mrb[0].mxu0
      %v1299 = vadd.f32 0.0, %v1298
      %v1300 = vpop.f32.mrb[0].mxu0
      %v1301 = vadd.f32 0.0, %v1300
      %1302 = vmatprep.mubr.bf16.mxu0 0
      %1303 = vmatmul.mubr.bf16.gmra.mrb[0].mxu0 %v1146
      %v1304 = vpop.f32.mrb[0].mxu0
      %v1305 = vadd.f32 0.0, %v1304
      %v1306 = vpop.f32.mrb[0].mxu0
      %v1307 = vadd.f32 0.0, %v1306
      %v1308 = vpop.f32.mrb[0].mxu0
      %v1309 = vadd.f32 0.0, %v1308
      %v1310 = vpop.f32.mrb[0].mxu0
      %v1311 = vadd.f32 0.0, %v1310
      %1312 = vmatprep.mubr.bf16.mxu0 0
      %1313 = vmatmul.mubr.bf16.gmra.mrb[0].mxu0 %v1147
      %v1314 = vpop.f32.mrb[0].mxu0
      %v1315 = vadd.f32 0.0, %v1314
      %v1316 = vpop.f32.mrb[0].mxu0
      %v1317 = vadd.f32 0.0, %v1316
      %v1318 = vpop.f32.mrb[0].mxu0
      %v1319 = vadd.f32 0.0, %v1318
      %v1320 = vpop.f32.mrb[0].mxu0
      %v1321 = vadd.f32 0.0, %v1320
      %1322 = vmatprep.mubr.bf16.mxu0 0
      %1323 = vmatmul.mubr.bf16.gmra.mrb[0].mxu0 %v1148
      %v1324 = vpop.f32.mrb[0].mxu0
      %v1325 = vadd.f32 0.0, %v1324
      %v1326 = vpop.f32.mrb[0].mxu0
      %v1327 = vadd.f32 0.0, %v1326
      %v1328 = vpop.f32.mrb[0].mxu0
      %v1329 = vadd.f32 0.0, %v1328
      %v1330 = vpop.f32.mrb[0].mxu0
      %v1331 = vadd.f32 0.0, %v1330
      %1332 = vmatprep.mubr.bf16.mxu0 0
      %1333 = vmatmul.mubr.bf16.gmra.mrb[0].mxu0 %v1149
      %v1334 = vpop.f32.mrb[0].mxu0
      %v1335 = vadd.f32 0.0, %v1334
      %v1336 = vpop.f32.mrb[0].mxu0
      %v1337 = vadd.f32 0.0, %v1336
      %v1338 = vpop.f32.mrb[0].mxu0
      %v1339 = vadd.f32 0.0, %v1338
      %v1340 = vpop.f32.mrb[0].mxu0
      %v1341 = vadd.f32 0.0, %v1340
      %1342 = vdwg.mxu0
      %v1343 = vmul.f32 %v1265, 0.5
      %v1344 = vmul.f32 %v1267, 0.5
      %v1345 = vmul.f32 %v1269, 0.5
      %v1346 = vmul.f32 %v1271, 0.5
      %v1347 = vmul.f32 %v1275, 0.5
      %v1348 = vmul.f32 %v1277, 0.5
      %v1349 = vmul.f32 %v1279, 0.5
      %v1350 = vmul.f32 %v1281, 0.5
      %v1351 = vmul.f32 %v1285, 0.5
      %v1352 = vmul.f32 %v1287, 0.5
      %v1353 = vmul.f32 %v1289, 0.5
      %v1354 = vmul.f32 %v1291, 0.5
      %v1355 = vmul.f32 %v1295, 0.5
      %v1356 = vmul.f32 %v1297, 0.5
      %v1357 = vmul.f32 %v1299, 0.5
      %v1358 = vmul.f32 %v1301, 0.5
      %v1359 = vmul.f32 %v1305, 0.5
      %v1360 = vmul.f32 %v1307, 0.5
      %v1361 = vmul.f32 %v1309, 0.5
      %v1362 = vmul.f32 %v1311, 0.5
      %v1363 = vmul.f32 %v1315, 0.5
      %v1364 = vmul.f32 %v1317, 0.5
      %v1365 = vmul.f32 %v1319, 0.5
      %v1366 = vmul.f32 %v1321, 0.5
      %v1367 = vmul.f32 %v1325, 0.5
      %v1368 = vmul.f32 %v1327, 0.5
      %v1369 = vmul.f32 %v1329, 0.5
      %v1370 = vmul.f32 %v1331, 0.5
      %v1371 = vmul.f32 %v1335, 0.5
      %v1372 = vmul.f32 %v1337, 0.5
      %v1373 = vmul.f32 %v1339, 0.5
      %v1374 = vmul.f32 %v1341, 0.5
      %v1375 = vmul.f32 %v1265, 0.70710677
      %v1376 = vmul.f32 %v1267, 0.70710677
      %v1377 = vmul.f32 %v1269, 0.70710677
      %v1378 = vmul.f32 %v1271, 0.70710677
      %v1379 = vmul.f32 %v1275, 0.70710677
      %v1380 = vmul.f32 %v1277, 0.70710677
      %v1381 = vmul.f32 %v1279, 0.70710677
      %v1382 = vmul.f32 %v1281, 0.70710677
      %v1383 = vmul.f32 %v1285, 0.70710677
      %v1384 = vmul.f32 %v1287, 0.70710677
      %v1385 = vmul.f32 %v1289, 0.70710677
      %v1386 = vmul.f32 %v1291, 0.70710677
      %v1387 = vmul.f32 %v1295, 0.70710677
      %v1388 = vmul.f32 %v1297, 0.70710677
      %v1389 = vmul.f32 %v1299, 0.70710677
      %v1390 = vmul.f32 %v1301, 0.70710677
      %v1391 = vmul.f32 %v1305, 0.70710677
      %v1392 = vmul.f32 %v1307, 0.70710677
      %v1393 = vmul.f32 %v1309, 0.70710677
      %v1394 = vmul.f32 %v1311, 0.70710677
      %v1395 = vmul.f32 %v1315, 0.70710677
      %v1396 = vmul.f32 %v1317, 0.70710677
      %v1397 = vmul.f32 %v1319, 0.70710677
      %v1398 = vmul.f32 %v1321, 0.70710677
      %v1399 = vmul.f32 %v1325, 0.70710677
      %v1400 = vmul.f32 %v1327, 0.70710677
      %v1401 = vmul.f32 %v1329, 0.70710677
      %v1402 = vmul.f32 %v1331, 0.70710677
      %v1403 = vmul.f32 %v1335, 0.70710677
      %v1404 = vmul.f32 %v1337, 0.70710677
      %v1405 = vmul.f32 %v1339, 0.70710677
      %v1406 = vmul.f32 %v1341, 0.70710677
      %v1407 = verf.f32.pop %v1375
      %v1408 = verf.f32.pop %v1376
      %v1409 = verf.f32.pop %v1377
      %v1410 = verf.f32.pop %v1378
      %v1411 = verf.f32.pop %v1379
      %v1412 = verf.f32.pop %v1380
      %v1413 = verf.f32.pop %v1381
      %v1414 = verf.f32.pop %v1382
      %v1415 = verf.f32.pop %v1383
      %v1416 = verf.f32.pop %v1384
      %v1417 = verf.f32.pop %v1385
      %v1418 = verf.f32.pop %v1386
      %v1419 = verf.f32.pop %v1387
      %v1420 = verf.f32.pop %v1388
      %v1421 = verf.f32.pop %v1389
      %v1422 = verf.f32.pop %v1390
      %v1423 = verf.f32.pop %v1391
      %v1424 = verf.f32.pop %v1392
      %v1425 = verf.f32.pop %v1393
      %v1426 = verf.f32.pop %v1394
      %v1427 = verf.f32.pop %v1395
      %v1428 = verf.f32.pop %v1396
      %v1429 = verf.f32.pop %v1397
      %v1430 = verf.f32.pop %v1398
      %v1431 = verf.f32.pop %v1399
      %v1432 = verf.f32.pop %v1400
      %v1433 = verf.f32.pop %v1401
      %v1434 = verf.f32.pop %v1402
      %v1435 = verf.f32.pop %v1403
      %v1436 = verf.f32.pop %v1404
      %v1437 = verf.f32.pop %v1405
      %v1438 = verf.f32.pop %v1406
      %v1439 = vadd.f32 %v1407, 1.0
      %v1440 = vadd.f32 %v1408, 1.0
      %v1441 = vadd.f32 %v1409, 1.0
      %v1442 = vadd.f32 %v1410, 1.0
      %v1443 = vadd.f32 %v1411, 1.0
      %v1444 = vadd.f32 %v1412, 1.0
      %v1445 = vadd.f32 %v1413, 1.0
      %v1446 = vadd.f32 %v1414, 1.0
      %v1447 = vadd.f32 %v1415, 1.0
      %v1448 = vadd.f32 %v1416, 1.0
      %v1449 = vadd.f32 %v1417, 1.0
      %v1450 = vadd.f32 %v1418, 1.0
      %v1451 = vadd.f32 %v1419, 1.0
      %v1452 = vadd.f32 %v1420, 1.0
      %v1453 = vadd.f32 %v1421, 1.0
      %v1454 = vadd.f32 %v1422, 1.0
      %v1455 = vadd.f32 %v1423, 1.0
      %v1456 = vadd.f32 %v1424, 1.0
      %v1457 = vadd.f32 %v1425, 1.0
      %v1458 = vadd.f32 %v1426, 1.0
      %v1459 = vadd.f32 %v1427, 1.0
      %v1460 = vadd.f32 %v1428, 1.0
      %v1461 = vadd.f32 %v1429, 1.0
      %v1462 = vadd.f32 %v1430, 1.0
      %v1463 = vadd.f32 %v1431, 1.0
      %v1464 = vadd.f32 %v1432, 1.0
      %v1465 = vadd.f32 %v1433, 1.0
      %v1466 = vadd.f32 %v1434, 1.0
      %v1467 = vadd.f32 %v1435, 1.0
      %v1468 = vadd.f32 %v1436, 1.0
      %v1469 = vadd.f32 %v1437, 1.0
      %v1470 = vadd.f32 %v1438, 1.0
      %v1471 = vmul.f32 %v1343, %v1439
      %v1472 = vmul.f32 %v1344, %v1440
      %v1473 = vmul.f32 %v1345, %v1441
      %v1474 = vmul.f32 %v1346, %v1442
      %v1475 = vmul.f32 %v1347, %v1443
      %v1476 = vmul.f32 %v1348, %v1444
      %v1477 = vmul.f32 %v1349, %v1445
      %v1478 = vmul.f32 %v1350, %v1446
      %v1479 = vmul.f32 %v1351, %v1447
      %v1480 = vmul.f32 %v1352, %v1448
      %v1481 = vmul.f32 %v1353, %v1449
      %v1482 = vmul.f32 %v1354, %v1450
      %v1483 = vmul.f32 %v1355, %v1451
      %v1484 = vmul.f32 %v1356, %v1452
      %v1485 = vmul.f32 %v1357, %v1453
      %v1486 = vmul.f32 %v1358, %v1454
      %v1487 = vmul.f32 %v1359, %v1455
      %v1488 = vmul.f32 %v1360, %v1456
      %v1489 = vmul.f32 %v1361, %v1457
      %v1490 = vmul.f32 %v1362, %v1458
      %v1491 = vmul.f32 %v1363, %v1459
      %v1492 = vmul.f32 %v1364, %v1460
      %v1493 = vmul.f32 %v1365, %v1461
      %v1494 = vmul.f32 %v1366, %v1462
      %v1495 = vmul.f32 %v1367, %v1463
      %v1496 = vmul.f32 %v1368, %v1464
      %v1497 = vmul.f32 %v1369, %v1465
      %v1498 = vmul.f32 %v1370, %v1466
      %v1499 = vmul.f32 %v1371, %v1467
      %v1500 = vmul.f32 %v1372, %v1468
      %v1501 = vmul.f32 %v1373, %v1469
      %v1502 = vmul.f32 %v1374, %v1470
      %v1503 = vpack.c.bf16 %v1473, %v1471
      %v1504 = vpack.c.bf16 %v1474, %v1472
      %v1505 = vpack.c.bf16 %v1477, %v1475
      %v1506 = vpack.c.bf16 %v1478, %v1476
      %v1507 = vpack.c.bf16 %v1481, %v1479
      %v1508 = vpack.c.bf16 %v1482, %v1480
      %v1509 = vpack.c.bf16 %v1485, %v1483
      %v1510 = vpack.c.bf16 %v1486, %v1484
      %v1511 = vpack.c.bf16 %v1489, %v1487
      %v1512 = vpack.c.bf16 %v1490, %v1488
      %v1513 = vpack.c.bf16 %v1493, %v1491
      %v1514 = vpack.c.bf16 %v1494, %v1492
      %v1515 = vpack.c.bf16 %v1497, %v1495
      %v1516 = vpack.c.bf16 %v1498, %v1496
      %v1517 = vpack.c.bf16 %v1501, %v1499
      %v1518 = vpack.c.bf16 %v1502, %v1500
      %1519 = vmatprep.subr.bf16.mxu0 0
      %1520 = vmatpush1.bf16.msra.mxu0 %v993
      %1521 = vmatprep.subr.bf16.mxu0 0
      %1522 = vmatpush1.bf16.msra.mxu0 %v994
      %1523 = vmatprep.subr.bf16.mxu0 0
      %1524 = vmatpush1.bf16.msra.mxu0 %v995
      %1525 = vmatprep.subr.bf16.mxu0 0
      %1526 = vmatpush1.bf16.msra.mxu0 %v996
      %1527 = vmatprep.subr.bf16.mxu0 0
      %1528 = vmatpush1.bf16.msra.mxu0 %v997
      %1529 = vmatprep.subr.bf16.mxu0 0
      %1530 = vmatpush1.bf16.msra.mxu0 %v998
      %1531 = vmatprep.subr.bf16.mxu0 0
      %1532 = vmatpush1.bf16.msra.mxu0 %v999
      %1533 = vmatprep.subr.bf16.mxu0 0
      %1534 = vmatpush1.bf16.msra.mxu0 %v1000
      %1535 = vmatprep.subr.bf16.mxu0 0
      %1536 = vmatpush1.bf16.msra.mxu0 %v1001
      %1537 = vmatprep.subr.bf16.mxu0 0
      %1538 = vmatpush1.bf16.msra.mxu0 %v1002
      %1539 = vmatprep.subr.bf16.mxu0 0
      %1540 = vmatpush1.bf16.msra.mxu0 %v1003
      %1541 = vmatprep.subr.bf16.mxu0 0
      %1542 = vmatpush1.bf16.msra.mxu0 %v1004
      %1543 = vmatprep.subr.bf16.mxu0 0
      %1544 = vmatpush1.bf16.msra.mxu0 %v1005
      %1545 = vmatprep.subr.bf16.mxu0 0
      %1546 = vmatpush1.bf16.msra.mxu0 %v1006
      %1547 = vmatprep.subr.bf16.mxu0 0
      %1548 = vmatpush1.bf16.msra.mxu0 %v1007
      %1549 = vmatprep.subr.bf16.mxu0 0
      %1550 = vmatpush1.bf16.msra.mxu0 %v1008
      %1551 = vmatprep.mubr.bf16.mxu0 %v1504
      %1552 = vmatmul.mubr.bf16.gmra.mrb[0].mxu0 %v1503
      %v1553 = vpop.f32.mrb[0].mxu0
      %v1554 = vadd.f32 0.0, %v1553
      %v1555 = vpop.f32.mrb[0].mxu0
      %v1556 = vpop.f32.mrb[0].mxu0
      %v1557 = vadd.f32 0.0, %v1556
      %v1558 = vpop.f32.mrb[0].mxu0
      %1559 = vmatprep.mubr.bf16.mxu0 %v1506
      %1560 = vmatmul.mubr.bf16.gmra.mrb[0].mxu0 %v1505
      %v1561 = vpop.f32.mrb[0].mxu0
      %v1562 = vadd.f32 0.0, %v1561
      %v1563 = vpop.f32.mrb[0].mxu0
      %v1564 = vpop.f32.mrb[0].mxu0
      %v1565 = vadd.f32 0.0, %v1564
      %v1566 = vpop.f32.mrb[0].mxu0
      %1567 = vmatprep.mubr.bf16.mxu0 %v1508
      %1568 = vmatmul.mubr.bf16.gmra.mrb[0].mxu0 %v1507
      %v1569 = vpop.f32.mrb[0].mxu0
      %v1570 = vadd.f32 0.0, %v1569
      %v1571 = vpop.f32.mrb[0].mxu0
      %v1572 = vpop.f32.mrb[0].mxu0
      %v1573 = vadd.f32 0.0, %v1572
      %v1574 = vpop.f32.mrb[0].mxu0
      %1575 = vmatprep.mubr.bf16.mxu0 %v1510
      %1576 = vmatmul.mubr.bf16.gmra.mrb[0].mxu0 %v1509
      %v1577 = vpop.f32.mrb[0].mxu0
      %v1578 = vadd.f32 0.0, %v1577
      %v1579 = vpop.f32.mrb[0].mxu0
      %v1580 = vpop.f32.mrb[0].mxu0
      %v1581 = vadd.f32 0.0, %v1580
      %v1582 = vpop.f32.mrb[0].mxu0
      %1583 = vmatprep.mubr.bf16.mxu0 %v1512
      %1584 = vmatmul.mubr.bf16.gmra.mrb[0].mxu0 %v1511
      %v1585 = vpop.f32.mrb[0].mxu0
      %v1586 = vadd.f32 0.0, %v1585
      %v1587 = vpop.f32.mrb[0].mxu0
      %v1588 = vpop.f32.mrb[0].mxu0
      %v1589 = vadd.f32 0.0, %v1588
      %v1590 = vpop.f32.mrb[0].mxu0
      %1591 = vmatprep.mubr.bf16.mxu0 %v1514
      %1592 = vmatmul.mubr.bf16.gmra.mrb[0].mxu0 %v1513
      %v1593 = vpop.f32.mrb[0].mxu0
      %v1594 = vadd.f32 0.0, %v1593
      %v1595 = vpop.f32.mrb[0].mxu0
      %v1596 = vpop.f32.mrb[0].mxu0
      %v1597 = vadd.f32 0.0, %v1596
      %v1598 = vpop.f32.mrb[0].mxu0
      %1599 = vmatprep.mubr.bf16.mxu0 %v1516
      %1600 = vmatmul.mubr.bf16.gmra.mrb[0].mxu0 %v1515
      %v1601 = vpop.f32.mrb[0].mxu0
      %v1602 = vadd.f32 0.0, %v1601
      %v1603 = vpop.f32.mrb[0].mxu0
      %v1604 = vpop.f32.mrb[0].mxu0
      %v1605 = vadd.f32 0.0, %v1604
      %v1606 = vpop.f32.mrb[0].mxu0
      %1607 = vmatprep.mubr.bf16.mxu0 %v1518
      %1608 = vmatmul.mubr.bf16.gmra.mrb[0].mxu0 %v1517
      %v1609 = vpop.f32.mrb[0].mxu0
      %v1610 = vadd.f32 0.0, %v1609
      %v1611 = vpop.f32.mrb[0].mxu0
      %v1612 = vpop.f32.mrb[0].mxu0
      %v1613 = vadd.f32 0.0, %v1612
      %v1614 = vpop.f32.mrb[0].mxu0
      %1615 = vdwg.mxu0
      %s1616 = scalar_lea.vmem %s3, 32
      %v1617 = vld [vmem:[%s1616] sm:$0xff]
      %v1618 = vld [vmem:[%s1616 + $0x8] sm:$0xff]
      %v1619 = vld [vmem:[%s1616 + $0x10] sm:$0xff]
      %v1620 = vld [vmem:[%s1616 + $0x18] sm:$0xff]
      %v1621 = vmul.f32 %v1554, %v1617
      %v1622 = vmul.f32 %v1557, %v1618
      %v1623 = vmul.f32 %v1562, %v1619
      %v1624 = vmul.f32 %v1565, %v1620
      %v1625 = vmul.f32 %v1570, %v1617
      %v1626 = vmul.f32 %v1573, %v1618
      %v1627 = vmul.f32 %v1578, %v1619
      %v1628 = vmul.f32 %v1581, %v1620
      %v1629 = vmul.f32 %v1586, %v1617
      %v1630 = vmul.f32 %v1589, %v1618
      %v1631 = vmul.f32 %v1594, %v1619
      %v1632 = vmul.f32 %v1597, %v1620
      %v1633 = vmul.f32 %v1602, %v1617
      %v1634 = vmul.f32 %v1605, %v1618
      %v1635 = vmul.f32 %v1610, %v1619
      %v1636 = vmul.f32 %v1613, %v1620
      %v1637 = vpack.c.bf16 %v1622, %v1621
      %v1638 = vpack.c.bf16 %v1624, %v1623
      %v1639 = vpack.c.bf16 %v1626, %v1625
      %v1640 = vpack.c.bf16 %v1628, %v1627
      %v1641 = vpack.c.bf16 %v1630, %v1629
      %v1642 = vpack.c.bf16 %v1632, %v1631
      %v1643 = vpack.c.bf16 %v1634, %v1633
      %v1644 = vpack.c.bf16 %v1636, %v1635
      %1645 = vmatprep.subr.bf16.mxu0 %v1199
      %1646 = vmatpush1.bf16.msra.mxu0 %v1198
      %1647 = vmatprep.subr.bf16.mxu0 %v1201
      %1648 = vmatpush1.bf16.msra.mxu0 %v1200
      %1649 = vmatprep.subr.bf16.mxu0 %v1203
      %1650 = vmatpush1.bf16.msra.mxu0 %v1202
      %1651 = vmatprep.subr.bf16.mxu0 %v1205
      %1652 = vmatpush1.bf16.msra.mxu0 %v1204
      %1653 = vmatprep.subr.bf16.mxu0 %v1207
      %1654 = vmatpush1.bf16.msra.mxu0 %v1206
      %1655 = vmatprep.subr.bf16.mxu0 %v1209
      %1656 = vmatpush1.bf16.msra.mxu0 %v1208
      %1657 = vmatprep.subr.bf16.mxu0 %v1211
      %1658 = vmatpush1.bf16.msra.mxu0 %v1210
      %1659 = vmatprep.subr.bf16.mxu0 %v1213
      %1660 = vmatpush1.bf16.msra.mxu0 %v1212
      %1661 = vmatprep.subr.bf16.mxu0 0
      %1662 = vmatpush1.bf16.msra.mxu0 0
      %1663 = vmatprep.subr.bf16.mxu0 0
      %1664 = vmatpush1.bf16.msra.mxu0 0
      %1665 = vmatprep.subr.bf16.mxu0 0
      %1666 = vmatpush1.bf16.msra.mxu0 0
      %1667 = vmatprep.subr.bf16.mxu0 0
      %1668 = vmatpush1.bf16.msra.mxu0 0
      %1669 = vmatprep.subr.bf16.mxu0 0
      %1670 = vmatpush1.bf16.msra.mxu0 0
      %1671 = vmatprep.subr.bf16.mxu0 0
      %1672 = vmatpush1.bf16.msra.mxu0 0
      %1673 = vmatprep.subr.bf16.mxu0 0
      %1674 = vmatpush1.bf16.msra.mxu0 0
      %1675 = vmatprep.subr.bf16.mxu0 0
      %1676 = vmatpush1.bf16.msra.mxu0 0
      %1677 = vmatprep.mubr.bf16.mxu0 0
      %1678 = vmatmul.mubr.bf16.gmra.mrb[0].mxu0 %v1637
      %v1679 = vpop.f32.mrb[0].mxu0
      %v1680 = vadd.f32 0.0, %v1679
      %v1681 = vpop.f32.mrb[0].mxu0
      %v1682 = vadd.f32 0.0, %v1681
      %v1683 = vpop.f32.mrb[0].mxu0
      %v1684 = vadd.f32 0.0, %v1683
      %v1685 = vpop.f32.mrb[0].mxu0
      %v1686 = vadd.f32 0.0, %v1685
      %1687 = vmatprep.mubr.bf16.mxu0 0
      %1688 = vmatmul.mubr.bf16.gmra.mrb[0].mxu0 %v1638
      %v1689 = vpop.f32.mrb[0].mxu0
      %v1690 = vadd.f32 0.0, %v1689
      %v1691 = vpop.f32.mrb[0].mxu0
      %v1692 = vadd.f32 0.0, %v1691
      %v1693 = vpop.f32.mrb[0].mxu0
      %v1694 = vadd.f32 0.0, %v1693
      %v1695 = vpop.f32.mrb[0].mxu0
      %v1696 = vadd.f32 0.0, %v1695
      %1697 = vmatprep.mubr.bf16.mxu0 0
      %1698 = vmatmul.mubr.bf16.gmra.mrb[0].mxu0 %v1639
      %v1699 = vpop.f32.mrb[0].mxu0
      %v1700 = vadd.f32 0.0, %v1699
      %v1701 = vpop.f32.mrb[0].mxu0
      %v1702 = vadd.f32 0.0, %v1701
      %v1703 = vpop.f32.mrb[0].mxu0
      %v1704 = vadd.f32 0.0, %v1703
      %v1705 = vpop.f32.mrb[0].mxu0
      %v1706 = vadd.f32 0.0, %v1705
      %1707 = vmatprep.mubr.bf16.mxu0 0
      %1708 = vmatmul.mubr.bf16.gmra.mrb[0].mxu0 %v1640
      %v1709 = vpop.f32.mrb[0].mxu0
      %v1710 = vadd.f32 0.0, %v1709
      %v1711 = vpop.f32.mrb[0].mxu0
      %v1712 = vadd.f32 0.0, %v1711
      %v1713 = vpop.f32.mrb[0].mxu0
      %v1714 = vadd.f32 0.0, %v1713
      %v1715 = vpop.f32.mrb[0].mxu0
      %v1716 = vadd.f32 0.0, %v1715
      %1717 = vmatprep.mubr.bf16.mxu0 0
      %1718 = vmatmul.mubr.bf16.gmra.mrb[0].mxu0 %v1641
      %v1719 = vpop.f32.mrb[0].mxu0
      %v1720 = vadd.f32 0.0, %v1719
      %v1721 = vpop.f32.mrb[0].mxu0
      %v1722 = vadd.f32 0.0, %v1721
      %v1723 = vpop.f32.mrb[0].mxu0
      %v1724 = vadd.f32 0.0, %v1723
      %v1725 = vpop.f32.mrb[0].mxu0
      %v1726 = vadd.f32 0.0, %v1725
      %1727 = vmatprep.mubr.bf16.mxu0 0
      %1728 = vmatmul.mubr.bf16.gmra.mrb[0].mxu0 %v1642
      %v1729 = vpop.f32.mrb[0].mxu0
      %v1730 = vadd.f32 0.0, %v1729
      %v1731 = vpop.f32.mrb[0].mxu0
      %v1732 = vadd.f32 0.0, %v1731
      %v1733 = vpop.f32.mrb[0].mxu0
      %v1734 = vadd.f32 0.0, %v1733
      %v1735 = vpop.f32.mrb[0].mxu0
      %v1736 = vadd.f32 0.0, %v1735
      %1737 = vmatprep.mubr.bf16.mxu0 0
      %1738 = vmatmul.mubr.bf16.gmra.mrb[0].mxu0 %v1643
      %v1739 = vpop.f32.mrb[0].mxu0
      %v1740 = vadd.f32 0.0, %v1739
      %v1741 = vpop.f32.mrb[0].mxu0
      %v1742 = vadd.f32 0.0, %v1741
      %v1743 = vpop.f32.mrb[0].mxu0
      %v1744 = vadd.f32 0.0, %v1743
      %v1745 = vpop.f32.mrb[0].mxu0
      %v1746 = vadd.f32 0.0, %v1745
      %1747 = vmatprep.mubr.bf16.mxu0 0
      %1748 = vmatmul.mubr.bf16.gmra.mrb[0].mxu0 %v1644
      %v1749 = vpop.f32.mrb[0].mxu0
      %v1750 = vadd.f32 0.0, %v1749
      %v1751 = vpop.f32.mrb[0].mxu0
      %v1752 = vadd.f32 0.0, %v1751
      %v1753 = vpop.f32.mrb[0].mxu0
      %v1754 = vadd.f32 0.0, %v1753
      %v1755 = vpop.f32.mrb[0].mxu0
      %v1756 = vadd.f32 0.0, %v1755
      %1757 = vdwg.mxu0
      %v1758 = vmul.f32 %v1680, 0.5
      %v1759 = vmul.f32 %v1682, 0.5
      %v1760 = vmul.f32 %v1684, 0.5
      %v1761 = vmul.f32 %v1686, 0.5
      %v1762 = vmul.f32 %v1690, 0.5
      %v1763 = vmul.f32 %v1692, 0.5
      %v1764 = vmul.f32 %v1694, 0.5
      %v1765 = vmul.f32 %v1696, 0.5
      %v1766 = vmul.f32 %v1700, 0.5
      %v1767 = vmul.f32 %v1702, 0.5
      %v1768 = vmul.f32 %v1704, 0.5
      %v1769 = vmul.f32 %v1706, 0.5
      %v1770 = vmul.f32 %v1710, 0.5
      %v1771 = vmul.f32 %v1712, 0.5
      %v1772 = vmul.f32 %v1714, 0.5
      %v1773 = vmul.f32 %v1716, 0.5
      %v1774 = vmul.f32 %v1720, 0.5
      %v1775 = vmul.f32 %v1722, 0.5
      %v1776 = vmul.f32 %v1724, 0.5
      %v1777 = vmul.f32 %v1726, 0.5
      %v1778 = vmul.f32 %v1730, 0.5
      %v1779 = vmul.f32 %v1732, 0.5
      %v1780 = vmul.f32 %v1734, 0.5
      %v1781 = vmul.f32 %v1736, 0.5
      %v1782 = vmul.f32 %v1740, 0.5
      %v1783 = vmul.f32 %v1742, 0.5
      %v1784 = vmul.f32 %v1744, 0.5
      %v1785 = vmul.f32 %v1746, 0.5
      %v1786 = vmul.f32 %v1750, 0.5
      %v1787 = vmul.f32 %v1752, 0.5
      %v1788 = vmul.f32 %v1754, 0.5
      %v1789 = vmul.f32 %v1756, 0.5
      %v1790 = vmul.f32 %v1680, 0.70710677
      %v1791 = vmul.f32 %v1682, 0.70710677
      %v1792 = vmul.f32 %v1684, 0.70710677
      %v1793 = vmul.f32 %v1686, 0.70710677
      %v1794 = vmul.f32 %v1690, 0.70710677
      %v1795 = vmul.f32 %v1692, 0.70710677
      %v1796 = vmul.f32 %v1694, 0.70710677
      %v1797 = vmul.f32 %v1696, 0.70710677
      %v1798 = vmul.f32 %v1700, 0.70710677
      %v1799 = vmul.f32 %v1702, 0.70710677
      %v1800 = vmul.f32 %v1704, 0.70710677
      %v1801 = vmul.f32 %v1706, 0.70710677
      %v1802 = vmul.f32 %v1710, 0.70710677
      %v1803 = vmul.f32 %v1712, 0.70710677
      %v1804 = vmul.f32 %v1714, 0.70710677
      %v1805 = vmul.f32 %v1716, 0.70710677
      %v1806 = vmul.f32 %v1720, 0.70710677
      %v1807 = vmul.f32 %v1722, 0.70710677
      %v1808 = vmul.f32 %v1724, 0.70710677
      %v1809 = vmul.f32 %v1726, 0.70710677
      %v1810 = vmul.f32 %v1730, 0.70710677
      %v1811 = vmul.f32 %v1732, 0.70710677
      %v1812 = vmul.f32 %v1734, 0.70710677
      %v1813 = vmul.f32 %v1736, 0.70710677
      %v1814 = vmul.f32 %v1740, 0.70710677
      %v1815 = vmul.f32 %v1742, 0.70710677
      %v1816 = vmul.f32 %v1744, 0.70710677
      %v1817 = vmul.f32 %v1746, 0.70710677
      %v1818 = vmul.f32 %v1750, 0.70710677
      %v1819 = vmul.f32 %v1752, 0.70710677
      %v1820 = vmul.f32 %v1754, 0.70710677
      %v1821 = vmul.f32 %v1756, 0.70710677
      %v1822 = verf.f32.pop %v1790
      %v1823 = verf.f32.pop %v1791
      %v1824 = verf.f32.pop %v1792
      %v1825 = verf.f32.pop %v1793
      %v1826 = verf.f32.pop %v1794
      %v1827 = verf.f32.pop %v1795
      %v1828 = verf.f32.pop %v1796
      %v1829 = verf.f32.pop %v1797
      %v1830 = verf.f32.pop %v1798
      %v1831 = verf.f32.pop %v1799
      %v1832 = verf.f32.pop %v1800
      %v1833 = verf.f32.pop %v1801
      %v1834 = verf.f32.pop %v1802
      %v1835 = verf.f32.pop %v1803
      %v1836 = verf.f32.pop %v1804
      %v1837 = verf.f32.pop %v1805
      %v1838 = verf.f32.pop %v1806
      %v1839 = verf.f32.pop %v1807
      %v1840 = verf.f32.pop %v1808
      %v1841 = verf.f32.pop %v1809
      %v1842 = verf.f32.pop %v1810
      %v1843 = verf.f32.pop %v1811
      %v1844 = verf.f32.pop %v1812
      %v1845 = verf.f32.pop %v1813
      %v1846 = verf.f32.pop %v1814
      %v1847 = verf.f32.pop %v1815
      %v1848 = verf.f32.pop %v1816
      %v1849 = verf.f32.pop %v1817
      %v1850 = verf.f32.pop %v1818
      %v1851 = verf.f32.pop %v1819
      %v1852 = verf.f32.pop %v1820
      %v1853 = verf.f32.pop %v1821
      %v1854 = vadd.f32 %v1822, 1.0
      %v1855 = vadd.f32 %v1823, 1.0
      %v1856 = vadd.f32 %v1824, 1.0
      %v1857 = vadd.f32 %v1825, 1.0
      %v1858 = vadd.f32 %v1826, 1.0
      %v1859 = vadd.f32 %v1827, 1.0
      %v1860 = vadd.f32 %v1828, 1.0
      %v1861 = vadd.f32 %v1829, 1.0
      %v1862 = vadd.f32 %v1830, 1.0
      %v1863 = vadd.f32 %v1831, 1.0
      %v1864 = vadd.f32 %v1832, 1.0
      %v1865 = vadd.f32 %v1833, 1.0
      %v1866 = vadd.f32 %v1834, 1.0
      %v1867 = vadd.f32 %v1835, 1.0
      %v1868 = vadd.f32 %v1836, 1.0
      %v1869 = vadd.f32 %v1837, 1.0
      %v1870 = vadd.f32 %v1838, 1.0
      %v1871 = vadd.f32 %v1839, 1.0
      %v1872 = vadd.f32 %v1840, 1.0
      %v1873 = vadd.f32 %v1841, 1.0
      %v1874 = vadd.f32 %v1842, 1.0
      %v1875 = vadd.f32 %v1843, 1.0
      %v1876 = vadd.f32 %v1844, 1.0
      %v1877 = vadd.f32 %v1845, 1.0
      %v1878 = vadd.f32 %v1846, 1.0
      %v1879 = vadd.f32 %v1847, 1.0
      %v1880 = vadd.f32 %v1848, 1.0
      %v1881 = vadd.f32 %v1849, 1.0
      %v1882 = vadd.f32 %v1850, 1.0
      %v1883 = vadd.f32 %v1851, 1.0
      %v1884 = vadd.f32 %v1852, 1.0
      %v1885 = vadd.f32 %v1853, 1.0
      %v1886 = vmul.f32 %v1758, %v1854
      %v1887 = vmul.f32 %v1759, %v1855
      %v1888 = vmul.f32 %v1760, %v1856
      %v1889 = vmul.f32 %v1761, %v1857
      %v1890 = vmul.f32 %v1762, %v1858
      %v1891 = vmul.f32 %v1763, %v1859
      %v1892 = vmul.f32 %v1764, %v1860
      %v1893 = vmul.f32 %v1765, %v1861
      %v1894 = vmul.f32 %v1766, %v1862
      %v1895 = vmul.f32 %v1767, %v1863
      %v1896 = vmul.f32 %v1768, %v1864
      %v1897 = vmul.f32 %v1769, %v1865
      %v1898 = vmul.f32 %v1770, %v1866
      %v1899 = vmul.f32 %v1771, %v1867
      %v1900 = vmul.f32 %v1772, %v1868
      %v1901 = vmul.f32 %v1773, %v1869
      %v1902 = vmul.f32 %v1774, %v1870
      %v1903 = vmul.f32 %v1775, %v1871
      %v1904 = vmul.f32 %v1776, %v1872
      %v1905 = vmul.f32 %v1777, %v1873
      %v1906 = vmul.f32 %v1778, %v1874
      %v1907 = vmul.f32 %v1779, %v1875
      %v1908 = vmul.f32 %v1780, %v1876
      %v1909 = vmul.f32 %v1781, %v1877
      %v1910 = vmul.f32 %v1782, %v1878
      %v1911 = vmul.f32 %v1783, %v1879
      %v1912 = vmul.f32 %v1784, %v1880
      %v1913 = vmul.f32 %v1785, %v1881
      %v1914 = vmul.f32 %v1786, %v1882
      %v1915 = vmul.f32 %v1787, %v1883
      %v1916 = vmul.f32 %v1788, %v1884
      %v1917 = vmul.f32 %v1789, %v1885
      %v1918 = vld [vmem:[%s6] sm:$0xff]
      %v1919 = vld [vmem:[%s6 + $0x8] sm:$0xff]
      %v1920 = vld [vmem:[%s6 + $0x10] sm:$0xff]
      %v1921 = vld [vmem:[%s6 + $0x18] sm:$0xff]
      %v1922 = vld [vmem:[%s6 + $0x20] sm:$0xff]
      %v1923 = vld [vmem:[%s6 + $0x28] sm:$0xff]
      %v1924 = vld [vmem:[%s6 + $0x30] sm:$0xff]
      %v1925 = vld [vmem:[%s6 + $0x38] sm:$0xff]
      %v1926 = vld [vmem:[%s6 + $0x40] sm:$0xff]
      %v1927 = vld [vmem:[%s6 + $0x48] sm:$0xff]
      %v1928 = vld [vmem:[%s6 + $0x50] sm:$0xff]
      %v1929 = vld [vmem:[%s6 + $0x58] sm:$0xff]
      %v1930 = vld [vmem:[%s6 + $0x60] sm:$0xff]
      %v1931 = vld [vmem:[%s6 + $0x68] sm:$0xff]
      %v1932 = vld [vmem:[%s6 + $0x70] sm:$0xff]
      %v1933 = vld [vmem:[%s6 + $0x78] sm:$0xff]
      %v1934 = vld [vmem:[%s7] sm:$0xff]
      %v1935 = vld [vmem:[%s7 + $0x8] sm:$0xff]
      %v1936 = vld [vmem:[%s7 + $0x10] sm:$0xff]
      %v1937 = vld [vmem:[%s7 + $0x18] sm:$0xff]
      %v1938 = vld [vmem:[%s7 + $0x20] sm:$0xff]
      %v1939 = vld [vmem:[%s7 + $0x28] sm:$0xff]
      %v1940 = vld [vmem:[%s7 + $0x30] sm:$0xff]
      %v1941 = vld [vmem:[%s7 + $0x38] sm:$0xff]
      %v1942 = vld [vmem:[%s7 + $0x40] sm:$0xff]
      %v1943 = vld [vmem:[%s7 + $0x48] sm:$0xff]
      %v1944 = vld [vmem:[%s7 + $0x50] sm:$0xff]
      %v1945 = vld [vmem:[%s7 + $0x58] sm:$0xff]
      %v1946 = vld [vmem:[%s7 + $0x60] sm:$0xff]
      %v1947 = vld [vmem:[%s7 + $0x68] sm:$0xff]
      %v1948 = vld [vmem:[%s7 + $0x70] sm:$0xff]
      %v1949 = vld [vmem:[%s7 + $0x78] sm:$0xff]
      %v1950 = vld [vmem:[%s8] sm:$0x1]
      %v1951 = vld [vmem:[#allocation2] sm:$0x1]
      %v1952 = vpack.c.bf16 %v1919, %v1918
      %v1953 = vpack.c.bf16 %v1921, %v1920
      %v1954 = vpack.c.bf16 %v1923, %v1922
      %v1955 = vpack.c.bf16 %v1925, %v1924
      %v1956 = vpack.c.bf16 %v1927, %v1926
      %v1957 = vpack.c.bf16 %v1929, %v1928
      %v1958 = vpack.c.bf16 %v1931, %v1930
      %v1959 = vpack.c.bf16 %v1933, %v1932
      %v1960 = vpack.c.bf16 %v1888, %v1886
      %v1961 = vpack.c.bf16 %v1889, %v1887
      %v1962 = vpack.c.bf16 %v1892, %v1890
      %v1963 = vpack.c.bf16 %v1893, %v1891
      %1965 = vset.pattern.permute.xlu0 0
      %1966 = vperm.xlu0 %1965, %v1934
      %v1967 = vpop.permute.xlu0 %1966
      %1970 = vset.pattern.permute.xlu0 0
      %1971 = vperm.xlu0 %1970, %v1935
      %v1972 = vpop.permute.xlu0 %1971
      %1975 = vset.pattern.permute.xlu0 0
      %1976 = vperm.xlu0 %1975, %v1936
      %v1977 = vpop.permute.xlu0 %1976
      %1980 = vset.pattern.permute.xlu0 0
      %1981 = vperm.xlu0 %1980, %v1937
      %v1982 = vpop.permute.xlu0 %1981
      %1985 = vset.pattern.permute.xlu0 0
      %1986 = vperm.xlu0 %1985, %v1938
      %v1987 = vpop.permute.xlu0 %1986
      %1990 = vset.pattern.permute.xlu0 0
      %1991 = vperm.xlu0 %1990, %v1939
      %v1992 = vpop.permute.xlu0 %1991
      %1995 = vset.pattern.permute.xlu0 0
      %1996 = vperm.xlu0 %1995, %v1940
      %v1997 = vpop.permute.xlu0 %1996
      %2000 = vset.pattern.permute.xlu0 0
      %2001 = vperm.xlu0 %2000, %v1941
      %v2002 = vpop.permute.xlu0 %2001
      %2005 = vset.pattern.permute.xlu0 0
      %2006 = vperm.xlu0 %2005, %v1942
      %v2007 = vpop.permute.xlu0 %2006
      %2010 = vset.pattern.permute.xlu0 0
      %2011 = vperm.xlu0 %2010, %v1943
      %v2012 = vpop.permute.xlu0 %2011
      %2015 = vset.pattern.permute.xlu0 0
      %2016 = vperm.xlu0 %2015, %v1944
      %v2017 = vpop.permute.xlu0 %2016
      %2020 = vset.pattern.permute.xlu0 0
      %2021 = vperm.xlu0 %2020, %v1945
      %v2022 = vpop.permute.xlu0 %2021
      %2025 = vset.pattern.permute.xlu0 0
      %2026 = vperm.xlu0 %2025, %v1946
      %v2027 = vpop.permute.xlu0 %2026
      %2030 = vset.pattern.permute.xlu0 0
      %2031 = vperm.xlu0 %2030, %v1947
      %v2032 = vpop.permute.xlu0 %2031
      %2035 = vset.pattern.permute.xlu0 0
      %2036 = vperm.xlu0 %2035, %v1948
      %v2037 = vpop.permute.xlu0 %2036
      %2040 = vset.pattern.permute.xlu0 0
      %2041 = vperm.xlu0 %2040, %v1949
      %v2042 = vpop.permute.xlu0 %2041
      %vm2044 = vcmask 261120
      %v2046 = vsel %vm2044, %v1952, 0
      %v2049 = vsel %vm2044, %v1953, 0
      %v2052 = vsel %vm2044, %v1954, 0
      %v2055 = vsel %vm2044, %v1955, 0
      %v2058 = vsel %vm2044, %v1956, 0
      %v2061 = vsel %vm2044, %v1957, 0
      %v2064 = vsel %vm2044, %v1958, 0
      %v2067 = vsel %vm2044, %v1959, 0
      %2069 = vmatprep.subr.bf16.mxu0 %v1961
      %2070 = vmatpush1.bf16.msra.mxu0 %v1960
      %2071 = vmatprep.subr.bf16.mxu0 %v1963
      %2072 = vmatpush1.bf16.msra.mxu0 %v1962
      %2073 = vmatprep.subr.bf16.mxu0 0
      %2074 = vmatpush1.bf16.msra.mxu0 0
      %2075 = vmatprep.subr.bf16.mxu0 0
      %2076 = vmatpush1.bf16.msra.mxu0 0
      %2077 = vmatprep.subr.bf16.mxu0 0
      %2078 = vmatpush1.bf16.msra.mxu0 0
      %2079 = vmatprep.subr.bf16.mxu0 0
      %2080 = vmatpush1.bf16.msra.mxu0 0
      %2081 = vmatprep.subr.bf16.mxu0 0
      %2082 = vmatpush1.bf16.msra.mxu0 0
      %2083 = vmatprep.subr.bf16.mxu0 0
      %2084 = vmatpush1.bf16.msra.mxu0 0
      %2085 = vmatprep.subr.bf16.mxu0 0
      %2086 = vmatpush1.bf16.msra.mxu0 0
      %2087 = vmatprep.subr.bf16.mxu0 0
      %2088 = vmatpush1.bf16.msra.mxu0 0
      %2089 = vmatprep.subr.bf16.mxu0 0
      %2090 = vmatpush1.bf16.msra.mxu0 0
      %2091 = vmatprep.subr.bf16.mxu0 0
      %2092 = vmatpush1.bf16.msra.mxu0 0
      %2093 = vmatprep.subr.bf16.mxu0 0
      %2094 = vmatpush1.bf16.msra.mxu0 0
      %2095 = vmatprep.subr.bf16.mxu0 0
      %2096 = vmatpush1.bf16.msra.mxu0 0
      %2097 = vmatprep.subr.bf16.mxu0 0
      %2098 = vmatpush1.bf16.msra.mxu0 0
      %2099 = vmatprep.subr.bf16.mxu0 0
      %2100 = vmatpush1.bf16.msra.mxu0 0
      %2101 = vmatprep.mubr.bf16.mxu0 0
      %2102 = vmatmul.mubr.bf16.gmra.mrb[0].mxu0 %v2046
      %v2103 = vpop.f32.mrb[0].mxu0
      %v2104 = vadd.f32 %v1967, %v2103
      %v2105 = vpop.f32.mrb[0].mxu0
      %v2106 = vadd.f32 %v1967, %v2105
      %v2107 = vpop.f32.mrb[0].mxu0
      %v2108 = vadd.f32 %v1972, %v2107
      %v2109 = vpop.f32.mrb[0].mxu0
      %v2110 = vadd.f32 %v1972, %v2109
      %2111 = vmatprep.mubr.bf16.mxu0 0
      %2112 = vmatmul.mubr.bf16.gmra.mrb[0].mxu0 %v2049
      %v2113 = vpop.f32.mrb[0].mxu0
      %v2114 = vadd.f32 %v1977, %v2113
      %v2115 = vpop.f32.mrb[0].mxu0
      %v2116 = vadd.f32 %v1977, %v2115
      %v2117 = vpop.f32.mrb[0].mxu0
      %v2118 = vadd.f32 %v1982, %v2117
      %v2119 = vpop.f32.mrb[0].mxu0
      %v2120 = vadd.f32 %v1982, %v2119
      %2121 = vmatprep.mubr.bf16.mxu0 0
      %2122 = vmatmul.mubr.bf16.gmra.mrb[0].mxu0 %v2052
      %v2123 = vpop.f32.mrb[0].mxu0
      %v2124 = vadd.f32 %v1987, %v2123
      %v2125 = vpop.f32.mrb[0].mxu0
      %v2126 = vadd.f32 %v1987, %v2125
      %v2127 = vpop.f32.mrb[0].mxu0
      %v2128 = vadd.f32 %v1992, %v2127
      %v2129 = vpop.f32.mrb[0].mxu0
      %v2130 = vadd.f32 %v1992, %v2129
      %2131 = vmatprep.mubr.bf16.mxu0 0
      %2132 = vmatmul.mubr.bf16.gmra.mrb[0].mxu0 %v2055
      %v2133 = vpop.f32.mrb[0].mxu0
      %v2134 = vadd.f32 %v1997, %v2133
      %v2135 = vpop.f32.mrb[0].mxu0
      %v2136 = vadd.f32 %v1997, %v2135
      %v2137 = vpop.f32.mrb[0].mxu0
      %v2138 = vadd.f32 %v2002, %v2137
      %v2139 = vpop.f32.mrb[0].mxu0
      %v2140 = vadd.f32 %v2002, %v2139
      %2141 = vmatprep.mubr.bf16.mxu0 0
      %2142 = vmatmul.mubr.bf16.gmra.mrb[0].mxu0 %v2058
      %v2143 = vpop.f32.mrb[0].mxu0
      %v2144 = vadd.f32 %v2007, %v2143
      %v2145 = vpop.f32.mrb[0].mxu0
      %v2146 = vadd.f32 %v2007, %v2145
      %v2147 = vpop.f32.mrb[0].mxu0
      %v2148 = vadd.f32 %v2012, %v2147
      %v2149 = vpop.f32.mrb[0].mxu0
      %v2150 = vadd.f32 %v2012, %v2149
      %2151 = vmatprep.mubr.bf16.mxu0 0
      %2152 = vmatmul.mubr.bf16.gmra.mrb[0].mxu0 %v2061
      %v2153 = vpop.f32.mrb[0].mxu0
      %v2154 = vadd.f32 %v2017, %v2153
      %v2155 = vpop.f32.mrb[0].mxu0
      %v2156 = vadd.f32 %v2017, %v2155
      %v2157 = vpop.f32.mrb[0].mxu0
      %v2158 = vadd.f32 %v2022, %v2157
      %v2159 = vpop.f32.mrb[0].mxu0
      %v2160 = vadd.f32 %v2022, %v2159
      %2161 = vmatprep.mubr.bf16.mxu0 0
      %2162 = vmatmul.mubr.bf16.gmra.mrb[0].mxu0 %v2064
      %v2163 = vpop.f32.mrb[0].mxu0
      %v2164 = vadd.f32 %v2027, %v2163
      %v2165 = vpop.f32.mrb[0].mxu0
      %v2166 = vadd.f32 %v2027, %v2165
      %v2167 = vpop.f32.mrb[0].mxu0
      %v2168 = vadd.f32 %v2032, %v2167
      %v2169 = vpop.f32.mrb[0].mxu0
      %v2170 = vadd.f32 %v2032, %v2169
      %2171 = vmatprep.mubr.bf16.mxu0 0
      %2172 = vmatmul.mubr.bf16.gmra.mrb[0].mxu0 %v2067
      %v2173 = vpop.f32.mrb[0].mxu0
      %v2174 = vadd.f32 %v2037, %v2173
      %v2175 = vpop.f32.mrb[0].mxu0
      %v2176 = vadd.f32 %v2037, %v2175
      %v2177 = vpop.f32.mrb[0].mxu0
      %v2178 = vadd.f32 %v2042, %v2177
      %v2179 = vpop.f32.mrb[0].mxu0
      %v2180 = vadd.f32 %v2042, %v2179
      %2181 = vdwg.mxu0
      %v2182 = vmul.f32 %v2104, 0.5
      %v2183 = vmul.f32 %v2106, 0.5
      %v2184 = vmul.f32 %v2108, 0.5
      %v2185 = vmul.f32 %v2110, 0.5
      %v2186 = vmul.f32 %v2114, 0.5
      %v2187 = vmul.f32 %v2116, 0.5
      %v2188 = vmul.f32 %v2118, 0.5
      %v2189 = vmul.f32 %v2120, 0.5
      %v2190 = vmul.f32 %v2124, 0.5
      %v2191 = vmul.f32 %v2126, 0.5
      %v2192 = vmul.f32 %v2128, 0.5
      %v2193 = vmul.f32 %v2130, 0.5
      %v2194 = vmul.f32 %v2134, 0.5
      %v2195 = vmul.f32 %v2136, 0.5
      %v2196 = vmul.f32 %v2138, 0.5
      %v2197 = vmul.f32 %v2140, 0.5
      %v2198 = vmul.f32 %v2144, 0.5
      %v2199 = vmul.f32 %v2146, 0.5
      %v2200 = vmul.f32 %v2148, 0.5
      %v2201 = vmul.f32 %v2150, 0.5
      %v2202 = vmul.f32 %v2154, 0.5
      %v2203 = vmul.f32 %v2156, 0.5
      %v2204 = vmul.f32 %v2158, 0.5
      %v2205 = vmul.f32 %v2160, 0.5
      %v2206 = vmul.f32 %v2164, 0.5
      %v2207 = vmul.f32 %v2166, 0.5
      %v2208 = vmul.f32 %v2168, 0.5
      %v2209 = vmul.f32 %v2170, 0.5
      %v2210 = vmul.f32 %v2174, 0.5
      %v2211 = vmul.f32 %v2176, 0.5
      %v2212 = vmul.f32 %v2178, 0.5
      %v2213 = vmul.f32 %v2180, 0.5
      %v2214 = vmul.f32 %v2104, 0.70710677
      %v2215 = vmul.f32 %v2106, 0.70710677
      %v2216 = vmul.f32 %v2108, 0.70710677
      %v2217 = vmul.f32 %v2110, 0.70710677
      %v2218 = vmul.f32 %v2114, 0.70710677
      %v2219 = vmul.f32 %v2116, 0.70710677
      %v2220 = vmul.f32 %v2118, 0.70710677
      %v2221 = vmul.f32 %v2120, 0.70710677
      %v2222 = vmul.f32 %v2124, 0.70710677
      %v2223 = vmul.f32 %v2126, 0.70710677
      %v2224 = vmul.f32 %v2128, 0.70710677
      %v2225 = vmul.f32 %v2130, 0.70710677
      %v2226 = vmul.f32 %v2134, 0.70710677
      %v2227 = vmul.f32 %v2136, 0.70710677
      %v2228 = vmul.f32 %v2138, 0.70710677
      %v2229 = vmul.f32 %v2140, 0.70710677
      %v2230 = vmul.f32 %v2144, 0.70710677
      %v2231 = vmul.f32 %v2146, 0.70710677
      %v2232 = vmul.f32 %v2148, 0.70710677
      %v2233 = vmul.f32 %v2150, 0.70710677
      %v2234 = vmul.f32 %v2154, 0.70710677
      %v2235 = vmul.f32 %v2156, 0.70710677
      %v2236 = vmul.f32 %v2158, 0.70710677
      %v2237 = vmul.f32 %v2160, 0.70710677
      %v2238 = vmul.f32 %v2164, 0.70710677
      %v2239 = vmul.f32 %v2166, 0.70710677
      %v2240 = vmul.f32 %v2168, 0.70710677
      %v2241 = vmul.f32 %v2170, 0.70710677
      %v2242 = vmul.f32 %v2174, 0.70710677
      %v2243 = vmul.f32 %v2176, 0.70710677
      %v2244 = vmul.f32 %v2178, 0.70710677
      %v2245 = vmul.f32 %v2180, 0.70710677
      %v2246 = verf.f32.pop %v2214
      %v2247 = verf.f32.pop %v2215
      %v2248 = verf.f32.pop %v2216
      %v2249 = verf.f32.pop %v2217
      %v2250 = verf.f32.pop %v2218
      %v2251 = verf.f32.pop %v2219
      %v2252 = verf.f32.pop %v2220
      %v2253 = verf.f32.pop %v2221
      %v2254 = verf.f32.pop %v2222
      %v2255 = verf.f32.pop %v2223
      %v2256 = verf.f32.pop %v2224
      %v2257 = verf.f32.pop %v2225
      %v2258 = verf.f32.pop %v2226
      %v2259 = verf.f32.pop %v2227
      %v2260 = verf.f32.pop %v2228
      %v2261 = verf.f32.pop %v2229
      %v2262 = verf.f32.pop %v2230
      %v2263 = verf.f32.pop %v2231
      %v2264 = verf.f32.pop %v2232
      %v2265 = verf.f32.pop %v2233
      %v2266 = verf.f32.pop %v2234
      %v2267 = verf.f32.pop %v2235
      %v2268 = verf.f32.pop %v2236
      %v2269 = verf.f32.pop %v2237
      %v2270 = verf.f32.pop %v2238
      %v2271 = verf.f32.pop %v2239
      %v2272 = verf.f32.pop %v2240
      %v2273 = verf.f32.pop %v2241
      %v2274 = verf.f32.pop %v2242
      %v2275 = verf.f32.pop %v2243
      %v2276 = verf.f32.pop %v2244
      %v2277 = verf.f32.pop %v2245
      %v2278 = vadd.f32 %v2246, 1.0
      %v2279 = vadd.f32 %v2247, 1.0
      %v2280 = vadd.f32 %v2248, 1.0
      %v2281 = vadd.f32 %v2249, 1.0
      %v2282 = vadd.f32 %v2250, 1.0
      %v2283 = vadd.f32 %v2251, 1.0
      %v2284 = vadd.f32 %v2252, 1.0
      %v2285 = vadd.f32 %v2253, 1.0
      %v2286 = vadd.f32 %v2254, 1.0
      %v2287 = vadd.f32 %v2255, 1.0
      %v2288 = vadd.f32 %v2256, 1.0
      %v2289 = vadd.f32 %v2257, 1.0
      %v2290 = vadd.f32 %v2258, 1.0
      %v2291 = vadd.f32 %v2259, 1.0
      %v2292 = vadd.f32 %v2260, 1.0
      %v2293 = vadd.f32 %v2261, 1.0
      %v2294 = vadd.f32 %v2262, 1.0
      %v2295 = vadd.f32 %v2263, 1.0
      %v2296 = vadd.f32 %v2264, 1.0
      %v2297 = vadd.f32 %v2265, 1.0
      %v2298 = vadd.f32 %v2266, 1.0
      %v2299 = vadd.f32 %v2267, 1.0
      %v2300 = vadd.f32 %v2268, 1.0
      %v2301 = vadd.f32 %v2269, 1.0
      %v2302 = vadd.f32 %v2270, 1.0
      %v2303 = vadd.f32 %v2271, 1.0
      %v2304 = vadd.f32 %v2272, 1.0
      %v2305 = vadd.f32 %v2273, 1.0
      %v2306 = vadd.f32 %v2274, 1.0
      %v2307 = vadd.f32 %v2275, 1.0
      %v2308 = vadd.f32 %v2276, 1.0
      %v2309 = vadd.f32 %v2277, 1.0
      %v2310 = vmul.f32 %v2182, %v2278
      %v2311 = vmul.f32 %v2183, %v2279
      %v2312 = vmul.f32 %v2184, %v2280
      %v2313 = vmul.f32 %v2185, %v2281
      %v2314 = vmul.f32 %v2186, %v2282
      %v2315 = vmul.f32 %v2187, %v2283
      %v2316 = vmul.f32 %v2188, %v2284
      %v2317 = vmul.f32 %v2189, %v2285
      %v2318 = vmul.f32 %v2190, %v2286
      %v2319 = vmul.f32 %v2191, %v2287
      %v2320 = vmul.f32 %v2192, %v2288
      %v2321 = vmul.f32 %v2193, %v2289
      %v2322 = vmul.f32 %v2194, %v2290
      %v2323 = vmul.f32 %v2195, %v2291
      %v2324 = vmul.f32 %v2196, %v2292
      %v2325 = vmul.f32 %v2197, %v2293
      %v2326 = vmul.f32 %v2198, %v2294
      %v2327 = vmul.f32 %v2199, %v2295
      %v2328 = vmul.f32 %v2200, %v2296
      %v2329 = vmul.f32 %v2201, %v2297
      %v2330 = vmul.f32 %v2202, %v2298
      %v2331 = vmul.f32 %v2203, %v2299
      %v2332 = vmul.f32 %v2204, %v2300
      %v2333 = vmul.f32 %v2205, %v2301
      %v2334 = vmul.f32 %v2206, %v2302
      %v2335 = vmul.f32 %v2207, %v2303
      %v2336 = vmul.f32 %v2208, %v2304
      %v2337 = vmul.f32 %v2209, %v2305
      %v2338 = vmul.f32 %v2210, %v2306
      %v2339 = vmul.f32 %v2211, %v2307
      %v2340 = vmul.f32 %v2212, %v2308
      %v2341 = vmul.f32 %v2213, %v2309
      %2343 = vset.pattern.permute.xlu0 0
      %2344 = vperm.xlu0 %2343, %v1951
      %v2345 = vpop.permute.xlu0 %2344
      %v2347 = vlaneseq
      %v2348 = vshrl.u32 %v2347, 7
      %v2349 = vsub.s32 0, %v2348
      %v2350 = vrot.slane %v2345, %v2349
      %2351 = vmatprep.subr.mxu0 %v2311
      %2352 = vmatpush1.msra.mxu0 %v2310
      %2353 = vmatprep.subr.mxu0 %v2313
      %2354 = vmatpush1.msra.mxu0 %v2312
      %2355 = vmatprep.subr.mxu0 %v2315
      %2356 = vmatpush1.msra.mxu0 %v2314
      %2357 = vmatprep.subr.mxu0 %v2317
      %2358 = vmatpush1.msra.mxu0 %v2316
      %2359 = vmatprep.subr.mxu0 %v2319
      %2360 = vmatpush1.msra.mxu0 %v2318
      %2361 = vmatprep.subr.mxu0 %v2321
      %2362 = vmatpush1.msra.mxu0 %v2320
      %2363 = vmatprep.subr.mxu0 %v2323
      %2364 = vmatpush1.msra.mxu0 %v2322
      %2365 = vmatprep.subr.mxu0 %v2325
      %2366 = vmatpush1.msra.mxu0 %v2324
      %2367 = vmatprep.subr.mxu0 %v2327
      %2368 = vmatpush1.msra.mxu0 %v2326
      %2369 = vmatprep.subr.mxu0 %v2329
      %2370 = vmatpush1.msra.mxu0 %v2328
      %2371 = vmatprep.subr.mxu0 %v2331
      %2372 = vmatpush1.msra.mxu0 %v2330
      %2373 = vmatprep.subr.mxu0 %v2333
      %2374 = vmatpush1.msra.mxu0 %v2332
      %2375 = vmatprep.subr.mxu0 %v2335
      %2376 = vmatpush1.msra.mxu0 %v2334
      %2377 = vmatprep.subr.mxu0 %v2337
      %2378 = vmatpush1.msra.mxu0 %v2336
      %2379 = vmatprep.subr.mxu0 %v2339
      %2380 = vmatpush1.msra.mxu0 %v2338
      %2381 = vmatprep.subr.mxu0 %v2341
      %2382 = vmatpush1.msra.mxu0 %v2340
      %2383 = vmatprep.subr.mxu0 0.0
      %2384 = vmatpush1.msra.mxu0 0.0
      %2385 = vmatprep.subr.mxu0 0.0
      %2386 = vmatpush1.msra.mxu0 0.0
      %2387 = vmatprep.subr.mxu0 0.0
      %2388 = vmatpush1.msra.mxu0 0.0
      %2389 = vmatprep.subr.mxu0 0.0
      %2390 = vmatpush1.msra.mxu0 0.0
      %2391 = vmatprep.subr.mxu0 0.0
      %2392 = vmatpush1.msra.mxu0 0.0
      %2393 = vmatprep.subr.mxu0 0.0
      %2394 = vmatpush1.msra.mxu0 0.0
      %2395 = vmatprep.subr.mxu0 0.0
      %2396 = vmatpush1.msra.mxu0 0.0
      %2397 = vmatprep.subr.mxu0 0.0
      %2398 = vmatpush1.msra.mxu0 0.0
      %2399 = vmatprep.subr.mxu0 0.0
      %2400 = vmatpush1.msra.mxu0 0.0
      %2401 = vmatprep.subr.mxu0 0.0
      %2402 = vmatpush1.msra.mxu0 0.0
      %2403 = vmatprep.subr.mxu0 0.0
      %2404 = vmatpush1.msra.mxu0 0.0
      %2405 = vmatprep.subr.mxu0 0.0
      %2406 = vmatpush1.msra.mxu0 0.0
      %2407 = vmatprep.subr.mxu0 0.0
      %2408 = vmatpush1.msra.mxu0 0.0
      %2409 = vmatprep.subr.mxu0 0.0
      %2410 = vmatpush1.msra.mxu0 0.0
      %2411 = vmatprep.subr.mxu0 0.0
      %2412 = vmatpush1.msra.mxu0 0.0
      %2413 = vmatprep.subr.mxu0 0.0
      %2414 = vmatpush1.msra.mxu0 0.0
      %2415 = vmatprep.mubr.f32.mxu0 0.0
      %2416 = vmatmul.mubr.f32.gmra.mrb[0].mxu0 %v1950
      %v2417 = vpop.f32.mrb[0].mxu0
      %v2418 = vadd.f32 %v2350, %v2417
      %v2419 = vpop.f32.mrb[0].mxu0
      %v2420 = vadd.f32 %v2350, %v2419
      %2421 = vdwg.mxu0
      %v2424 = vcombine.low %v2418, %v2420
      %v2426 = vunpack.c.l.s4 1966171168
      %v2427 = vunpack.c.0.s8 %v2426
      %v2428 = vlaneseq
      %v2429 = vshrl.u32 %v2428, 7
      %v2430 = vsub.s32 %v2427, %v2429
      %v2431 = vrot.slane %v2424, %v2430
      %v2433 = vunpack.c.l.s4 1966171168
      %v2434 = vunpack.c.0.s8 %v2433
      %v2435 = vlaneseq
      %v2436 = vshrl.u32 %v2435, 7
      %v2437 = vsub.s32 %v2434, %v2436
      %v2438 = vrot.slane %v2431, %v2437
      %v2440 = vlaneseq
      %vm2441 = vcmp.ge.s32.totalorder %v2440, 0
      %vm2442 = vcmp.lt.s32.totalorder %v2440, 256
      %vm2443 = vmand %vm2441, %vm2442
      %2444 = vst.msk [vmem:[%s366] sm:$0x3] %vm2443, %v2438
      %v2445 = vpack.c.bf16 %v1896, %v1894
      %v2446 = vpack.c.bf16 %v1897, %v1895
      %v2447 = vpack.c.bf16 %v1900, %v1898
      %v2448 = vpack.c.bf16 %v1901, %v1899
      %2449 = vmatprep.subr.bf16.mxu0 %v2446
      %2450 = vmatpush1.bf16.msra.mxu0 %v2445
      %2451 = vmatprep.subr.bf16.mxu0 %v2448
      %2452 = vmatpush1.bf16.msra.mxu0 %v2447
      %2453 = vmatprep.subr.bf16.mxu0 0
      %2454 = vmatpush1.bf16.msra.mxu0 0
      %2455 = vmatprep.subr.bf16.mxu0 0
      %2456 = vmatpush1.bf16.msra.mxu0 0
      %2457 = vmatprep.subr.bf16.mxu0 0
      %2458 = vmatpush1.bf16.msra.mxu0 0
      %2459 = vmatprep.subr.bf16.mxu0 0
      %2460 = vmatpush1.bf16.msra.mxu0 0
      %2461 = vmatprep.subr.bf16.mxu0 0
      %2462 = vmatpush1.bf16.msra.mxu0 0
      %2463 = vmatprep.subr.bf16.mxu0 0
      %2464 = vmatpush1.bf16.msra.mxu0 0
      %2465 = vmatprep.subr.bf16.mxu0 0
      %2466 = vmatpush1.bf16.msra.mxu0 0
      %2467 = vmatprep.subr.bf16.mxu0 0
      %2468 = vmatpush1.bf16.msra.mxu0 0
      %2469 = vmatprep.subr.bf16.mxu0 0
      %2470 = vmatpush1.bf16.msra.mxu0 0
      %2471 = vmatprep.subr.bf16.mxu0 0
      %2472 = vmatpush1.bf16.msra.mxu0 0
      %2473 = vmatprep.subr.bf16.mxu0 0
      %2474 = vmatpush1.bf16.msra.mxu0 0
      %2475 = vmatprep.subr.bf16.mxu0 0
      %2476 = vmatpush1.bf16.msra.mxu0 0
      %2477 = vmatprep.subr.bf16.mxu0 0
      %2478 = vmatpush1.bf16.msra.mxu0 0
      %2479 = vmatprep.subr.bf16.mxu0 0
      %2480 = vmatpush1.bf16.msra.mxu0 0
      %2481 = vmatprep.mubr.bf16.mxu0 0
      %2482 = vmatmul.mubr.bf16.gmra.mrb[0].mxu0 %v2046
      %v2483 = vpop.f32.mrb[0].mxu0
      %v2484 = vadd.f32 %v1967, %v2483
      %v2485 = vpop.f32.mrb[0].mxu0
      %v2486 = vadd.f32 %v1967, %v2485
      %v2487 = vpop.f32.mrb[0].mxu0
      %v2488 = vadd.f32 %v1972, %v2487
      %v2489 = vpop.f32.mrb[0].mxu0
      %v2490 = vadd.f32 %v1972, %v2489
      %2491 = vmatprep.mubr.bf16.mxu0 0
      %2492 = vmatmul.mubr.bf16.gmra.mrb[0].mxu0 %v2049
      %v2493 = vpop.f32.mrb[0].mxu0
      %v2494 = vadd.f32 %v1977, %v2493
      %v2495 = vpop.f32.mrb[0].mxu0
      %v2496 = vadd.f32 %v1977, %v2495
      %v2497 = vpop.f32.mrb[0].mxu0
      %v2498 = vadd.f32 %v1982, %v2497
      %v2499 = vpop.f32.mrb[0].mxu0
      %v2500 = vadd.f32 %v1982, %v2499
      %2501 = vmatprep.mubr.bf16.mxu0 0
      %2502 = vmatmul.mubr.bf16.gmra.mrb[0].mxu0 %v2052
      %v2503 = vpop.f32.mrb[0].mxu0
      %v2504 = vadd.f32 %v1987, %v2503
      %v2505 = vpop.f32.mrb[0].mxu0
      %v2506 = vadd.f32 %v1987, %v2505
      %v2507 = vpop.f32.mrb[0].mxu0
      %v2508 = vadd.f32 %v1992, %v2507
      %v2509 = vpop.f32.mrb[0].mxu0
      %v2510 = vadd.f32 %v1992, %v2509
      %2511 = vmatprep.mubr.bf16.mxu0 0
      %2512 = vmatmul.mubr.bf16.gmra.mrb[0].mxu0 %v2055
      %v2513 = vpop.f32.mrb[0].mxu0
      %v2514 = vadd.f32 %v1997, %v2513
      %v2515 = vpop.f32.mrb[0].mxu0
      %v2516 = vadd.f32 %v1997, %v2515
      %v2517 = vpop.f32.mrb[0].mxu0
      %v2518 = vadd.f32 %v2002, %v2517
      %v2519 = vpop.f32.mrb[0].mxu0
      %v2520 = vadd.f32 %v2002, %v2519
      %2521 = vmatprep.mubr.bf16.mxu0 0
      %2522 = vmatmul.mubr.bf16.gmra.mrb[0].mxu0 %v2058
      %v2523 = vpop.f32.mrb[0].mxu0
      %v2524 = vadd.f32 %v2007, %v2523
      %v2525 = vpop.f32.mrb[0].mxu0
      %v2526 = vadd.f32 %v2007, %v2525
      %v2527 = vpop.f32.mrb[0].mxu0
      %v2528 = vadd.f32 %v2012, %v2527
      %v2529 = vpop.f32.mrb[0].mxu0
      %v2530 = vadd.f32 %v2012, %v2529
      %2531 = vmatprep.mubr.bf16.mxu0 0
      %2532 = vmatmul.mubr.bf16.gmra.mrb[0].mxu0 %v2061
      %v2533 = vpop.f32.mrb[0].mxu0
      %v2534 = vadd.f32 %v2017, %v2533
      %v2535 = vpop.f32.mrb[0].mxu0
      %v2536 = vadd.f32 %v2017, %v2535
      %v2537 = vpop.f32.mrb[0].mxu0
      %v2538 = vadd.f32 %v2022, %v2537
      %v2539 = vpop.f32.mrb[0].mxu0
      %v2540 = vadd.f32 %v2022, %v2539
      %2541 = vmatprep.mubr.bf16.mxu0 0
      %2542 = vmatmul.mubr.bf16.gmra.mrb[0].mxu0 %v2064
      %v2543 = vpop.f32.mrb[0].mxu0
      %v2544 = vadd.f32 %v2027, %v2543
      %v2545 = vpop.f32.mrb[0].mxu0
      %v2546 = vadd.f32 %v2027, %v2545
      %v2547 = vpop.f32.mrb[0].mxu0
      %v2548 = vadd.f32 %v2032, %v2547
      %v2549 = vpop.f32.mrb[0].mxu0
      %v2550 = vadd.f32 %v2032, %v2549
      %2551 = vmatprep.mubr.bf16.mxu0 0
      %2552 = vmatmul.mubr.bf16.gmra.mrb[0].mxu0 %v2067
      %v2553 = vpop.f32.mrb[0].mxu0
      %v2554 = vadd.f32 %v2037, %v2553
      %v2555 = vpop.f32.mrb[0].mxu0
      %v2556 = vadd.f32 %v2037, %v2555
      %v2557 = vpop.f32.mrb[0].mxu0
      %v2558 = vadd.f32 %v2042, %v2557
      %v2559 = vpop.f32.mrb[0].mxu0
      %v2560 = vadd.f32 %v2042, %v2559
      %2561 = vdwg.mxu0
      %v2562 = vmul.f32 %v2484, 0.5
      %v2563 = vmul.f32 %v2486, 0.5
      %v2564 = vmul.f32 %v2488, 0.5
      %v2565 = vmul.f32 %v2490, 0.5
      %v2566 = vmul.f32 %v2494, 0.5
      %v2567 = vmul.f32 %v2496, 0.5
      %v2568 = vmul.f32 %v2498, 0.5
      %v2569 = vmul.f32 %v2500, 0.5
      %v2570 = vmul.f32 %v2504, 0.5
      %v2571 = vmul.f32 %v2506, 0.5
      %v2572 = vmul.f32 %v2508, 0.5
      %v2573 = vmul.f32 %v2510, 0.5
      %v2574 = vmul.f32 %v2514, 0.5
      %v2575 = vmul.f32 %v2516, 0.5
      %v2576 = vmul.f32 %v2518, 0.5
      %v2577 = vmul.f32 %v2520, 0.5
      %v2578 = vmul.f32 %v2524, 0.5
      %v2579 = vmul.f32 %v2526, 0.5
      %v2580 = vmul.f32 %v2528, 0.5
      %v2581 = vmul.f32 %v2530, 0.5
      %v2582 = vmul.f32 %v2534, 0.5
      %v2583 = vmul.f32 %v2536, 0.5
      %v2584 = vmul.f32 %v2538, 0.5
      %v2585 = vmul.f32 %v2540, 0.5
      %v2586 = vmul.f32 %v2544, 0.5
      %v2587 = vmul.f32 %v2546, 0.5
      %v2588 = vmul.f32 %v2548, 0.5
      %v2589 = vmul.f32 %v2550, 0.5
      %v2590 = vmul.f32 %v2554, 0.5
      %v2591 = vmul.f32 %v2556, 0.5
      %v2592 = vmul.f32 %v2558, 0.5
      %v2593 = vmul.f32 %v2560, 0.5
      %v2594 = vmul.f32 %v2484, 0.70710677
      %v2595 = vmul.f32 %v2486, 0.70710677
      %v2596 = vmul.f32 %v2488, 0.70710677
      %v2597 = vmul.f32 %v2490, 0.70710677
      %v2598 = vmul.f32 %v2494, 0.70710677
      %v2599 = vmul.f32 %v2496, 0.70710677
      %v2600 = vmul.f32 %v2498, 0.70710677
      %v2601 = vmul.f32 %v2500, 0.70710677
      %v2602 = vmul.f32 %v2504, 0.70710677
      %v2603 = vmul.f32 %v2506, 0.70710677
      %v2604 = vmul.f32 %v2508, 0.70710677
      %v2605 = vmul.f32 %v2510, 0.70710677
      %v2606 = vmul.f32 %v2514, 0.70710677
      %v2607 = vmul.f32 %v2516, 0.70710677
      %v2608 = vmul.f32 %v2518, 0.70710677
      %v2609 = vmul.f32 %v2520, 0.70710677
      %v2610 = vmul.f32 %v2524, 0.70710677
      %v2611 = vmul.f32 %v2526, 0.70710677
      %v2612 = vmul.f32 %v2528, 0.70710677
      %v2613 = vmul.f32 %v2530, 0.70710677
      %v2614 = vmul.f32 %v2534, 0.70710677
      %v2615 = vmul.f32 %v2536, 0.70710677
      %v2616 = vmul.f32 %v2538, 0.70710677
      %v2617 = vmul.f32 %v2540, 0.70710677
      %v2618 = vmul.f32 %v2544, 0.70710677
      %v2619 = vmul.f32 %v2546, 0.70710677
      %v2620 = vmul.f32 %v2548, 0.70710677
      %v2621 = vmul.f32 %v2550, 0.70710677
      %v2622 = vmul.f32 %v2554, 0.70710677
      %v2623 = vmul.f32 %v2556, 0.70710677
      %v2624 = vmul.f32 %v2558, 0.70710677
      %v2625 = vmul.f32 %v2560, 0.70710677
      %v2626 = verf.f32.pop %v2594
      %v2627 = verf.f32.pop %v2595
      %v2628 = verf.f32.pop %v2596
      %v2629 = verf.f32.pop %v2597
      %v2630 = verf.f32.pop %v2598
      %v2631 = verf.f32.pop %v2599
      %v2632 = verf.f32.pop %v2600
      %v2633 = verf.f32.pop %v2601
      %v2634 = verf.f32.pop %v2602
      %v2635 = verf.f32.pop %v2603
      %v2636 = verf.f32.pop %v2604
      %v2637 = verf.f32.pop %v2605
      %v2638 = verf.f32.pop %v2606
      %v2639 = verf.f32.pop %v2607
      %v2640 = verf.f32.pop %v2608
      %v2641 = verf.f32.pop %v2609
      %v2642 = verf.f32.pop %v2610
      %v2643 = verf.f32.pop %v2611
      %v2644 = verf.f32.pop %v2612
      %v2645 = verf.f32.pop %v2613
      %v2646 = verf.f32.pop %v2614
      %v2647 = verf.f32.pop %v2615
      %v2648 = verf.f32.pop %v2616
      %v2649 = verf.f32.pop %v2617
      %v2650 = verf.f32.pop %v2618
      %v2651 = verf.f32.pop %v2619
      %v2652 = verf.f32.pop %v2620
      %v2653 = verf.f32.pop %v2621
      %v2654 = verf.f32.pop %v2622
      %v2655 = verf.f32.pop %v2623
      %v2656 = verf.f32.pop %v2624
      %v2657 = verf.f32.pop %v2625
      %v2658 = vadd.f32 %v2626, 1.0
      %v2659 = vadd.f32 %v2627, 1.0
      %v2660 = vadd.f32 %v2628, 1.0
      %v2661 = vadd.f32 %v2629, 1.0
      %v2662 = vadd.f32 %v2630, 1.0
      %v2663 = vadd.f32 %v2631, 1.0
      %v2664 = vadd.f32 %v2632, 1.0
      %v2665 = vadd.f32 %v2633, 1.0
      %v2666 = vadd.f32 %v2634, 1.0
      %v2667 = vadd.f32 %v2635, 1.0
      %v2668 = vadd.f32 %v2636, 1.0
      %v2669 = vadd.f32 %v2637, 1.0
      %v2670 = vadd.f32 %v2638, 1.0
      %v2671 = vadd.f32 %v2639, 1.0
      %v2672 = vadd.f32 %v2640, 1.0
      %v2673 = vadd.f32 %v2641, 1.0
      %v2674 = vadd.f32 %v2642, 1.0
      %v2675 = vadd.f32 %v2643, 1.0
      %v2676 = vadd.f32 %v2644, 1.0
      %v2677 = vadd.f32 %v2645, 1.0
      %v2678 = vadd.f32 %v2646, 1.0
      %v2679 = vadd.f32 %v2647, 1.0
      %v2680 = vadd.f32 %v2648, 1.0
      %v2681 = vadd.f32 %v2649, 1.0
      %v2682 = vadd.f32 %v2650, 1.0
      %v2683 = vadd.f32 %v2651, 1.0
      %v2684 = vadd.f32 %v2652, 1.0
      %v2685 = vadd.f32 %v2653, 1.0
      %v2686 = vadd.f32 %v2654, 1.0
      %v2687 = vadd.f32 %v2655, 1.0
      %v2688 = vadd.f32 %v2656, 1.0
      %v2689 = vadd.f32 %v2657, 1.0
      %v2690 = vmul.f32 %v2562, %v2658
      %v2691 = vmul.f32 %v2563, %v2659
      %v2692 = vmul.f32 %v2564, %v2660
      %v2693 = vmul.f32 %v2565, %v2661
      %v2694 = vmul.f32 %v2566, %v2662
      %v2695 = vmul.f32 %v2567, %v2663
      %v2696 = vmul.f32 %v2568, %v2664
      %v2697 = vmul.f32 %v2569, %v2665
      %v2698 = vmul.f32 %v2570, %v2666
      %v2699 = vmul.f32 %v2571, %v2667
      %v2700 = vmul.f32 %v2572, %v2668
      %v2701 = vmul.f32 %v2573, %v2669
      %v2702 = vmul.f32 %v2574, %v2670
      %v2703 = vmul.f32 %v2575, %v2671
      %v2704 = vmul.f32 %v2576, %v2672
      %v2705 = vmul.f32 %v2577, %v2673
      %v2706 = vmul.f32 %v2578, %v2674
      %v2707 = vmul.f32 %v2579, %v2675
      %v2708 = vmul.f32 %v2580, %v2676
      %v2709 = vmul.f32 %v2581, %v2677
      %v2710 = vmul.f32 %v2582, %v2678
      %v2711 = vmul.f32 %v2583, %v2679
      %v2712 = vmul.f32 %v2584, %v2680
      %v2713 = vmul.f32 %v2585, %v2681
      %v2714 = vmul.f32 %v2586, %v2682
      %v2715 = vmul.f32 %v2587, %v2683
      %v2716 = vmul.f32 %v2588, %v2684
      %v2717 = vmul.f32 %v2589, %v2685
      %v2718 = vmul.f32 %v2590, %v2686
      %v2719 = vmul.f32 %v2591, %v2687
      %v2720 = vmul.f32 %v2592, %v2688
      %v2721 = vmul.f32 %v2593, %v2689
      %2722 = vmatprep.subr.mxu0 %v2691
      %2723 = vmatpush1.msra.mxu0 %v2690
      %2724 = vmatprep.subr.mxu0 %v2693
      %2725 = vmatpush1.msra.mxu0 %v2692
      %2726 = vmatprep.subr.mxu0 %v2695
      %2727 = vmatpush1.msra.mxu0 %v2694
      %2728 = vmatprep.subr.mxu0 %v2697
      %2729 = vmatpush1.msra.mxu0 %v2696
      %2730 = vmatprep.subr.mxu0 %v2699
      %2731 = vmatpush1.msra.mxu0 %v2698
      %2732 = vmatprep.subr.mxu0 %v2701
      %2733 = vmatpush1.msra.mxu0 %v2700
      %2734 = vmatprep.subr.mxu0 %v2703
      %2735 = vmatpush1.msra.mxu0 %v2702
      %2736 = vmatprep.subr.mxu0 %v2705
      %2737 = vmatpush1.msra.mxu0 %v2704
      %2738 = vmatprep.subr.mxu0 %v2707
      %2739 = vmatpush1.msra.mxu0 %v2706
      %2740 = vmatprep.subr.mxu0 %v2709
      %2741 = vmatpush1.msra.mxu0 %v2708
      %2742 = vmatprep.subr.mxu0 %v2711
      %2743 = vmatpush1.msra.mxu0 %v2710
      %2744 = vmatprep.subr.mxu0 %v2713
      %2745 = vmatpush1.msra.mxu0 %v2712
      %2746 = vmatprep.subr.mxu0 %v2715
      %2747 = vmatpush1.msra.mxu0 %v2714
      %2748 = vmatprep.subr.mxu0 %v2717
      %2749 = vmatpush1.msra.mxu0 %v2716
      %2750 = vmatprep.subr.mxu0 %v2719
      %2751 = vmatpush1.msra.mxu0 %v2718
      %2752 = vmatprep.subr.mxu0 %v2721
      %2753 = vmatpush1.msra.mxu0 %v2720
      %2754 = vmatprep.subr.mxu0 0.0
      %2755 = vmatpush1.msra.mxu0 0.0
      %2756 = vmatprep.subr.mxu0 0.0
      %2757 = vmatpush1.msra.mxu0 0.0
      %2758 = vmatprep.subr.mxu0 0.0
      %2759 = vmatpush1.msra.mxu0 0.0
      %2760 = vmatprep.subr.mxu0 0.0
      %2761 = vmatpush1.msra.mxu0 0.0
      %2762 = vmatprep.subr.mxu0 0.0
      %2763 = vmatpush1.msra.mxu0 0.0
      %2764 = vmatprep.subr.mxu0 0.0
      %2765 = vmatpush1.msra.mxu0 0.0
      %2766 = vmatprep.subr.mxu0 0.0
      %2767 = vmatpush1.msra.mxu0 0.0
      %2768 = vmatprep.subr.mxu0 0.0
      %2769 = vmatpush1.msra.mxu0 0.0
      %2770 = vmatprep.subr.mxu0 0.0
      %2771 = vmatpush1.msra.mxu0 0.0
      %2772 = vmatprep.subr.mxu0 0.0
      %2773 = vmatpush1.msra.mxu0 0.0
      %2774 = vmatprep.subr.mxu0 0.0
      %2775 = vmatpush1.msra.mxu0 0.0
      %2776 = vmatprep.subr.mxu0 0.0
      %2777 = vmatpush1.msra.mxu0 0.0
      %2778 = vmatprep.subr.mxu0 0.0
      %2779 = vmatpush1.msra.mxu0 0.0
      %2780 = vmatprep.subr.mxu0 0.0
      %2781 = vmatpush1.msra.mxu0 0.0
      %2782 = vmatprep.subr.mxu0 0.0
      %2783 = vmatpush1.msra.mxu0 0.0
      %2784 = vmatprep.subr.mxu0 0.0
      %2785 = vmatpush1.msra.mxu0 0.0
      %2786 = vmatprep.mubr.f32.mxu0 0.0
      %2787 = vmatmul.mubr.f32.gmra.mrb[0].mxu0 %v1950
      %v2788 = vpop.f32.mrb[0].mxu0
      %v2789 = vadd.f32 %v2350, %v2788
      %v2790 = vpop.f32.mrb[0].mxu0
      %v2791 = vadd.f32 %v2350, %v2790
      %2792 = vdwg.mxu0
      %v2795 = vcombine.low %v2789, %v2791
      %v2797 = vunpack.c.l.s4 1966171168
      %v2798 = vunpack.c.0.s8 %v2797
      %v2799 = vlaneseq
      %v2800 = vshrl.u32 %v2799, 7
      %v2801 = vsub.s32 %v2798, %v2800
      %v2802 = vrot.slane %v2795, %v2801
      %v2804 = vunpack.c.l.s4 1966171168
      %v2805 = vunpack.c.0.s8 %v2804
      %v2806 = vlaneseq
      %v2807 = vshrl.u32 %v2806, 7
      %v2808 = vsub.s32 %v2805, %v2807
      %v2809 = vrot.slane %v2802, %v2808
      %s2811 = scalar_lea.vmem %s366, 2
      %2812 = vst.msk [vmem:[%s2811] sm:$0x3] %vm2443, %v2809
      %v2813 = vpack.c.bf16 %v1904, %v1902
      %v2814 = vpack.c.bf16 %v1905, %v1903
      %v2815 = vpack.c.bf16 %v1908, %v1906
      %v2816 = vpack.c.bf16 %v1909, %v1907
      %2817 = vmatprep.subr.bf16.mxu0 %v2814
      %2818 = vmatpush1.bf16.msra.mxu0 %v2813
      %2819 = vmatprep.subr.bf16.mxu0 %v2816
      %2820 = vmatpush1.bf16.msra.mxu0 %v2815
      %2821 = vmatprep.subr.bf16.mxu0 0
      %2822 = vmatpush1.bf16.msra.mxu0 0
      %2823 = vmatprep.subr.bf16.mxu0 0
      %2824 = vmatpush1.bf16.msra.mxu0 0
      %2825 = vmatprep.subr.bf16.mxu0 0
      %2826 = vmatpush1.bf16.msra.mxu0 0
      %2827 = vmatprep.subr.bf16.mxu0 0
      %2828 = vmatpush1.bf16.msra.mxu0 0
      %2829 = vmatprep.subr.bf16.mxu0 0
      %2830 = vmatpush1.bf16.msra.mxu0 0
      %2831 = vmatprep.subr.bf16.mxu0 0
      %2832 = vmatpush1.bf16.msra.mxu0 0
      %2833 = vmatprep.subr.bf16.mxu0 0
      %2834 = vmatpush1.bf16.msra.mxu0 0
      %2835 = vmatprep.subr.bf16.mxu0 0
      %2836 = vmatpush1.bf16.msra.mxu0 0
      %2837 = vmatprep.subr.bf16.mxu0 0
      %2838 = vmatpush1.bf16.msra.mxu0 0
      %2839 = vmatprep.subr.bf16.mxu0 0
      %2840 = vmatpush1.bf16.msra.mxu0 0
      %2841 = vmatprep.subr.bf16.mxu0 0
      %2842 = vmatpush1.bf16.msra.mxu0 0
      %2843 = vmatprep.subr.bf16.mxu0 0
      %2844 = vmatpush1.bf16.msra.mxu0 0
      %2845 = vmatprep.subr.bf16.mxu0 0
      %2846 = vmatpush1.bf16.msra.mxu0 0
      %2847 = vmatprep.subr.bf16.mxu0 0
      %2848 = vmatpush1.bf16.msra.mxu0 0
      %2849 = vmatprep.mubr.bf16.mxu0 0
      %2850 = vmatmul.mubr.bf16.gmra.mrb[0].mxu0 %v2046
      %v2851 = vpop.f32.mrb[0].mxu0
      %v2852 = vadd.f32 %v1967, %v2851
      %v2853 = vpop.f32.mrb[0].mxu0
      %v2854 = vadd.f32 %v1967, %v2853
      %v2855 = vpop.f32.mrb[0].mxu0
      %v2856 = vadd.f32 %v1972, %v2855
      %v2857 = vpop.f32.mrb[0].mxu0
      %v2858 = vadd.f32 %v1972, %v2857
      %2859 = vmatprep.mubr.bf16.mxu0 0
      %2860 = vmatmul.mubr.bf16.gmra.mrb[0].mxu0 %v2049
      %v2861 = vpop.f32.mrb[0].mxu0
      %v2862 = vadd.f32 %v1977, %v2861
      %v2863 = vpop.f32.mrb[0].mxu0
      %v2864 = vadd.f32 %v1977, %v2863
      %v2865 = vpop.f32.mrb[0].mxu0
      %v2866 = vadd.f32 %v1982, %v2865
      %v2867 = vpop.f32.mrb[0].mxu0
      %v2868 = vadd.f32 %v1982, %v2867
      %2869 = vmatprep.mubr.bf16.mxu0 0
      %2870 = vmatmul.mubr.bf16.gmra.mrb[0].mxu0 %v2052
      %v2871 = vpop.f32.mrb[0].mxu0
      %v2872 = vadd.f32 %v1987, %v2871
      %v2873 = vpop.f32.mrb[0].mxu0
      %v2874 = vadd.f32 %v1987, %v2873
      %v2875 = vpop.f32.mrb[0].mxu0
      %v2876 = vadd.f32 %v1992, %v2875
      %v2877 = vpop.f32.mrb[0].mxu0
      %v2878 = vadd.f32 %v1992, %v2877
      %2879 = vmatprep.mubr.bf16.mxu0 0
      %2880 = vmatmul.mubr.bf16.gmra.mrb[0].mxu0 %v2055
      %v2881 = vpop.f32.mrb[0].mxu0
      %v2882 = vadd.f32 %v1997, %v2881
      %v2883 = vpop.f32.mrb[0].mxu0
      %v2884 = vadd.f32 %v1997, %v2883
      %v2885 = vpop.f32.mrb[0].mxu0
      %v2886 = vadd.f32 %v2002, %v2885
      %v2887 = vpop.f32.mrb[0].mxu0
      %v2888 = vadd.f32 %v2002, %v2887
      %2889 = vmatprep.mubr.bf16.mxu0 0
      %2890 = vmatmul.mubr.bf16.gmra.mrb[0].mxu0 %v2058
      %v2891 = vpop.f32.mrb[0].mxu0
      %v2892 = vadd.f32 %v2007, %v2891
      %v2893 = vpop.f32.mrb[0].mxu0
      %v2894 = vadd.f32 %v2007, %v2893
      %v2895 = vpop.f32.mrb[0].mxu0
      %v2896 = vadd.f32 %v2012, %v2895
      %v2897 = vpop.f32.mrb[0].mxu0
      %v2898 = vadd.f32 %v2012, %v2897
      %2899 = vmatprep.mubr.bf16.mxu0 0
      %2900 = vmatmul.mubr.bf16.gmra.mrb[0].mxu0 %v2061
      %v2901 = vpop.f32.mrb[0].mxu0
      %v2902 = vadd.f32 %v2017, %v2901
      %v2903 = vpop.f32.mrb[0].mxu0
      %v2904 = vadd.f32 %v2017, %v2903
      %v2905 = vpop.f32.mrb[0].mxu0
      %v2906 = vadd.f32 %v2022, %v2905
      %v2907 = vpop.f32.mrb[0].mxu0
      %v2908 = vadd.f32 %v2022, %v2907
      %2909 = vmatprep.mubr.bf16.mxu0 0
      %2910 = vmatmul.mubr.bf16.gmra.mrb[0].mxu0 %v2064
      %v2911 = vpop.f32.mrb[0].mxu0
      %v2912 = vadd.f32 %v2027, %v2911
      %v2913 = vpop.f32.mrb[0].mxu0
      %v2914 = vadd.f32 %v2027, %v2913
      %v2915 = vpop.f32.mrb[0].mxu0
      %v2916 = vadd.f32 %v2032, %v2915
      %v2917 = vpop.f32.mrb[0].mxu0
      %v2918 = vadd.f32 %v2032, %v2917
      %2919 = vmatprep.mubr.bf16.mxu0 0
      %2920 = vmatmul.mubr.bf16.gmra.mrb[0].mxu0 %v2067
      %v2921 = vpop.f32.mrb[0].mxu0
      %v2922 = vadd.f32 %v2037, %v2921
      %v2923 = vpop.f32.mrb[0].mxu0
      %v2924 = vadd.f32 %v2037, %v2923
      %v2925 = vpop.f32.mrb[0].mxu0
      %v2926 = vadd.f32 %v2042, %v2925
      %v2927 = vpop.f32.mrb[0].mxu0
      %v2928 = vadd.f32 %v2042, %v2927
      %2929 = vdwg.mxu0
      %v2930 = vmul.f32 %v2852, 0.5
      %v2931 = vmul.f32 %v2854, 0.5
      %v2932 = vmul.f32 %v2856, 0.5
      %v2933 = vmul.f32 %v2858, 0.5
      %v2934 = vmul.f32 %v2862, 0.5
      %v2935 = vmul.f32 %v2864, 0.5
      %v2936 = vmul.f32 %v2866, 0.5
      %v2937 = vmul.f32 %v2868, 0.5
      %v2938 = vmul.f32 %v2872, 0.5
      %v2939 = vmul.f32 %v2874, 0.5
      %v2940 = vmul.f32 %v2876, 0.5
      %v2941 = vmul.f32 %v2878, 0.5
      %v2942 = vmul.f32 %v2882, 0.5
      %v2943 = vmul.f32 %v2884, 0.5
      %v2944 = vmul.f32 %v2886, 0.5
      %v2945 = vmul.f32 %v2888, 0.5
      %v2946 = vmul.f32 %v2892, 0.5
      %v2947 = vmul.f32 %v2894, 0.5
      %v2948 = vmul.f32 %v2896, 0.5
      %v2949 = vmul.f32 %v2898, 0.5
      %v2950 = vmul.f32 %v2902, 0.5
      %v2951 = vmul.f32 %v2904, 0.5
      %v2952 = vmul.f32 %v2906, 0.5
      %v2953 = vmul.f32 %v2908, 0.5
      %v2954 = vmul.f32 %v2912, 0.5
      %v2955 = vmul.f32 %v2914, 0.5
      %v2956 = vmul.f32 %v2916, 0.5
      %v2957 = vmul.f32 %v2918, 0.5
      %v2958 = vmul.f32 %v2922, 0.5
      %v2959 = vmul.f32 %v2924, 0.5
      %v2960 = vmul.f32 %v2926, 0.5
      %v2961 = vmul.f32 %v2928, 0.5
      %v2962 = vmul.f32 %v2852, 0.70710677
      %v2963 = vmul.f32 %v2854, 0.70710677
      %v2964 = vmul.f32 %v2856, 0.70710677
      %v2965 = vmul.f32 %v2858, 0.70710677
      %v2966 = vmul.f32 %v2862, 0.70710677
      %v2967 = vmul.f32 %v2864, 0.70710677
      %v2968 = vmul.f32 %v2866, 0.70710677
      %v2969 = vmul.f32 %v2868, 0.70710677
      %v2970 = vmul.f32 %v2872, 0.70710677
      %v2971 = vmul.f32 %v2874, 0.70710677
      %v2972 = vmul.f32 %v2876, 0.70710677
      %v2973 = vmul.f32 %v2878, 0.70710677
      %v2974 = vmul.f32 %v2882, 0.70710677
      %v2975 = vmul.f32 %v2884, 0.70710677
      %v2976 = vmul.f32 %v2886, 0.70710677
      %v2977 = vmul.f32 %v2888, 0.70710677
      %v2978 = vmul.f32 %v2892, 0.70710677
      %v2979 = vmul.f32 %v2894, 0.70710677
      %v2980 = vmul.f32 %v2896, 0.70710677
      %v2981 = vmul.f32 %v2898, 0.70710677
      %v2982 = vmul.f32 %v2902, 0.70710677
      %v2983 = vmul.f32 %v2904, 0.70710677
      %v2984 = vmul.f32 %v2906, 0.70710677
      %v2985 = vmul.f32 %v2908, 0.70710677
      %v2986 = vmul.f32 %v2912, 0.70710677
      %v2987 = vmul.f32 %v2914, 0.70710677
      %v2988 = vmul.f32 %v2916, 0.70710677
      %v2989 = vmul.f32 %v2918, 0.70710677
      %v2990 = vmul.f32 %v2922, 0.70710677
      %v2991 = vmul.f32 %v2924, 0.70710677
      %v2992 = vmul.f32 %v2926, 0.70710677
      %v2993 = vmul.f32 %v2928, 0.70710677
      %v2994 = verf.f32.pop %v2962
      %v2995 = verf.f32.pop %v2963
      %v2996 = verf.f32.pop %v2964
      %v2997 = verf.f32.pop %v2965
      %v2998 = verf.f32.pop %v2966
      %v2999 = verf.f32.pop %v2967
      %v3000 = verf.f32.pop %v2968
      %v3001 = verf.f32.pop %v2969
      %v3002 = verf.f32.pop %v2970
      %v3003 = verf.f32.pop %v2971
      %v3004 = verf.f32.pop %v2972
      %v3005 = verf.f32.pop %v2973
      %v3006 = verf.f32.pop %v2974
      %v3007 = verf.f32.pop %v2975
      %v3008 = verf.f32.pop %v2976
      %v3009 = verf.f32.pop %v2977
      %v3010 = verf.f32.pop %v2978
      %v3011 = verf.f32.pop %v2979
      %v3012 = verf.f32.pop %v2980
      %v3013 = verf.f32.pop %v2981
      %v3014 = verf.f32.pop %v2982
      %v3015 = verf.f32.pop %v2983
      %v3016 = verf.f32.pop %v2984
      %v3017 = verf.f32.pop %v2985
      %v3018 = verf.f32.pop %v2986
      %v3019 = verf.f32.pop %v2987
      %v3020 = verf.f32.pop %v2988
      %v3021 = verf.f32.pop %v2989
      %v3022 = verf.f32.pop %v2990
      %v3023 = verf.f32.pop %v2991
      %v3024 = verf.f32.pop %v2992
      %v3025 = verf.f32.pop %v2993
      %v3026 = vadd.f32 %v2994, 1.0
      %v3027 = vadd.f32 %v2995, 1.0
      %v3028 = vadd.f32 %v2996, 1.0
      %v3029 = vadd.f32 %v2997, 1.0
      %v3030 = vadd.f32 %v2998, 1.0
      %v3031 = vadd.f32 %v2999, 1.0
      %v3032 = vadd.f32 %v3000, 1.0
      %v3033 = vadd.f32 %v3001, 1.0
      %v3034 = vadd.f32 %v3002, 1.0
      %v3035 = vadd.f32 %v3003, 1.0
      %v3036 = vadd.f32 %v3004, 1.0
      %v3037 = vadd.f32 %v3005, 1.0
      %v3038 = vadd.f32 %v3006, 1.0
      %v3039 = vadd.f32 %v3007, 1.0
      %v3040 = vadd.f32 %v3008, 1.0
      %v3041 = vadd.f32 %v3009, 1.0
      %v3042 = vadd.f32 %v3010, 1.0
      %v3043 = vadd.f32 %v3011, 1.0
      %v3044 = vadd.f32 %v3012, 1.0
      %v3045 = vadd.f32 %v3013, 1.0
      %v3046 = vadd.f32 %v3014, 1.0
      %v3047 = vadd.f32 %v3015, 1.0
      %v3048 = vadd.f32 %v3016, 1.0
      %v3049 = vadd.f32 %v3017, 1.0
      %v3050 = vadd.f32 %v3018, 1.0
      %v3051 = vadd.f32 %v3019, 1.0
      %v3052 = vadd.f32 %v3020, 1.0
      %v3053 = vadd.f32 %v3021, 1.0
      %v3054 = vadd.f32 %v3022, 1.0
      %v3055 = vadd.f32 %v3023, 1.0
      %v3056 = vadd.f32 %v3024, 1.0
      %v3057 = vadd.f32 %v3025, 1.0
      %v3058 = vmul.f32 %v2930, %v3026
      %v3059 = vmul.f32 %v2931, %v3027
      %v3060 = vmul.f32 %v2932, %v3028
      %v3061 = vmul.f32 %v2933, %v3029
      %v3062 = vmul.f32 %v2934, %v3030
      %v3063 = vmul.f32 %v2935, %v3031
      %v3064 = vmul.f32 %v2936, %v3032
      %v3065 = vmul.f32 %v2937, %v3033
      %v3066 = vmul.f32 %v2938, %v3034
      %v3067 = vmul.f32 %v2939, %v3035
      %v3068 = vmul.f32 %v2940, %v3036
      %v3069 = vmul.f32 %v2941, %v3037
      %v3070 = vmul.f32 %v2942, %v3038
      %v3071 = vmul.f32 %v2943, %v3039
      %v3072 = vmul.f32 %v2944, %v3040
      %v3073 = vmul.f32 %v2945, %v3041
      %v3074 = vmul.f32 %v2946, %v3042
      %v3075 = vmul.f32 %v2947, %v3043
      %v3076 = vmul.f32 %v2948, %v3044
      %v3077 = vmul.f32 %v2949, %v3045
      %v3078 = vmul.f32 %v2950, %v3046
      %v3079 = vmul.f32 %v2951, %v3047
      %v3080 = vmul.f32 %v2952, %v3048
      %v3081 = vmul.f32 %v2953, %v3049
      %v3082 = vmul.f32 %v2954, %v3050
      %v3083 = vmul.f32 %v2955, %v3051
      %v3084 = vmul.f32 %v2956, %v3052
      %v3085 = vmul.f32 %v2957, %v3053
      %v3086 = vmul.f32 %v2958, %v3054
      %v3087 = vmul.f32 %v2959, %v3055
      %v3088 = vmul.f32 %v2960, %v3056
      %v3089 = vmul.f32 %v2961, %v3057
      %3090 = vmatprep.subr.mxu0 %v3059
      %3091 = vmatpush1.msra.mxu0 %v3058
      %3092 = vmatprep.subr.mxu0 %v3061
      %3093 = vmatpush1.msra.mxu0 %v3060
      %3094 = vmatprep.subr.mxu0 %v3063
      %3095 = vmatpush1.msra.mxu0 %v3062
      %3096 = vmatprep.subr.mxu0 %v3065
      %3097 = vmatpush1.msra.mxu0 %v3064
      %3098 = vmatprep.subr.mxu0 %v3067
      %3099 = vmatpush1.msra.mxu0 %v3066
      %3100 = vmatprep.subr.mxu0 %v3069
      %3101 = vmatpush1.msra.mxu0 %v3068
      %3102 = vmatprep.subr.mxu0 %v3071
      %3103 = vmatpush1.msra.mxu0 %v3070
      %3104 = vmatprep.subr.mxu0 %v3073
      %3105 = vmatpush1.msra.mxu0 %v3072
      %3106 = vmatprep.subr.mxu0 %v3075
      %3107 = vmatpush1.msra.mxu0 %v3074
      %3108 = vmatprep.subr.mxu0 %v3077
      %3109 = vmatpush1.msra.mxu0 %v3076
      %3110 = vmatprep.subr.mxu0 %v3079
      %3111 = vmatpush1.msra.mxu0 %v3078
      %3112 = vmatprep.subr.mxu0 %v3081
      %3113 = vmatpush1.msra.mxu0 %v3080
      %3114 = vmatprep.subr.mxu0 %v3083
      %3115 = vmatpush1.msra.mxu0 %v3082
      %3116 = vmatprep.subr.mxu0 %v3085
      %3117 = vmatpush1.msra.mxu0 %v3084
      %3118 = vmatprep.subr.mxu0 %v3087
      %3119 = vmatpush1.msra.mxu0 %v3086
      %3120 = vmatprep.subr.mxu0 %v3089
      %3121 = vmatpush1.msra.mxu0 %v3088
      %3122 = vmatprep.subr.mxu0 0.0
      %3123 = vmatpush1.msra.mxu0 0.0
      %3124 = vmatprep.subr.mxu0 0.0
      %3125 = vmatpush1.msra.mxu0 0.0
      %3126 = vmatprep.subr.mxu0 0.0
      %3127 = vmatpush1.msra.mxu0 0.0
      %3128 = vmatprep.subr.mxu0 0.0
      %3129 = vmatpush1.msra.mxu0 0.0
      %3130 = vmatprep.subr.mxu0 0.0
      %3131 = vmatpush1.msra.mxu0 0.0
      %3132 = vmatprep.subr.mxu0 0.0
      %3133 = vmatpush1.msra.mxu0 0.0
      %3134 = vmatprep.subr.mxu0 0.0
      %3135 = vmatpush1.msra.mxu0 0.0
      %3136 = vmatprep.subr.mxu0 0.0
      %3137 = vmatpush1.msra.mxu0 0.0
      %3138 = vmatprep.subr.mxu0 0.0
      %3139 = vmatpush1.msra.mxu0 0.0
      %3140 = vmatprep.subr.mxu0 0.0
      %3141 = vmatpush1.msra.mxu0 0.0
      %3142 = vmatprep.subr.mxu0 0.0
      %3143 = vmatpush1.msra.mxu0 0.0
      %3144 = vmatprep.subr.mxu0 0.0
      %3145 = vmatpush1.msra.mxu0 0.0
      %3146 = vmatprep.subr.mxu0 0.0
      %3147 = vmatpush1.msra.mxu0 0.0
      %3148 = vmatprep.subr.mxu0 0.0
      %3149 = vmatpush1.msra.mxu0 0.0
      %3150 = vmatprep.subr.mxu0 0.0
      %3151 = vmatpush1.msra.mxu0 0.0
      %3152 = vmatprep.subr.mxu0 0.0
      %3153 = vmatpush1.msra.mxu0 0.0
      %3154 = vmatprep.mubr.f32.mxu0 0.0
      %3155 = vmatmul.mubr.f32.gmra.mrb[0].mxu0 %v1950
      %v3156 = vpop.f32.mrb[0].mxu0
      %v3157 = vadd.f32 %v2350, %v3156
      %v3158 = vpop.f32.mrb[0].mxu0
      %v3159 = vadd.f32 %v2350, %v3158
      %3160 = vdwg.mxu0
      %v3163 = vcombine.low %v3157, %v3159
      %v3165 = vunpack.c.l.s4 1966171168
      %v3166 = vunpack.c.0.s8 %v3165
      %v3167 = vlaneseq
      %v3168 = vshrl.u32 %v3167, 7
      %v3169 = vsub.s32 %v3166, %v3168
      %v3170 = vrot.slane %v3163, %v3169
      %v3172 = vunpack.c.l.s4 1966171168
      %v3173 = vunpack.c.0.s8 %v3172
      %v3174 = vlaneseq
      %v3175 = vshrl.u32 %v3174, 7
      %v3176 = vsub.s32 %v3173, %v3175
      %v3177 = vrot.slane %v3170, %v3176
      %s3179 = scalar_lea.vmem %s366, 4
      %3180 = vst.msk [vmem:[%s3179] sm:$0x3] %vm2443, %v3177
      %v3181 = vpack.c.bf16 %v1912, %v1910
      %v3182 = vpack.c.bf16 %v1913, %v1911
      %v3183 = vpack.c.bf16 %v1916, %v1914
      %v3184 = vpack.c.bf16 %v1917, %v1915
      %3185 = vmatprep.subr.bf16.mxu0 %v3182
      %3186 = vmatpush1.bf16.msra.mxu0 %v3181
      %3187 = vmatprep.subr.bf16.mxu0 %v3184
      %3188 = vmatpush1.bf16.msra.mxu0 %v3183
      %3189 = vmatprep.subr.bf16.mxu0 0
      %3190 = vmatpush1.bf16.msra.mxu0 0
      %3191 = vmatprep.subr.bf16.mxu0 0
      %3192 = vmatpush1.bf16.msra.mxu0 0
      %3193 = vmatprep.subr.bf16.mxu0 0
      %3194 = vmatpush1.bf16.msra.mxu0 0
      %3195 = vmatprep.subr.bf16.mxu0 0
      %3196 = vmatpush1.bf16.msra.mxu0 0
      %3197 = vmatprep.subr.bf16.mxu0 0
      %3198 = vmatpush1.bf16.msra.mxu0 0
      %3199 = vmatprep.subr.bf16.mxu0 0
      %3200 = vmatpush1.bf16.msra.mxu0 0
      %3201 = vmatprep.subr.bf16.mxu0 0
      %3202 = vmatpush1.bf16.msra.mxu0 0
      %3203 = vmatprep.subr.bf16.mxu0 0
      %3204 = vmatpush1.bf16.msra.mxu0 0
      %3205 = vmatprep.subr.bf16.mxu0 0
      %3206 = vmatpush1.bf16.msra.mxu0 0
      %3207 = vmatprep.subr.bf16.mxu0 0
      %3208 = vmatpush1.bf16.msra.mxu0 0
      %3209 = vmatprep.subr.bf16.mxu0 0
      %3210 = vmatpush1.bf16.msra.mxu0 0
      %3211 = vmatprep.subr.bf16.mxu0 0
      %3212 = vmatpush1.bf16.msra.mxu0 0
      %3213 = vmatprep.subr.bf16.mxu0 0
      %3214 = vmatpush1.bf16.msra.mxu0 0
      %3215 = vmatprep.subr.bf16.mxu0 0
      %3216 = vmatpush1.bf16.msra.mxu0 0
      %3217 = vmatprep.mubr.bf16.mxu0 0
      %3218 = vmatmul.mubr.bf16.gmra.mrb[0].mxu0 %v2046
      %v3219 = vpop.f32.mrb[0].mxu0
      %v3220 = vadd.f32 %v1967, %v3219
      %v3221 = vpop.f32.mrb[0].mxu0
      %v3222 = vadd.f32 %v1967, %v3221
      %v3223 = vpop.f32.mrb[0].mxu0
      %v3224 = vadd.f32 %v1972, %v3223
      %v3225 = vpop.f32.mrb[0].mxu0
      %v3226 = vadd.f32 %v1972, %v3225
      %3227 = vmatprep.mubr.bf16.mxu0 0
      %3228 = vmatmul.mubr.bf16.gmra.mrb[0].mxu0 %v2049
      %v3229 = vpop.f32.mrb[0].mxu0
      %v3230 = vadd.f32 %v1977, %v3229
      %v3231 = vpop.f32.mrb[0].mxu0
      %v3232 = vadd.f32 %v1977, %v3231
      %v3233 = vpop.f32.mrb[0].mxu0
      %v3234 = vadd.f32 %v1982, %v3233
      %v3235 = vpop.f32.mrb[0].mxu0
      %v3236 = vadd.f32 %v1982, %v3235
      %3237 = vmatprep.mubr.bf16.mxu0 0
      %3238 = vmatmul.mubr.bf16.gmra.mrb[0].mxu0 %v2052
      %v3239 = vpop.f32.mrb[0].mxu0
      %v3240 = vadd.f32 %v1987, %v3239
      %v3241 = vpop.f32.mrb[0].mxu0
      %v3242 = vadd.f32 %v1987, %v3241
      %v3243 = vpop.f32.mrb[0].mxu0
      %v3244 = vadd.f32 %v1992, %v3243
      %v3245 = vpop.f32.mrb[0].mxu0
      %v3246 = vadd.f32 %v1992, %v3245
      %3247 = vmatprep.mubr.bf16.mxu0 0
      %3248 = vmatmul.mubr.bf16.gmra.mrb[0].mxu0 %v2055
      %v3249 = vpop.f32.mrb[0].mxu0
      %v3250 = vadd.f32 %v1997, %v3249
      %v3251 = vpop.f32.mrb[0].mxu0
      %v3252 = vadd.f32 %v1997, %v3251
      %v3253 = vpop.f32.mrb[0].mxu0
      %v3254 = vadd.f32 %v2002, %v3253
      %v3255 = vpop.f32.mrb[0].mxu0
      %v3256 = vadd.f32 %v2002, %v3255
      %3257 = vmatprep.mubr.bf16.mxu0 0
      %3258 = vmatmul.mubr.bf16.gmra.mrb[0].mxu0 %v2058
      %v3259 = vpop.f32.mrb[0].mxu0
      %v3260 = vadd.f32 %v2007, %v3259
      %v3261 = vpop.f32.mrb[0].mxu0
      %v3262 = vadd.f32 %v2007, %v3261
      %v3263 = vpop.f32.mrb[0].mxu0
      %v3264 = vadd.f32 %v2012, %v3263
      %v3265 = vpop.f32.mrb[0].mxu0
      %v3266 = vadd.f32 %v2012, %v3265
      %3267 = vmatprep.mubr.bf16.mxu0 0
      %3268 = vmatmul.mubr.bf16.gmra.mrb[0].mxu0 %v2061
      %v3269 = vpop.f32.mrb[0].mxu0
      %v3270 = vadd.f32 %v2017, %v3269
      %v3271 = vpop.f32.mrb[0].mxu0
      %v3272 = vadd.f32 %v2017, %v3271
      %v3273 = vpop.f32.mrb[0].mxu0
      %v3274 = vadd.f32 %v2022, %v3273
      %v3275 = vpop.f32.mrb[0].mxu0
      %v3276 = vadd.f32 %v2022, %v3275
      %3277 = vmatprep.mubr.bf16.mxu0 0
      %3278 = vmatmul.mubr.bf16.gmra.mrb[0].mxu0 %v2064
      %v3279 = vpop.f32.mrb[0].mxu0
      %v3280 = vadd.f32 %v2027, %v3279
      %v3281 = vpop.f32.mrb[0].mxu0
      %v3282 = vadd.f32 %v2027, %v3281
      %v3283 = vpop.f32.mrb[0].mxu0
      %v3284 = vadd.f32 %v2032, %v3283
      %v3285 = vpop.f32.mrb[0].mxu0
      %v3286 = vadd.f32 %v2032, %v3285
      %3287 = vmatprep.mubr.bf16.mxu0 0
      %3288 = vmatmul.mubr.bf16.gmra.mrb[0].mxu0 %v2067
      %v3289 = vpop.f32.mrb[0].mxu0
      %v3290 = vadd.f32 %v2037, %v3289
      %v3291 = vpop.f32.mrb[0].mxu0
      %v3292 = vadd.f32 %v2037, %v3291
      %v3293 = vpop.f32.mrb[0].mxu0
      %v3294 = vadd.f32 %v2042, %v3293
      %v3295 = vpop.f32.mrb[0].mxu0
      %v3296 = vadd.f32 %v2042, %v3295
      %3297 = vdwg.mxu0
      %v3298 = vmul.f32 %v3220, 0.5
      %v3299 = vmul.f32 %v3222, 0.5
      %v3300 = vmul.f32 %v3224, 0.5
      %v3301 = vmul.f32 %v3226, 0.5
      %v3302 = vmul.f32 %v3230, 0.5
      %v3303 = vmul.f32 %v3232, 0.5
      %v3304 = vmul.f32 %v3234, 0.5
      %v3305 = vmul.f32 %v3236, 0.5
      %v3306 = vmul.f32 %v3240, 0.5
      %v3307 = vmul.f32 %v3242, 0.5
      %v3308 = vmul.f32 %v3244, 0.5
      %v3309 = vmul.f32 %v3246, 0.5
      %v3310 = vmul.f32 %v3250, 0.5
      %v3311 = vmul.f32 %v3252, 0.5
      %v3312 = vmul.f32 %v3254, 0.5
      %v3313 = vmul.f32 %v3256, 0.5
      %v3314 = vmul.f32 %v3260, 0.5
      %v3315 = vmul.f32 %v3262, 0.5
      %v3316 = vmul.f32 %v3264, 0.5
      %v3317 = vmul.f32 %v3266, 0.5
      %v3318 = vmul.f32 %v3270, 0.5
      %v3319 = vmul.f32 %v3272, 0.5
      %v3320 = vmul.f32 %v3274, 0.5
      %v3321 = vmul.f32 %v3276, 0.5
      %v3322 = vmul.f32 %v3280, 0.5
      %v3323 = vmul.f32 %v3282, 0.5
      %v3324 = vmul.f32 %v3284, 0.5
      %v3325 = vmul.f32 %v3286, 0.5
      %v3326 = vmul.f32 %v3290, 0.5
      %v3327 = vmul.f32 %v3292, 0.5
      %v3328 = vmul.f32 %v3294, 0.5
      %v3329 = vmul.f32 %v3296, 0.5
      %v3330 = vmul.f32 %v3220, 0.70710677
      %v3331 = vmul.f32 %v3222, 0.70710677
      %v3332 = vmul.f32 %v3224, 0.70710677
      %v3333 = vmul.f32 %v3226, 0.70710677
      %v3334 = vmul.f32 %v3230, 0.70710677
      %v3335 = vmul.f32 %v3232, 0.70710677
      %v3336 = vmul.f32 %v3234, 0.70710677
      %v3337 = vmul.f32 %v3236, 0.70710677
      %v3338 = vmul.f32 %v3240, 0.70710677
      %v3339 = vmul.f32 %v3242, 0.70710677
      %v3340 = vmul.f32 %v3244, 0.70710677
      %v3341 = vmul.f32 %v3246, 0.70710677
      %v3342 = vmul.f32 %v3250, 0.70710677
      %v3343 = vmul.f32 %v3252, 0.70710677
      %v3344 = vmul.f32 %v3254, 0.70710677
      %v3345 = vmul.f32 %v3256, 0.70710677
      %v3346 = vmul.f32 %v3260, 0.70710677
      %v3347 = vmul.f32 %v3262, 0.70710677
      %v3348 = vmul.f32 %v3264, 0.70710677
      %v3349 = vmul.f32 %v3266, 0.70710677
      %v3350 = vmul.f32 %v3270, 0.70710677
      %v3351 = vmul.f32 %v3272, 0.70710677
      %v3352 = vmul.f32 %v3274, 0.70710677
      %v3353 = vmul.f32 %v3276, 0.70710677
      %v3354 = vmul.f32 %v3280, 0.70710677
      %v3355 = vmul.f32 %v3282, 0.70710677
      %v3356 = vmul.f32 %v3284, 0.70710677
      %v3357 = vmul.f32 %v3286, 0.70710677
      %v3358 = vmul.f32 %v3290, 0.70710677
      %v3359 = vmul.f32 %v3292, 0.70710677
      %v3360 = vmul.f32 %v3294, 0.70710677
      %v3361 = vmul.f32 %v3296, 0.70710677
      %v3362 = verf.f32.pop %v3330
      %v3363 = verf.f32.pop %v3331
      %v3364 = verf.f32.pop %v3332
      %v3365 = verf.f32.pop %v3333
      %v3366 = verf.f32.pop %v3334
      %v3367 = verf.f32.pop %v3335
      %v3368 = verf.f32.pop %v3336
      %v3369 = verf.f32.pop %v3337
      %v3370 = verf.f32.pop %v3338
      %v3371 = verf.f32.pop %v3339
      %v3372 = verf.f32.pop %v3340
      %v3373 = verf.f32.pop %v3341
      %v3374 = verf.f32.pop %v3342
      %v3375 = verf.f32.pop %v3343
      %v3376 = verf.f32.pop %v3344
      %v3377 = verf.f32.pop %v3345
      %v3378 = verf.f32.pop %v3346
      %v3379 = verf.f32.pop %v3347
      %v3380 = verf.f32.pop %v3348
      %v3381 = verf.f32.pop %v3349
      %v3382 = verf.f32.pop %v3350
      %v3383 = verf.f32.pop %v3351
      %v3384 = verf.f32.pop %v3352
      %v3385 = verf.f32.pop %v3353
      %v3386 = verf.f32.pop %v3354
      %v3387 = verf.f32.pop %v3355
      %v3388 = verf.f32.pop %v3356
      %v3389 = verf.f32.pop %v3357
      %v3390 = verf.f32.pop %v3358
      %v3391 = verf.f32.pop %v3359
      %v3392 = verf.f32.pop %v3360
      %v3393 = verf.f32.pop %v3361
      %v3394 = vadd.f32 %v3362, 1.0
      %v3395 = vadd.f32 %v3363, 1.0
      %v3396 = vadd.f32 %v3364, 1.0
      %v3397 = vadd.f32 %v3365, 1.0
      %v3398 = vadd.f32 %v3366, 1.0
      %v3399 = vadd.f32 %v3367, 1.0
      %v3400 = vadd.f32 %v3368, 1.0
      %v3401 = vadd.f32 %v3369, 1.0
      %v3402 = vadd.f32 %v3370, 1.0
      %v3403 = vadd.f32 %v3371, 1.0
      %v3404 = vadd.f32 %v3372, 1.0
      %v3405 = vadd.f32 %v3373, 1.0
      %v3406 = vadd.f32 %v3374, 1.0
      %v3407 = vadd.f32 %v3375, 1.0
      %v3408 = vadd.f32 %v3376, 1.0
      %v3409 = vadd.f32 %v3377, 1.0
      %v3410 = vadd.f32 %v3378, 1.0
      %v3411 = vadd.f32 %v3379, 1.0
      %v3412 = vadd.f32 %v3380, 1.0
      %v3413 = vadd.f32 %v3381, 1.0
      %v3414 = vadd.f32 %v3382, 1.0
      %v3415 = vadd.f32 %v3383, 1.0
      %v3416 = vadd.f32 %v3384, 1.0
      %v3417 = vadd.f32 %v3385, 1.0
      %v3418 = vadd.f32 %v3386, 1.0
      %v3419 = vadd.f32 %v3387, 1.0
      %v3420 = vadd.f32 %v3388, 1.0
      %v3421 = vadd.f32 %v3389, 1.0
      %v3422 = vadd.f32 %v3390, 1.0
      %v3423 = vadd.f32 %v3391, 1.0
      %v3424 = vadd.f32 %v3392, 1.0
      %v3425 = vadd.f32 %v3393, 1.0
      %v3426 = vmul.f32 %v3298, %v3394
      %v3427 = vmul.f32 %v3299, %v3395
      %v3428 = vmul.f32 %v3300, %v3396
      %v3429 = vmul.f32 %v3301, %v3397
      %v3430 = vmul.f32 %v3302, %v3398
      %v3431 = vmul.f32 %v3303, %v3399
      %v3432 = vmul.f32 %v3304, %v3400
      %v3433 = vmul.f32 %v3305, %v3401
      %v3434 = vmul.f32 %v3306, %v3402
      %v3435 = vmul.f32 %v3307, %v3403
      %v3436 = vmul.f32 %v3308, %v3404
      %v3437 = vmul.f32 %v3309, %v3405
      %v3438 = vmul.f32 %v3310, %v3406
      %v3439 = vmul.f32 %v3311, %v3407
      %v3440 = vmul.f32 %v3312, %v3408
      %v3441 = vmul.f32 %v3313, %v3409
      %v3442 = vmul.f32 %v3314, %v3410
      %v3443 = vmul.f32 %v3315, %v3411
      %v3444 = vmul.f32 %v3316, %v3412
      %v3445 = vmul.f32 %v3317, %v3413
      %v3446 = vmul.f32 %v3318, %v3414
      %v3447 = vmul.f32 %v3319, %v3415
      %v3448 = vmul.f32 %v3320, %v3416
      %v3449 = vmul.f32 %v3321, %v3417
      %v3450 = vmul.f32 %v3322, %v3418
      %v3451 = vmul.f32 %v3323, %v3419
      %v3452 = vmul.f32 %v3324, %v3420
      %v3453 = vmul.f32 %v3325, %v3421
      %v3454 = vmul.f32 %v3326, %v3422
      %v3455 = vmul.f32 %v3327, %v3423
      %v3456 = vmul.f32 %v3328, %v3424
      %v3457 = vmul.f32 %v3329, %v3425
      %3458 = vmatprep.subr.mxu0 %v3427
      %3459 = vmatpush1.msra.mxu0 %v3426
      %3460 = vmatprep.subr.mxu0 %v3429
      %3461 = vmatpush1.msra.mxu0 %v3428
      %3462 = vmatprep.subr.mxu0 %v3431
      %3463 = vmatpush1.msra.mxu0 %v3430
      %3464 = vmatprep.subr.mxu0 %v3433
      %3465 = vmatpush1.msra.mxu0 %v3432
      %3466 = vmatprep.subr.mxu0 %v3435
      %3467 = vmatpush1.msra.mxu0 %v3434
      %3468 = vmatprep.subr.mxu0 %v3437
      %3469 = vmatpush1.msra.mxu0 %v3436
      %3470 = vmatprep.subr.mxu0 %v3439
      %3471 = vmatpush1.msra.mxu0 %v3438
      %3472 = vmatprep.subr.mxu0 %v3441
      %3473 = vmatpush1.msra.mxu0 %v3440
      %3474 = vmatprep.subr.mxu0 %v3443
      %3475 = vmatpush1.msra.mxu0 %v3442
      %3476 = vmatprep.subr.mxu0 %v3445
      %3477 = vmatpush1.msra.mxu0 %v3444
      %3478 = vmatprep.subr.mxu0 %v3447
      %3479 = vmatpush1.msra.mxu0 %v3446
      %3480 = vmatprep.subr.mxu0 %v3449
      %3481 = vmatpush1.msra.mxu0 %v3448
      %3482 = vmatprep.subr.mxu0 %v3451
      %3483 = vmatpush1.msra.mxu0 %v3450
      %3484 = vmatprep.subr.mxu0 %v3453
      %3485 = vmatpush1.msra.mxu0 %v3452
      %3486 = vmatprep.subr.mxu0 %v3455
      %3487 = vmatpush1.msra.mxu0 %v3454
      %3488 = vmatprep.subr.mxu0 %v3457
      %3489 = vmatpush1.msra.mxu0 %v3456
      %3490 = vmatprep.subr.mxu0 0.0
      %3491 = vmatpush1.msra.mxu0 0.0
      %3492 = vmatprep.subr.mxu0 0.0
      %3493 = vmatpush1.msra.mxu0 0.0
      %3494 = vmatprep.subr.mxu0 0.0
      %3495 = vmatpush1.msra.mxu0 0.0
      %3496 = vmatprep.subr.mxu0 0.0
      %3497 = vmatpush1.msra.mxu0 0.0
      %3498 = vmatprep.subr.mxu0 0.0
      %3499 = vmatpush1.msra.mxu0 0.0
      %3500 = vmatprep.subr.mxu0 0.0
      %3501 = vmatpush1.msra.mxu0 0.0
      %3502 = vmatprep.subr.mxu0 0.0
      %3503 = vmatpush1.msra.mxu0 0.0
      %3504 = vmatprep.subr.mxu0 0.0
      %3505 = vmatpush1.msra.mxu0 0.0
      %3506 = vmatprep.subr.mxu0 0.0
      %3507 = vmatpush1.msra.mxu0 0.0
      %3508 = vmatprep.subr.mxu0 0.0
      %3509 = vmatpush1.msra.mxu0 0.0
      %3510 = vmatprep.subr.mxu0 0.0
      %3511 = vmatpush1.msra.mxu0 0.0
      %3512 = vmatprep.subr.mxu0 0.0
      %3513 = vmatpush1.msra.mxu0 0.0
      %3514 = vmatprep.subr.mxu0 0.0
      %3515 = vmatpush1.msra.mxu0 0.0
      %3516 = vmatprep.subr.mxu0 0.0
      %3517 = vmatpush1.msra.mxu0 0.0
      %3518 = vmatprep.subr.mxu0 0.0
      %3519 = vmatpush1.msra.mxu0 0.0
      %3520 = vmatprep.subr.mxu0 0.0
      %3521 = vmatpush1.msra.mxu0 0.0
      %3522 = vmatprep.mubr.f32.mxu0 0.0
      %3523 = vmatmul.mubr.f32.gmra.mrb[0].mxu0 %v1950
      %v3524 = vpop.f32.mrb[0].mxu0
      %v3525 = vadd.f32 %v2350, %v3524
      %v3526 = vpop.f32.mrb[0].mxu0
      %v3527 = vadd.f32 %v2350, %v3526
      %3528 = vdwg.mxu0
      %v3531 = vcombine.low %v3525, %v3527
      %v3533 = vunpack.c.l.s4 1966171168
      %v3534 = vunpack.c.0.s8 %v3533
      %v3535 = vlaneseq
      %v3536 = vshrl.u32 %v3535, 7
      %v3537 = vsub.s32 %v3534, %v3536
      %v3538 = vrot.slane %v3531, %v3537
      %v3540 = vunpack.c.l.s4 1966171168
      %v3541 = vunpack.c.0.s8 %v3540
      %v3542 = vlaneseq
      %v3543 = vshrl.u32 %v3542, 7
      %v3544 = vsub.s32 %v3541, %v3543
      %v3545 = vrot.slane %v3538, %v3544
      %s3547 = scalar_lea.vmem %s366, 6
      %3548 = vst.msk [vmem:[%s3547] sm:$0x3] %vm2443, %v3545
      %s3549 = smul.u32 4, %s23
      %p3550 = scmp.lt.s32.totalorder %s3549, 7
      %s3551 = scalar_select %p3550, %s3549, 7
      %s3552 = smul.addr %s3551, 2
      %s3553 = scalar_lea.vmem %s10, %s3552
      // Predicated region
      $region61: #{fno2d_forward_packed.1} parent=59 // pred_check
        %p3554 = pneg %p256
      $region62: #{fno2d_forward_packed.1} parent=59 // pred_check_branch
        %3556 = sbr.rel (%p3554) target = $region64
      $region63: #{fno2d_forward_packed.1} parent=59 // pred_region
        %s3557 = smul.u32 4, %s23
      $region64: #{fno2d_forward_packed.1} parent=59 // pred_fallthru
        _
    $region60: #{fno2d_forward_packed.1} parent=5 // pred_fallthru
      _
    %p3558 = scmp.le.s32.totalorder 2, %s18
    // Predicated region
    $region65: #{fno2d_forward_packed.1} parent=5 // pred_check
      %p3559 = pneg %p3558
    $region66: #{fno2d_forward_packed.1} parent=5 // pred_check_branch
      %3561 = sbr.rel (%p3559) target = $region68
    $region67: #{fno2d_forward_packed.1} parent=5 // pred_region
      %s3562 = ssub.s32 %s18, 2
      // Predicated region
      $region69: #{fno2d_forward_packed.1} parent=67 // pred_check
        %p3563 = pneg %p262
      $region70: #{fno2d_forward_packed.1} parent=67 // pred_check_branch
        %3565 = sbr.rel (%p3563) target = $region72
      $region71: #{fno2d_forward_packed.1} parent=67 // pred_region
        %s3566 = smul.u32 4, %s24
        %p3567 = scmp.lt.s32.totalorder %s3566, 7
        %s3568 = scalar_select %p3567, %s3566, 7
        %s3569 = smul.addr %s3568, 2
        %s3570 = scalar_lea.vmem %s10, %s3569
      $region72: #{fno2d_forward_packed.1} parent=67 // pred_fallthru
        _
    $region68: #{fno2d_forward_packed.1} parent=5 // pred_fallthru
      _
  $region6: #{fno2d_forward_packed.1} parent=0 // loop_footer
    %s22 = sadd.s32 1, %s18
  $region7: #{fno2d_forward_packed.1} parent=0 // loop_footer_branch
    %17 = sbr.rel target = $region3
  $region8: #{fno2d_forward_packed.1} parent=0 // loop_exit
    _

</llo_original>
